<compile_context>
chip_gen: v7x
topology: tpu7x:2x2x1
jax: 0.10.0
libtpu: 0.0.40
codegen_flags: <defaults>
</compile_context>

<pallas_src>
import functools

import jax
import jax.numpy as jnp
from jax import lax
from jax.experimental import pallas as pl
from jax.experimental.pallas import tpu as pltpu


def _cvti_kernel(body_ref, halo_ref, w_ref, e_ref, b_ref, o_ref, slab_ref, *,
                 after, cin, cout, tile_h, width, group):
    """One (batch item, row tile) step of the fused upsample+conv."""
    wp = width + 2
    w2 = 2 * width
    w4 = 4 * width

    # ---- 1. Flattened bf16 slab: slab[c, r*Wp + col] = xpad_lowres[c, r, col].
    # body block holds rows [r*T, (r+1)*T) of the padded low-res input, the halo
    # block the next 8 rows (we use 3: 2 real halo rows + 1 over-read guard row
    # that only ever feeds the never-stored garbage columns j in {W, W+1}).
    for i in range(tile_h):
        slab_ref[:, i * wp:(i + 1) * wp] = body_ref[:, i:i + 1, :][:, 0, :]
    for j in range(3):
        slab_ref[:, (tile_h + j) * wp:(tile_h + j + 1) * wp] = \
            halo_ref[:, j:j + 1, :][:, 0, :]

    bias = b_ref[...]                     # (4*Cout, 1) f32, hoisted out of loops

    n_groups = tile_h // group
    for g in range(n_groups):
        base = g * group

        # ---- 2. Sub-pixel conv: 9 shifted-slice matmuls, f32 accumulation.
        # acc[(b,a,o)-row, q = i*Wp + j] = conv value for output pixel
        # (o, 2*(base+i)+a, 2*j+b); columns with j >= W are garbage and unused.
        acc = None
        for t in range(3):
            for s in range(3):
                start = (base + t) * wp + s
                rhs = slab_ref[:, start:start + group * wp]     # (Cin, G*Wp) bf16
                part = jnp.dot(w_ref[t * 3 + s], rhs,
                               preferred_element_type=jnp.float32)
                acc = part if acc is None else acc + part
        acc = acc + bias
        if after == "Tanh":
            acc = jnp.tanh(acc)
        elif after == "sigmoid":
            acc = jax.nn.sigmoid(acc)
        # TODO(synk): after == 'BN' (BatchNorm2d) needs cross-batch statistics;
        # not fused here (the wrapper rejects it).
        accb = acc.astype(jnp.bfloat16)

        # ---- 3. Column-parity interleave (exact 0/1 bf16 matmuls) + store.
        # acc rows are ordered (b, a, cout): rows [0, 2*Cout) are b=0 (even
        # output columns), rows [2*Cout, 4*Cout) are b=1 (odd columns).
        for ii in range(group):
            i = base + ii
            zz = accb[:, ii * wp:ii * wp + width]               # (4*Cout, W)
            c_all = (jnp.dot(zz[0:2 * cout], e_ref[0],
                             preferred_element_type=jnp.float32) +
                     jnp.dot(zz[2 * cout:4 * cout], e_ref[1],
                             preferred_element_type=jnp.float32))
            # c_all: (2*Cout, 2W), rows ordered (a, cout).
            o_ref[:, i * w4:i * w4 + w2] = c_all[0:cout].astype(o_ref.dtype)
            o_ref[:, i * w4 + w2:i * w4 + w4] = \
                c_all[cout:2 * cout].astype(o_ref.dtype)


def _pick_tile_h(H, W, Cin, Cout, budget_bytes=20 * 1024 * 1024, max_tile=32):
    """Largest row tile (multiple of 8, divides H, <= max_tile) in the budget."""
    if H % 8 != 0:
        raise ValueError("CvTi Pallas kernel requires H to be a multiple of 8")
    wp = W + 2
    best = 8
    th = 8
    while th <= min(H, max_tile):
        if H % th == 0:
            use = (2 * Cin * th * wp * 2 +         # double-buffered bf16 body block
                   2 * Cin * 8 * wp * 2 +          # double-buffered halo block
                   2 * Cout * th * 4 * W * 4 +     # double-buffered f32 output block
                   Cin * (th + 3) * wp * 2 +       # bf16 slab scratch
                   2 * (9 * 4 * Cout * Cin * 2 + 2 * W * 2 * W * 2 + 4 * Cout * 4))
            if use <= budget_bytes:
                best = th
        th += 8
    return best


def _pick_group(tile_h, wp, cout, acc_budget_bytes=96 * 1024):
    """Rows per inner matmul group: biggest that keeps the f32 acc vreg-sized."""
    for g in (8, 4, 2, 1):
        if tile_h % g == 0 and 4 * cout * g * wp * 4 <= acc_budget_bytes:
            return g
    return 1


def cvti_forward(x_nchw, weight, bias, *, before=None, after=False):
    """Forward of CvTi.

    x_nchw : (N, Cin, H, W)  float32 (PyTorch NCHW convention)
    weight : (Cout, Cin, 3, 3) (PyTorch OIHW convention)
    bias   : (Cout,)
    Returns (N, Cout, 2H, 2W) in NCHW (float32; internally bf16 MXU matmuls).
    """
    if after == "BN":
        # TODO(synk): BatchNorm2d needs batch/running statistics (cross-batch
        # reduction + affine); not implemented in this fused kernel.
        raise NotImplementedError("CvTi Pallas kernel: after='BN' not supported")

    N, Cin, H, W = x_nchw.shape
    Cout = weight.shape[0]
    if W % 4 != 0:
        raise ValueError("CvTi Pallas kernel requires W to be a multiple of 4")

    TILE_H = _pick_tile_h(H, W, Cin, Cout)
    R = H // TILE_H
    Wp = W + 2
    GROUP = _pick_group(TILE_H, Wp, Cout)

    # 'before' activation fused with the pad + bf16 cast in the wrapper.
    x = x_nchw
    if before == "ReLU":
        x = jnp.maximum(x, 0.0)
    elif before == "LReLU":
        x = jnp.where(x >= 0.0, x, 0.2 * x)
    # Pad: 1 row top, TILE_H-1 rows bottom (so body/halo blocks tile the padded
    # array exactly), 1 column left/right.  Stored in HBM as bf16.
    xp = jnp.pad(x.astype(jnp.bfloat16), ((0, 0), (0, 0), (1, TILE_H - 1), (1, 1)))

    # --- sub-pixel (4 phase) per-tap weight pre-combination -----------------
    # For output parity a and kernel row ky, the low-res tap row offset is
    # t = (a + ky - 1)//2 + 1 (same rule for columns with b, kx).  Taps a
    # parity does not touch stay zero.  Row order inside 4*Cout: (b, a, cout).
    w32 = weight.astype(jnp.float32)
    wt = jnp.zeros((3, 3, 2, 2, Cout, Cin), jnp.float32)     # [t, s, b, a, o, c]
    for a in (0, 1):
        for b in (0, 1):
            for ky in range(3):
                t = (a + ky - 1) // 2 + 1
                for kx in range(3):
                    s = (b + kx - 1) // 2 + 1
                    wt = wt.at[t, s, b, a].add(w32[:, :, ky, kx])
    wtap = wt.reshape(9, 4 * Cout, Cin).astype(jnp.bfloat16)

    bcol = jnp.tile(bias.astype(jnp.float32), 4).reshape(4 * Cout, 1)

    # Exact 0/1 interleave matrices (resident bf16 inputs): scatter a W-wide row
    # into the even / odd lanes of a 2W-wide row.
    jj = jnp.arange(W)
    e = jnp.zeros((2, W, 2 * W), jnp.float32)
    e = e.at[0, jj, 2 * jj].set(1.0)
    e = e.at[1, jj, 2 * jj + 1].set(1.0)
    e = e.astype(jnp.bfloat16)

    kernel = functools.partial(_cvti_kernel, after=after, cin=Cin, cout=Cout,
                               tile_h=TILE_H, width=W, group=GROUP)

    out = pl.pallas_call(
        kernel,
        out_shape=jax.ShapeDtypeStruct((N, Cout, H * 4 * W), jnp.float32),
        grid_spec=pltpu.PrefetchScalarGridSpec(
            num_scalar_prefetch=0,
            grid=(N, R),
            in_specs=[
                # body rows of the padded input (TILE_H rows)
                pl.BlockSpec((pl.Squeezed(), Cin, TILE_H, Wp),
                             lambda n, r: (n, 0, r, 0)),
                # halo: next 8 padded rows (only the first 3 are used)
                pl.BlockSpec((pl.Squeezed(), Cin, 8, Wp),
                             lambda n, r: (n, 0, (r + 1) * (TILE_H // 8), 0)),
                # pre-combined per-tap sub-pixel weights (resident)
                pl.BlockSpec((9, 4 * Cout, Cin), lambda n, r: (0, 0, 0)),
                # even/odd interleave matrices (resident)
                pl.BlockSpec((2, W, 2 * W), lambda n, r: (0, 0, 0)),
                # bias, tiled over the 4 parities
                pl.BlockSpec((4 * Cout, 1), lambda n, r: (0, 0)),
            ],
            # lane-dense output: last dim of the block is TILE_H*4W
            out_specs=pl.BlockSpec((pl.Squeezed(), Cout, TILE_H * 4 * W),
                                   lambda n, r: (n, 0, r)),
            scratch_shapes=[
                pltpu.VMEM((Cin, (TILE_H + 3) * Wp), jnp.bfloat16),  # flat slab
            ],
        ),
        compiler_params=pltpu.CompilerParams(
            dimension_semantics=("parallel", "parallel"),
            vmem_limit_bytes=48 * 1024 * 1024),
    )(xp, xp, wtap, e, bcol)

    # Free (bitcast) reshape: (N, Cout, H*4W) -> (N, Cout, 2H, 2W).
    return out.reshape(N, Cout, 2 * H, 2 * W)


def _reference(x_nchw, weight, bias, *, before=None, after=False):
    """Pure-JAX reference mirroring the PyTorch forward."""
    x = x_nchw
    if before == "ReLU":
        x = jnp.maximum(x, 0.0)
    elif before == "LReLU":
        x = jnp.where(x >= 0.0, x, 0.2 * x)
    x = jnp.repeat(jnp.repeat(x, 2, axis=2), 2, axis=3)  # nearest upsample (NCHW)
    y = lax.conv_general_dilated(
        x, weight, window_strides=(1, 1), padding=((1, 1), (1, 1)),
        dimension_numbers=("NCHW", "OIHW", "NCHW"))
    y = y + bias.reshape(1, -1, 1, 1)
    if after == "Tanh":
        y = jnp.tanh(y)
    elif after == "sigmoid":
        y = jax.nn.sigmoid(y)
    return y


if __name__ == "__main__":
    key = jax.random.PRNGKey(0)
    k_x, k_w, k_b = jax.random.split(key, 3)

    N, Cin, Cout, H, W = 2, 4, 8, 16, 16

    x = jax.random.normal(k_x, (N, Cin, H, W), dtype=jnp.float32)
    # weights_init('gaussian'): weight ~ N(0, 0.02), bias = 0
    weight = 0.02 * jax.random.normal(k_w, (Cout, Cin, 3, 3), dtype=jnp.float32)
    bias = jnp.zeros((Cout,), dtype=jnp.float32)

    # Default CvTi construction: no `before`, no `after`.
    out = jax.block_until_ready(cvti_forward(x, weight, bias))
    ref = _reference(x, weight, bias)
    assert out.shape == (N, Cout, 2 * H, 2 * W), out.shape
    # bf16 MXU inputs with f32 accumulation -> looser tolerance than pure f32.
    assert jnp.allclose(out, ref, atol=1e-2, rtol=1e-2), "mismatch vs reference"

    # Fused activation paths + non-zero bias (before='LReLU', after='Tanh').
    bias2 = 0.1 * jax.random.normal(k_b, (Cout,), dtype=jnp.float32)
    out2 = jax.block_until_ready(
        cvti_forward(x, weight, bias2, before="LReLU", after="Tanh"))
    ref2 = _reference(x, weight, bias2, before="LReLU", after="Tanh")
    assert jnp.allclose(out2, ref2, atol=1e-2, rtol=1e-2), "mismatch (act path)"

    print("KERNEL_OK")
</pallas_src>

<mosaic_0001>
module attributes {stable_mosaic.version = 11 : i64} {
  func.func @_cvti_kernel(%arg0: i32, %arg1: i32, %arg2: memref<1x4x16x18xbf16, #tpu.memory_space<vmem>>, %arg3: memref<1x4x8x18xbf16, #tpu.memory_space<vmem>>, %arg4: memref<9x32x4xbf16, #tpu.memory_space<vmem>>, %arg5: memref<2x16x32xbf16, #tpu.memory_space<vmem>>, %arg6: memref<32x1xf32, #tpu.memory_space<vmem>>, %arg7: memref<1x8x1024xf32, #tpu.memory_space<vmem>>, %arg8: memref<4x342xbf16, #tpu.memory_space<vmem>>) attributes {dimension_semantics = [#tpu.dimension_semantics<parallel>, #tpu.dimension_semantics<parallel>], iteration_bounds = array<i64: 2, 1>, scalar_prefetch = 0 : i64, scratch_operands = 1 : i64, tpu.core_type = #tpu.core_type<tc>, window_params = [{transform_indices = @transform_0, window_bounds = array<i64: 1, 4, 16, 18>}, {transform_indices = @transform_1, window_bounds = array<i64: 1, 4, 8, 18>}, {pipeline_mode = #tpu.pipeline_mode<synchronous>, transform_indices = @transform_2, window_bounds = array<i64: 9, 32, 4>}, {pipeline_mode = #tpu.pipeline_mode<synchronous>, transform_indices = @transform_3, window_bounds = array<i64: 2, 16, 32>}, {pipeline_mode = #tpu.pipeline_mode<synchronous>, transform_indices = @transform_4, window_bounds = array<i64: 32, 1>}, {transform_indices = @transform_5, window_bounds = array<i64: 1, 8, 1024>}]} {
    %c0 = arith.constant 0 : index
    %c0_0 = arith.constant 0 : index
    %c0_1 = arith.constant 0 : index
    %c0_2 = arith.constant 0 : index
    %0 = vector.load %arg2[%c0, %c0_0, %c0_1, %c0_2] : memref<1x4x16x18xbf16, #tpu.memory_space<vmem>>, vector<1x4x1x18xbf16>
    %1 = vector.shape_cast %0 : vector<1x4x1x18xbf16> to vector<4x1x18xbf16>
    %2 = vector.shape_cast %1 : vector<4x1x18xbf16> to vector<4x18xbf16>
    %c0_3 = arith.constant 0 : index
    %c0_4 = arith.constant 0 : index
    %3 = vector.load %arg8[%c0_3, %c0_4] : memref<4x342xbf16, #tpu.memory_space<vmem>>, vector<4x18xbf16>
    tpu.vector_store %arg8[%c0_3, %c0_4], %2 {strides = array<i32>} : memref<4x342xbf16, #tpu.memory_space<vmem>>, vector<4x18xbf16>,
    %c0_5 = arith.constant 0 : index
    %c0_6 = arith.constant 0 : index
    %c1 = arith.constant 1 : index
    %c0_7 = arith.constant 0 : index
    %4 = vector.load %arg2[%c0_5, %c0_6, %c1, %c0_7] : memref<1x4x16x18xbf16, #tpu.memory_space<vmem>>, vector<1x4x1x18xbf16>
    %5 = vector.shape_cast %4 : vector<1x4x1x18xbf16> to vector<4x1x18xbf16>
    %6 = vector.shape_cast %5 : vector<4x1x18xbf16> to vector<4x18xbf16>
    %c0_8 = arith.constant 0 : index
    %c18 = arith.constant 18 : index
    %7 = vector.load %arg8[%c0_8, %c18] : memref<4x342xbf16, #tpu.memory_space<vmem>>, vector<4x18xbf16>
    tpu.vector_store %arg8[%c0_8, %c18], %6 {strides = array<i32>} : memref<4x342xbf16, #tpu.memory_space<vmem>>, vector<4x18xbf16>,
    %c0_9 = arith.constant 0 : index
    %c0_10 = arith.constant 0 : index
    %c2 = arith.constant 2 : index
    %c0_11 = arith.constant 0 : index
    %8 = vector.load %arg2[%c0_9, %c0_10, %c2, %c0_11] : memref<1x4x16x18xbf16, #tpu.memory_space<vmem>>, vector<1x4x1x18xbf16>
    %9 = vector.shape_cast %8 : vector<1x4x1x18xbf16> to vector<4x1x18xbf16>
    %10 = vector.shape_cast %9 : vector<4x1x18xbf16> to vector<4x18xbf16>
    %c0_12 = arith.constant 0 : index
    %c36 = arith.constant 36 : index
    %11 = vector.load %arg8[%c0_12, %c36] : memref<4x342xbf16, #tpu.memory_space<vmem>>, vector<4x18xbf16>
    tpu.vector_store %arg8[%c0_12, %c36], %10 {strides = array<i32>} : memref<4x342xbf16, #tpu.memory_space<vmem>>, vector<4x18xbf16>,
    %c0_13 = arith.constant 0 : index
    %c0_14 = arith.constant 0 : index
    %c3 = arith.constant 3 : index
    %c0_15 = arith.constant 0 : index
    %12 = vector.load %arg2[%c0_13, %c0_14, %c3, %c0_15] : memref<1x4x16x18xbf16, #tpu.memory_space<vmem>>, vector<1x4x1x18xbf16>
    %13 = vector.shape_cast %12 : vector<1x4x1x18xbf16> to vector<4x1x18xbf16>
    %14 = vector.shape_cast %13 : vector<4x1x18xbf16> to vector<4x18xbf16>
    %c0_16 = arith.constant 0 : index
    %c54 = arith.constant 54 : index
    %15 = vector.load %arg8[%c0_16, %c54] : memref<4x342xbf16, #tpu.memory_space<vmem>>, vector<4x18xbf16>
    tpu.vector_store %arg8[%c0_16, %c54], %14 {strides = array<i32>} : memref<4x342xbf16, #tpu.memory_space<vmem>>, vector<4x18xbf16>,
    %c0_17 = arith.constant 0 : index
    %c0_18 = arith.constant 0 : index
    %c4 = arith.constant 4 : index
    %c0_19 = arith.constant 0 : index
    %16 = vector.load %arg2[%c0_17, %c0_18, %c4, %c0_19] : memref<1x4x16x18xbf16, #tpu.memory_space<vmem>>, vector<1x4x1x18xbf16>
    %17 = vector.shape_cast %16 : vector<1x4x1x18xbf16> to vector<4x1x18xbf16>
    %18 = vector.shape_cast %17 : vector<4x1x18xbf16> to vector<4x18xbf16>
    %c0_20 = arith.constant 0 : index
    %c72 = arith.constant 72 : index
    %19 = vector.load %arg8[%c0_20, %c72] : memref<4x342xbf16, #tpu.memory_space<vmem>>, vector<4x18xbf16>
    tpu.vector_store %arg8[%c0_20, %c72], %18 {strides = array<i32>} : memref<4x342xbf16, #tpu.memory_space<vmem>>, vector<4x18xbf16>,
    %c0_21 = arith.constant 0 : index
    %c0_22 = arith.constant 0 : index
    %c5 = arith.constant 5 : index
    %c0_23 = arith.constant 0 : index
    %20 = vector.load %arg2[%c0_21, %c0_22, %c5, %c0_23] : memref<1x4x16x18xbf16, #tpu.memory_space<vmem>>, vector<1x4x1x18xbf16>
    %21 = vector.shape_cast %20 : vector<1x4x1x18xbf16> to vector<4x1x18xbf16>
    %22 = vector.shape_cast %21 : vector<4x1x18xbf16> to vector<4x18xbf16>
    %c0_24 = arith.constant 0 : index
    %c90 = arith.constant 90 : index
    %23 = vector.load %arg8[%c0_24, %c90] : memref<4x342xbf16, #tpu.memory_space<vmem>>, vector<4x18xbf16>
    tpu.vector_store %arg8[%c0_24, %c90], %22 {strides = array<i32>} : memref<4x342xbf16, #tpu.memory_space<vmem>>, vector<4x18xbf16>,
    %c0_25 = arith.constant 0 : index
    %c0_26 = arith.constant 0 : index
    %c6 = arith.constant 6 : index
    %c0_27 = arith.constant 0 : index
    %24 = vector.load %arg2[%c0_25, %c0_26, %c6, %c0_27] : memref<1x4x16x18xbf16, #tpu.memory_space<vmem>>, vector<1x4x1x18xbf16>
    %25 = vector.shape_cast %24 : vector<1x4x1x18xbf16> to vector<4x1x18xbf16>
    %26 = vector.shape_cast %25 : vector<4x1x18xbf16> to vector<4x18xbf16>
    %c0_28 = arith.constant 0 : index
    %c108 = arith.constant 108 : index
    %27 = vector.load %arg8[%c0_28, %c108] : memref<4x342xbf16, #tpu.memory_space<vmem>>, vector<4x18xbf16>
    tpu.vector_store %arg8[%c0_28, %c108], %26 {strides = array<i32>} : memref<4x342xbf16, #tpu.memory_space<vmem>>, vector<4x18xbf16>,
    %c0_29 = arith.constant 0 : index
    %c0_30 = arith.constant 0 : index
    %c7 = arith.constant 7 : index
    %c0_31 = arith.constant 0 : index
    %28 = vector.load %arg2[%c0_29, %c0_30, %c7, %c0_31] : memref<1x4x16x18xbf16, #tpu.memory_space<vmem>>, vector<1x4x1x18xbf16>
    %29 = vector.shape_cast %28 : vector<1x4x1x18xbf16> to vector<4x1x18xbf16>
    %30 = vector.shape_cast %29 : vector<4x1x18xbf16> to vector<4x18xbf16>
    %c0_32 = arith.constant 0 : index
    %c126 = arith.constant 126 : index
    %31 = vector.load %arg8[%c0_32, %c126] : memref<4x342xbf16, #tpu.memory_space<vmem>>, vector<4x18xbf16>
    tpu.vector_store %arg8[%c0_32, %c126], %30 {strides = array<i32>} : memref<4x342xbf16, #tpu.memory_space<vmem>>, vector<4x18xbf16>,
    %c0_33 = arith.constant 0 : index
    %c0_34 = arith.constant 0 : index
    %c8 = arith.constant 8 : index
    %c0_35 = arith.constant 0 : index
    %32 = vector.load %arg2[%c0_33, %c0_34, %c8, %c0_35] : memref<1x4x16x18xbf16, #tpu.memory_space<vmem>>, vector<1x4x1x18xbf16>
    %33 = vector.shape_cast %32 : vector<1x4x1x18xbf16> to vector<4x1x18xbf16>
    %34 = vector.shape_cast %33 : vector<4x1x18xbf16> to vector<4x18xbf16>
    %c0_36 = arith.constant 0 : index
    %c144 = arith.constant 144 : index
    %35 = vector.load %arg8[%c0_36, %c144] : memref<4x342xbf16, #tpu.memory_space<vmem>>, vector<4x18xbf16>
    tpu.vector_store %arg8[%c0_36, %c144], %34 {strides = array<i32>} : memref<4x342xbf16, #tpu.memory_space<vmem>>, vector<4x18xbf16>,
    %c0_37 = arith.constant 0 : index
    %c0_38 = arith.constant 0 : index
    %c9 = arith.constant 9 : index
    %c0_39 = arith.constant 0 : index
    %36 = vector.load %arg2[%c0_37, %c0_38, %c9, %c0_39] : memref<1x4x16x18xbf16, #tpu.memory_space<vmem>>, vector<1x4x1x18xbf16>
    %37 = vector.shape_cast %36 : vector<1x4x1x18xbf16> to vector<4x1x18xbf16>
    %38 = vector.shape_cast %37 : vector<4x1x18xbf16> to vector<4x18xbf16>
    %c0_40 = arith.constant 0 : index
    %c162 = arith.constant 162 : index
    %39 = vector.load %arg8[%c0_40, %c162] : memref<4x342xbf16, #tpu.memory_space<vmem>>, vector<4x18xbf16>
    tpu.vector_store %arg8[%c0_40, %c162], %38 {strides = array<i32>} : memref<4x342xbf16, #tpu.memory_space<vmem>>, vector<4x18xbf16>,
    %c0_41 = arith.constant 0 : index
    %c0_42 = arith.constant 0 : index
    %c10 = arith.constant 10 : index
    %c0_43 = arith.constant 0 : index
    %40 = vector.load %arg2[%c0_41, %c0_42, %c10, %c0_43] : memref<1x4x16x18xbf16, #tpu.memory_space<vmem>>, vector<1x4x1x18xbf16>
    %41 = vector.shape_cast %40 : vector<1x4x1x18xbf16> to vector<4x1x18xbf16>
    %42 = vector.shape_cast %41 : vector<4x1x18xbf16> to vector<4x18xbf16>
    %c0_44 = arith.constant 0 : index
    %c180 = arith.constant 180 : index
    %43 = vector.load %arg8[%c0_44, %c180] : memref<4x342xbf16, #tpu.memory_space<vmem>>, vector<4x18xbf16>
    tpu.vector_store %arg8[%c0_44, %c180], %42 {strides = array<i32>} : memref<4x342xbf16, #tpu.memory_space<vmem>>, vector<4x18xbf16>,
    %c0_45 = arith.constant 0 : index
    %c0_46 = arith.constant 0 : index
    %c11 = arith.constant 11 : index
    %c0_47 = arith.constant 0 : index
    %44 = vector.load %arg2[%c0_45, %c0_46, %c11, %c0_47] : memref<1x4x16x18xbf16, #tpu.memory_space<vmem>>, vector<1x4x1x18xbf16>
    %45 = vector.shape_cast %44 : vector<1x4x1x18xbf16> to vector<4x1x18xbf16>
    %46 = vector.shape_cast %45 : vector<4x1x18xbf16> to vector<4x18xbf16>
    %c0_48 = arith.constant 0 : index
    %c198 = arith.constant 198 : index
    %47 = vector.load %arg8[%c0_48, %c198] : memref<4x342xbf16, #tpu.memory_space<vmem>>, vector<4x18xbf16>
    tpu.vector_store %arg8[%c0_48, %c198], %46 {strides = array<i32>} : memref<4x342xbf16, #tpu.memory_space<vmem>>, vector<4x18xbf16>,
    %c0_49 = arith.constant 0 : index
    %c0_50 = arith.constant 0 : index
    %c12 = arith.constant 12 : index
    %c0_51 = arith.constant 0 : index
    %48 = vector.load %arg2[%c0_49, %c0_50, %c12, %c0_51] : memref<1x4x16x18xbf16, #tpu.memory_space<vmem>>, vector<1x4x1x18xbf16>
    %49 = vector.shape_cast %48 : vector<1x4x1x18xbf16> to vector<4x1x18xbf16>
    %50 = vector.shape_cast %49 : vector<4x1x18xbf16> to vector<4x18xbf16>
    %c0_52 = arith.constant 0 : index
    %c216 = arith.constant 216 : index
    %51 = vector.load %arg8[%c0_52, %c216] : memref<4x342xbf16, #tpu.memory_space<vmem>>, vector<4x18xbf16>
    tpu.vector_store %arg8[%c0_52, %c216], %50 {strides = array<i32>} : memref<4x342xbf16, #tpu.memory_space<vmem>>, vector<4x18xbf16>,
    %c0_53 = arith.constant 0 : index
    %c0_54 = arith.constant 0 : index
    %c13 = arith.constant 13 : index
    %c0_55 = arith.constant 0 : index
    %52 = vector.load %arg2[%c0_53, %c0_54, %c13, %c0_55] : memref<1x4x16x18xbf16, #tpu.memory_space<vmem>>, vector<1x4x1x18xbf16>
    %53 = vector.shape_cast %52 : vector<1x4x1x18xbf16> to vector<4x1x18xbf16>
    %54 = vector.shape_cast %53 : vector<4x1x18xbf16> to vector<4x18xbf16>
    %c0_56 = arith.constant 0 : index
    %c234 = arith.constant 234 : index
    %55 = vector.load %arg8[%c0_56, %c234] : memref<4x342xbf16, #tpu.memory_space<vmem>>, vector<4x18xbf16>
    tpu.vector_store %arg8[%c0_56, %c234], %54 {strides = array<i32>} : memref<4x342xbf16, #tpu.memory_space<vmem>>, vector<4x18xbf16>,
    %c0_57 = arith.constant 0 : index
    %c0_58 = arith.constant 0 : index
    %c14 = arith.constant 14 : index
    %c0_59 = arith.constant 0 : index
    %56 = vector.load %arg2[%c0_57, %c0_58, %c14, %c0_59] : memref<1x4x16x18xbf16, #tpu.memory_space<vmem>>, vector<1x4x1x18xbf16>
    %57 = vector.shape_cast %56 : vector<1x4x1x18xbf16> to vector<4x1x18xbf16>
    %58 = vector.shape_cast %57 : vector<4x1x18xbf16> to vector<4x18xbf16>
    %c0_60 = arith.constant 0 : index
    %c252 = arith.constant 252 : index
    %59 = vector.load %arg8[%c0_60, %c252] : memref<4x342xbf16, #tpu.memory_space<vmem>>, vector<4x18xbf16>
    tpu.vector_store %arg8[%c0_60, %c252], %58 {strides = array<i32>} : memref<4x342xbf16, #tpu.memory_space<vmem>>, vector<4x18xbf16>,
    %c0_61 = arith.constant 0 : index
    %c0_62 = arith.constant 0 : index
    %c15 = arith.constant 15 : index
    %c0_63 = arith.constant 0 : index
    %60 = vector.load %arg2[%c0_61, %c0_62, %c15, %c0_63] : memref<1x4x16x18xbf16, #tpu.memory_space<vmem>>, vector<1x4x1x18xbf16>
    %61 = vector.shape_cast %60 : vector<1x4x1x18xbf16> to vector<4x1x18xbf16>
    %62 = vector.shape_cast %61 : vector<4x1x18xbf16> to vector<4x18xbf16>
    %c0_64 = arith.constant 0 : index
    %c270 = arith.constant 270 : index
    %63 = vector.load %arg8[%c0_64, %c270] : memref<4x342xbf16, #tpu.memory_space<vmem>>, vector<4x18xbf16>
    tpu.vector_store %arg8[%c0_64, %c270], %62 {strides = array<i32>} : memref<4x342xbf16, #tpu.memory_space<vmem>>, vector<4x18xbf16>,
    %c0_65 = arith.constant 0 : index
    %c0_66 = arith.constant 0 : index
    %c0_67 = arith.constant 0 : index
    %c0_68 = arith.constant 0 : index
    %64 = vector.load %arg3[%c0_65, %c0_66, %c0_67, %c0_68] : memref<1x4x8x18xbf16, #tpu.memory_space<vmem>>, vector<1x4x1x18xbf16>
    %65 = vector.shape_cast %64 : vector<1x4x1x18xbf16> to vector<4x1x18xbf16>
    %66 = vector.shape_cast %65 : vector<4x1x18xbf16> to vector<4x18xbf16>
    %c0_69 = arith.constant 0 : index
    %c288 = arith.constant 288 : index
    %67 = vector.load %arg8[%c0_69, %c288] : memref<4x342xbf16, #tpu.memory_space<vmem>>, vector<4x18xbf16>
    tpu.vector_store %arg8[%c0_69, %c288], %66 {strides = array<i32>} : memref<4x342xbf16, #tpu.memory_space<vmem>>, vector<4x18xbf16>,
    %c0_70 = arith.constant 0 : index
    %c0_71 = arith.constant 0 : index
    %c1_72 = arith.constant 1 : index
    %c0_73 = arith.constant 0 : index
    %68 = vector.load %arg3[%c0_70, %c0_71, %c1_72, %c0_73] : memref<1x4x8x18xbf16, #tpu.memory_space<vmem>>, vector<1x4x1x18xbf16>
    %69 = vector.shape_cast %68 : vector<1x4x1x18xbf16> to vector<4x1x18xbf16>
    %70 = vector.shape_cast %69 : vector<4x1x18xbf16> to vector<4x18xbf16>
    %c0_74 = arith.constant 0 : index
    %c306 = arith.constant 306 : index
    %71 = vector.load %arg8[%c0_74, %c306] : memref<4x342xbf16, #tpu.memory_space<vmem>>, vector<4x18xbf16>
    tpu.vector_store %arg8[%c0_74, %c306], %70 {strides = array<i32>} : memref<4x342xbf16, #tpu.memory_space<vmem>>, vector<4x18xbf16>,
    %c0_75 = arith.constant 0 : index
    %c0_76 = arith.constant 0 : index
    %c2_77 = arith.constant 2 : index
    %c0_78 = arith.constant 0 : index
    %72 = vector.load %arg3[%c0_75, %c0_76, %c2_77, %c0_78] : memref<1x4x8x18xbf16, #tpu.memory_space<vmem>>, vector<1x4x1x18xbf16>
    %73 = vector.shape_cast %72 : vector<1x4x1x18xbf16> to vector<4x1x18xbf16>
    %74 = vector.shape_cast %73 : vector<4x1x18xbf16> to vector<4x18xbf16>
    %c0_79 = arith.constant 0 : index
    %c324 = arith.constant 324 : index
    %75 = vector.load %arg8[%c0_79, %c324] : memref<4x342xbf16, #tpu.memory_space<vmem>>, vector<4x18xbf16>
    tpu.vector_store %arg8[%c0_79, %c324], %74 {strides = array<i32>} : memref<4x342xbf16, #tpu.memory_space<vmem>>, vector<4x18xbf16>,
    %c0_80 = arith.constant 0 : index
    %c0_81 = arith.constant 0 : index
    %76 = vector.load %arg6[%c0_80, %c0_81] : memref<32x1xf32, #tpu.memory_space<vmem>>, vector<32x1xf32>
    %c0_82 = arith.constant 0 : index
    %c0_83 = arith.constant 0 : index
    %77 = vector.load %arg8[%c0_82, %c0_83] : memref<4x342xbf16, #tpu.memory_space<vmem>>, vector<4x144xbf16>
    %c0_84 = arith.constant 0 : index
    %c0_85 = arith.constant 0 : index
    %c0_86 = arith.constant 0 : index
    %78 = vector.load %arg4[%c0_84, %c0_85, %c0_86] : memref<9x32x4xbf16, #tpu.memory_space<vmem>>, vector<1x32x4xbf16>
    %79 = vector.shape_cast %78 : vector<1x32x4xbf16> to vector<32x4xbf16>
    %cst = arith.constant dense<0.000000e+00> : vector<32x144xf32>
    %80 = tpu.matmul %79, %77, %cst {dimension_numbers = #tpu.dot_dimension_numbers<[1], [0], [0], [1], [0, 0, 1, 1], [], []>} : vector<32x4xbf16>, vector<4x144xbf16>, vector<32x144xf32> -> vector<32x144xf32>
    %c0_87 = arith.constant 0 : index
    %c1_88 = arith.constant 1 : index
    %81 = vector.load %arg8[%c0_87, %c1_88] : memref<4x342xbf16, #tpu.memory_space<vmem>>, vector<4x144xbf16>
    %c1_89 = arith.constant 1 : index
    %c0_90 = arith.constant 0 : index
    %c0_91 = arith.constant 0 : index
    %82 = vector.load %arg4[%c1_89, %c0_90, %c0_91] : memref<9x32x4xbf16, #tpu.memory_space<vmem>>, vector<1x32x4xbf16>
    %83 = vector.shape_cast %82 : vector<1x32x4xbf16> to vector<32x4xbf16>
    %cst_92 = arith.constant dense<0.000000e+00> : vector<32x144xf32>
    %84 = tpu.matmul %83, %81, %cst_92 {dimension_numbers = #tpu.dot_dimension_numbers<[1], [0], [0], [1], [0, 0, 1, 1], [], []>} : vector<32x4xbf16>, vector<4x144xbf16>, vector<32x144xf32> -> vector<32x144xf32>
    %85 = arith.addf %80, %84 : vector<32x144xf32>
    %c0_93 = arith.constant 0 : index
    %c2_94 = arith.constant 2 : index
    %86 = vector.load %arg8[%c0_93, %c2_94] : memref<4x342xbf16, #tpu.memory_space<vmem>>, vector<4x144xbf16>
    %c2_95 = arith.constant 2 : index
    %c0_96 = arith.constant 0 : index
    %c0_97 = arith.constant 0 : index
    %87 = vector.load %arg4[%c2_95, %c0_96, %c0_97] : memref<9x32x4xbf16, #tpu.memory_space<vmem>>, vector<1x32x4xbf16>
    %88 = vector.shape_cast %87 : vector<1x32x4xbf16> to vector<32x4xbf16>
    %cst_98 = arith.constant dense<0.000000e+00> : vector<32x144xf32>
    %89 = tpu.matmul %88, %86, %cst_98 {dimension_numbers = #tpu.dot_dimension_numbers<[1], [0], [0], [1], [0, 0, 1, 1], [], []>} : vector<32x4xbf16>, vector<4x144xbf16>, vector<32x144xf32> -> vector<32x144xf32>
    %90 = arith.addf %85, %89 : vector<32x144xf32>
    %c0_99 = arith.constant 0 : index
    %c18_100 = arith.constant 18 : index
    %91 = vector.load %arg8[%c0_99, %c18_100] : memref<4x342xbf16, #tpu.memory_space<vmem>>, vector<4x144xbf16>
    %c3_101 = arith.constant 3 : index
    %c0_102 = arith.constant 0 : index
    %c0_103 = arith.constant 0 : index
    %92 = vector.load %arg4[%c3_101, %c0_102, %c0_103] : memref<9x32x4xbf16, #tpu.memory_space<vmem>>, vector<1x32x4xbf16>
    %93 = vector.shape_cast %92 : vector<1x32x4xbf16> to vector<32x4xbf16>
    %cst_104 = arith.constant dense<0.000000e+00> : vector<32x144xf32>
    %94 = tpu.matmul %93, %91, %cst_104 {dimension_numbers = #tpu.dot_dimension_numbers<[1], [0], [0], [1], [0, 0, 1, 1], [], []>} : vector<32x4xbf16>, vector<4x144xbf16>, vector<32x144xf32> -> vector<32x144xf32>
    %95 = arith.addf %90, %94 : vector<32x144xf32>
    %c0_105 = arith.constant 0 : index
    %c19 = arith.constant 19 : index
    %96 = vector.load %arg8[%c0_105, %c19] : memref<4x342xbf16, #tpu.memory_space<vmem>>, vector<4x144xbf16>
    %c4_106 = arith.constant 4 : index
    %c0_107 = arith.constant 0 : index
    %c0_108 = arith.constant 0 : index
    %97 = vector.load %arg4[%c4_106, %c0_107, %c0_108] : memref<9x32x4xbf16, #tpu.memory_space<vmem>>, vector<1x32x4xbf16>
    %98 = vector.shape_cast %97 : vector<1x32x4xbf16> to vector<32x4xbf16>
    %cst_109 = arith.constant dense<0.000000e+00> : vector<32x144xf32>
    %99 = tpu.matmul %98, %96, %cst_109 {dimension_numbers = #tpu.dot_dimension_numbers<[1], [0], [0], [1], [0, 0, 1, 1], [], []>} : vector<32x4xbf16>, vector<4x144xbf16>, vector<32x144xf32> -> vector<32x144xf32>
    %100 = arith.addf %95, %99 : vector<32x144xf32>
    %c0_110 = arith.constant 0 : index
    %c20 = arith.constant 20 : index
    %101 = vector.load %arg8[%c0_110, %c20] : memref<4x342xbf16, #tpu.memory_space<vmem>>, vector<4x144xbf16>
    %c5_111 = arith.constant 5 : index
    %c0_112 = arith.constant 0 : index
    %c0_113 = arith.constant 0 : index
    %102 = vector.load %arg4[%c5_111, %c0_112, %c0_113] : memref<9x32x4xbf16, #tpu.memory_space<vmem>>, vector<1x32x4xbf16>
    %103 = vector.shape_cast %102 : vector<1x32x4xbf16> to vector<32x4xbf16>
    %cst_114 = arith.constant dense<0.000000e+00> : vector<32x144xf32>
    %104 = tpu.matmul %103, %101, %cst_114 {dimension_numbers = #tpu.dot_dimension_numbers<[1], [0], [0], [1], [0, 0, 1, 1], [], []>} : vector<32x4xbf16>, vector<4x144xbf16>, vector<32x144xf32> -> vector<32x144xf32>
    %105 = arith.addf %100, %104 : vector<32x144xf32>
    %c0_115 = arith.constant 0 : index
    %c36_116 = arith.constant 36 : index
    %106 = vector.load %arg8[%c0_115, %c36_116] : memref<4x342xbf16, #tpu.memory_space<vmem>>, vector<4x144xbf16>
    %c6_117 = arith.constant 6 : index
    %c0_118 = arith.constant 0 : index
    %c0_119 = arith.constant 0 : index
    %107 = vector.load %arg4[%c6_117, %c0_118, %c0_119] : memref<9x32x4xbf16, #tpu.memory_space<vmem>>, vector<1x32x4xbf16>
    %108 = vector.shape_cast %107 : vector<1x32x4xbf16> to vector<32x4xbf16>
    %cst_120 = arith.constant dense<0.000000e+00> : vector<32x144xf32>
    %109 = tpu.matmul %108, %106, %cst_120 {dimension_numbers = #tpu.dot_dimension_numbers<[1], [0], [0], [1], [0, 0, 1, 1], [], []>} : vector<32x4xbf16>, vector<4x144xbf16>, vector<32x144xf32> -> vector<32x144xf32>
    %110 = arith.addf %105, %109 : vector<32x144xf32>
    %c0_121 = arith.constant 0 : index
    %c37 = arith.constant 37 : index
    %111 = vector.load %arg8[%c0_121, %c37] : memref<4x342xbf16, #tpu.memory_space<vmem>>, vector<4x144xbf16>
    %c7_122 = arith.constant 7 : index
    %c0_123 = arith.constant 0 : index
    %c0_124 = arith.constant 0 : index
    %112 = vector.load %arg4[%c7_122, %c0_123, %c0_124] : memref<9x32x4xbf16, #tpu.memory_space<vmem>>, vector<1x32x4xbf16>
    %113 = vector.shape_cast %112 : vector<1x32x4xbf16> to vector<32x4xbf16>
    %cst_125 = arith.constant dense<0.000000e+00> : vector<32x144xf32>
    %114 = tpu.matmul %113, %111, %cst_125 {dimension_numbers = #tpu.dot_dimension_numbers<[1], [0], [0], [1], [0, 0, 1, 1], [], []>} : vector<32x4xbf16>, vector<4x144xbf16>, vector<32x144xf32> -> vector<32x144xf32>
    %115 = arith.addf %110, %114 : vector<32x144xf32>
    %c0_126 = arith.constant 0 : index
    %c38 = arith.constant 38 : index
    %116 = vector.load %arg8[%c0_126, %c38] : memref<4x342xbf16, #tpu.memory_space<vmem>>, vector<4x144xbf16>
    %c8_127 = arith.constant 8 : index
    %c0_128 = arith.constant 0 : index
    %c0_129 = arith.constant 0 : index
    %117 = vector.load %arg4[%c8_127, %c0_128, %c0_129] : memref<9x32x4xbf16, #tpu.memory_space<vmem>>, vector<1x32x4xbf16>
    %118 = vector.shape_cast %117 : vector<1x32x4xbf16> to vector<32x4xbf16>
    %cst_130 = arith.constant dense<0.000000e+00> : vector<32x144xf32>
    %119 = tpu.matmul %118, %116, %cst_130 {dimension_numbers = #tpu.dot_dimension_numbers<[1], [0], [0], [1], [0, 0, 1, 1], [], []>} : vector<32x4xbf16>, vector<4x144xbf16>, vector<32x144xf32> -> vector<32x144xf32>
    %120 = arith.addf %115, %119 : vector<32x144xf32>
    %121 = vector.broadcast %76 : vector<32x1xf32> to vector<32x144xf32>
    %122 = arith.addf %120, %121 : vector<32x144xf32>
    %123 = arith.truncf %122 : vector<32x144xf32> to vector<32x144xbf16>
    %124 = vector.extract_strided_slice %123 {offsets = [0, 0], sizes = [32, 16], strides = [1, 1]} : vector<32x144xbf16> to vector<32x16xbf16>
    %125 = vector.extract_strided_slice %124 {offsets = [0, 0], sizes = [16, 16], strides = [1, 1]} : vector<32x16xbf16> to vector<16x16xbf16>
    %c0_131 = arith.constant 0 : index
    %c0_132 = arith.constant 0 : index
    %c0_133 = arith.constant 0 : index
    %126 = vector.load %arg5[%c0_131, %c0_132, %c0_133] : memref<2x16x32xbf16, #tpu.memory_space<vmem>>, vector<1x16x32xbf16>
    %127 = vector.shape_cast %126 : vector<1x16x32xbf16> to vector<16x32xbf16>
    %cst_134 = arith.constant dense<0.000000e+00> : vector<16x32xf32>
    %128 = tpu.matmul %125, %127, %cst_134 {dimension_numbers = #tpu.dot_dimension_numbers<[1], [0], [0], [1], [0, 0, 1, 1], [], []>} : vector<16x16xbf16>, vector<16x32xbf16>, vector<16x32xf32> -> vector<16x32xf32>
    %129 = vector.extract_strided_slice %124 {offsets = [16, 0], sizes = [16, 16], strides = [1, 1]} : vector<32x16xbf16> to vector<16x16xbf16>
    %c1_135 = arith.constant 1 : index
    %c0_136 = arith.constant 0 : index
    %c0_137 = arith.constant 0 : index
    %130 = vector.load %arg5[%c1_135, %c0_136, %c0_137] : memref<2x16x32xbf16, #tpu.memory_space<vmem>>, vector<1x16x32xbf16>
    %131 = vector.shape_cast %130 : vector<1x16x32xbf16> to vector<16x32xbf16>
    %cst_138 = arith.constant dense<0.000000e+00> : vector<16x32xf32>
    %132 = tpu.matmul %129, %131, %cst_138 {dimension_numbers = #tpu.dot_dimension_numbers<[1], [0], [0], [1], [0, 0, 1, 1], [], []>} : vector<16x16xbf16>, vector<16x32xbf16>, vector<16x32xf32> -> vector<16x32xf32>
    %133 = arith.addf %128, %132 : vector<16x32xf32>
    %134 = vector.extract_strided_slice %133 {offsets = [0, 0], sizes = [8, 32], strides = [1, 1]} : vector<16x32xf32> to vector<8x32xf32>
    %c0_139 = arith.constant 0 : index
    %c0_140 = arith.constant 0 : index
    %c0_141 = arith.constant 0 : index
    %135 = vector.load %arg7[%c0_139, %c0_140, %c0_141] : memref<1x8x1024xf32, #tpu.memory_space<vmem>>, vector<1x8x32xf32>
    %136 = vector.shape_cast %135 : vector<1x8x32xf32> to vector<8x32xf32>
    %137 = vector.shape_cast %134 : vector<8x32xf32> to vector<1x8x32xf32>
    tpu.vector_store %arg7[%c0_139, %c0_140, %c0_141], %137 {strides = array<i32>} : memref<1x8x1024xf32, #tpu.memory_space<vmem>>, vector<1x8x32xf32>,
    %138 = vector.extract_strided_slice %133 {offsets = [8, 0], sizes = [8, 32], strides = [1, 1]} : vector<16x32xf32> to vector<8x32xf32>
    %c0_142 = arith.constant 0 : index
    %c0_143 = arith.constant 0 : index
    %c32 = arith.constant 32 : index
    %139 = vector.load %arg7[%c0_142, %c0_143, %c32] : memref<1x8x1024xf32, #tpu.memory_space<vmem>>, vector<1x8x32xf32>
    %140 = vector.shape_cast %139 : vector<1x8x32xf32> to vector<8x32xf32>
    %141 = vector.shape_cast %138 : vector<8x32xf32> to vector<1x8x32xf32>
    tpu.vector_store %arg7[%c0_142, %c0_143, %c32], %141 {strides = array<i32>} : memref<1x8x1024xf32, #tpu.memory_space<vmem>>, vector<1x8x32xf32>,
    %142 = vector.extract_strided_slice %123 {offsets = [0, 18], sizes = [32, 16], strides = [1, 1]} : vector<32x144xbf16> to vector<32x16xbf16>
    %143 = vector.extract_strided_slice %142 {offsets = [0, 0], sizes = [16, 16], strides = [1, 1]} : vector<32x16xbf16> to vector<16x16xbf16>
    %c0_144 = arith.constant 0 : index
    %c0_145 = arith.constant 0 : index
    %c0_146 = arith.constant 0 : index
    %144 = vector.load %arg5[%c0_144, %c0_145, %c0_146] : memref<2x16x32xbf16, #tpu.memory_space<vmem>>, vector<1x16x32xbf16>
    %145 = vector.shape_cast %144 : vector<1x16x32xbf16> to vector<16x32xbf16>
    %cst_147 = arith.constant dense<0.000000e+00> : vector<16x32xf32>
    %146 = tpu.matmul %143, %145, %cst_147 {dimension_numbers = #tpu.dot_dimension_numbers<[1], [0], [0], [1], [0, 0, 1, 1], [], []>} : vector<16x16xbf16>, vector<16x32xbf16>, vector<16x32xf32> -> vector<16x32xf32>
    %147 = vector.extract_strided_slice %142 {offsets = [16, 0], sizes = [16, 16], strides = [1, 1]} : vector<32x16xbf16> to vector<16x16xbf16>
    %c1_148 = arith.constant 1 : index
    %c0_149 = arith.constant 0 : index
    %c0_150 = arith.constant 0 : index
    %148 = vector.load %arg5[%c1_148, %c0_149, %c0_150] : memref<2x16x32xbf16, #tpu.memory_space<vmem>>, vector<1x16x32xbf16>
    %149 = vector.shape_cast %148 : vector<1x16x32xbf16> to vector<16x32xbf16>
    %cst_151 = arith.constant dense<0.000000e+00> : vector<16x32xf32>
    %150 = tpu.matmul %147, %149, %cst_151 {dimension_numbers = #tpu.dot_dimension_numbers<[1], [0], [0], [1], [0, 0, 1, 1], [], []>} : vector<16x16xbf16>, vector<16x32xbf16>, vector<16x32xf32> -> vector<16x32xf32>
    %151 = arith.addf %146, %150 : vector<16x32xf32>
    %152 = vector.extract_strided_slice %151 {offsets = [0, 0], sizes = [8, 32], strides = [1, 1]} : vector<16x32xf32> to vector<8x32xf32>
    %c0_152 = arith.constant 0 : index
    %c0_153 = arith.constant 0 : index
    %c64 = arith.constant 64 : index
    %153 = vector.load %arg7[%c0_152, %c0_153, %c64] : memref<1x8x1024xf32, #tpu.memory_space<vmem>>, vector<1x8x32xf32>
    %154 = vector.shape_cast %153 : vector<1x8x32xf32> to vector<8x32xf32>
    %155 = vector.shape_cast %152 : vector<8x32xf32> to vector<1x8x32xf32>
    tpu.vector_store %arg7[%c0_152, %c0_153, %c64], %155 {strides = array<i32>} : memref<1x8x1024xf32, #tpu.memory_space<vmem>>, vector<1x8x32xf32>,
    %156 = vector.extract_strided_slice %151 {offsets = [8, 0], sizes = [8, 32], strides = [1, 1]} : vector<16x32xf32> to vector<8x32xf32>
    %c0_154 = arith.constant 0 : index
    %c0_155 = arith.constant 0 : index
    %c96 = arith.constant 96 : index
    %157 = vector.load %arg7[%c0_154, %c0_155, %c96] : memref<1x8x1024xf32, #tpu.memory_space<vmem>>, vector<1x8x32xf32>
    %158 = vector.shape_cast %157 : vector<1x8x32xf32> to vector<8x32xf32>
    %159 = vector.shape_cast %156 : vector<8x32xf32> to vector<1x8x32xf32>
    tpu.vector_store %arg7[%c0_154, %c0_155, %c96], %159 {strides = array<i32>} : memref<1x8x1024xf32, #tpu.memory_space<vmem>>, vector<1x8x32xf32>,
    %160 = vector.extract_strided_slice %123 {offsets = [0, 36], sizes = [32, 16], strides = [1, 1]} : vector<32x144xbf16> to vector<32x16xbf16>
    %161 = vector.extract_strided_slice %160 {offsets = [0, 0], sizes = [16, 16], strides = [1, 1]} : vector<32x16xbf16> to vector<16x16xbf16>
    %c0_156 = arith.constant 0 : index
    %c0_157 = arith.constant 0 : index
    %c0_158 = arith.constant 0 : index
    %162 = vector.load %arg5[%c0_156, %c0_157, %c0_158] : memref<2x16x32xbf16, #tpu.memory_space<vmem>>, vector<1x16x32xbf16>
    %163 = vector.shape_cast %162 : vector<1x16x32xbf16> to vector<16x32xbf16>
    %cst_159 = arith.constant dense<0.000000e+00> : vector<16x32xf32>
    %164 = tpu.matmul %161, %163, %cst_159 {dimension_numbers = #tpu.dot_dimension_numbers<[1], [0], [0], [1], [0, 0, 1, 1], [], []>} : vector<16x16xbf16>, vector<16x32xbf16>, vector<16x32xf32> -> vector<16x32xf32>
    %165 = vector.extract_strided_slice %160 {offsets = [16, 0], sizes = [16, 16], strides = [1, 1]} : vector<32x16xbf16> to vector<16x16xbf16>
    %c1_160 = arith.constant 1 : index
    %c0_161 = arith.constant 0 : index
    %c0_162 = arith.constant 0 : index
    %166 = vector.load %arg5[%c1_160, %c0_161, %c0_162] : memref<2x16x32xbf16, #tpu.memory_space<vmem>>, vector<1x16x32xbf16>
    %167 = vector.shape_cast %166 : vector<1x16x32xbf16> to vector<16x32xbf16>
    %cst_163 = arith.constant dense<0.000000e+00> : vector<16x32xf32>
    %168 = tpu.matmul %165, %167, %cst_163 {dimension_numbers = #tpu.dot_dimension_numbers<[1], [0], [0], [1], [0, 0, 1, 1], [], []>} : vector<16x16xbf16>, vector<16x32xbf16>, vector<16x32xf32> -> vector<16x32xf32>
    %169 = arith.addf %164, %168 : vector<16x32xf32>
    %170 = vector.extract_strided_slice %169 {offsets = [0, 0], sizes = [8, 32], strides = [1, 1]} : vector<16x32xf32> to vector<8x32xf32>
    %c0_164 = arith.constant 0 : index
    %c0_165 = arith.constant 0 : index
    %c128 = arith.constant 128 : index
    %171 = vector.load %arg7[%c0_164, %c0_165, %c128] : memref<1x8x1024xf32, #tpu.memory_space<vmem>>, vector<1x8x32xf32>
    %172 = vector.shape_cast %171 : vector<1x8x32xf32> to vector<8x32xf32>
    %173 = vector.shape_cast %170 : vector<8x32xf32> to vector<1x8x32xf32>
    tpu.vector_store %arg7[%c0_164, %c0_165, %c128], %173 {strides = array<i32>} : memref<1x8x1024xf32, #tpu.memory_space<vmem>>, vector<1x8x32xf32>,
    %174 = vector.extract_strided_slice %169 {offsets = [8, 0], sizes = [8, 32], strides = [1, 1]} : vector<16x32xf32> to vector<8x32xf32>
    %c0_166 = arith.constant 0 : index
    %c0_167 = arith.constant 0 : index
    %c160 = arith.constant 160 : index
    %175 = vector.load %arg7[%c0_166, %c0_167, %c160] : memref<1x8x1024xf32, #tpu.memory_space<vmem>>, vector<1x8x32xf32>
    %176 = vector.shape_cast %175 : vector<1x8x32xf32> to vector<8x32xf32>
    %177 = vector.shape_cast %174 : vector<8x32xf32> to vector<1x8x32xf32>
    tpu.vector_store %arg7[%c0_166, %c0_167, %c160], %177 {strides = array<i32>} : memref<1x8x1024xf32, #tpu.memory_space<vmem>>, vector<1x8x32xf32>,
    %178 = vector.extract_strided_slice %123 {offsets = [0, 54], sizes = [32, 16], strides = [1, 1]} : vector<32x144xbf16> to vector<32x16xbf16>
    %179 = vector.extract_strided_slice %178 {offsets = [0, 0], sizes = [16, 16], strides = [1, 1]} : vector<32x16xbf16> to vector<16x16xbf16>
    %c0_168 = arith.constant 0 : index
    %c0_169 = arith.constant 0 : index
    %c0_170 = arith.constant 0 : index
    %180 = vector.load %arg5[%c0_168, %c0_169, %c0_170] : memref<2x16x32xbf16, #tpu.memory_space<vmem>>, vector<1x16x32xbf16>
    %181 = vector.shape_cast %180 : vector<1x16x32xbf16> to vector<16x32xbf16>
    %cst_171 = arith.constant dense<0.000000e+00> : vector<16x32xf32>
    %182 = tpu.matmul %179, %181, %cst_171 {dimension_numbers = #tpu.dot_dimension_numbers<[1], [0], [0], [1], [0, 0, 1, 1], [], []>} : vector<16x16xbf16>, vector<16x32xbf16>, vector<16x32xf32> -> vector<16x32xf32>
    %183 = vector.extract_strided_slice %178 {offsets = [16, 0], sizes = [16, 16], strides = [1, 1]} : vector<32x16xbf16> to vector<16x16xbf16>
    %c1_172 = arith.constant 1 : index
    %c0_173 = arith.constant 0 : index
    %c0_174 = arith.constant 0 : index
    %184 = vector.load %arg5[%c1_172, %c0_173, %c0_174] : memref<2x16x32xbf16, #tpu.memory_space<vmem>>, vector<1x16x32xbf16>
    %185 = vector.shape_cast %184 : vector<1x16x32xbf16> to vector<16x32xbf16>
    %cst_175 = arith.constant dense<0.000000e+00> : vector<16x32xf32>
    %186 = tpu.matmul %183, %185, %cst_175 {dimension_numbers = #tpu.dot_dimension_numbers<[1], [0], [0], [1], [0, 0, 1, 1], [], []>} : vector<16x16xbf16>, vector<16x32xbf16>, vector<16x32xf32> -> vector<16x32xf32>
    %187 = arith.addf %182, %186 : vector<16x32xf32>
    %188 = vector.extract_strided_slice %187 {offsets = [0, 0], sizes = [8, 32], strides = [1, 1]} : vector<16x32xf32> to vector<8x32xf32>
    %c0_176 = arith.constant 0 : index
    %c0_177 = arith.constant 0 : index
    %c192 = arith.constant 192 : index
    %189 = vector.load %arg7[%c0_176, %c0_177, %c192] : memref<1x8x1024xf32, #tpu.memory_space<vmem>>, vector<1x8x32xf32>
    %190 = vector.shape_cast %189 : vector<1x8x32xf32> to vector<8x32xf32>
    %191 = vector.shape_cast %188 : vector<8x32xf32> to vector<1x8x32xf32>
    tpu.vector_store %arg7[%c0_176, %c0_177, %c192], %191 {strides = array<i32>} : memref<1x8x1024xf32, #tpu.memory_space<vmem>>, vector<1x8x32xf32>,
    %192 = vector.extract_strided_slice %187 {offsets = [8, 0], sizes = [8, 32], strides = [1, 1]} : vector<16x32xf32> to vector<8x32xf32>
    %c0_178 = arith.constant 0 : index
    %c0_179 = arith.constant 0 : index
    %c224 = arith.constant 224 : index
    %193 = vector.load %arg7[%c0_178, %c0_179, %c224] : memref<1x8x1024xf32, #tpu.memory_space<vmem>>, vector<1x8x32xf32>
    %194 = vector.shape_cast %193 : vector<1x8x32xf32> to vector<8x32xf32>
    %195 = vector.shape_cast %192 : vector<8x32xf32> to vector<1x8x32xf32>
    tpu.vector_store %arg7[%c0_178, %c0_179, %c224], %195 {strides = array<i32>} : memref<1x8x1024xf32, #tpu.memory_space<vmem>>, vector<1x8x32xf32>,
    %196 = vector.extract_strided_slice %123 {offsets = [0, 72], sizes = [32, 16], strides = [1, 1]} : vector<32x144xbf16> to vector<32x16xbf16>
    %197 = vector.extract_strided_slice %196 {offsets = [0, 0], sizes = [16, 16], strides = [1, 1]} : vector<32x16xbf16> to vector<16x16xbf16>
    %c0_180 = arith.constant 0 : index
    %c0_181 = arith.constant 0 : index
    %c0_182 = arith.constant 0 : index
    %198 = vector.load %arg5[%c0_180, %c0_181, %c0_182] : memref<2x16x32xbf16, #tpu.memory_space<vmem>>, vector<1x16x32xbf16>
    %199 = vector.shape_cast %198 : vector<1x16x32xbf16> to vector<16x32xbf16>
    %cst_183 = arith.constant dense<0.000000e+00> : vector<16x32xf32>
    %200 = tpu.matmul %197, %199, %cst_183 {dimension_numbers = #tpu.dot_dimension_numbers<[1], [0], [0], [1], [0, 0, 1, 1], [], []>} : vector<16x16xbf16>, vector<16x32xbf16>, vector<16x32xf32> -> vector<16x32xf32>
    %201 = vector.extract_strided_slice %196 {offsets = [16, 0], sizes = [16, 16], strides = [1, 1]} : vector<32x16xbf16> to vector<16x16xbf16>
    %c1_184 = arith.constant 1 : index
    %c0_185 = arith.constant 0 : index
    %c0_186 = arith.constant 0 : index
    %202 = vector.load %arg5[%c1_184, %c0_185, %c0_186] : memref<2x16x32xbf16, #tpu.memory_space<vmem>>, vector<1x16x32xbf16>
    %203 = vector.shape_cast %202 : vector<1x16x32xbf16> to vector<16x32xbf16>
    %cst_187 = arith.constant dense<0.000000e+00> : vector<16x32xf32>
    %204 = tpu.matmul %201, %203, %cst_187 {dimension_numbers = #tpu.dot_dimension_numbers<[1], [0], [0], [1], [0, 0, 1, 1], [], []>} : vector<16x16xbf16>, vector<16x32xbf16>, vector<16x32xf32> -> vector<16x32xf32>
    %205 = arith.addf %200, %204 : vector<16x32xf32>
    %206 = vector.extract_strided_slice %205 {offsets = [0, 0], sizes = [8, 32], strides = [1, 1]} : vector<16x32xf32> to vector<8x32xf32>
    %c0_188 = arith.constant 0 : index
    %c0_189 = arith.constant 0 : index
    %c256 = arith.constant 256 : index
    %207 = vector.load %arg7[%c0_188, %c0_189, %c256] : memref<1x8x1024xf32, #tpu.memory_space<vmem>>, vector<1x8x32xf32>
    %208 = vector.shape_cast %207 : vector<1x8x32xf32> to vector<8x32xf32>
    %209 = vector.shape_cast %206 : vector<8x32xf32> to vector<1x8x32xf32>
    tpu.vector_store %arg7[%c0_188, %c0_189, %c256], %209 {strides = array<i32>} : memref<1x8x1024xf32, #tpu.memory_space<vmem>>, vector<1x8x32xf32>,
    %210 = vector.extract_strided_slice %205 {offsets = [8, 0], sizes = [8, 32], strides = [1, 1]} : vector<16x32xf32> to vector<8x32xf32>
    %c0_190 = arith.constant 0 : index
    %c0_191 = arith.constant 0 : index
    %c288_192 = arith.constant 288 : index
    %211 = vector.load %arg7[%c0_190, %c0_191, %c288_192] : memref<1x8x1024xf32, #tpu.memory_space<vmem>>, vector<1x8x32xf32>
    %212 = vector.shape_cast %211 : vector<1x8x32xf32> to vector<8x32xf32>
    %213 = vector.shape_cast %210 : vector<8x32xf32> to vector<1x8x32xf32>
    tpu.vector_store %arg7[%c0_190, %c0_191, %c288_192], %213 {strides = array<i32>} : memref<1x8x1024xf32, #tpu.memory_space<vmem>>, vector<1x8x32xf32>,
    %214 = vector.extract_strided_slice %123 {offsets = [0, 90], sizes = [32, 16], strides = [1, 1]} : vector<32x144xbf16> to vector<32x16xbf16>
    %215 = vector.extract_strided_slice %214 {offsets = [0, 0], sizes = [16, 16], strides = [1, 1]} : vector<32x16xbf16> to vector<16x16xbf16>
    %c0_193 = arith.constant 0 : index
    %c0_194 = arith.constant 0 : index
    %c0_195 = arith.constant 0 : index
    %216 = vector.load %arg5[%c0_193, %c0_194, %c0_195] : memref<2x16x32xbf16, #tpu.memory_space<vmem>>, vector<1x16x32xbf16>
    %217 = vector.shape_cast %216 : vector<1x16x32xbf16> to vector<16x32xbf16>
    %cst_196 = arith.constant dense<0.000000e+00> : vector<16x32xf32>
    %218 = tpu.matmul %215, %217, %cst_196 {dimension_numbers = #tpu.dot_dimension_numbers<[1], [0], [0], [1], [0, 0, 1, 1], [], []>} : vector<16x16xbf16>, vector<16x32xbf16>, vector<16x32xf32> -> vector<16x32xf32>
    %219 = vector.extract_strided_slice %214 {offsets = [16, 0], sizes = [16, 16], strides = [1, 1]} : vector<32x16xbf16> to vector<16x16xbf16>
    %c1_197 = arith.constant 1 : index
    %c0_198 = arith.constant 0 : index
    %c0_199 = arith.constant 0 : index
    %220 = vector.load %arg5[%c1_197, %c0_198, %c0_199] : memref<2x16x32xbf16, #tpu.memory_space<vmem>>, vector<1x16x32xbf16>
    %221 = vector.shape_cast %220 : vector<1x16x32xbf16> to vector<16x32xbf16>
    %cst_200 = arith.constant dense<0.000000e+00> : vector<16x32xf32>
    %222 = tpu.matmul %219, %221, %cst_200 {dimension_numbers = #tpu.dot_dimension_numbers<[1], [0], [0], [1], [0, 0, 1, 1], [], []>} : vector<16x16xbf16>, vector<16x32xbf16>, vector<16x32xf32> -> vector<16x32xf32>
    %223 = arith.addf %218, %222 : vector<16x32xf32>
    %224 = vector.extract_strided_slice %223 {offsets = [0, 0], sizes = [8, 32], strides = [1, 1]} : vector<16x32xf32> to vector<8x32xf32>
    %c0_201 = arith.constant 0 : index
    %c0_202 = arith.constant 0 : index
    %c320 = arith.constant 320 : index
    %225 = vector.load %arg7[%c0_201, %c0_202, %c320] : memref<1x8x1024xf32, #tpu.memory_space<vmem>>, vector<1x8x32xf32>
    %226 = vector.shape_cast %225 : vector<1x8x32xf32> to vector<8x32xf32>
    %227 = vector.shape_cast %224 : vector<8x32xf32> to vector<1x8x32xf32>
    tpu.vector_store %arg7[%c0_201, %c0_202, %c320], %227 {strides = array<i32>} : memref<1x8x1024xf32, #tpu.memory_space<vmem>>, vector<1x8x32xf32>,
    %228 = vector.extract_strided_slice %223 {offsets = [8, 0], sizes = [8, 32], strides = [1, 1]} : vector<16x32xf32> to vector<8x32xf32>
    %c0_203 = arith.constant 0 : index
    %c0_204 = arith.constant 0 : index
    %c352 = arith.constant 352 : index
    %229 = vector.load %arg7[%c0_203, %c0_204, %c352] : memref<1x8x1024xf32, #tpu.memory_space<vmem>>, vector<1x8x32xf32>
    %230 = vector.shape_cast %229 : vector<1x8x32xf32> to vector<8x32xf32>
    %231 = vector.shape_cast %228 : vector<8x32xf32> to vector<1x8x32xf32>
    tpu.vector_store %arg7[%c0_203, %c0_204, %c352], %231 {strides = array<i32>} : memref<1x8x1024xf32, #tpu.memory_space<vmem>>, vector<1x8x32xf32>,
    %232 = vector.extract_strided_slice %123 {offsets = [0, 108], sizes = [32, 16], strides = [1, 1]} : vector<32x144xbf16> to vector<32x16xbf16>
    %233 = vector.extract_strided_slice %232 {offsets = [0, 0], sizes = [16, 16], strides = [1, 1]} : vector<32x16xbf16> to vector<16x16xbf16>
    %c0_205 = arith.constant 0 : index
    %c0_206 = arith.constant 0 : index
    %c0_207 = arith.constant 0 : index
    %234 = vector.load %arg5[%c0_205, %c0_206, %c0_207] : memref<2x16x32xbf16, #tpu.memory_space<vmem>>, vector<1x16x32xbf16>
    %235 = vector.shape_cast %234 : vector<1x16x32xbf16> to vector<16x32xbf16>
    %cst_208 = arith.constant dense<0.000000e+00> : vector<16x32xf32>
    %236 = tpu.matmul %233, %235, %cst_208 {dimension_numbers = #tpu.dot_dimension_numbers<[1], [0], [0], [1], [0, 0, 1, 1], [], []>} : vector<16x16xbf16>, vector<16x32xbf16>, vector<16x32xf32> -> vector<16x32xf32>
    %237 = vector.extract_strided_slice %232 {offsets = [16, 0], sizes = [16, 16], strides = [1, 1]} : vector<32x16xbf16> to vector<16x16xbf16>
    %c1_209 = arith.constant 1 : index
    %c0_210 = arith.constant 0 : index
    %c0_211 = arith.constant 0 : index
    %238 = vector.load %arg5[%c1_209, %c0_210, %c0_211] : memref<2x16x32xbf16, #tpu.memory_space<vmem>>, vector<1x16x32xbf16>
    %239 = vector.shape_cast %238 : vector<1x16x32xbf16> to vector<16x32xbf16>
    %cst_212 = arith.constant dense<0.000000e+00> : vector<16x32xf32>
    %240 = tpu.matmul %237, %239, %cst_212 {dimension_numbers = #tpu.dot_dimension_numbers<[1], [0], [0], [1], [0, 0, 1, 1], [], []>} : vector<16x16xbf16>, vector<16x32xbf16>, vector<16x32xf32> -> vector<16x32xf32>
    %241 = arith.addf %236, %240 : vector<16x32xf32>
    %242 = vector.extract_strided_slice %241 {offsets = [0, 0], sizes = [8, 32], strides = [1, 1]} : vector<16x32xf32> to vector<8x32xf32>
    %c0_213 = arith.constant 0 : index
    %c0_214 = arith.constant 0 : index
    %c384 = arith.constant 384 : index
    %243 = vector.load %arg7[%c0_213, %c0_214, %c384] : memref<1x8x1024xf32, #tpu.memory_space<vmem>>, vector<1x8x32xf32>
    %244 = vector.shape_cast %243 : vector<1x8x32xf32> to vector<8x32xf32>
    %245 = vector.shape_cast %242 : vector<8x32xf32> to vector<1x8x32xf32>
    tpu.vector_store %arg7[%c0_213, %c0_214, %c384], %245 {strides = array<i32>} : memref<1x8x1024xf32, #tpu.memory_space<vmem>>, vector<1x8x32xf32>,
    %246 = vector.extract_strided_slice %241 {offsets = [8, 0], sizes = [8, 32], strides = [1, 1]} : vector<16x32xf32> to vector<8x32xf32>
    %c0_215 = arith.constant 0 : index
    %c0_216 = arith.constant 0 : index
    %c416 = arith.constant 416 : index
    %247 = vector.load %arg7[%c0_215, %c0_216, %c416] : memref<1x8x1024xf32, #tpu.memory_space<vmem>>, vector<1x8x32xf32>
    %248 = vector.shape_cast %247 : vector<1x8x32xf32> to vector<8x32xf32>
    %249 = vector.shape_cast %246 : vector<8x32xf32> to vector<1x8x32xf32>
    tpu.vector_store %arg7[%c0_215, %c0_216, %c416], %249 {strides = array<i32>} : memref<1x8x1024xf32, #tpu.memory_space<vmem>>, vector<1x8x32xf32>,
    %250 = vector.extract_strided_slice %123 {offsets = [0, 126], sizes = [32, 16], strides = [1, 1]} : vector<32x144xbf16> to vector<32x16xbf16>
    %251 = vector.extract_strided_slice %250 {offsets = [0, 0], sizes = [16, 16], strides = [1, 1]} : vector<32x16xbf16> to vector<16x16xbf16>
    %c0_217 = arith.constant 0 : index
    %c0_218 = arith.constant 0 : index
    %c0_219 = arith.constant 0 : index
    %252 = vector.load %arg5[%c0_217, %c0_218, %c0_219] : memref<2x16x32xbf16, #tpu.memory_space<vmem>>, vector<1x16x32xbf16>
    %253 = vector.shape_cast %252 : vector<1x16x32xbf16> to vector<16x32xbf16>
    %cst_220 = arith.constant dense<0.000000e+00> : vector<16x32xf32>
    %254 = tpu.matmul %251, %253, %cst_220 {dimension_numbers = #tpu.dot_dimension_numbers<[1], [0], [0], [1], [0, 0, 1, 1], [], []>} : vector<16x16xbf16>, vector<16x32xbf16>, vector<16x32xf32> -> vector<16x32xf32>
    %255 = vector.extract_strided_slice %250 {offsets = [16, 0], sizes = [16, 16], strides = [1, 1]} : vector<32x16xbf16> to vector<16x16xbf16>
    %c1_221 = arith.constant 1 : index
    %c0_222 = arith.constant 0 : index
    %c0_223 = arith.constant 0 : index
    %256 = vector.load %arg5[%c1_221, %c0_222, %c0_223] : memref<2x16x32xbf16, #tpu.memory_space<vmem>>, vector<1x16x32xbf16>
    %257 = vector.shape_cast %256 : vector<1x16x32xbf16> to vector<16x32xbf16>
    %cst_224 = arith.constant dense<0.000000e+00> : vector<16x32xf32>
    %258 = tpu.matmul %255, %257, %cst_224 {dimension_numbers = #tpu.dot_dimension_numbers<[1], [0], [0], [1], [0, 0, 1, 1], [], []>} : vector<16x16xbf16>, vector<16x32xbf16>, vector<16x32xf32> -> vector<16x32xf32>
    %259 = arith.addf %254, %258 : vector<16x32xf32>
    %260 = vector.extract_strided_slice %259 {offsets = [0, 0], sizes = [8, 32], strides = [1, 1]} : vector<16x32xf32> to vector<8x32xf32>
    %c0_225 = arith.constant 0 : index
    %c0_226 = arith.constant 0 : index
    %c448 = arith.constant 448 : index
    %261 = vector.load %arg7[%c0_225, %c0_226, %c448] : memref<1x8x1024xf32, #tpu.memory_space<vmem>>, vector<1x8x32xf32>
    %262 = vector.shape_cast %261 : vector<1x8x32xf32> to vector<8x32xf32>
    %263 = vector.shape_cast %260 : vector<8x32xf32> to vector<1x8x32xf32>
    tpu.vector_store %arg7[%c0_225, %c0_226, %c448], %263 {strides = array<i32>} : memref<1x8x1024xf32, #tpu.memory_space<vmem>>, vector<1x8x32xf32>,
    %264 = vector.extract_strided_slice %259 {offsets = [8, 0], sizes = [8, 32], strides = [1, 1]} : vector<16x32xf32> to vector<8x32xf32>
    %c0_227 = arith.constant 0 : index
    %c0_228 = arith.constant 0 : index
    %c480 = arith.constant 480 : index
    %265 = vector.load %arg7[%c0_227, %c0_228, %c480] : memref<1x8x1024xf32, #tpu.memory_space<vmem>>, vector<1x8x32xf32>
    %266 = vector.shape_cast %265 : vector<1x8x32xf32> to vector<8x32xf32>
    %267 = vector.shape_cast %264 : vector<8x32xf32> to vector<1x8x32xf32>
    tpu.vector_store %arg7[%c0_227, %c0_228, %c480], %267 {strides = array<i32>} : memref<1x8x1024xf32, #tpu.memory_space<vmem>>, vector<1x8x32xf32>,
    %c0_229 = arith.constant 0 : index
    %c144_230 = arith.constant 144 : index
    %268 = vector.load %arg8[%c0_229, %c144_230] : memref<4x342xbf16, #tpu.memory_space<vmem>>, vector<4x144xbf16>
    %c0_231 = arith.constant 0 : index
    %c0_232 = arith.constant 0 : index
    %c0_233 = arith.constant 0 : index
    %269 = vector.load %arg4[%c0_231, %c0_232, %c0_233] : memref<9x32x4xbf16, #tpu.memory_space<vmem>>, vector<1x32x4xbf16>
    %270 = vector.shape_cast %269 : vector<1x32x4xbf16> to vector<32x4xbf16>
    %cst_234 = arith.constant dense<0.000000e+00> : vector<32x144xf32>
    %271 = tpu.matmul %270, %268, %cst_234 {dimension_numbers = #tpu.dot_dimension_numbers<[1], [0], [0], [1], [0, 0, 1, 1], [], []>} : vector<32x4xbf16>, vector<4x144xbf16>, vector<32x144xf32> -> vector<32x144xf32>
    %c0_235 = arith.constant 0 : index
    %c145 = arith.constant 145 : index
    %272 = vector.load %arg8[%c0_235, %c145] : memref<4x342xbf16, #tpu.memory_space<vmem>>, vector<4x144xbf16>
    %c1_236 = arith.constant 1 : index
    %c0_237 = arith.constant 0 : index
    %c0_238 = arith.constant 0 : index
    %273 = vector.load %arg4[%c1_236, %c0_237, %c0_238] : memref<9x32x4xbf16, #tpu.memory_space<vmem>>, vector<1x32x4xbf16>
    %274 = vector.shape_cast %273 : vector<1x32x4xbf16> to vector<32x4xbf16>
    %cst_239 = arith.constant dense<0.000000e+00> : vector<32x144xf32>
    %275 = tpu.matmul %274, %272, %cst_239 {dimension_numbers = #tpu.dot_dimension_numbers<[1], [0], [0], [1], [0, 0, 1, 1], [], []>} : vector<32x4xbf16>, vector<4x144xbf16>, vector<32x144xf32> -> vector<32x144xf32>
    %276 = arith.addf %271, %275 : vector<32x144xf32>
    %c0_240 = arith.constant 0 : index
    %c146 = arith.constant 146 : index
    %277 = vector.load %arg8[%c0_240, %c146] : memref<4x342xbf16, #tpu.memory_space<vmem>>, vector<4x144xbf16>
    %c2_241 = arith.constant 2 : index
    %c0_242 = arith.constant 0 : index
    %c0_243 = arith.constant 0 : index
    %278 = vector.load %arg4[%c2_241, %c0_242, %c0_243] : memref<9x32x4xbf16, #tpu.memory_space<vmem>>, vector<1x32x4xbf16>
    %279 = vector.shape_cast %278 : vector<1x32x4xbf16> to vector<32x4xbf16>
    %cst_244 = arith.constant dense<0.000000e+00> : vector<32x144xf32>
    %280 = tpu.matmul %279, %277, %cst_244 {dimension_numbers = #tpu.dot_dimension_numbers<[1], [0], [0], [1], [0, 0, 1, 1], [], []>} : vector<32x4xbf16>, vector<4x144xbf16>, vector<32x144xf32> -> vector<32x144xf32>
    %281 = arith.addf %276, %280 : vector<32x144xf32>
    %c0_245 = arith.constant 0 : index
    %c162_246 = arith.constant 162 : index
    %282 = vector.load %arg8[%c0_245, %c162_246] : memref<4x342xbf16, #tpu.memory_space<vmem>>, vector<4x144xbf16>
    %c3_247 = arith.constant 3 : index
    %c0_248 = arith.constant 0 : index
    %c0_249 = arith.constant 0 : index
    %283 = vector.load %arg4[%c3_247, %c0_248, %c0_249] : memref<9x32x4xbf16, #tpu.memory_space<vmem>>, vector<1x32x4xbf16>
    %284 = vector.shape_cast %283 : vector<1x32x4xbf16> to vector<32x4xbf16>
    %cst_250 = arith.constant dense<0.000000e+00> : vector<32x144xf32>
    %285 = tpu.matmul %284, %282, %cst_250 {dimension_numbers = #tpu.dot_dimension_numbers<[1], [0], [0], [1], [0, 0, 1, 1], [], []>} : vector<32x4xbf16>, vector<4x144xbf16>, vector<32x144xf32> -> vector<32x144xf32>
    %286 = arith.addf %281, %285 : vector<32x144xf32>
    %c0_251 = arith.constant 0 : index
    %c163 = arith.constant 163 : index
    %287 = vector.load %arg8[%c0_251, %c163] : memref<4x342xbf16, #tpu.memory_space<vmem>>, vector<4x144xbf16>
    %c4_252 = arith.constant 4 : index
    %c0_253 = arith.constant 0 : index
    %c0_254 = arith.constant 0 : index
    %288 = vector.load %arg4[%c4_252, %c0_253, %c0_254] : memref<9x32x4xbf16, #tpu.memory_space<vmem>>, vector<1x32x4xbf16>
    %289 = vector.shape_cast %288 : vector<1x32x4xbf16> to vector<32x4xbf16>
    %cst_255 = arith.constant dense<0.000000e+00> : vector<32x144xf32>
    %290 = tpu.matmul %289, %287, %cst_255 {dimension_numbers = #tpu.dot_dimension_numbers<[1], [0], [0], [1], [0, 0, 1, 1], [], []>} : vector<32x4xbf16>, vector<4x144xbf16>, vector<32x144xf32> -> vector<32x144xf32>
    %291 = arith.addf %286, %290 : vector<32x144xf32>
    %c0_256 = arith.constant 0 : index
    %c164 = arith.constant 164 : index
    %292 = vector.load %arg8[%c0_256, %c164] : memref<4x342xbf16, #tpu.memory_space<vmem>>, vector<4x144xbf16>
    %c5_257 = arith.constant 5 : index
    %c0_258 = arith.constant 0 : index
    %c0_259 = arith.constant 0 : index
    %293 = vector.load %arg4[%c5_257, %c0_258, %c0_259] : memref<9x32x4xbf16, #tpu.memory_space<vmem>>, vector<1x32x4xbf16>
    %294 = vector.shape_cast %293 : vector<1x32x4xbf16> to vector<32x4xbf16>
    %cst_260 = arith.constant dense<0.000000e+00> : vector<32x144xf32>
    %295 = tpu.matmul %294, %292, %cst_260 {dimension_numbers = #tpu.dot_dimension_numbers<[1], [0], [0], [1], [0, 0, 1, 1], [], []>} : vector<32x4xbf16>, vector<4x144xbf16>, vector<32x144xf32> -> vector<32x144xf32>
    %296 = arith.addf %291, %295 : vector<32x144xf32>
    %c0_261 = arith.constant 0 : index
    %c180_262 = arith.constant 180 : index
    %297 = vector.load %arg8[%c0_261, %c180_262] : memref<4x342xbf16, #tpu.memory_space<vmem>>, vector<4x144xbf16>
    %c6_263 = arith.constant 6 : index
    %c0_264 = arith.constant 0 : index
    %c0_265 = arith.constant 0 : index
    %298 = vector.load %arg4[%c6_263, %c0_264, %c0_265] : memref<9x32x4xbf16, #tpu.memory_space<vmem>>, vector<1x32x4xbf16>
    %299 = vector.shape_cast %298 : vector<1x32x4xbf16> to vector<32x4xbf16>
    %cst_266 = arith.constant dense<0.000000e+00> : vector<32x144xf32>
    %300 = tpu.matmul %299, %297, %cst_266 {dimension_numbers = #tpu.dot_dimension_numbers<[1], [0], [0], [1], [0, 0, 1, 1], [], []>} : vector<32x4xbf16>, vector<4x144xbf16>, vector<32x144xf32> -> vector<32x144xf32>
    %301 = arith.addf %296, %300 : vector<32x144xf32>
    %c0_267 = arith.constant 0 : index
    %c181 = arith.constant 181 : index
    %302 = vector.load %arg8[%c0_267, %c181] : memref<4x342xbf16, #tpu.memory_space<vmem>>, vector<4x144xbf16>
    %c7_268 = arith.constant 7 : index
    %c0_269 = arith.constant 0 : index
    %c0_270 = arith.constant 0 : index
    %303 = vector.load %arg4[%c7_268, %c0_269, %c0_270] : memref<9x32x4xbf16, #tpu.memory_space<vmem>>, vector<1x32x4xbf16>
    %304 = vector.shape_cast %303 : vector<1x32x4xbf16> to vector<32x4xbf16>
    %cst_271 = arith.constant dense<0.000000e+00> : vector<32x144xf32>
    %305 = tpu.matmul %304, %302, %cst_271 {dimension_numbers = #tpu.dot_dimension_numbers<[1], [0], [0], [1], [0, 0, 1, 1], [], []>} : vector<32x4xbf16>, vector<4x144xbf16>, vector<32x144xf32> -> vector<32x144xf32>
    %306 = arith.addf %301, %305 : vector<32x144xf32>
    %c0_272 = arith.constant 0 : index
    %c182 = arith.constant 182 : index
    %307 = vector.load %arg8[%c0_272, %c182] : memref<4x342xbf16, #tpu.memory_space<vmem>>, vector<4x144xbf16>
    %c8_273 = arith.constant 8 : index
    %c0_274 = arith.constant 0 : index
    %c0_275 = arith.constant 0 : index
    %308 = vector.load %arg4[%c8_273, %c0_274, %c0_275] : memref<9x32x4xbf16, #tpu.memory_space<vmem>>, vector<1x32x4xbf16>
    %309 = vector.shape_cast %308 : vector<1x32x4xbf16> to vector<32x4xbf16>
    %cst_276 = arith.constant dense<0.000000e+00> : vector<32x144xf32>
    %310 = tpu.matmul %309, %307, %cst_276 {dimension_numbers = #tpu.dot_dimension_numbers<[1], [0], [0], [1], [0, 0, 1, 1], [], []>} : vector<32x4xbf16>, vector<4x144xbf16>, vector<32x144xf32> -> vector<32x144xf32>
    %311 = arith.addf %306, %310 : vector<32x144xf32>
    %312 = vector.broadcast %76 : vector<32x1xf32> to vector<32x144xf32>
    %313 = arith.addf %311, %312 : vector<32x144xf32>
    %314 = arith.truncf %313 : vector<32x144xf32> to vector<32x144xbf16>
    %315 = vector.extract_strided_slice %314 {offsets = [0, 0], sizes = [32, 16], strides = [1, 1]} : vector<32x144xbf16> to vector<32x16xbf16>
    %316 = vector.extract_strided_slice %315 {offsets = [0, 0], sizes = [16, 16], strides = [1, 1]} : vector<32x16xbf16> to vector<16x16xbf16>
    %c0_277 = arith.constant 0 : index
    %c0_278 = arith.constant 0 : index
    %c0_279 = arith.constant 0 : index
    %317 = vector.load %arg5[%c0_277, %c0_278, %c0_279] : memref<2x16x32xbf16, #tpu.memory_space<vmem>>, vector<1x16x32xbf16>
    %318 = vector.shape_cast %317 : vector<1x16x32xbf16> to vector<16x32xbf16>
    %cst_280 = arith.constant dense<0.000000e+00> : vector<16x32xf32>
    %319 = tpu.matmul %316, %318, %cst_280 {dimension_numbers = #tpu.dot_dimension_numbers<[1], [0], [0], [1], [0, 0, 1, 1], [], []>} : vector<16x16xbf16>, vector<16x32xbf16>, vector<16x32xf32> -> vector<16x32xf32>
    %320 = vector.extract_strided_slice %315 {offsets = [16, 0], sizes = [16, 16], strides = [1, 1]} : vector<32x16xbf16> to vector<16x16xbf16>
    %c1_281 = arith.constant 1 : index
    %c0_282 = arith.constant 0 : index
    %c0_283 = arith.constant 0 : index
    %321 = vector.load %arg5[%c1_281, %c0_282, %c0_283] : memref<2x16x32xbf16, #tpu.memory_space<vmem>>, vector<1x16x32xbf16>
    %322 = vector.shape_cast %321 : vector<1x16x32xbf16> to vector<16x32xbf16>
    %cst_284 = arith.constant dense<0.000000e+00> : vector<16x32xf32>
    %323 = tpu.matmul %320, %322, %cst_284 {dimension_numbers = #tpu.dot_dimension_numbers<[1], [0], [0], [1], [0, 0, 1, 1], [], []>} : vector<16x16xbf16>, vector<16x32xbf16>, vector<16x32xf32> -> vector<16x32xf32>
    %324 = arith.addf %319, %323 : vector<16x32xf32>
    %325 = vector.extract_strided_slice %324 {offsets = [0, 0], sizes = [8, 32], strides = [1, 1]} : vector<16x32xf32> to vector<8x32xf32>
    %c0_285 = arith.constant 0 : index
    %c0_286 = arith.constant 0 : index
    %c512 = arith.constant 512 : index
    %326 = vector.load %arg7[%c0_285, %c0_286, %c512] : memref<1x8x1024xf32, #tpu.memory_space<vmem>>, vector<1x8x32xf32>
    %327 = vector.shape_cast %326 : vector<1x8x32xf32> to vector<8x32xf32>
    %328 = vector.shape_cast %325 : vector<8x32xf32> to vector<1x8x32xf32>
    tpu.vector_store %arg7[%c0_285, %c0_286, %c512], %328 {strides = array<i32>} : memref<1x8x1024xf32, #tpu.memory_space<vmem>>, vector<1x8x32xf32>,
    %329 = vector.extract_strided_slice %324 {offsets = [8, 0], sizes = [8, 32], strides = [1, 1]} : vector<16x32xf32> to vector<8x32xf32>
    %c0_287 = arith.constant 0 : index
    %c0_288 = arith.constant 0 : index
    %c544 = arith.constant 544 : index
    %330 = vector.load %arg7[%c0_287, %c0_288, %c544] : memref<1x8x1024xf32, #tpu.memory_space<vmem>>, vector<1x8x32xf32>
    %331 = vector.shape_cast %330 : vector<1x8x32xf32> to vector<8x32xf32>
    %332 = vector.shape_cast %329 : vector<8x32xf32> to vector<1x8x32xf32>
    tpu.vector_store %arg7[%c0_287, %c0_288, %c544], %332 {strides = array<i32>} : memref<1x8x1024xf32, #tpu.memory_space<vmem>>, vector<1x8x32xf32>,
    %333 = vector.extract_strided_slice %314 {offsets = [0, 18], sizes = [32, 16], strides = [1, 1]} : vector<32x144xbf16> to vector<32x16xbf16>
    %334 = vector.extract_strided_slice %333 {offsets = [0, 0], sizes = [16, 16], strides = [1, 1]} : vector<32x16xbf16> to vector<16x16xbf16>
    %c0_289 = arith.constant 0 : index
    %c0_290 = arith.constant 0 : index
    %c0_291 = arith.constant 0 : index
    %335 = vector.load %arg5[%c0_289, %c0_290, %c0_291] : memref<2x16x32xbf16, #tpu.memory_space<vmem>>, vector<1x16x32xbf16>
    %336 = vector.shape_cast %335 : vector<1x16x32xbf16> to vector<16x32xbf16>
    %cst_292 = arith.constant dense<0.000000e+00> : vector<16x32xf32>
    %337 = tpu.matmul %334, %336, %cst_292 {dimension_numbers = #tpu.dot_dimension_numbers<[1], [0], [0], [1], [0, 0, 1, 1], [], []>} : vector<16x16xbf16>, vector<16x32xbf16>, vector<16x32xf32> -> vector<16x32xf32>
    %338 = vector.extract_strided_slice %333 {offsets = [16, 0], sizes = [16, 16], strides = [1, 1]} : vector<32x16xbf16> to vector<16x16xbf16>
    %c1_293 = arith.constant 1 : index
    %c0_294 = arith.constant 0 : index
    %c0_295 = arith.constant 0 : index
    %339 = vector.load %arg5[%c1_293, %c0_294, %c0_295] : memref<2x16x32xbf16, #tpu.memory_space<vmem>>, vector<1x16x32xbf16>
    %340 = vector.shape_cast %339 : vector<1x16x32xbf16> to vector<16x32xbf16>
    %cst_296 = arith.constant dense<0.000000e+00> : vector<16x32xf32>
    %341 = tpu.matmul %338, %340, %cst_296 {dimension_numbers = #tpu.dot_dimension_numbers<[1], [0], [0], [1], [0, 0, 1, 1], [], []>} : vector<16x16xbf16>, vector<16x32xbf16>, vector<16x32xf32> -> vector<16x32xf32>
    %342 = arith.addf %337, %341 : vector<16x32xf32>
    %343 = vector.extract_strided_slice %342 {offsets = [0, 0], sizes = [8, 32], strides = [1, 1]} : vector<16x32xf32> to vector<8x32xf32>
    %c0_297 = arith.constant 0 : index
    %c0_298 = arith.constant 0 : index
    %c576 = arith.constant 576 : index
    %344 = vector.load %arg7[%c0_297, %c0_298, %c576] : memref<1x8x1024xf32, #tpu.memory_space<vmem>>, vector<1x8x32xf32>
    %345 = vector.shape_cast %344 : vector<1x8x32xf32> to vector<8x32xf32>
    %346 = vector.shape_cast %343 : vector<8x32xf32> to vector<1x8x32xf32>
    tpu.vector_store %arg7[%c0_297, %c0_298, %c576], %346 {strides = array<i32>} : memref<1x8x1024xf32, #tpu.memory_space<vmem>>, vector<1x8x32xf32>,
    %347 = vector.extract_strided_slice %342 {offsets = [8, 0], sizes = [8, 32], strides = [1, 1]} : vector<16x32xf32> to vector<8x32xf32>
    %c0_299 = arith.constant 0 : index
    %c0_300 = arith.constant 0 : index
    %c608 = arith.constant 608 : index
    %348 = vector.load %arg7[%c0_299, %c0_300, %c608] : memref<1x8x1024xf32, #tpu.memory_space<vmem>>, vector<1x8x32xf32>
    %349 = vector.shape_cast %348 : vector<1x8x32xf32> to vector<8x32xf32>
    %350 = vector.shape_cast %347 : vector<8x32xf32> to vector<1x8x32xf32>
    tpu.vector_store %arg7[%c0_299, %c0_300, %c608], %350 {strides = array<i32>} : memref<1x8x1024xf32, #tpu.memory_space<vmem>>, vector<1x8x32xf32>,
    %351 = vector.extract_strided_slice %314 {offsets = [0, 36], sizes = [32, 16], strides = [1, 1]} : vector<32x144xbf16> to vector<32x16xbf16>
    %352 = vector.extract_strided_slice %351 {offsets = [0, 0], sizes = [16, 16], strides = [1, 1]} : vector<32x16xbf16> to vector<16x16xbf16>
    %c0_301 = arith.constant 0 : index
    %c0_302 = arith.constant 0 : index
    %c0_303 = arith.constant 0 : index
    %353 = vector.load %arg5[%c0_301, %c0_302, %c0_303] : memref<2x16x32xbf16, #tpu.memory_space<vmem>>, vector<1x16x32xbf16>
    %354 = vector.shape_cast %353 : vector<1x16x32xbf16> to vector<16x32xbf16>
    %cst_304 = arith.constant dense<0.000000e+00> : vector<16x32xf32>
    %355 = tpu.matmul %352, %354, %cst_304 {dimension_numbers = #tpu.dot_dimension_numbers<[1], [0], [0], [1], [0, 0, 1, 1], [], []>} : vector<16x16xbf16>, vector<16x32xbf16>, vector<16x32xf32> -> vector<16x32xf32>
    %356 = vector.extract_strided_slice %351 {offsets = [16, 0], sizes = [16, 16], strides = [1, 1]} : vector<32x16xbf16> to vector<16x16xbf16>
    %c1_305 = arith.constant 1 : index
    %c0_306 = arith.constant 0 : index
    %c0_307 = arith.constant 0 : index
    %357 = vector.load %arg5[%c1_305, %c0_306, %c0_307] : memref<2x16x32xbf16, #tpu.memory_space<vmem>>, vector<1x16x32xbf16>
    %358 = vector.shape_cast %357 : vector<1x16x32xbf16> to vector<16x32xbf16>
    %cst_308 = arith.constant dense<0.000000e+00> : vector<16x32xf32>
    %359 = tpu.matmul %356, %358, %cst_308 {dimension_numbers = #tpu.dot_dimension_numbers<[1], [0], [0], [1], [0, 0, 1, 1], [], []>} : vector<16x16xbf16>, vector<16x32xbf16>, vector<16x32xf32> -> vector<16x32xf32>
    %360 = arith.addf %355, %359 : vector<16x32xf32>
    %361 = vector.extract_strided_slice %360 {offsets = [0, 0], sizes = [8, 32], strides = [1, 1]} : vector<16x32xf32> to vector<8x32xf32>
    %c0_309 = arith.constant 0 : index
    %c0_310 = arith.constant 0 : index
    %c640 = arith.constant 640 : index
    %362 = vector.load %arg7[%c0_309, %c0_310, %c640] : memref<1x8x1024xf32, #tpu.memory_space<vmem>>, vector<1x8x32xf32>
    %363 = vector.shape_cast %362 : vector<1x8x32xf32> to vector<8x32xf32>
    %364 = vector.shape_cast %361 : vector<8x32xf32> to vector<1x8x32xf32>
    tpu.vector_store %arg7[%c0_309, %c0_310, %c640], %364 {strides = array<i32>} : memref<1x8x1024xf32, #tpu.memory_space<vmem>>, vector<1x8x32xf32>,
    %365 = vector.extract_strided_slice %360 {offsets = [8, 0], sizes = [8, 32], strides = [1, 1]} : vector<16x32xf32> to vector<8x32xf32>
    %c0_311 = arith.constant 0 : index
    %c0_312 = arith.constant 0 : index
    %c672 = arith.constant 672 : index
    %366 = vector.load %arg7[%c0_311, %c0_312, %c672] : memref<1x8x1024xf32, #tpu.memory_space<vmem>>, vector<1x8x32xf32>
    %367 = vector.shape_cast %366 : vector<1x8x32xf32> to vector<8x32xf32>
    %368 = vector.shape_cast %365 : vector<8x32xf32> to vector<1x8x32xf32>
    tpu.vector_store %arg7[%c0_311, %c0_312, %c672], %368 {strides = array<i32>} : memref<1x8x1024xf32, #tpu.memory_space<vmem>>, vector<1x8x32xf32>,
    %369 = vector.extract_strided_slice %314 {offsets = [0, 54], sizes = [32, 16], strides = [1, 1]} : vector<32x144xbf16> to vector<32x16xbf16>
    %370 = vector.extract_strided_slice %369 {offsets = [0, 0], sizes = [16, 16], strides = [1, 1]} : vector<32x16xbf16> to vector<16x16xbf16>
    %c0_313 = arith.constant 0 : index
    %c0_314 = arith.constant 0 : index
    %c0_315 = arith.constant 0 : index
    %371 = vector.load %arg5[%c0_313, %c0_314, %c0_315] : memref<2x16x32xbf16, #tpu.memory_space<vmem>>, vector<1x16x32xbf16>
    %372 = vector.shape_cast %371 : vector<1x16x32xbf16> to vector<16x32xbf16>
    %cst_316 = arith.constant dense<0.000000e+00> : vector<16x32xf32>
    %373 = tpu.matmul %370, %372, %cst_316 {dimension_numbers = #tpu.dot_dimension_numbers<[1], [0], [0], [1], [0, 0, 1, 1], [], []>} : vector<16x16xbf16>, vector<16x32xbf16>, vector<16x32xf32> -> vector<16x32xf32>
    %374 = vector.extract_strided_slice %369 {offsets = [16, 0], sizes = [16, 16], strides = [1, 1]} : vector<32x16xbf16> to vector<16x16xbf16>
    %c1_317 = arith.constant 1 : index
    %c0_318 = arith.constant 0 : index
    %c0_319 = arith.constant 0 : index
    %375 = vector.load %arg5[%c1_317, %c0_318, %c0_319] : memref<2x16x32xbf16, #tpu.memory_space<vmem>>, vector<1x16x32xbf16>
    %376 = vector.shape_cast %375 : vector<1x16x32xbf16> to vector<16x32xbf16>
    %cst_320 = arith.constant dense<0.000000e+00> : vector<16x32xf32>
    %377 = tpu.matmul %374, %376, %cst_320 {dimension_numbers = #tpu.dot_dimension_numbers<[1], [0], [0], [1], [0, 0, 1, 1], [], []>} : vector<16x16xbf16>, vector<16x32xbf16>, vector<16x32xf32> -> vector<16x32xf32>
    %378 = arith.addf %373, %377 : vector<16x32xf32>
    %379 = vector.extract_strided_slice %378 {offsets = [0, 0], sizes = [8, 32], strides = [1, 1]} : vector<16x32xf32> to vector<8x32xf32>
    %c0_321 = arith.constant 0 : index
    %c0_322 = arith.constant 0 : index
    %c704 = arith.constant 704 : index
    %380 = vector.load %arg7[%c0_321, %c0_322, %c704] : memref<1x8x1024xf32, #tpu.memory_space<vmem>>, vector<1x8x32xf32>
    %381 = vector.shape_cast %380 : vector<1x8x32xf32> to vector<8x32xf32>
    %382 = vector.shape_cast %379 : vector<8x32xf32> to vector<1x8x32xf32>
    tpu.vector_store %arg7[%c0_321, %c0_322, %c704], %382 {strides = array<i32>} : memref<1x8x1024xf32, #tpu.memory_space<vmem>>, vector<1x8x32xf32>,
    %383 = vector.extract_strided_slice %378 {offsets = [8, 0], sizes = [8, 32], strides = [1, 1]} : vector<16x32xf32> to vector<8x32xf32>
    %c0_323 = arith.constant 0 : index
    %c0_324 = arith.constant 0 : index
    %c736 = arith.constant 736 : index
    %384 = vector.load %arg7[%c0_323, %c0_324, %c736] : memref<1x8x1024xf32, #tpu.memory_space<vmem>>, vector<1x8x32xf32>
    %385 = vector.shape_cast %384 : vector<1x8x32xf32> to vector<8x32xf32>
    %386 = vector.shape_cast %383 : vector<8x32xf32> to vector<1x8x32xf32>
    tpu.vector_store %arg7[%c0_323, %c0_324, %c736], %386 {strides = array<i32>} : memref<1x8x1024xf32, #tpu.memory_space<vmem>>, vector<1x8x32xf32>,
    %387 = vector.extract_strided_slice %314 {offsets = [0, 72], sizes = [32, 16], strides = [1, 1]} : vector<32x144xbf16> to vector<32x16xbf16>
    %388 = vector.extract_strided_slice %387 {offsets = [0, 0], sizes = [16, 16], strides = [1, 1]} : vector<32x16xbf16> to vector<16x16xbf16>
    %c0_325 = arith.constant 0 : index
    %c0_326 = arith.constant 0 : index
    %c0_327 = arith.constant 0 : index
    %389 = vector.load %arg5[%c0_325, %c0_326, %c0_327] : memref<2x16x32xbf16, #tpu.memory_space<vmem>>, vector<1x16x32xbf16>
    %390 = vector.shape_cast %389 : vector<1x16x32xbf16> to vector<16x32xbf16>
    %cst_328 = arith.constant dense<0.000000e+00> : vector<16x32xf32>
    %391 = tpu.matmul %388, %390, %cst_328 {dimension_numbers = #tpu.dot_dimension_numbers<[1], [0], [0], [1], [0, 0, 1, 1], [], []>} : vector<16x16xbf16>, vector<16x32xbf16>, vector<16x32xf32> -> vector<16x32xf32>
    %392 = vector.extract_strided_slice %387 {offsets = [16, 0], sizes = [16, 16], strides = [1, 1]} : vector<32x16xbf16> to vector<16x16xbf16>
    %c1_329 = arith.constant 1 : index
    %c0_330 = arith.constant 0 : index
    %c0_331 = arith.constant 0 : index
    %393 = vector.load %arg5[%c1_329, %c0_330, %c0_331] : memref<2x16x32xbf16, #tpu.memory_space<vmem>>, vector<1x16x32xbf16>
    %394 = vector.shape_cast %393 : vector<1x16x32xbf16> to vector<16x32xbf16>
    %cst_332 = arith.constant dense<0.000000e+00> : vector<16x32xf32>
    %395 = tpu.matmul %392, %394, %cst_332 {dimension_numbers = #tpu.dot_dimension_numbers<[1], [0], [0], [1], [0, 0, 1, 1], [], []>} : vector<16x16xbf16>, vector<16x32xbf16>, vector<16x32xf32> -> vector<16x32xf32>
    %396 = arith.addf %391, %395 : vector<16x32xf32>
    %397 = vector.extract_strided_slice %396 {offsets = [0, 0], sizes = [8, 32], strides = [1, 1]} : vector<16x32xf32> to vector<8x32xf32>
    %c0_333 = arith.constant 0 : index
    %c0_334 = arith.constant 0 : index
    %c768 = arith.constant 768 : index
    %398 = vector.load %arg7[%c0_333, %c0_334, %c768] : memref<1x8x1024xf32, #tpu.memory_space<vmem>>, vector<1x8x32xf32>
    %399 = vector.shape_cast %398 : vector<1x8x32xf32> to vector<8x32xf32>
    %400 = vector.shape_cast %397 : vector<8x32xf32> to vector<1x8x32xf32>
    tpu.vector_store %arg7[%c0_333, %c0_334, %c768], %400 {strides = array<i32>} : memref<1x8x1024xf32, #tpu.memory_space<vmem>>, vector<1x8x32xf32>,
    %401 = vector.extract_strided_slice %396 {offsets = [8, 0], sizes = [8, 32], strides = [1, 1]} : vector<16x32xf32> to vector<8x32xf32>
    %c0_335 = arith.constant 0 : index
    %c0_336 = arith.constant 0 : index
    %c800 = arith.constant 800 : index
    %402 = vector.load %arg7[%c0_335, %c0_336, %c800] : memref<1x8x1024xf32, #tpu.memory_space<vmem>>, vector<1x8x32xf32>
    %403 = vector.shape_cast %402 : vector<1x8x32xf32> to vector<8x32xf32>
    %404 = vector.shape_cast %401 : vector<8x32xf32> to vector<1x8x32xf32>
    tpu.vector_store %arg7[%c0_335, %c0_336, %c800], %404 {strides = array<i32>} : memref<1x8x1024xf32, #tpu.memory_space<vmem>>, vector<1x8x32xf32>,
    %405 = vector.extract_strided_slice %314 {offsets = [0, 90], sizes = [32, 16], strides = [1, 1]} : vector<32x144xbf16> to vector<32x16xbf16>
    %406 = vector.extract_strided_slice %405 {offsets = [0, 0], sizes = [16, 16], strides = [1, 1]} : vector<32x16xbf16> to vector<16x16xbf16>
    %c0_337 = arith.constant 0 : index
    %c0_338 = arith.constant 0 : index
    %c0_339 = arith.constant 0 : index
    %407 = vector.load %arg5[%c0_337, %c0_338, %c0_339] : memref<2x16x32xbf16, #tpu.memory_space<vmem>>, vector<1x16x32xbf16>
    %408 = vector.shape_cast %407 : vector<1x16x32xbf16> to vector<16x32xbf16>
    %cst_340 = arith.constant dense<0.000000e+00> : vector<16x32xf32>
    %409 = tpu.matmul %406, %408, %cst_340 {dimension_numbers = #tpu.dot_dimension_numbers<[1], [0], [0], [1], [0, 0, 1, 1], [], []>} : vector<16x16xbf16>, vector<16x32xbf16>, vector<16x32xf32> -> vector<16x32xf32>
    %410 = vector.extract_strided_slice %405 {offsets = [16, 0], sizes = [16, 16], strides = [1, 1]} : vector<32x16xbf16> to vector<16x16xbf16>
    %c1_341 = arith.constant 1 : index
    %c0_342 = arith.constant 0 : index
    %c0_343 = arith.constant 0 : index
    %411 = vector.load %arg5[%c1_341, %c0_342, %c0_343] : memref<2x16x32xbf16, #tpu.memory_space<vmem>>, vector<1x16x32xbf16>
    %412 = vector.shape_cast %411 : vector<1x16x32xbf16> to vector<16x32xbf16>
    %cst_344 = arith.constant dense<0.000000e+00> : vector<16x32xf32>
    %413 = tpu.matmul %410, %412, %cst_344 {dimension_numbers = #tpu.dot_dimension_numbers<[1], [0], [0], [1], [0, 0, 1, 1], [], []>} : vector<16x16xbf16>, vector<16x32xbf16>, vector<16x32xf32> -> vector<16x32xf32>
    %414 = arith.addf %409, %413 : vector<16x32xf32>
    %415 = vector.extract_strided_slice %414 {offsets = [0, 0], sizes = [8, 32], strides = [1, 1]} : vector<16x32xf32> to vector<8x32xf32>
    %c0_345 = arith.constant 0 : index
    %c0_346 = arith.constant 0 : index
    %c832 = arith.constant 832 : index
    %416 = vector.load %arg7[%c0_345, %c0_346, %c832] : memref<1x8x1024xf32, #tpu.memory_space<vmem>>, vector<1x8x32xf32>
    %417 = vector.shape_cast %416 : vector<1x8x32xf32> to vector<8x32xf32>
    %418 = vector.shape_cast %415 : vector<8x32xf32> to vector<1x8x32xf32>
    tpu.vector_store %arg7[%c0_345, %c0_346, %c832], %418 {strides = array<i32>} : memref<1x8x1024xf32, #tpu.memory_space<vmem>>, vector<1x8x32xf32>,
    %419 = vector.extract_strided_slice %414 {offsets = [8, 0], sizes = [8, 32], strides = [1, 1]} : vector<16x32xf32> to vector<8x32xf32>
    %c0_347 = arith.constant 0 : index
    %c0_348 = arith.constant 0 : index
    %c864 = arith.constant 864 : index
    %420 = vector.load %arg7[%c0_347, %c0_348, %c864] : memref<1x8x1024xf32, #tpu.memory_space<vmem>>, vector<1x8x32xf32>
    %421 = vector.shape_cast %420 : vector<1x8x32xf32> to vector<8x32xf32>
    %422 = vector.shape_cast %419 : vector<8x32xf32> to vector<1x8x32xf32>
    tpu.vector_store %arg7[%c0_347, %c0_348, %c864], %422 {strides = array<i32>} : memref<1x8x1024xf32, #tpu.memory_space<vmem>>, vector<1x8x32xf32>,
    %423 = vector.extract_strided_slice %314 {offsets = [0, 108], sizes = [32, 16], strides = [1, 1]} : vector<32x144xbf16> to vector<32x16xbf16>
    %424 = vector.extract_strided_slice %423 {offsets = [0, 0], sizes = [16, 16], strides = [1, 1]} : vector<32x16xbf16> to vector<16x16xbf16>
    %c0_349 = arith.constant 0 : index
    %c0_350 = arith.constant 0 : index
    %c0_351 = arith.constant 0 : index
    %425 = vector.load %arg5[%c0_349, %c0_350, %c0_351] : memref<2x16x32xbf16, #tpu.memory_space<vmem>>, vector<1x16x32xbf16>
    %426 = vector.shape_cast %425 : vector<1x16x32xbf16> to vector<16x32xbf16>
    %cst_352 = arith.constant dense<0.000000e+00> : vector<16x32xf32>
    %427 = tpu.matmul %424, %426, %cst_352 {dimension_numbers = #tpu.dot_dimension_numbers<[1], [0], [0], [1], [0, 0, 1, 1], [], []>} : vector<16x16xbf16>, vector<16x32xbf16>, vector<16x32xf32> -> vector<16x32xf32>
    %428 = vector.extract_strided_slice %423 {offsets = [16, 0], sizes = [16, 16], strides = [1, 1]} : vector<32x16xbf16> to vector<16x16xbf16>
    %c1_353 = arith.constant 1 : index
    %c0_354 = arith.constant 0 : index
    %c0_355 = arith.constant 0 : index
    %429 = vector.load %arg5[%c1_353, %c0_354, %c0_355] : memref<2x16x32xbf16, #tpu.memory_space<vmem>>, vector<1x16x32xbf16>
    %430 = vector.shape_cast %429 : vector<1x16x32xbf16> to vector<16x32xbf16>
    %cst_356 = arith.constant dense<0.000000e+00> : vector<16x32xf32>
    %431 = tpu.matmul %428, %430, %cst_356 {dimension_numbers = #tpu.dot_dimension_numbers<[1], [0], [0], [1], [0, 0, 1, 1], [], []>} : vector<16x16xbf16>, vector<16x32xbf16>, vector<16x32xf32> -> vector<16x32xf32>
    %432 = arith.addf %427, %431 : vector<16x32xf32>
    %433 = vector.extract_strided_slice %432 {offsets = [0, 0], sizes = [8, 32], strides = [1, 1]} : vector<16x32xf32> to vector<8x32xf32>
    %c0_357 = arith.constant 0 : index
    %c0_358 = arith.constant 0 : index
    %c896 = arith.constant 896 : index
    %434 = vector.load %arg7[%c0_357, %c0_358, %c896] : memref<1x8x1024xf32, #tpu.memory_space<vmem>>, vector<1x8x32xf32>
    %435 = vector.shape_cast %434 : vector<1x8x32xf32> to vector<8x32xf32>
    %436 = vector.shape_cast %433 : vector<8x32xf32> to vector<1x8x32xf32>
    tpu.vector_store %arg7[%c0_357, %c0_358, %c896], %436 {strides = array<i32>} : memref<1x8x1024xf32, #tpu.memory_space<vmem>>, vector<1x8x32xf32>,
    %437 = vector.extract_strided_slice %432 {offsets = [8, 0], sizes = [8, 32], strides = [1, 1]} : vector<16x32xf32> to vector<8x32xf32>
    %c0_359 = arith.constant 0 : index
    %c0_360 = arith.constant 0 : index
    %c928 = arith.constant 928 : index
    %438 = vector.load %arg7[%c0_359, %c0_360, %c928] : memref<1x8x1024xf32, #tpu.memory_space<vmem>>, vector<1x8x32xf32>
    %439 = vector.shape_cast %438 : vector<1x8x32xf32> to vector<8x32xf32>
    %440 = vector.shape_cast %437 : vector<8x32xf32> to vector<1x8x32xf32>
    tpu.vector_store %arg7[%c0_359, %c0_360, %c928], %440 {strides = array<i32>} : memref<1x8x1024xf32, #tpu.memory_space<vmem>>, vector<1x8x32xf32>,
    %441 = vector.extract_strided_slice %314 {offsets = [0, 126], sizes = [32, 16], strides = [1, 1]} : vector<32x144xbf16> to vector<32x16xbf16>
    %442 = vector.extract_strided_slice %441 {offsets = [0, 0], sizes = [16, 16], strides = [1, 1]} : vector<32x16xbf16> to vector<16x16xbf16>
    %c0_361 = arith.constant 0 : index
    %c0_362 = arith.constant 0 : index
    %c0_363 = arith.constant 0 : index
    %443 = vector.load %arg5[%c0_361, %c0_362, %c0_363] : memref<2x16x32xbf16, #tpu.memory_space<vmem>>, vector<1x16x32xbf16>
    %444 = vector.shape_cast %443 : vector<1x16x32xbf16> to vector<16x32xbf16>
    %cst_364 = arith.constant dense<0.000000e+00> : vector<16x32xf32>
    %445 = tpu.matmul %442, %444, %cst_364 {dimension_numbers = #tpu.dot_dimension_numbers<[1], [0], [0], [1], [0, 0, 1, 1], [], []>} : vector<16x16xbf16>, vector<16x32xbf16>, vector<16x32xf32> -> vector<16x32xf32>
    %446 = vector.extract_strided_slice %441 {offsets = [16, 0], sizes = [16, 16], strides = [1, 1]} : vector<32x16xbf16> to vector<16x16xbf16>
    %c1_365 = arith.constant 1 : index
    %c0_366 = arith.constant 0 : index
    %c0_367 = arith.constant 0 : index
    %447 = vector.load %arg5[%c1_365, %c0_366, %c0_367] : memref<2x16x32xbf16, #tpu.memory_space<vmem>>, vector<1x16x32xbf16>
    %448 = vector.shape_cast %447 : vector<1x16x32xbf16> to vector<16x32xbf16>
    %cst_368 = arith.constant dense<0.000000e+00> : vector<16x32xf32>
    %449 = tpu.matmul %446, %448, %cst_368 {dimension_numbers = #tpu.dot_dimension_numbers<[1], [0], [0], [1], [0, 0, 1, 1], [], []>} : vector<16x16xbf16>, vector<16x32xbf16>, vector<16x32xf32> -> vector<16x32xf32>
    %450 = arith.addf %445, %449 : vector<16x32xf32>
    %451 = vector.extract_strided_slice %450 {offsets = [0, 0], sizes = [8, 32], strides = [1, 1]} : vector<16x32xf32> to vector<8x32xf32>
    %c0_369 = arith.constant 0 : index
    %c0_370 = arith.constant 0 : index
    %c960 = arith.constant 960 : index
    %452 = vector.load %arg7[%c0_369, %c0_370, %c960] : memref<1x8x1024xf32, #tpu.memory_space<vmem>>, vector<1x8x32xf32>
    %453 = vector.shape_cast %452 : vector<1x8x32xf32> to vector<8x32xf32>
    %454 = vector.shape_cast %451 : vector<8x32xf32> to vector<1x8x32xf32>
    tpu.vector_store %arg7[%c0_369, %c0_370, %c960], %454 {strides = array<i32>} : memref<1x8x1024xf32, #tpu.memory_space<vmem>>, vector<1x8x32xf32>,
    %455 = vector.extract_strided_slice %450 {offsets = [8, 0], sizes = [8, 32], strides = [1, 1]} : vector<16x32xf32> to vector<8x32xf32>
    %c0_371 = arith.constant 0 : index
    %c0_372 = arith.constant 0 : index
    %c992 = arith.constant 992 : index
    %456 = vector.load %arg7[%c0_371, %c0_372, %c992] : memref<1x8x1024xf32, #tpu.memory_space<vmem>>, vector<1x8x32xf32>
    %457 = vector.shape_cast %456 : vector<1x8x32xf32> to vector<8x32xf32>
    %458 = vector.shape_cast %455 : vector<8x32xf32> to vector<1x8x32xf32>
    tpu.vector_store %arg7[%c0_371, %c0_372, %c992], %458 {strides = array<i32>} : memref<1x8x1024xf32, #tpu.memory_space<vmem>>, vector<1x8x32xf32>,
    return
  }
  func.func @transform_0(%arg0: i32, %arg1: i32) -> (i32, i32, i32, i32) {
    %c0_i32 = arith.constant 0 : i32
    %c0_i32_0 = arith.constant 0 : i32
    %c0_i32_1 = arith.constant 0 : i32
    return %arg0, %c0_i32, %arg1, %c0_i32_0 : i32, i32, i32, i32
  }
  func.func @transform_1(%arg0: i32, %arg1: i32) -> (i32, i32, i32, i32) {
    %c1_i32 = arith.constant 1 : i32
    %0 = arith.addi %arg1, %c1_i32 : i32
    %c2_i32 = arith.constant 2 : i32
    %1 = arith.muli %0, %c2_i32 : i32
    %c0_i32 = arith.constant 0 : i32
    %c0_i32_0 = arith.constant 0 : i32
    %c0_i32_1 = arith.constant 0 : i32
    return %arg0, %c0_i32, %1, %c0_i32_0 : i32, i32, i32, i32
  }
  func.func @transform_2(%arg0: i32, %arg1: i32) -> (i32, i32, i32) {
    %c0_i32 = arith.constant 0 : i32
    %c0_i32_0 = arith.constant 0 : i32
    %c0_i32_1 = arith.constant 0 : i32
    %c0_i32_2 = arith.constant 0 : i32
    return %c0_i32, %c0_i32_0, %c0_i32_1 : i32, i32, i32
  }
  func.func @transform_3(%arg0: i32, %arg1: i32) -> (i32, i32, i32) {
    %c0_i32 = arith.constant 0 : i32
    %c0_i32_0 = arith.constant 0 : i32
    %c0_i32_1 = arith.constant 0 : i32
    %c0_i32_2 = arith.constant 0 : i32
    return %c0_i32, %c0_i32_0, %c0_i32_1 : i32, i32, i32
  }
  func.func @transform_4(%arg0: i32, %arg1: i32) -> (i32, i32) {
    %c0_i32 = arith.constant 0 : i32
    %c0_i32_0 = arith.constant 0 : i32
    %c0_i32_1 = arith.constant 0 : i32
    return %c0_i32, %c0_i32_0 : i32, i32
  }
  func.func @transform_5(%arg0: i32, %arg1: i32) -> (i32, i32, i32) {
    %c0_i32 = arith.constant 0 : i32
    %c0_i32_0 = arith.constant 0 : i32
    return %arg0, %c0_i32, %arg1 : i32, i32, i32
  }
}

</mosaic_0001>

<llo_original>
// kernel: tpu_custom_call.1
$region0: #{tpu_custom_call.1}
  #allocation0 [shape = 'u32[]', space=smem, size = 0x4, offset = 0x4, fixed_abs, tag = 'smem constant byte address 0x4 - core index']
  #allocation1 [shape = 'u32[144,128]{1,0:T(1,128)}', space=vmem, size = 0x12000, scoped, tag = 'internal scratch']
  #allocation2 [shape = 'bf16[4,342]{1,0:T(4,128)(2,1)}', space=vmem, size = 0xc00, scoped, tag = 'scratch operand']
  %s0 = inlined_call_operand.vmem [shape: bf16[2,4,32,18], index: 0, kind: input, shape index: {}]
  %s1 = inlined_call_operand.vmem [shape: bf16[2,4,32,18], index: 1, kind: input, shape index: {}]
  %s2 = inlined_call_operand.vmem [shape: bf16[9,32,4], index: 2, kind: input, shape index: {}]
  %s3 = inlined_call_operand.vmem [shape: bf16[2,16,32], index: 3, kind: input, shape index: {}]
  %s4 = inlined_call_operand.vmem [shape: f32[32,1], index: 4, kind: input, shape index: {}]
  %s5 = inlined_call_operand.hbm [shape: f32[2,8,1024], index: 5, kind: output, shape index: {}]
  %s6 = sld [smem:[#allocation0]]
  $region135: #{tpu_custom_call.1} parent=0
    _
  %s8 = ssub.s32 1, %s6
  %s9 = scalar_select 0, %s8, %s6
  $region1: #{tpu_custom_call.1} parent=0
    #allocation3 [shape = 'u8[32768]{0}', space=vmem, size = 0x8000, scoped, tag = 'input window, operand 0']
    #allocation4 [shape = 'u8[16384]{0}', space=vmem, size = 0x4000, scoped, tag = 'input window, operand 1']
    #allocation5 [shape = 'u8[65536]{0}', space=vmem, size = 0x10000, scoped, tag = 'output window, operand 0']
    #allocation6 [shape = 's32[2]{0}', space=sflag, size = 0x8, scoped, tag = 'scoped memory for tpu_custom_call.1']
    %10 = vsyncpa [#allocation6], 0
    %s11 = scalar_lea.sflag [#allocation6], 1
    %12 = vsyncpa %s11, 0
    loop: start=0, step=1, limit=4
    $region2: #{tpu_custom_call.1} parent=1 // loop_pre_header
      _
    $region3: #{tpu_custom_call.1} parent=1 // loop_header
      %s14 = sphi 0, %s18
      %p15 = scmp.ge.s32.totalorder %s14, 4
      %s21 = sphi 0, %s33
      %s22 = sphi 0, %s29
      %s23 = sphi 0, %s21
      %s24 = sphi 0, %s22
      %s25 = sphi 0, %s23
      %s26 = sphi 0, %s24
      %s38 = sphi 0, %s40
      %s41 = sphi 0, %s38
      %s42 = sphi 0, %s41
      %s58 = sphi 0, %s42
      %s70 = sphi 0, %s72
      %s73 = sphi 0, %s70
      %s74 = sphi 0, %s73
      %s90 = sphi 0, %s74
      %s94 = sphi 0, %s94
      %s96 = sphi 0, %s94
      %s97 = sphi 0, %s96
      %s111 = sphi 0, %s97
      %s115 = sphi 0, %s115
      %s117 = sphi 0, %s115
      %s118 = sphi 0, %s117
      %s132 = sphi 0, %s118
      %s136 = sphi 0, %s136
      %s138 = sphi 0, %s136
      %s139 = sphi 0, %s138
      %s153 = sphi 0, %s139
      %s161 = sphi 0, %s163
      %s164 = sphi 0, %s161
      %s165 = sphi 0, %s164
      %s181 = sphi 0, %s165
    $region4: #{tpu_custom_call.1} parent=1 // loop_header_branch
      %17 = sbr.rel (%p15) target = $region8
    $region5: #{tpu_custom_call.1} parent=1 // loop_body
      %s19 = ssub.s32 %s14, 1
      %s20 = ssub.s32 %s14, 2
      %s27 = sadd.s32 1, %s22
      %p28 = scmp.ge.s32.totalorder %s27, 1
      %s29 = scalar_select %p28, 0, %s27
      %s30 = sadd.s32 1, %s21
      %s31 = scalar_select %p28, %s30, %s21
      %p32 = scmp.ge.s32.totalorder %s31, 2
      %s33 = scalar_select %p32, 0, %s31
      %s34 = ssub.s32 %s21, %s33
      %s35 = ssub.s32 %s22, %s29
      %s36 = sor.u32 %s34, %s35
      %p37 = scmp.eq.s32.totalorder %s36, 0
      %s39 = sadd.s32 %s38, 1
      %s40 = scalar_select %p37, %s38, %s39
      %p43 = pneg %p37
      %p44 = scmp.eq.s32.totalorder %s14, 1
      %p45 = por %p43, %p44
      %p46 = scmp.ne.s32.totalorder %s38, %s41
      %p47 = scmp.eq.s32.totalorder %s14, 0
      %p48 = por %p46, %p47
      %p49 = scmp.ne.s32.totalorder %s38, %s41
      %p50 = scmp.eq.s32.totalorder %s19, 1
      %p51 = por %p49, %p50
      %p52 = scmp.ne.s32.totalorder %s41, %s42
      %p53 = scmp.eq.s32.totalorder %s19, 0
      %p54 = por %p52, %p53
      %p55 = scmp.ne.s32.totalorder %s41, %s42
      %p56 = scmp.eq.s32.totalorder %s20, 1
      %p57 = por %p55, %p56
      %p59 = scmp.ne.s32.totalorder %s42, %s58
      %p60 = scmp.eq.s32.totalorder %s20, 0
      %p61 = por %p59, %p60
      %s62 = sadd.s32 %s22, 1
      %s63 = smul.u32 %s62, 2
      %s64 = sadd.s32 %s29, 1
      %s65 = smul.u32 %s64, 2
      %s66 = ssub.s32 %s21, %s33
      %s67 = ssub.s32 %s63, %s65
      %s68 = sor.u32 %s66, %s67
      %p69 = scmp.eq.s32.totalorder %s68, 0
      %s71 = sadd.s32 %s70, 1
      %s72 = scalar_select %p69, %s70, %s71
      %p75 = pneg %p69
      %p76 = scmp.eq.s32.totalorder %s14, 1
      %p77 = por %p75, %p76
      %p78 = scmp.ne.s32.totalorder %s70, %s73
      %p79 = scmp.eq.s32.totalorder %s14, 0
      %p80 = por %p78, %p79
      %p81 = scmp.ne.s32.totalorder %s70, %s73
      %p82 = scmp.eq.s32.totalorder %s19, 1
      %p83 = por %p81, %p82
      %p84 = scmp.ne.s32.totalorder %s73, %s74
      %p85 = scmp.eq.s32.totalorder %s19, 0
      %p86 = por %p84, %p85
      %p87 = scmp.ne.s32.totalorder %s73, %s74
      %p88 = scmp.eq.s32.totalorder %s20, 1
      %p89 = por %p87, %p88
      %p91 = scmp.ne.s32.totalorder %s74, %s90
      %p92 = scmp.eq.s32.totalorder %s20, 0
      %p93 = por %p91, %p92
      %s95 = sadd.s32 %s94, 1
      %p98 = scmp.eq.s32.totalorder %s14, 1
      %p99 = scmp.ne.s32.totalorder %s94, %s96
      %p100 = scmp.eq.s32.totalorder %s14, 0
      %p101 = por %p99, %p100
      %p102 = scmp.ne.s32.totalorder %s94, %s96
      %p103 = scmp.eq.s32.totalorder %s19, 1
      %p104 = por %p102, %p103
      %p105 = scmp.ne.s32.totalorder %s96, %s97
      %p106 = scmp.eq.s32.totalorder %s19, 0
      %p107 = por %p105, %p106
      %p108 = scmp.ne.s32.totalorder %s96, %s97
      %p109 = scmp.eq.s32.totalorder %s20, 1
      %p110 = por %p108, %p109
      %p112 = scmp.ne.s32.totalorder %s97, %s111
      %p113 = scmp.eq.s32.totalorder %s20, 0
      %p114 = por %p112, %p113
      %s116 = sadd.s32 %s115, 1
      %p119 = scmp.eq.s32.totalorder %s14, 1
      %p120 = scmp.ne.s32.totalorder %s115, %s117
      %p121 = scmp.eq.s32.totalorder %s14, 0
      %p122 = por %p120, %p121
      %p123 = scmp.ne.s32.totalorder %s115, %s117
      %p124 = scmp.eq.s32.totalorder %s19, 1
      %p125 = por %p123, %p124
      %p126 = scmp.ne.s32.totalorder %s117, %s118
      %p127 = scmp.eq.s32.totalorder %s19, 0
      %p128 = por %p126, %p127
      %p129 = scmp.ne.s32.totalorder %s117, %s118
      %p130 = scmp.eq.s32.totalorder %s20, 1
      %p131 = por %p129, %p130
      %p133 = scmp.ne.s32.totalorder %s118, %s132
      %p134 = scmp.eq.s32.totalorder %s20, 0
      %p135 = por %p133, %p134
      %s137 = sadd.s32 %s136, 1
      %p140 = scmp.eq.s32.totalorder %s14, 1
      %p141 = scmp.ne.s32.totalorder %s136, %s138
      %p142 = scmp.eq.s32.totalorder %s14, 0
      %p143 = por %p141, %p142
      %p144 = scmp.ne.s32.totalorder %s136, %s138
      %p145 = scmp.eq.s32.totalorder %s19, 1
      %p146 = por %p144, %p145
      %p147 = scmp.ne.s32.totalorder %s138, %s139
      %p148 = scmp.eq.s32.totalorder %s19, 0
      %p149 = por %p147, %p148
      %p150 = scmp.ne.s32.totalorder %s138, %s139
      %p151 = scmp.eq.s32.totalorder %s20, 1
      %p152 = por %p150, %p151
      %p154 = scmp.ne.s32.totalorder %s139, %s153
      %p155 = scmp.eq.s32.totalorder %s20, 0
      %p156 = por %p154, %p155
      %s157 = ssub.s32 %s21, %s33
      %s158 = ssub.s32 %s22, %s29
      %s159 = sor.u32 %s157, %s158
      %p160 = scmp.eq.s32.totalorder %s159, 0
      %s162 = sadd.s32 %s161, 1
      %s163 = scalar_select %p160, %s161, %s162
      %p166 = pneg %p160
      %p167 = scmp.eq.s32.totalorder %s14, 1
      %p168 = por %p166, %p167
      %p169 = scmp.ne.s32.totalorder %s161, %s164
      %p170 = scmp.eq.s32.totalorder %s14, 0
      %p171 = por %p169, %p170
      %p172 = scmp.ne.s32.totalorder %s161, %s164
      %p173 = scmp.eq.s32.totalorder %s19, 1
      %p174 = por %p172, %p173
      %p175 = scmp.ne.s32.totalorder %s164, %s165
      %p176 = scmp.eq.s32.totalorder %s19, 0
      %p177 = por %p175, %p176
      %p178 = scmp.ne.s32.totalorder %s164, %s165
      %p179 = scmp.eq.s32.totalorder %s20, 1
      %p180 = por %p178, %p179
      %p182 = scmp.ne.s32.totalorder %s165, %s181
      %p183 = scmp.eq.s32.totalorder %s20, 0
      %p184 = por %p182, %p183
      %p185 = scmp.le.s32.totalorder 1, %s14
      %p186 = scmp.lt.s32.totalorder %s14, 3
      %p187 = pnand %p185, %p186
      %p188 = pneg %p187
      // Predicated region
      $region9: #{tpu_custom_call.1} parent=5 // pred_check
        _
      $region10: #{tpu_custom_call.1} parent=5 // pred_check_branch
        %190 = sbr.rel (%p187) target = $region12
      $region11: #{tpu_custom_call.1} parent=5 // pred_region
        %s191 = ssub.s32 %s14, 1
        // Predicated region
        $region13: #{tpu_custom_call.1} parent=11 // pred_check
          %p192 = pneg %p107
        $region14: #{tpu_custom_call.1} parent=11 // pred_check_branch
          %194 = sbr.rel (%p192) target = $region16
        $region15: #{tpu_custom_call.1} parent=11 // pred_region
          _
        $region16: #{tpu_custom_call.1} parent=11 // pred_fallthru
          _
        // Predicated region
        $region17: #{tpu_custom_call.1} parent=11 // pred_check
          %p195 = pneg %p128
        $region18: #{tpu_custom_call.1} parent=11 // pred_check_branch
          %197 = sbr.rel (%p195) target = $region20
        $region19: #{tpu_custom_call.1} parent=11 // pred_region
          _
        $region20: #{tpu_custom_call.1} parent=11 // pred_fallthru
          _
        // Predicated region
        $region21: #{tpu_custom_call.1} parent=11 // pred_check
          %p198 = pneg %p149
        $region22: #{tpu_custom_call.1} parent=11 // pred_check_branch
          %200 = sbr.rel (%p198) target = $region24
        $region23: #{tpu_custom_call.1} parent=11 // pred_region
          _
        $region24: #{tpu_custom_call.1} parent=11 // pred_fallthru
          _
      $region12: #{tpu_custom_call.1} parent=5 // pred_fallthru
        _
      %p201 = scmp.lt.s32.totalorder %s14, 2
      // Predicated region
      $region25: #{tpu_custom_call.1} parent=5 // pred_check
        %p202 = pneg %p201
      $region26: #{tpu_custom_call.1} parent=5 // pred_check_branch
        %204 = sbr.rel (%p202) target = $region28
      $region27: #{tpu_custom_call.1} parent=5 // pred_region
        // Predicated region
        $region29: #{tpu_custom_call.1} parent=27 // pred_check
          %p205 = pneg %p48
        $region30: #{tpu_custom_call.1} parent=27 // pred_check_branch
          %207 = sbr.rel (%p205) target = $region32
        $region31: #{tpu_custom_call.1} parent=27 // pred_region
          %s208 = sand.u32 %s38, 1
          %s209 = sand.u32 %s38, 1
          %s210 = smul.addr %s209, 32
          %s211 = scalar_lea.vmem [#allocation3], %s210
          %s212 = smul.u32 2, %s22
          %s213 = smul.addr %s21, 16
          %s214 = sadd.s32 %s212, %s213
          %s215 = smul.addr %s214, 4
          %s216 = scalar_lea.vmem %s0, %s215
          // Predicated region
          $region33: #{tpu_custom_call.1} parent=31 // pred_check
            _
          $region34: #{tpu_custom_call.1} parent=31 // pred_check_branch
            %218 = sbr.rel (0) target = $region36
          $region35: #{tpu_custom_call.1} parent=31 // pred_region
            // Predicated region
            $region37: #{tpu_custom_call.1} parent=35 // pred_check
              _
            $region38: #{tpu_custom_call.1} parent=35 // pred_check_branch
              %220 = sbr.rel target = $region40
            $region39: #{tpu_custom_call.1} parent=35 // pred_region
              // Predicated region
              $region52: #{tpu_custom_call.1} parent=39 // pred_check
                _
              $region53: #{tpu_custom_call.1} parent=39 // pred_check_branch
                %249 = sbr.rel (0) target = $region55
              $region54: #{tpu_custom_call.1} parent=39 // pred_region
                loop: start=0, step=1, limit=1
                $region56: #{tpu_custom_call.1} parent=54 // loop_pre_header
                  _
                $region57: #{tpu_custom_call.1} parent=54 // loop_header
                  %s251 = sphi 0, %s255
                  %p252 = scmp.ge.s32.totalorder %s251, 1
                  %s256 = sphi %s216, %s216
                  %s257 = sphi %s211, %s211
                $region58: #{tpu_custom_call.1} parent=54 // loop_header_branch
                  %254 = sbr.rel (%p252) target = $region62
                $region59: #{tpu_custom_call.1} parent=54 // loop_body
                  _
                $region60: #{tpu_custom_call.1} parent=54 // loop_footer
                  %s255 = sadd.s32 1, %s251
                $region61: #{tpu_custom_call.1} parent=54 // loop_footer_branch
                  %250 = sbr.rel target = $region57
                $region62: #{tpu_custom_call.1} parent=54 // loop_exit
                  _
                loop: start=0, step=1, limit=1
                $region63: #{tpu_custom_call.1} parent=54 // loop_pre_header
                  _
                $region64: #{tpu_custom_call.1} parent=54 // loop_header
                  %s260 = sphi 0, %s264
                  %p261 = scmp.ge.s32.totalorder %s260, 1
                  %s265 = sphi %s216, %s216
                  %s266 = sphi %s211, %s211
                $region65: #{tpu_custom_call.1} parent=54 // loop_header_branch
                  %263 = sbr.rel (%p261) target = $region69
                $region66: #{tpu_custom_call.1} parent=54 // loop_body
                  %v267 = vld [vmem:[%s265] sm:$0xf]
                  %268 = vst [vmem:[%s266] sm:$0xf] %v267
                  %v269 = vld [vmem:[%s265 + $0x4] sm:$0xf]
                  %270 = vst [vmem:[%s266 + $0x4] sm:$0xf] %v269
                  %v271 = vld [vmem:[%s265 + $0x10] sm:$0xf]
                  %272 = vst [vmem:[%s266 + $0x8] sm:$0xf] %v271
                  %v273 = vld [vmem:[%s265 + $0x14] sm:$0xf]
                  %274 = vst [vmem:[%s266 + $0xc] sm:$0xf] %v273
                  %v275 = vld [vmem:[%s265 + $0x20] sm:$0xf]
                  %276 = vst [vmem:[%s266 + $0x10] sm:$0xf] %v275
                  %v277 = vld [vmem:[%s265 + $0x24] sm:$0xf]
                  %278 = vst [vmem:[%s266 + $0x14] sm:$0xf] %v277
                  %v279 = vld [vmem:[%s265 + $0x30] sm:$0xf]
                  %280 = vst [vmem:[%s266 + $0x18] sm:$0xf] %v279
                  %v281 = vld [vmem:[%s265 + $0x34] sm:$0xf]
                  %282 = vst [vmem:[%s266 + $0x1c] sm:$0xf] %v281
                $region67: #{tpu_custom_call.1} parent=54 // loop_footer
                  %s264 = sadd.s32 1, %s260
                $region68: #{tpu_custom_call.1} parent=54 // loop_footer_branch
                  %259 = sbr.rel target = $region64
                $region69: #{tpu_custom_call.1} parent=54 // loop_exit
                  _
              $region55: #{tpu_custom_call.1} parent=39 // pred_fallthru
                _
            $region40: #{tpu_custom_call.1} parent=35 // pred_fallthru
              _
            // Predicated region
            $region41: #{tpu_custom_call.1} parent=35 // pred_check
              _
            $region42: #{tpu_custom_call.1} parent=35 // pred_check_branch
              %222 = sbr.rel (0) target = $region44
            $region43: #{tpu_custom_call.1} parent=35 // pred_region
              loop: start=0, step=1, limit=1
              $region45: #{tpu_custom_call.1} parent=43 // loop_pre_header
                _
              $region46: #{tpu_custom_call.1} parent=43 // loop_header
                %s225 = sphi 0, %s229
                %p226 = scmp.ge.s32.totalorder %s225, 1
                %s230 = sphi %s216, %s216
                %s231 = sphi %s211, %s211
              $region47: #{tpu_custom_call.1} parent=43 // loop_header_branch
                %228 = sbr.rel (%p226) target = $region51
              $region48: #{tpu_custom_call.1} parent=43 // loop_body
                %v232 = vld [vmem:[%s230] sm:$0xf]
                %233 = vst [vmem:[%s231] sm:$0xf] %v232
                %v234 = vld [vmem:[%s230 + $0x4] sm:$0xf]
                %235 = vst [vmem:[%s231 + $0x4] sm:$0xf] %v234
                %v236 = vld [vmem:[%s230 + $0x10] sm:$0xf]
                %237 = vst [vmem:[%s231 + $0x8] sm:$0xf] %v236
                %v238 = vld [vmem:[%s230 + $0x14] sm:$0xf]
                %239 = vst [vmem:[%s231 + $0xc] sm:$0xf] %v238
                %v240 = vld [vmem:[%s230 + $0x20] sm:$0xf]
                %241 = vst [vmem:[%s231 + $0x10] sm:$0xf] %v240
                %v242 = vld [vmem:[%s230 + $0x24] sm:$0xf]
                %243 = vst [vmem:[%s231 + $0x14] sm:$0xf] %v242
                %v244 = vld [vmem:[%s230 + $0x30] sm:$0xf]
                %245 = vst [vmem:[%s231 + $0x18] sm:$0xf] %v244
                %v246 = vld [vmem:[%s230 + $0x34] sm:$0xf]
                %247 = vst [vmem:[%s231 + $0x1c] sm:$0xf] %v246
              $region49: #{tpu_custom_call.1} parent=43 // loop_footer
                %s229 = sadd.s32 1, %s225
              $region50: #{tpu_custom_call.1} parent=43 // loop_footer_branch
                %224 = sbr.rel target = $region46
              $region51: #{tpu_custom_call.1} parent=43 // loop_exit
                _
            $region44: #{tpu_custom_call.1} parent=35 // pred_fallthru
              _
          $region36: #{tpu_custom_call.1} parent=31 // pred_fallthru
            _
          %283 = vnop
        $region32: #{tpu_custom_call.1} parent=27 // pred_fallthru
          _
        // Predicated region
        $region70: #{tpu_custom_call.1} parent=27 // pred_check
          %p284 = pneg %p80
        $region71: #{tpu_custom_call.1} parent=27 // pred_check_branch
          %286 = sbr.rel (%p284) target = $region73
        $region72: #{tpu_custom_call.1} parent=27 // pred_region
          %s287 = sand.u32 %s70, 1
          %s288 = sand.u32 %s70, 1
          %s289 = smul.addr %s288, 16
          %s290 = scalar_lea.vmem [#allocation4], %s289
          %s291 = sadd.s32 %s22, 1
          %s292 = smul.u32 %s291, 2
          %s293 = smul.addr %s21, 16
          %s294 = sadd.s32 %s292, %s293
          %s295 = smul.addr %s294, 4
          %s296 = scalar_lea.vmem %s1, %s295
          // Predicated region
          $region74: #{tpu_custom_call.1} parent=72 // pred_check
            _
          $region75: #{tpu_custom_call.1} parent=72 // pred_check_branch
            %298 = sbr.rel (0) target = $region77
          $region76: #{tpu_custom_call.1} parent=72 // pred_region
            // Predicated region
            $region78: #{tpu_custom_call.1} parent=76 // pred_check
              _
            $region79: #{tpu_custom_call.1} parent=76 // pred_check_branch
              %300 = sbr.rel target = $region81
            $region80: #{tpu_custom_call.1} parent=76 // pred_region
              // Predicated region
              $region93: #{tpu_custom_call.1} parent=80 // pred_check
                _
              $region94: #{tpu_custom_call.1} parent=80 // pred_check_branch
                %321 = sbr.rel (0) target = $region96
              $region95: #{tpu_custom_call.1} parent=80 // pred_region
                loop: start=0, step=1, limit=1
                $region97: #{tpu_custom_call.1} parent=95 // loop_pre_header
                  _
                $region98: #{tpu_custom_call.1} parent=95 // loop_header
                  %s323 = sphi 0, %s327
                  %p324 = scmp.ge.s32.totalorder %s323, 1
                  %s328 = sphi %s296, %s296
                  %s329 = sphi %s290, %s290
                $region99: #{tpu_custom_call.1} parent=95 // loop_header_branch
                  %326 = sbr.rel (%p324) target = $region103
                $region100: #{tpu_custom_call.1} parent=95 // loop_body
                  _
                $region101: #{tpu_custom_call.1} parent=95 // loop_footer
                  %s327 = sadd.s32 1, %s323
                $region102: #{tpu_custom_call.1} parent=95 // loop_footer_branch
                  %322 = sbr.rel target = $region98
                $region103: #{tpu_custom_call.1} parent=95 // loop_exit
                  _
                loop: start=0, step=1, limit=1
                $region104: #{tpu_custom_call.1} parent=95 // loop_pre_header
                  _
                $region105: #{tpu_custom_call.1} parent=95 // loop_header
                  %s332 = sphi 0, %s336
                  %p333 = scmp.ge.s32.totalorder %s332, 1
                  %s337 = sphi %s296, %s296
                  %s338 = sphi %s290, %s290
                $region106: #{tpu_custom_call.1} parent=95 // loop_header_branch
                  %335 = sbr.rel (%p333) target = $region110
                $region107: #{tpu_custom_call.1} parent=95 // loop_body
                  %v339 = vld [vmem:[%s337] sm:$0xf]
                  %340 = vst [vmem:[%s338] sm:$0xf] %v339
                  %v341 = vld [vmem:[%s337 + $0x10] sm:$0xf]
                  %342 = vst [vmem:[%s338 + $0x4] sm:$0xf] %v341
                  %v343 = vld [vmem:[%s337 + $0x20] sm:$0xf]
                  %344 = vst [vmem:[%s338 + $0x8] sm:$0xf] %v343
                  %v345 = vld [vmem:[%s337 + $0x30] sm:$0xf]
                  %346 = vst [vmem:[%s338 + $0xc] sm:$0xf] %v345
                $region108: #{tpu_custom_call.1} parent=95 // loop_footer
                  %s336 = sadd.s32 1, %s332
                $region109: #{tpu_custom_call.1} parent=95 // loop_footer_branch
                  %331 = sbr.rel target = $region105
                $region110: #{tpu_custom_call.1} parent=95 // loop_exit
                  _
              $region96: #{tpu_custom_call.1} parent=80 // pred_fallthru
                _
            $region81: #{tpu_custom_call.1} parent=76 // pred_fallthru
              _
            // Predicated region
            $region82: #{tpu_custom_call.1} parent=76 // pred_check
              _
            $region83: #{tpu_custom_call.1} parent=76 // pred_check_branch
              %302 = sbr.rel (0) target = $region85
            $region84: #{tpu_custom_call.1} parent=76 // pred_region
              loop: start=0, step=1, limit=1
              $region86: #{tpu_custom_call.1} parent=84 // loop_pre_header
                _
              $region87: #{tpu_custom_call.1} parent=84 // loop_header
                %s305 = sphi 0, %s309
                %p306 = scmp.ge.s32.totalorder %s305, 1
                %s310 = sphi %s296, %s296
                %s311 = sphi %s290, %s290
              $region88: #{tpu_custom_call.1} parent=84 // loop_header_branch
                %308 = sbr.rel (%p306) target = $region92
              $region89: #{tpu_custom_call.1} parent=84 // loop_body
                %v312 = vld [vmem:[%s310] sm:$0xf]
                %313 = vst [vmem:[%s311] sm:$0xf] %v312
                %v314 = vld [vmem:[%s310 + $0x10] sm:$0xf]
                %315 = vst [vmem:[%s311 + $0x4] sm:$0xf] %v314
                %v316 = vld [vmem:[%s310 + $0x20] sm:$0xf]
                %317 = vst [vmem:[%s311 + $0x8] sm:$0xf] %v316
                %v318 = vld [vmem:[%s310 + $0x30] sm:$0xf]
                %319 = vst [vmem:[%s311 + $0xc] sm:$0xf] %v318
              $region90: #{tpu_custom_call.1} parent=84 // loop_footer
                %s309 = sadd.s32 1, %s305
              $region91: #{tpu_custom_call.1} parent=84 // loop_footer_branch
                %304 = sbr.rel target = $region87
              $region92: #{tpu_custom_call.1} parent=84 // loop_exit
                _
            $region85: #{tpu_custom_call.1} parent=76 // pred_fallthru
              _
          $region77: #{tpu_custom_call.1} parent=72 // pred_fallthru
            _
          %347 = vnop
        $region73: #{tpu_custom_call.1} parent=27 // pred_fallthru
          _
      $region28: #{tpu_custom_call.1} parent=5 // pred_fallthru
        _
      %p348 = scmp.le.s32.totalorder 1, %s14
      %p349 = scmp.lt.s32.totalorder %s14, 3
      %p350 = pnand %p348, %p349
      %p351 = pneg %p350
      // Predicated region
      $region111: #{tpu_custom_call.1} parent=5 // pred_check
        _
      $region112: #{tpu_custom_call.1} parent=5 // pred_check_branch
        %353 = sbr.rel (%p350) target = $region114
      $region113: #{tpu_custom_call.1} parent=5 // pred_region
        %s354 = ssub.s32 %s14, 1
        %s355 = sand.u32 %s41, 1
        %s356 = sand.u32 %s41, 1
        %s357 = smul.addr %s356, 32
        %s358 = scalar_lea.vmem [#allocation3], %s357
        // Predicated region
        $region115: #{tpu_custom_call.1} parent=113 // pred_check
          %p359 = pneg %p54
        $region116: #{tpu_custom_call.1} parent=113 // pred_check_branch
          %361 = sbr.rel (%p359) target = $region118
        $region117: #{tpu_custom_call.1} parent=113 // pred_region
          _
        $region118: #{tpu_custom_call.1} parent=113 // pred_fallthru
          _
        %s362 = sand.u32 %s73, 1
        %s363 = sand.u32 %s73, 1
        %s364 = smul.addr %s363, 16
        %s365 = scalar_lea.vmem [#allocation4], %s364
        // Predicated region
        $region119: #{tpu_custom_call.1} parent=113 // pred_check
          %p366 = pneg %p86
        $region120: #{tpu_custom_call.1} parent=113 // pred_check_branch
          %368 = sbr.rel (%p366) target = $region122
        $region121: #{tpu_custom_call.1} parent=113 // pred_region
          _
        $region122: #{tpu_custom_call.1} parent=113 // pred_fallthru
          _
        %s369 = sand.u32 %s41, 1
        %s370 = sand.u32 %s41, 1
        %s371 = smul.addr %s370, 32
        %s372 = scalar_lea.vmem [#allocation3], %s371
        %p373 = pneg %p54
        %p374 = pneg %p51
        %s375 = sand.u32 %s73, 1
        %s376 = sand.u32 %s73, 1
        %s377 = smul.addr %s376, 16
        %s378 = scalar_lea.vmem [#allocation4], %s377
        %p379 = pneg %p86
        %p380 = pneg %p83
        %p381 = pneg %p107
        %p382 = pneg %p104
        %p383 = pneg %p128
        %p384 = pneg %p125
        %p385 = pneg %p149
        %p386 = pneg %p146
        %p387 = pneg %p177
        %p388 = pneg %p174
        %s389 = sand.u32 %s164, 1
        %s390 = scalar_lea.sflag [#allocation6], %s389
        %s391 = sand.u32 %s164, 1
        %s392 = smul.addr %s391, 64
        %s393 = scalar_lea.vmem [#allocation5], %s392
        %s394 = smul.u32 2, %s24
        %s395 = sadd.s32 %s24, 1
        %s396 = smul.u32 %s395, 2
        %s397 = smul.u32 8, %s24
        %v399 = vld [vmem:[%s358] sm:$0x1]
        %v400 = vld [vmem:[%s358 + $0x8] sm:$0x1]
        %v401 = vld [vmem:[%s358 + $0x10] sm:$0x1]
        %v402 = vld [vmem:[%s358 + $0x18] sm:$0x1]
        %v408 = vunpack.c.l.s4 1983009808
        %v409 = vunpack.c.0.s8 %v408
        %v410 = vlaneseq
        %v411 = vshrl.u32 %v410, 7
        %v412 = vsub.s32 %v409, %v411
        %v413 = vrot.slane %v399, %v412
        %v415 = vunpack.c.l.s4 1983009808
        %v416 = vunpack.c.0.s8 %v415
        %v417 = vlaneseq
        %v418 = vshrl.u32 %v417, 7
        %v419 = vsub.s32 %v416, %v418
        %v420 = vrot.slane %v400, %v419
        %v422 = vunpack.c.l.s4 1983009808
        %v423 = vunpack.c.0.s8 %v422
        %v424 = vlaneseq
        %v425 = vshrl.u32 %v424, 7
        %v426 = vsub.s32 %v423, %v425
        %v427 = vrot.slane %v401, %v426
        %v429 = vunpack.c.l.s4 1983009808
        %v430 = vunpack.c.0.s8 %v429
        %v431 = vlaneseq
        %v432 = vshrl.u32 %v431, 7
        %v433 = vsub.s32 %v430, %v432
        %v434 = vrot.slane %v402, %v433
        %v436 = vunpack.c.l.s4 1983009808
        %v437 = vunpack.c.0.s8 %v436
        %v438 = vlaneseq
        %v439 = vshrl.u32 %v438, 7
        %v440 = vsub.s32 %v437, %v439
        %v441 = vrot.slane %v413, %v440
        %v443 = vunpack.c.l.s4 1983009808
        %v444 = vunpack.c.0.s8 %v443
        %v445 = vlaneseq
        %v446 = vshrl.u32 %v445, 7
        %v447 = vsub.s32 %v444, %v446
        %v448 = vrot.slane %v420, %v447
        %v450 = vunpack.c.l.s4 1983009808
        %v451 = vunpack.c.0.s8 %v450
        %v452 = vlaneseq
        %v453 = vshrl.u32 %v452, 7
        %v454 = vsub.s32 %v451, %v453
        %v455 = vrot.slane %v427, %v454
        %v457 = vunpack.c.l.s4 1983009808
        %v458 = vunpack.c.0.s8 %v457
        %v459 = vlaneseq
        %v460 = vshrl.u32 %v459, 7
        %v461 = vsub.s32 %v458, %v460
        %v462 = vrot.slane %v434, %v461
        %v463 = vunpack.c.l.b16 %v441
        %v464 = vunpack.c.l.b16 %v448
        %v465 = vunpack.c.l.b16 %v455
        %v466 = vunpack.c.l.b16 %v462
        %v467 = vrot.slane %v464, 7
        %vm468 = vcmask 1041409
        %v469 = vsel %vm468, %v467, %v463
        %v470 = vrot.slane %v465, 6
        %vm471 = vcmask 1042434
        %v472 = vsel %vm471, %v470, %v469
        %v473 = vrot.slane %v466, 5
        %vm474 = vcmask 1043459
        %v475 = vsel %vm474, %v473, %v472
        %v476 = vpack.c.b16 %v475, %v475
        %v478 = vunpack.c.l.s4 1983009808
        %v479 = vunpack.c.0.s8 %v478
        %v480 = vlaneseq
        %v481 = vshrl.u32 %v480, 7
        %v482 = vsub.s32 %v479, %v481
        %v483 = vrot.slane %v476, %v482
        %vm485 = vcmask 140288
        %486 = vst.msk [vmem:[#allocation2] sm:$0x3] %vm485, %v483
        %v487 = vld [vmem:[%s358] sm:$0x1]
        %v488 = vld [vmem:[%s358 + $0x8] sm:$0x1]
        %v489 = vld [vmem:[%s358 + $0x10] sm:$0x1]
        %v490 = vld [vmem:[%s358 + $0x18] sm:$0x1]
        %v496 = vunpack.c.l.s4 1983009808
        %v497 = vunpack.c.0.s8 %v496
        %v498 = vlaneseq
        %v499 = vshrl.u32 %v498, 7
        %v500 = vsub.s32 %v497, %v499
        %v501 = vrot.slane %v487, %v500
        %v503 = vunpack.c.l.s4 1983009808
        %v504 = vunpack.c.0.s8 %v503
        %v505 = vlaneseq
        %v506 = vshrl.u32 %v505, 7
        %v507 = vsub.s32 %v504, %v506
        %v508 = vrot.slane %v488, %v507
        %v510 = vunpack.c.l.s4 1983009808
        %v511 = vunpack.c.0.s8 %v510
        %v512 = vlaneseq
        %v513 = vshrl.u32 %v512, 7
        %v514 = vsub.s32 %v511, %v513
        %v515 = vrot.slane %v489, %v514
        %v517 = vunpack.c.l.s4 1983009808
        %v518 = vunpack.c.0.s8 %v517
        %v519 = vlaneseq
        %v520 = vshrl.u32 %v519, 7
        %v521 = vsub.s32 %v518, %v520
        %v522 = vrot.slane %v490, %v521
        %v524 = vunpack.c.l.s4 1983009808
        %v525 = vunpack.c.0.s8 %v524
        %v526 = vlaneseq
        %v527 = vshrl.u32 %v526, 7
        %v528 = vsub.s32 %v525, %v527
        %v529 = vrot.slane %v501, %v528
        %v531 = vunpack.c.l.s4 1983009808
        %v532 = vunpack.c.0.s8 %v531
        %v533 = vlaneseq
        %v534 = vshrl.u32 %v533, 7
        %v535 = vsub.s32 %v532, %v534
        %v536 = vrot.slane %v508, %v535
        %v538 = vunpack.c.l.s4 1983009808
        %v539 = vunpack.c.0.s8 %v538
        %v540 = vlaneseq
        %v541 = vshrl.u32 %v540, 7
        %v542 = vsub.s32 %v539, %v541
        %v543 = vrot.slane %v515, %v542
        %v545 = vunpack.c.l.s4 1983009808
        %v546 = vunpack.c.0.s8 %v545
        %v547 = vlaneseq
        %v548 = vshrl.u32 %v547, 7
        %v549 = vsub.s32 %v546, %v548
        %v550 = vrot.slane %v522, %v549
        %v551 = vunpack.c.l.b16 %v529
        %v552 = vunpack.c.l.b16 %v536
        %v553 = vunpack.c.l.b16 %v543
        %v554 = vunpack.c.l.b16 %v550
        %v555 = vrot.slane %v551, 1
        %v556 = vsel %vm468, %v552, %v555
        %v557 = vrot.slane %v553, 7
        %v558 = vsel %vm471, %v557, %v556
        %v559 = vrot.slane %v554, 6
        %v560 = vsel %vm474, %v559, %v558
        %v561 = vpack.c.b16 %v560, %v560
        %v563 = vunpack.c.l.s4 1983009808
        %v564 = vunpack.c.0.s8 %v563
        %v565 = vlaneseq
        %v566 = vshrl.u32 %v565, 7
        %v567 = vsub.s32 %v564, %v566
        %v568 = vrot.slane %v561, %v567
        %569 = vrot.lane.b32.xlu0 %v568, 18
        %v570 = vpop.permute.xlu0 %569
        %vm572 = vcmask 287888
        %573 = vst.msk [vmem:[#allocation2] sm:$0x3] %vm572, %v570
        %v574 = vld [vmem:[%s358] sm:$0x2]
        %v575 = vld [vmem:[%s358 + $0x8] sm:$0x2]
        %v576 = vld [vmem:[%s358 + $0x10] sm:$0x2]
        %v577 = vld [vmem:[%s358 + $0x18] sm:$0x2]
        %v583 = vunpack.c.l.s4 1983009808
        %v584 = vunpack.c.0.s8 %v583
        %v585 = vlaneseq
        %v586 = vshrl.u32 %v585, 7
        %v587 = vsub.s32 %v584, %v586
        %v588 = vrot.slane %v574, %v587
        %v590 = vunpack.c.l.s4 1983009808
        %v591 = vunpack.c.0.s8 %v590
        %v592 = vlaneseq
        %v593 = vshrl.u32 %v592, 7
        %v594 = vsub.s32 %v591, %v593
        %v595 = vrot.slane %v575, %v594
        %v597 = vunpack.c.l.s4 1983009808
        %v598 = vunpack.c.0.s8 %v597
        %v599 = vlaneseq
        %v600 = vshrl.u32 %v599, 7
        %v601 = vsub.s32 %v598, %v600
        %v602 = vrot.slane %v576, %v601
        %v604 = vunpack.c.l.s4 1983009808
        %v605 = vunpack.c.0.s8 %v604
        %v606 = vlaneseq
        %v607 = vshrl.u32 %v606, 7
        %v608 = vsub.s32 %v605, %v607
        %v609 = vrot.slane %v577, %v608
        %v611 = vunpack.c.l.s4 1983009808
        %v612 = vunpack.c.0.s8 %v611
        %v613 = vlaneseq
        %v614 = vshrl.u32 %v613, 7
        %v615 = vsub.s32 %v612, %v614
        %v616 = vrot.slane %v588, %v615
        %v618 = vunpack.c.l.s4 1983009808
        %v619 = vunpack.c.0.s8 %v618
        %v620 = vlaneseq
        %v621 = vshrl.u32 %v620, 7
        %v622 = vsub.s32 %v619, %v621
        %v623 = vrot.slane %v595, %v622
        %v625 = vunpack.c.l.s4 1983009808
        %v626 = vunpack.c.0.s8 %v625
        %v627 = vlaneseq
        %v628 = vshrl.u32 %v627, 7
        %v629 = vsub.s32 %v626, %v628
        %v630 = vrot.slane %v602, %v629
        %v632 = vunpack.c.l.s4 1983009808
        %v633 = vunpack.c.0.s8 %v632
        %v634 = vlaneseq
        %v635 = vshrl.u32 %v634, 7
        %v636 = vsub.s32 %v633, %v635
        %v637 = vrot.slane %v609, %v636
        %v638 = vunpack.c.l.b16 %v616
        %v639 = vunpack.c.l.b16 %v623
        %v640 = vunpack.c.l.b16 %v630
        %v641 = vunpack.c.l.b16 %v637
        %v642 = vrot.slane %v638, 2
        %v643 = vrot.slane %v639, 1
        %v644 = vsel %vm468, %v643, %v642
        %v645 = vsel %vm471, %v640, %v644
        %v646 = vrot.slane %v641, 7
        %v647 = vsel %vm474, %v646, %v645
        %v648 = vpack.c.b16 %v647, %v647
        %v650 = vunpack.c.l.s4 1983009808
        %v651 = vunpack.c.0.s8 %v650
        %v652 = vlaneseq
        %v653 = vshrl.u32 %v652, 7
        %v654 = vsub.s32 %v651, %v653
        %v655 = vrot.slane %v648, %v654
        %656 = vrot.lane.b32.xlu0 %v655, 36
        %v657 = vpop.permute.xlu0 %656
        %vm659 = vcmask 435488
        %660 = vst.msk [vmem:[#allocation2] sm:$0x3] %vm659, %v657
        %v661 = vld [vmem:[%s358] sm:$0x2]
        %v662 = vld [vmem:[%s358 + $0x8] sm:$0x2]
        %v663 = vld [vmem:[%s358 + $0x10] sm:$0x2]
        %v664 = vld [vmem:[%s358 + $0x18] sm:$0x2]
        %v670 = vunpack.c.l.s4 1983009808
        %v671 = vunpack.c.0.s8 %v670
        %v672 = vlaneseq
        %v673 = vshrl.u32 %v672, 7
        %v674 = vsub.s32 %v671, %v673
        %v675 = vrot.slane %v661, %v674
        %v677 = vunpack.c.l.s4 1983009808
        %v678 = vunpack.c.0.s8 %v677
        %v679 = vlaneseq
        %v680 = vshrl.u32 %v679, 7
        %v681 = vsub.s32 %v678, %v680
        %v682 = vrot.slane %v662, %v681
        %v684 = vunpack.c.l.s4 1983009808
        %v685 = vunpack.c.0.s8 %v684
        %v686 = vlaneseq
        %v687 = vshrl.u32 %v686, 7
        %v688 = vsub.s32 %v685, %v687
        %v689 = vrot.slane %v663, %v688
        %v691 = vunpack.c.l.s4 1983009808
        %v692 = vunpack.c.0.s8 %v691
        %v693 = vlaneseq
        %v694 = vshrl.u32 %v693, 7
        %v695 = vsub.s32 %v692, %v694
        %v696 = vrot.slane %v664, %v695
        %v698 = vunpack.c.l.s4 1983009808
        %v699 = vunpack.c.0.s8 %v698
        %v700 = vlaneseq
        %v701 = vshrl.u32 %v700, 7
        %v702 = vsub.s32 %v699, %v701
        %v703 = vrot.slane %v675, %v702
        %v705 = vunpack.c.l.s4 1983009808
        %v706 = vunpack.c.0.s8 %v705
        %v707 = vlaneseq
        %v708 = vshrl.u32 %v707, 7
        %v709 = vsub.s32 %v706, %v708
        %v710 = vrot.slane %v682, %v709
        %v712 = vunpack.c.l.s4 1983009808
        %v713 = vunpack.c.0.s8 %v712
        %v714 = vlaneseq
        %v715 = vshrl.u32 %v714, 7
        %v716 = vsub.s32 %v713, %v715
        %v717 = vrot.slane %v689, %v716
        %v719 = vunpack.c.l.s4 1983009808
        %v720 = vunpack.c.0.s8 %v719
        %v721 = vlaneseq
        %v722 = vshrl.u32 %v721, 7
        %v723 = vsub.s32 %v720, %v722
        %v724 = vrot.slane %v696, %v723
        %v725 = vunpack.c.l.b16 %v703
        %v726 = vunpack.c.l.b16 %v710
        %v727 = vunpack.c.l.b16 %v717
        %v728 = vunpack.c.l.b16 %v724
        %v729 = vrot.slane %v725, 3
        %v730 = vrot.slane %v726, 2
        %v731 = vsel %vm468, %v730, %v729
        %v732 = vrot.slane %v727, 1
        %v733 = vsel %vm471, %v732, %v731
        %v734 = vsel %vm474, %v728, %v733
        %v735 = vpack.c.b16 %v734, %v734
        %v737 = vunpack.c.l.s4 1983009808
        %v738 = vunpack.c.0.s8 %v737
        %v739 = vlaneseq
        %v740 = vshrl.u32 %v739, 7
        %v741 = vsub.s32 %v738, %v740
        %v742 = vrot.slane %v735, %v741
        %743 = vrot.lane.b32.xlu0 %v742, 54
        %v744 = vpop.permute.xlu0 %743
        %vm746 = vcmask 583088
        %747 = vst.msk [vmem:[#allocation2] sm:$0x3] %vm746, %v744
        %v748 = vld [vmem:[%s358] sm:$0x4]
        %v749 = vld [vmem:[%s358 + $0x8] sm:$0x4]
        %v750 = vld [vmem:[%s358 + $0x10] sm:$0x4]
        %v751 = vld [vmem:[%s358 + $0x18] sm:$0x4]
        %v757 = vunpack.c.l.s4 1983009808
        %v758 = vunpack.c.0.s8 %v757
        %v759 = vlaneseq
        %v760 = vshrl.u32 %v759, 7
        %v761 = vsub.s32 %v758, %v760
        %v762 = vrot.slane %v748, %v761
        %v763 = vcombine.high %v762, %v762
        %v765 = vunpack.c.l.s4 1983009808
        %v766 = vunpack.c.0.s8 %v765
        %v767 = vlaneseq
        %v768 = vshrl.u32 %v767, 7
        %v769 = vsub.s32 %v766, %v768
        %v770 = vrot.slane %v749, %v769
        %v771 = vcombine.high %v770, %v770
        %v773 = vunpack.c.l.s4 1983009808
        %v774 = vunpack.c.0.s8 %v773
        %v775 = vlaneseq
        %v776 = vshrl.u32 %v775, 7
        %v777 = vsub.s32 %v774, %v776
        %v778 = vrot.slane %v750, %v777
        %v779 = vcombine.high %v778, %v778
        %v781 = vunpack.c.l.s4 1983009808
        %v782 = vunpack.c.0.s8 %v781
        %v783 = vlaneseq
        %v784 = vshrl.u32 %v783, 7
        %v785 = vsub.s32 %v782, %v784
        %v786 = vrot.slane %v751, %v785
        %v787 = vcombine.high %v786, %v786
        %v789 = vunpack.c.l.s4 1983009808
        %v790 = vunpack.c.0.s8 %v789
        %v791 = vlaneseq
        %v792 = vshrl.u32 %v791, 7
        %v793 = vsub.s32 %v790, %v792
        %v794 = vrot.slane %v763, %v793
        %v796 = vunpack.c.l.s4 1983009808
        %v797 = vunpack.c.0.s8 %v796
        %v798 = vlaneseq
        %v799 = vshrl.u32 %v798, 7
        %v800 = vsub.s32 %v797, %v799
        %v801 = vrot.slane %v771, %v800
        %v803 = vunpack.c.l.s4 1983009808
        %v804 = vunpack.c.0.s8 %v803
        %v805 = vlaneseq
        %v806 = vshrl.u32 %v805, 7
        %v807 = vsub.s32 %v804, %v806
        %v808 = vrot.slane %v779, %v807
        %v810 = vunpack.c.l.s4 1983009808
        %v811 = vunpack.c.0.s8 %v810
        %v812 = vlaneseq
        %v813 = vshrl.u32 %v812, 7
        %v814 = vsub.s32 %v811, %v813
        %v815 = vrot.slane %v787, %v814
        %v816 = vunpack.c.l.b16 %v794
        %v817 = vunpack.c.l.b16 %v801
        %v818 = vunpack.c.l.b16 %v808
        %v819 = vunpack.c.l.b16 %v815
        %v820 = vrot.slane %v817, 7
        %v821 = vsel %vm468, %v820, %v816
        %v822 = vrot.slane %v818, 6
        %v823 = vsel %vm471, %v822, %v821
        %v824 = vrot.slane %v819, 5
        %v825 = vsel %vm474, %v824, %v823
        %v826 = vpack.c.b16 %v825, %v825
        %v828 = vunpack.c.l.s4 1983009808
        %v829 = vunpack.c.0.s8 %v828
        %v830 = vlaneseq
        %v831 = vshrl.u32 %v830, 7
        %v832 = vsub.s32 %v829, %v831
        %v833 = vrot.slane %v826, %v832
        %834 = vrot.lane.b32.xlu0 %v833, 72
        %v835 = vpop.permute.xlu0 %834
        %vm837 = vcmask 730688
        %838 = vst.msk [vmem:[#allocation2] sm:$0x3] %vm837, %v835
        %v839 = vld [vmem:[%s358] sm:$0x4]
        %v840 = vld [vmem:[%s358 + $0x8] sm:$0x4]
        %v841 = vld [vmem:[%s358 + $0x10] sm:$0x4]
        %v842 = vld [vmem:[%s358 + $0x18] sm:$0x4]
        %v848 = vunpack.c.l.s4 1983009808
        %v849 = vunpack.c.0.s8 %v848
        %v850 = vlaneseq
        %v851 = vshrl.u32 %v850, 7
        %v852 = vsub.s32 %v849, %v851
        %v853 = vrot.slane %v839, %v852
        %v854 = vcombine.high %v853, %v853
        %v856 = vunpack.c.l.s4 1983009808
        %v857 = vunpack.c.0.s8 %v856
        %v858 = vlaneseq
        %v859 = vshrl.u32 %v858, 7
        %v860 = vsub.s32 %v857, %v859
        %v861 = vrot.slane %v840, %v860
        %v862 = vcombine.high %v861, %v861
        %v864 = vunpack.c.l.s4 1983009808
        %v865 = vunpack.c.0.s8 %v864
        %v866 = vlaneseq
        %v867 = vshrl.u32 %v866, 7
        %v868 = vsub.s32 %v865, %v867
        %v869 = vrot.slane %v841, %v868
        %v870 = vcombine.high %v869, %v869
        %v872 = vunpack.c.l.s4 1983009808
        %v873 = vunpack.c.0.s8 %v872
        %v874 = vlaneseq
        %v875 = vshrl.u32 %v874, 7
        %v876 = vsub.s32 %v873, %v875
        %v877 = vrot.slane %v842, %v876
        %v878 = vcombine.high %v877, %v877
        %v880 = vunpack.c.l.s4 1983009808
        %v881 = vunpack.c.0.s8 %v880
        %v882 = vlaneseq
        %v883 = vshrl.u32 %v882, 7
        %v884 = vsub.s32 %v881, %v883
        %v885 = vrot.slane %v854, %v884
        %v887 = vunpack.c.l.s4 1983009808
        %v888 = vunpack.c.0.s8 %v887
        %v889 = vlaneseq
        %v890 = vshrl.u32 %v889, 7
        %v891 = vsub.s32 %v888, %v890
        %v892 = vrot.slane %v862, %v891
        %v894 = vunpack.c.l.s4 1983009808
        %v895 = vunpack.c.0.s8 %v894
        %v896 = vlaneseq
        %v897 = vshrl.u32 %v896, 7
        %v898 = vsub.s32 %v895, %v897
        %v899 = vrot.slane %v870, %v898
        %v901 = vunpack.c.l.s4 1983009808
        %v902 = vunpack.c.0.s8 %v901
        %v903 = vlaneseq
        %v904 = vshrl.u32 %v903, 7
        %v905 = vsub.s32 %v902, %v904
        %v906 = vrot.slane %v878, %v905
        %v907 = vunpack.c.l.b16 %v885
        %v908 = vunpack.c.l.b16 %v892
        %v909 = vunpack.c.l.b16 %v899
        %v910 = vunpack.c.l.b16 %v906
        %v911 = vrot.slane %v907, 1
        %v912 = vsel %vm468, %v908, %v911
        %v913 = vrot.slane %v909, 7
        %v914 = vsel %vm471, %v913, %v912
        %v915 = vrot.slane %v910, 6
        %v916 = vsel %vm474, %v915, %v914
        %v917 = vpack.c.b16 %v916, %v916
        %v919 = vunpack.c.l.s4 1983009808
        %v920 = vunpack.c.0.s8 %v919
        %v921 = vlaneseq
        %v922 = vshrl.u32 %v921, 7
        %v923 = vsub.s32 %v920, %v922
        %v924 = vrot.slane %v917, %v923
        %925 = vrot.lane.b32.xlu0 %v924, 90
        %v926 = vpop.permute.xlu0 %925
        %vm928 = vcmask 878288
        %929 = vst.msk [vmem:[#allocation2] sm:$0x3] %vm928, %v926
        %v930 = vld [vmem:[%s358] sm:$0x8]
        %v931 = vld [vmem:[%s358 + $0x8] sm:$0x8]
        %v932 = vld [vmem:[%s358 + $0x10] sm:$0x8]
        %v933 = vld [vmem:[%s358 + $0x18] sm:$0x8]
        %v939 = vunpack.c.l.s4 1983009808
        %v940 = vunpack.c.0.s8 %v939
        %v941 = vlaneseq
        %v942 = vshrl.u32 %v941, 7
        %v943 = vsub.s32 %v940, %v942
        %v944 = vrot.slane %v930, %v943
        %v945 = vcombine.high %v944, %v944
        %v947 = vunpack.c.l.s4 1983009808
        %v948 = vunpack.c.0.s8 %v947
        %v949 = vlaneseq
        %v950 = vshrl.u32 %v949, 7
        %v951 = vsub.s32 %v948, %v950
        %v952 = vrot.slane %v931, %v951
        %v953 = vcombine.high %v952, %v952
        %v955 = vunpack.c.l.s4 1983009808
        %v956 = vunpack.c.0.s8 %v955
        %v957 = vlaneseq
        %v958 = vshrl.u32 %v957, 7
        %v959 = vsub.s32 %v956, %v958
        %v960 = vrot.slane %v932, %v959
        %v961 = vcombine.high %v960, %v960
        %v963 = vunpack.c.l.s4 1983009808
        %v964 = vunpack.c.0.s8 %v963
        %v965 = vlaneseq
        %v966 = vshrl.u32 %v965, 7
        %v967 = vsub.s32 %v964, %v966
        %v968 = vrot.slane %v933, %v967
        %v969 = vcombine.high %v968, %v968
        %v971 = vunpack.c.l.s4 1983009808
        %v972 = vunpack.c.0.s8 %v971
        %v973 = vlaneseq
        %v974 = vshrl.u32 %v973, 7
        %v975 = vsub.s32 %v972, %v974
        %v976 = vrot.slane %v945, %v975
        %v978 = vunpack.c.l.s4 1983009808
        %v979 = vunpack.c.0.s8 %v978
        %v980 = vlaneseq
        %v981 = vshrl.u32 %v980, 7
        %v982 = vsub.s32 %v979, %v981
        %v983 = vrot.slane %v953, %v982
        %v985 = vunpack.c.l.s4 1983009808
        %v986 = vunpack.c.0.s8 %v985
        %v987 = vlaneseq
        %v988 = vshrl.u32 %v987, 7
        %v989 = vsub.s32 %v986, %v988
        %v990 = vrot.slane %v961, %v989
        %v992 = vunpack.c.l.s4 1983009808
        %v993 = vunpack.c.0.s8 %v992
        %v994 = vlaneseq
        %v995 = vshrl.u32 %v994, 7
        %v996 = vsub.s32 %v993, %v995
        %v997 = vrot.slane %v969, %v996
        %v998 = vunpack.c.l.b16 %v976
        %v999 = vunpack.c.l.b16 %v983
        %v1000 = vunpack.c.l.b16 %v990
        %v1001 = vunpack.c.l.b16 %v997
        %v1002 = vrot.slane %v998, 2
        %v1003 = vrot.slane %v999, 1
        %v1004 = vsel %vm468, %v1003, %v1002
        %v1005 = vsel %vm471, %v1000, %v1004
        %v1006 = vrot.slane %v1001, 7
        %v1007 = vsel %vm474, %v1006, %v1005
        %v1008 = vpack.c.b16 %v1007, %v1007
        %v1010 = vunpack.c.l.s4 1983009808
        %v1011 = vunpack.c.0.s8 %v1010
        %v1012 = vlaneseq
        %v1013 = vshrl.u32 %v1012, 7
        %v1014 = vsub.s32 %v1011, %v1013
        %v1015 = vrot.slane %v1008, %v1014
        %1016 = vrot.lane.b32.xlu0 %v1015, 108
        %v1017 = vpop.permute.xlu0 %1016
        %vm1019 = vcmask 1025888
        %1020 = vst.msk [vmem:[#allocation2] sm:$0x3] %vm1019, %v1017
        %v1021 = vld [vmem:[%s358] sm:$0x8]
        %v1022 = vld [vmem:[%s358 + $0x8] sm:$0x8]
        %v1023 = vld [vmem:[%s358 + $0x10] sm:$0x8]
        %v1024 = vld [vmem:[%s358 + $0x18] sm:$0x8]
        %v1030 = vunpack.c.l.s4 1983009808
        %v1031 = vunpack.c.0.s8 %v1030
        %v1032 = vlaneseq
        %v1033 = vshrl.u32 %v1032, 7
        %v1034 = vsub.s32 %v1031, %v1033
        %v1035 = vrot.slane %v1021, %v1034
        %v1036 = vcombine.high %v1035, %v1035
        %v1038 = vunpack.c.l.s4 1983009808
        %v1039 = vunpack.c.0.s8 %v1038
        %v1040 = vlaneseq
        %v1041 = vshrl.u32 %v1040, 7
        %v1042 = vsub.s32 %v1039, %v1041
        %v1043 = vrot.slane %v1022, %v1042
        %v1044 = vcombine.high %v1043, %v1043
        %v1046 = vunpack.c.l.s4 1983009808
        %v1047 = vunpack.c.0.s8 %v1046
        %v1048 = vlaneseq
        %v1049 = vshrl.u32 %v1048, 7
        %v1050 = vsub.s32 %v1047, %v1049
        %v1051 = vrot.slane %v1023, %v1050
        %v1052 = vcombine.high %v1051, %v1051
        %v1054 = vunpack.c.l.s4 1983009808
        %v1055 = vunpack.c.0.s8 %v1054
        %v1056 = vlaneseq
        %v1057 = vshrl.u32 %v1056, 7
        %v1058 = vsub.s32 %v1055, %v1057
        %v1059 = vrot.slane %v1024, %v1058
        %v1060 = vcombine.high %v1059, %v1059
        %v1062 = vunpack.c.l.s4 1983009808
        %v1063 = vunpack.c.0.s8 %v1062
        %v1064 = vlaneseq
        %v1065 = vshrl.u32 %v1064, 7
        %v1066 = vsub.s32 %v1063, %v1065
        %v1067 = vrot.slane %v1036, %v1066
        %v1069 = vunpack.c.l.s4 1983009808
        %v1070 = vunpack.c.0.s8 %v1069
        %v1071 = vlaneseq
        %v1072 = vshrl.u32 %v1071, 7
        %v1073 = vsub.s32 %v1070, %v1072
        %v1074 = vrot.slane %v1044, %v1073
        %v1076 = vunpack.c.l.s4 1983009808
        %v1077 = vunpack.c.0.s8 %v1076
        %v1078 = vlaneseq
        %v1079 = vshrl.u32 %v1078, 7
        %v1080 = vsub.s32 %v1077, %v1079
        %v1081 = vrot.slane %v1052, %v1080
        %v1083 = vunpack.c.l.s4 1983009808
        %v1084 = vunpack.c.0.s8 %v1083
        %v1085 = vlaneseq
        %v1086 = vshrl.u32 %v1085, 7
        %v1087 = vsub.s32 %v1084, %v1086
        %v1088 = vrot.slane %v1060, %v1087
        %v1089 = vunpack.c.l.b16 %v1067
        %v1090 = vunpack.c.l.b16 %v1074
        %v1091 = vunpack.c.l.b16 %v1081
        %v1092 = vunpack.c.l.b16 %v1088
        %v1093 = vrot.slane %v1089, 3
        %v1094 = vrot.slane %v1090, 2
        %v1095 = vsel %vm468, %v1094, %v1093
        %v1096 = vrot.slane %v1091, 1
        %v1097 = vsel %vm471, %v1096, %v1095
        %v1098 = vsel %vm474, %v1092, %v1097
        %v1099 = vpack.c.b16 %v1098, %v1098
        %v1101 = vunpack.c.l.s4 1983009808
        %v1102 = vunpack.c.0.s8 %v1101
        %v1103 = vlaneseq
        %v1104 = vshrl.u32 %v1103, 7
        %v1105 = vsub.s32 %v1102, %v1104
        %v1106 = vrot.slane %v1099, %v1105
        %1107 = vrot.lane.b32.xlu0 %v1106, 126
        %v1108 = vpop.permute.xlu0 %1107
        %v1109 = vrot.slane %v1108, 6
        %vm1110 = vcmask 1031168
        %v1111 = vsel %vm1110, %v1109, %v1108
        %vm1113 = vcmask 1042416
        %vm1114 = vcmask 125954
        %vm1115 = vmor %vm1114, %vm1113
        %1116 = vst.msk [vmem:[#allocation2] sm:$0xf] %vm1115, %v1111
        %v1117 = vld [vmem:[%s358 + $0x4] sm:$0x1]
        %v1118 = vld [vmem:[%s358 + $0xc] sm:$0x1]
        %v1119 = vld [vmem:[%s358 + $0x14] sm:$0x1]
        %v1120 = vld [vmem:[%s358 + $0x1c] sm:$0x1]
        %v1126 = vunpack.c.l.s4 1983009808
        %v1127 = vunpack.c.0.s8 %v1126
        %v1128 = vlaneseq
        %v1129 = vshrl.u32 %v1128, 7
        %v1130 = vsub.s32 %v1127, %v1129
        %v1131 = vrot.slane %v1117, %v1130
        %v1133 = vunpack.c.l.s4 1983009808
        %v1134 = vunpack.c.0.s8 %v1133
        %v1135 = vlaneseq
        %v1136 = vshrl.u32 %v1135, 7
        %v1137 = vsub.s32 %v1134, %v1136
        %v1138 = vrot.slane %v1118, %v1137
        %v1140 = vunpack.c.l.s4 1983009808
        %v1141 = vunpack.c.0.s8 %v1140
        %v1142 = vlaneseq
        %v1143 = vshrl.u32 %v1142, 7
        %v1144 = vsub.s32 %v1141, %v1143
        %v1145 = vrot.slane %v1119, %v1144
        %v1147 = vunpack.c.l.s4 1983009808
        %v1148 = vunpack.c.0.s8 %v1147
        %v1149 = vlaneseq
        %v1150 = vshrl.u32 %v1149, 7
        %v1151 = vsub.s32 %v1148, %v1150
        %v1152 = vrot.slane %v1120, %v1151
        %v1154 = vunpack.c.l.s4 1983009808
        %v1155 = vunpack.c.0.s8 %v1154
        %v1156 = vlaneseq
        %v1157 = vshrl.u32 %v1156, 7
        %v1158 = vsub.s32 %v1155, %v1157
        %v1159 = vrot.slane %v1131, %v1158
        %v1161 = vunpack.c.l.s4 1983009808
        %v1162 = vunpack.c.0.s8 %v1161
        %v1163 = vlaneseq
        %v1164 = vshrl.u32 %v1163, 7
        %v1165 = vsub.s32 %v1162, %v1164
        %v1166 = vrot.slane %v1138, %v1165
        %v1168 = vunpack.c.l.s4 1983009808
        %v1169 = vunpack.c.0.s8 %v1168
        %v1170 = vlaneseq
        %v1171 = vshrl.u32 %v1170, 7
        %v1172 = vsub.s32 %v1169, %v1171
        %v1173 = vrot.slane %v1145, %v1172
        %v1175 = vunpack.c.l.s4 1983009808
        %v1176 = vunpack.c.0.s8 %v1175
        %v1177 = vlaneseq
        %v1178 = vshrl.u32 %v1177, 7
        %v1179 = vsub.s32 %v1176, %v1178
        %v1180 = vrot.slane %v1152, %v1179
        %v1181 = vunpack.c.l.b16 %v1159
        %v1182 = vunpack.c.l.b16 %v1166
        %v1183 = vunpack.c.l.b16 %v1173
        %v1184 = vunpack.c.l.b16 %v1180
        %v1185 = vrot.slane %v1182, 7
        %v1186 = vsel %vm468, %v1185, %v1181
        %v1187 = vrot.slane %v1183, 6
        %v1188 = vsel %vm471, %v1187, %v1186
        %v1189 = vrot.slane %v1184, 5
        %v1190 = vsel %vm474, %v1189, %v1188
        %v1191 = vpack.c.b16 %v1190, %v1190
        %v1193 = vunpack.c.l.s4 1983009808
        %v1194 = vunpack.c.0.s8 %v1193
        %v1195 = vlaneseq
        %v1196 = vshrl.u32 %v1195, 7
        %v1197 = vsub.s32 %v1194, %v1196
        %v1198 = vrot.slane %v1191, %v1197
        %1199 = vrot.lane.b32.xlu0 %v1198, 16
        %v1200 = vpop.permute.xlu0 %1199
        %vm1202 = vcmask 271488
        %1203 = vst.msk [vmem:[#allocation2 + $0x2] sm:$0x3] %vm1202, %v1200
        %v1204 = vld [vmem:[%s358 + $0x4] sm:$0x1]
        %v1205 = vld [vmem:[%s358 + $0xc] sm:$0x1]
        %v1206 = vld [vmem:[%s358 + $0x14] sm:$0x1]
        %v1207 = vld [vmem:[%s358 + $0x1c] sm:$0x1]
        %v1213 = vunpack.c.l.s4 1983009808
        %v1214 = vunpack.c.0.s8 %v1213
        %v1215 = vlaneseq
        %v1216 = vshrl.u32 %v1215, 7
        %v1217 = vsub.s32 %v1214, %v1216
        %v1218 = vrot.slane %v1204, %v1217
        %v1220 = vunpack.c.l.s4 1983009808
        %v1221 = vunpack.c.0.s8 %v1220
        %v1222 = vlaneseq
        %v1223 = vshrl.u32 %v1222, 7
        %v1224 = vsub.s32 %v1221, %v1223
        %v1225 = vrot.slane %v1205, %v1224
        %v1227 = vunpack.c.l.s4 1983009808
        %v1228 = vunpack.c.0.s8 %v1227
        %v1229 = vlaneseq
        %v1230 = vshrl.u32 %v1229, 7
        %v1231 = vsub.s32 %v1228, %v1230
        %v1232 = vrot.slane %v1206, %v1231
        %v1234 = vunpack.c.l.s4 1983009808
        %v1235 = vunpack.c.0.s8 %v1234
        %v1236 = vlaneseq
        %v1237 = vshrl.u32 %v1236, 7
        %v1238 = vsub.s32 %v1235, %v1237
        %v1239 = vrot.slane %v1207, %v1238
        %v1241 = vunpack.c.l.s4 1983009808
        %v1242 = vunpack.c.0.s8 %v1241
        %v1243 = vlaneseq
        %v1244 = vshrl.u32 %v1243, 7
        %v1245 = vsub.s32 %v1242, %v1244
        %v1246 = vrot.slane %v1218, %v1245
        %v1248 = vunpack.c.l.s4 1983009808
        %v1249 = vunpack.c.0.s8 %v1248
        %v1250 = vlaneseq
        %v1251 = vshrl.u32 %v1250, 7
        %v1252 = vsub.s32 %v1249, %v1251
        %v1253 = vrot.slane %v1225, %v1252
        %v1255 = vunpack.c.l.s4 1983009808
        %v1256 = vunpack.c.0.s8 %v1255
        %v1257 = vlaneseq
        %v1258 = vshrl.u32 %v1257, 7
        %v1259 = vsub.s32 %v1256, %v1258
        %v1260 = vrot.slane %v1232, %v1259
        %v1262 = vunpack.c.l.s4 1983009808
        %v1263 = vunpack.c.0.s8 %v1262
        %v1264 = vlaneseq
        %v1265 = vshrl.u32 %v1264, 7
        %v1266 = vsub.s32 %v1263, %v1265
        %v1267 = vrot.slane %v1239, %v1266
        %v1268 = vunpack.c.l.b16 %v1246
        %v1269 = vunpack.c.l.b16 %v1253
        %v1270 = vunpack.c.l.b16 %v1260
        %v1271 = vunpack.c.l.b16 %v1267
        %v1272 = vrot.slane %v1268, 1
        %v1273 = vsel %vm468, %v1269, %v1272
        %v1274 = vrot.slane %v1270, 7
        %v1275 = vsel %vm471, %v1274, %v1273
        %v1276 = vrot.slane %v1271, 6
        %v1277 = vsel %vm474, %v1276, %v1275
        %v1278 = vpack.c.b16 %v1277, %v1277
        %v1280 = vunpack.c.l.s4 1983009808
        %v1281 = vunpack.c.0.s8 %v1280
        %v1282 = vlaneseq
        %v1283 = vshrl.u32 %v1282, 7
        %v1284 = vsub.s32 %v1281, %v1283
        %v1285 = vrot.slane %v1278, %v1284
        %1286 = vrot.lane.b32.xlu0 %v1285, 34
        %v1287 = vpop.permute.xlu0 %1286
        %vm1289 = vcmask 419088
        %1290 = vst.msk [vmem:[#allocation2 + $0x2] sm:$0x3] %vm1289, %v1287
        %v1291 = vld [vmem:[%s358 + $0x4] sm:$0x2]
        %v1292 = vld [vmem:[%s358 + $0xc] sm:$0x2]
        %v1293 = vld [vmem:[%s358 + $0x14] sm:$0x2]
        %v1294 = vld [vmem:[%s358 + $0x1c] sm:$0x2]
        %v1300 = vunpack.c.l.s4 1983009808
        %v1301 = vunpack.c.0.s8 %v1300
        %v1302 = vlaneseq
        %v1303 = vshrl.u32 %v1302, 7
        %v1304 = vsub.s32 %v1301, %v1303
        %v1305 = vrot.slane %v1291, %v1304
        %v1307 = vunpack.c.l.s4 1983009808
        %v1308 = vunpack.c.0.s8 %v1307
        %v1309 = vlaneseq
        %v1310 = vshrl.u32 %v1309, 7
        %v1311 = vsub.s32 %v1308, %v1310
        %v1312 = vrot.slane %v1292, %v1311
        %v1314 = vunpack.c.l.s4 1983009808
        %v1315 = vunpack.c.0.s8 %v1314
        %v1316 = vlaneseq
        %v1317 = vshrl.u32 %v1316, 7
        %v1318 = vsub.s32 %v1315, %v1317
        %v1319 = vrot.slane %v1293, %v1318
        %v1321 = vunpack.c.l.s4 1983009808
        %v1322 = vunpack.c.0.s8 %v1321
        %v1323 = vlaneseq
        %v1324 = vshrl.u32 %v1323, 7
        %v1325 = vsub.s32 %v1322, %v1324
        %v1326 = vrot.slane %v1294, %v1325
        %v1328 = vunpack.c.l.s4 1983009808
        %v1329 = vunpack.c.0.s8 %v1328
        %v1330 = vlaneseq
        %v1331 = vshrl.u32 %v1330, 7
        %v1332 = vsub.s32 %v1329, %v1331
        %v1333 = vrot.slane %v1305, %v1332
        %v1335 = vunpack.c.l.s4 1983009808
        %v1336 = vunpack.c.0.s8 %v1335
        %v1337 = vlaneseq
        %v1338 = vshrl.u32 %v1337, 7
        %v1339 = vsub.s32 %v1336, %v1338
        %v1340 = vrot.slane %v1312, %v1339
        %v1342 = vunpack.c.l.s4 1983009808
        %v1343 = vunpack.c.0.s8 %v1342
        %v1344 = vlaneseq
        %v1345 = vshrl.u32 %v1344, 7
        %v1346 = vsub.s32 %v1343, %v1345
        %v1347 = vrot.slane %v1319, %v1346
        %v1349 = vunpack.c.l.s4 1983009808
        %v1350 = vunpack.c.0.s8 %v1349
        %v1351 = vlaneseq
        %v1352 = vshrl.u32 %v1351, 7
        %v1353 = vsub.s32 %v1350, %v1352
        %v1354 = vrot.slane %v1326, %v1353
        %v1355 = vunpack.c.l.b16 %v1333
        %v1356 = vunpack.c.l.b16 %v1340
        %v1357 = vunpack.c.l.b16 %v1347
        %v1358 = vunpack.c.l.b16 %v1354
        %v1359 = vrot.slane %v1355, 2
        %v1360 = vrot.slane %v1356, 1
        %v1361 = vsel %vm468, %v1360, %v1359
        %v1362 = vsel %vm471, %v1357, %v1361
        %v1363 = vrot.slane %v1358, 7
        %v1364 = vsel %vm474, %v1363, %v1362
        %v1365 = vpack.c.b16 %v1364, %v1364
        %v1367 = vunpack.c.l.s4 1983009808
        %v1368 = vunpack.c.0.s8 %v1367
        %v1369 = vlaneseq
        %v1370 = vshrl.u32 %v1369, 7
        %v1371 = vsub.s32 %v1368, %v1370
        %v1372 = vrot.slane %v1365, %v1371
        %1373 = vrot.lane.b32.xlu0 %v1372, 52
        %v1374 = vpop.permute.xlu0 %1373
        %vm1376 = vcmask 566688
        %1377 = vst.msk [vmem:[#allocation2 + $0x2] sm:$0x3] %vm1376, %v1374
        %v1378 = vld [vmem:[%s358 + $0x4] sm:$0x2]
        %v1379 = vld [vmem:[%s358 + $0xc] sm:$0x2]
        %v1380 = vld [vmem:[%s358 + $0x14] sm:$0x2]
        %v1381 = vld [vmem:[%s358 + $0x1c] sm:$0x2]
        %v1387 = vunpack.c.l.s4 1983009808
        %v1388 = vunpack.c.0.s8 %v1387
        %v1389 = vlaneseq
        %v1390 = vshrl.u32 %v1389, 7
        %v1391 = vsub.s32 %v1388, %v1390
        %v1392 = vrot.slane %v1378, %v1391
        %v1394 = vunpack.c.l.s4 1983009808
        %v1395 = vunpack.c.0.s8 %v1394
        %v1396 = vlaneseq
        %v1397 = vshrl.u32 %v1396, 7
        %v1398 = vsub.s32 %v1395, %v1397
        %v1399 = vrot.slane %v1379, %v1398
        %v1401 = vunpack.c.l.s4 1983009808
        %v1402 = vunpack.c.0.s8 %v1401
        %v1403 = vlaneseq
        %v1404 = vshrl.u32 %v1403, 7
        %v1405 = vsub.s32 %v1402, %v1404
        %v1406 = vrot.slane %v1380, %v1405
        %v1408 = vunpack.c.l.s4 1983009808
        %v1409 = vunpack.c.0.s8 %v1408
        %v1410 = vlaneseq
        %v1411 = vshrl.u32 %v1410, 7
        %v1412 = vsub.s32 %v1409, %v1411
        %v1413 = vrot.slane %v1381, %v1412
        %v1415 = vunpack.c.l.s4 1983009808
        %v1416 = vunpack.c.0.s8 %v1415
        %v1417 = vlaneseq
        %v1418 = vshrl.u32 %v1417, 7
        %v1419 = vsub.s32 %v1416, %v1418
        %v1420 = vrot.slane %v1392, %v1419
        %v1422 = vunpack.c.l.s4 1983009808
        %v1423 = vunpack.c.0.s8 %v1422
        %v1424 = vlaneseq
        %v1425 = vshrl.u32 %v1424, 7
        %v1426 = vsub.s32 %v1423, %v1425
        %v1427 = vrot.slane %v1399, %v1426
        %v1429 = vunpack.c.l.s4 1983009808
        %v1430 = vunpack.c.0.s8 %v1429
        %v1431 = vlaneseq
        %v1432 = vshrl.u32 %v1431, 7
        %v1433 = vsub.s32 %v1430, %v1432
        %v1434 = vrot.slane %v1406, %v1433
        %v1436 = vunpack.c.l.s4 1983009808
        %v1437 = vunpack.c.0.s8 %v1436
        %v1438 = vlaneseq
        %v1439 = vshrl.u32 %v1438, 7
        %v1440 = vsub.s32 %v1437, %v1439
        %v1441 = vrot.slane %v1413, %v1440
        %v1442 = vunpack.c.l.b16 %v1420
        %v1443 = vunpack.c.l.b16 %v1427
        %v1444 = vunpack.c.l.b16 %v1434
        %v1445 = vunpack.c.l.b16 %v1441
        %v1446 = vrot.slane %v1442, 3
        %v1447 = vrot.slane %v1443, 2
        %v1448 = vsel %vm468, %v1447, %v1446
        %v1449 = vrot.slane %v1444, 1
        %v1450 = vsel %vm471, %v1449, %v1448
        %v1451 = vsel %vm474, %v1445, %v1450
        %v1452 = vpack.c.b16 %v1451, %v1451
        %v1454 = vunpack.c.l.s4 1983009808
        %v1455 = vunpack.c.0.s8 %v1454
        %v1456 = vlaneseq
        %v1457 = vshrl.u32 %v1456, 7
        %v1458 = vsub.s32 %v1455, %v1457
        %v1459 = vrot.slane %v1452, %v1458
        %1460 = vrot.lane.b32.xlu0 %v1459, 70
        %v1461 = vpop.permute.xlu0 %1460
        %vm1463 = vcmask 714288
        %1464 = vst.msk [vmem:[#allocation2 + $0x2] sm:$0x3] %vm1463, %v1461
        %v1465 = vld [vmem:[%s358 + $0x4] sm:$0x4]
        %v1466 = vld [vmem:[%s358 + $0xc] sm:$0x4]
        %v1467 = vld [vmem:[%s358 + $0x14] sm:$0x4]
        %v1468 = vld [vmem:[%s358 + $0x1c] sm:$0x4]
        %v1474 = vunpack.c.l.s4 1983009808
        %v1475 = vunpack.c.0.s8 %v1474
        %v1476 = vlaneseq
        %v1477 = vshrl.u32 %v1476, 7
        %v1478 = vsub.s32 %v1475, %v1477
        %v1479 = vrot.slane %v1465, %v1478
        %v1480 = vcombine.high %v1479, %v1479
        %v1482 = vunpack.c.l.s4 1983009808
        %v1483 = vunpack.c.0.s8 %v1482
        %v1484 = vlaneseq
        %v1485 = vshrl.u32 %v1484, 7
        %v1486 = vsub.s32 %v1483, %v1485
        %v1487 = vrot.slane %v1466, %v1486
        %v1488 = vcombine.high %v1487, %v1487
        %v1490 = vunpack.c.l.s4 1983009808
        %v1491 = vunpack.c.0.s8 %v1490
        %v1492 = vlaneseq
        %v1493 = vshrl.u32 %v1492, 7
        %v1494 = vsub.s32 %v1491, %v1493
        %v1495 = vrot.slane %v1467, %v1494
        %v1496 = vcombine.high %v1495, %v1495
        %v1498 = vunpack.c.l.s4 1983009808
        %v1499 = vunpack.c.0.s8 %v1498
        %v1500 = vlaneseq
        %v1501 = vshrl.u32 %v1500, 7
        %v1502 = vsub.s32 %v1499, %v1501
        %v1503 = vrot.slane %v1468, %v1502
        %v1504 = vcombine.high %v1503, %v1503
        %v1506 = vunpack.c.l.s4 1983009808
        %v1507 = vunpack.c.0.s8 %v1506
        %v1508 = vlaneseq
        %v1509 = vshrl.u32 %v1508, 7
        %v1510 = vsub.s32 %v1507, %v1509
        %v1511 = vrot.slane %v1480, %v1510
        %v1513 = vunpack.c.l.s4 1983009808
        %v1514 = vunpack.c.0.s8 %v1513
        %v1515 = vlaneseq
        %v1516 = vshrl.u32 %v1515, 7
        %v1517 = vsub.s32 %v1514, %v1516
        %v1518 = vrot.slane %v1488, %v1517
        %v1520 = vunpack.c.l.s4 1983009808
        %v1521 = vunpack.c.0.s8 %v1520
        %v1522 = vlaneseq
        %v1523 = vshrl.u32 %v1522, 7
        %v1524 = vsub.s32 %v1521, %v1523
        %v1525 = vrot.slane %v1496, %v1524
        %v1527 = vunpack.c.l.s4 1983009808
        %v1528 = vunpack.c.0.s8 %v1527
        %v1529 = vlaneseq
        %v1530 = vshrl.u32 %v1529, 7
        %v1531 = vsub.s32 %v1528, %v1530
        %v1532 = vrot.slane %v1504, %v1531
        %v1533 = vunpack.c.l.b16 %v1511
        %v1534 = vunpack.c.l.b16 %v1518
        %v1535 = vunpack.c.l.b16 %v1525
        %v1536 = vunpack.c.l.b16 %v1532
        %v1537 = vrot.slane %v1534, 7
        %v1538 = vsel %vm468, %v1537, %v1533
        %v1539 = vrot.slane %v1535, 6
        %v1540 = vsel %vm471, %v1539, %v1538
        %v1541 = vrot.slane %v1536, 5
        %v1542 = vsel %vm474, %v1541, %v1540
        %v1543 = vpack.c.b16 %v1542, %v1542
        %v1545 = vunpack.c.l.s4 1983009808
        %v1546 = vunpack.c.0.s8 %v1545
        %v1547 = vlaneseq
        %v1548 = vshrl.u32 %v1547, 7
        %v1549 = vsub.s32 %v1546, %v1548
        %v1550 = vrot.slane %v1543, %v1549
        %1551 = vrot.lane.b32.xlu0 %v1550, 88
        %v1552 = vpop.permute.xlu0 %1551
        %vm1554 = vcmask 861888
        %1555 = vst.msk [vmem:[#allocation2 + $0x2] sm:$0x3] %vm1554, %v1552
        %v1556 = vld [vmem:[%s358 + $0x4] sm:$0x4]
        %v1557 = vld [vmem:[%s358 + $0xc] sm:$0x4]
        %v1558 = vld [vmem:[%s358 + $0x14] sm:$0x4]
        %v1559 = vld [vmem:[%s358 + $0x1c] sm:$0x4]
        %v1565 = vunpack.c.l.s4 1983009808
        %v1566 = vunpack.c.0.s8 %v1565
        %v1567 = vlaneseq
        %v1568 = vshrl.u32 %v1567, 7
        %v1569 = vsub.s32 %v1566, %v1568
        %v1570 = vrot.slane %v1556, %v1569
        %v1571 = vcombine.high %v1570, %v1570
        %v1573 = vunpack.c.l.s4 1983009808
        %v1574 = vunpack.c.0.s8 %v1573
        %v1575 = vlaneseq
        %v1576 = vshrl.u32 %v1575, 7
        %v1577 = vsub.s32 %v1574, %v1576
        %v1578 = vrot.slane %v1557, %v1577
        %v1579 = vcombine.high %v1578, %v1578
        %v1581 = vunpack.c.l.s4 1983009808
        %v1582 = vunpack.c.0.s8 %v1581
        %v1583 = vlaneseq
        %v1584 = vshrl.u32 %v1583, 7
        %v1585 = vsub.s32 %v1582, %v1584
        %v1586 = vrot.slane %v1558, %v1585
        %v1587 = vcombine.high %v1586, %v1586
        %v1589 = vunpack.c.l.s4 1983009808
        %v1590 = vunpack.c.0.s8 %v1589
        %v1591 = vlaneseq
        %v1592 = vshrl.u32 %v1591, 7
        %v1593 = vsub.s32 %v1590, %v1592
        %v1594 = vrot.slane %v1559, %v1593
        %v1595 = vcombine.high %v1594, %v1594
        %v1597 = vunpack.c.l.s4 1983009808
        %v1598 = vunpack.c.0.s8 %v1597
        %v1599 = vlaneseq
        %v1600 = vshrl.u32 %v1599, 7
        %v1601 = vsub.s32 %v1598, %v1600
        %v1602 = vrot.slane %v1571, %v1601
        %v1604 = vunpack.c.l.s4 1983009808
        %v1605 = vunpack.c.0.s8 %v1604
        %v1606 = vlaneseq
        %v1607 = vshrl.u32 %v1606, 7
        %v1608 = vsub.s32 %v1605, %v1607
        %v1609 = vrot.slane %v1579, %v1608
        %v1611 = vunpack.c.l.s4 1983009808
        %v1612 = vunpack.c.0.s8 %v1611
        %v1613 = vlaneseq
        %v1614 = vshrl.u32 %v1613, 7
        %v1615 = vsub.s32 %v1612, %v1614
        %v1616 = vrot.slane %v1587, %v1615
        %v1618 = vunpack.c.l.s4 1983009808
        %v1619 = vunpack.c.0.s8 %v1618
        %v1620 = vlaneseq
        %v1621 = vshrl.u32 %v1620, 7
        %v1622 = vsub.s32 %v1619, %v1621
        %v1623 = vrot.slane %v1595, %v1622
        %v1624 = vunpack.c.l.b16 %v1602
        %v1625 = vunpack.c.l.b16 %v1609
        %v1626 = vunpack.c.l.b16 %v1616
        %v1627 = vunpack.c.l.b16 %v1623
        %v1628 = vrot.slane %v1624, 1
        %v1629 = vsel %vm468, %v1625, %v1628
        %v1630 = vrot.slane %v1626, 7
        %v1631 = vsel %vm471, %v1630, %v1629
        %v1632 = vrot.slane %v1627, 6
        %v1633 = vsel %vm474, %v1632, %v1631
        %v1634 = vpack.c.b16 %v1633, %v1633
        %v1636 = vunpack.c.l.s4 1983009808
        %v1637 = vunpack.c.0.s8 %v1636
        %v1638 = vlaneseq
        %v1639 = vshrl.u32 %v1638, 7
        %v1640 = vsub.s32 %v1637, %v1639
        %v1641 = vrot.slane %v1634, %v1640
        %1642 = vrot.lane.b32.xlu0 %v1641, 106
        %v1643 = vpop.permute.xlu0 %1642
        %vm1645 = vcmask 1009488
        %1646 = vst.msk [vmem:[#allocation2 + $0x2] sm:$0x3] %vm1645, %v1643
        %v1647 = vld [vmem:[%s358 + $0x4] sm:$0x8]
        %v1648 = vld [vmem:[%s358 + $0xc] sm:$0x8]
        %v1649 = vld [vmem:[%s358 + $0x14] sm:$0x8]
        %v1650 = vld [vmem:[%s358 + $0x1c] sm:$0x8]
        %v1656 = vunpack.c.l.s4 1983009808
        %v1657 = vunpack.c.0.s8 %v1656
        %v1658 = vlaneseq
        %v1659 = vshrl.u32 %v1658, 7
        %v1660 = vsub.s32 %v1657, %v1659
        %v1661 = vrot.slane %v1647, %v1660
        %v1662 = vcombine.high %v1661, %v1661
        %v1664 = vunpack.c.l.s4 1983009808
        %v1665 = vunpack.c.0.s8 %v1664
        %v1666 = vlaneseq
        %v1667 = vshrl.u32 %v1666, 7
        %v1668 = vsub.s32 %v1665, %v1667
        %v1669 = vrot.slane %v1648, %v1668
        %v1670 = vcombine.high %v1669, %v1669
        %v1672 = vunpack.c.l.s4 1983009808
        %v1673 = vunpack.c.0.s8 %v1672
        %v1674 = vlaneseq
        %v1675 = vshrl.u32 %v1674, 7
        %v1676 = vsub.s32 %v1673, %v1675
        %v1677 = vrot.slane %v1649, %v1676
        %v1678 = vcombine.high %v1677, %v1677
        %v1680 = vunpack.c.l.s4 1983009808
        %v1681 = vunpack.c.0.s8 %v1680
        %v1682 = vlaneseq
        %v1683 = vshrl.u32 %v1682, 7
        %v1684 = vsub.s32 %v1681, %v1683
        %v1685 = vrot.slane %v1650, %v1684
        %v1686 = vcombine.high %v1685, %v1685
        %v1688 = vunpack.c.l.s4 1983009808
        %v1689 = vunpack.c.0.s8 %v1688
        %v1690 = vlaneseq
        %v1691 = vshrl.u32 %v1690, 7
        %v1692 = vsub.s32 %v1689, %v1691
        %v1693 = vrot.slane %v1662, %v1692
        %v1695 = vunpack.c.l.s4 1983009808
        %v1696 = vunpack.c.0.s8 %v1695
        %v1697 = vlaneseq
        %v1698 = vshrl.u32 %v1697, 7
        %v1699 = vsub.s32 %v1696, %v1698
        %v1700 = vrot.slane %v1670, %v1699
        %v1702 = vunpack.c.l.s4 1983009808
        %v1703 = vunpack.c.0.s8 %v1702
        %v1704 = vlaneseq
        %v1705 = vshrl.u32 %v1704, 7
        %v1706 = vsub.s32 %v1703, %v1705
        %v1707 = vrot.slane %v1678, %v1706
        %v1709 = vunpack.c.l.s4 1983009808
        %v1710 = vunpack.c.0.s8 %v1709
        %v1711 = vlaneseq
        %v1712 = vshrl.u32 %v1711, 7
        %v1713 = vsub.s32 %v1710, %v1712
        %v1714 = vrot.slane %v1686, %v1713
        %v1715 = vunpack.c.l.b16 %v1693
        %v1716 = vunpack.c.l.b16 %v1700
        %v1717 = vunpack.c.l.b16 %v1707
        %v1718 = vunpack.c.l.b16 %v1714
        %v1719 = vrot.slane %v1715, 2
        %v1720 = vrot.slane %v1716, 1
        %v1721 = vsel %vm468, %v1720, %v1719
        %v1722 = vsel %vm471, %v1717, %v1721
        %v1723 = vrot.slane %v1718, 7
        %v1724 = vsel %vm474, %v1723, %v1722
        %v1725 = vpack.c.b16 %v1724, %v1724
        %v1727 = vunpack.c.l.s4 1983009808
        %v1728 = vunpack.c.0.s8 %v1727
        %v1729 = vlaneseq
        %v1730 = vshrl.u32 %v1729, 7
        %v1731 = vsub.s32 %v1728, %v1730
        %v1732 = vrot.slane %v1725, %v1731
        %1733 = vrot.lane.b32.xlu0 %v1732, 124
        %v1734 = vpop.permute.xlu0 %1733
        %v1735 = vrot.slane %v1734, 6
        %vm1736 = vcmask 1014784
        %v1737 = vsel %vm1736, %v1735, %v1734
        %vm1739 = vcmask 1042400
        %vm1740 = vcmask 109570
        %vm1741 = vmor %vm1740, %vm1739
        %1742 = vst.msk [vmem:[#allocation2 + $0x2] sm:$0xf] %vm1741, %v1737
        %v1743 = vld [vmem:[%s358 + $0x4] sm:$0x8]
        %v1744 = vld [vmem:[%s358 + $0xc] sm:$0x8]
        %v1745 = vld [vmem:[%s358 + $0x14] sm:$0x8]
        %v1746 = vld [vmem:[%s358 + $0x1c] sm:$0x8]
        %v1752 = vunpack.c.l.s4 1983009808
        %v1753 = vunpack.c.0.s8 %v1752
        %v1754 = vlaneseq
        %v1755 = vshrl.u32 %v1754, 7
        %v1756 = vsub.s32 %v1753, %v1755
        %v1757 = vrot.slane %v1743, %v1756
        %v1758 = vcombine.high %v1757, %v1757
        %v1760 = vunpack.c.l.s4 1983009808
        %v1761 = vunpack.c.0.s8 %v1760
        %v1762 = vlaneseq
        %v1763 = vshrl.u32 %v1762, 7
        %v1764 = vsub.s32 %v1761, %v1763
        %v1765 = vrot.slane %v1744, %v1764
        %v1766 = vcombine.high %v1765, %v1765
        %v1768 = vunpack.c.l.s4 1983009808
        %v1769 = vunpack.c.0.s8 %v1768
        %v1770 = vlaneseq
        %v1771 = vshrl.u32 %v1770, 7
        %v1772 = vsub.s32 %v1769, %v1771
        %v1773 = vrot.slane %v1745, %v1772
        %v1774 = vcombine.high %v1773, %v1773
        %v1776 = vunpack.c.l.s4 1983009808
        %v1777 = vunpack.c.0.s8 %v1776
        %v1778 = vlaneseq
        %v1779 = vshrl.u32 %v1778, 7
        %v1780 = vsub.s32 %v1777, %v1779
        %v1781 = vrot.slane %v1746, %v1780
        %v1782 = vcombine.high %v1781, %v1781
        %v1784 = vunpack.c.l.s4 1983009808
        %v1785 = vunpack.c.0.s8 %v1784
        %v1786 = vlaneseq
        %v1787 = vshrl.u32 %v1786, 7
        %v1788 = vsub.s32 %v1785, %v1787
        %v1789 = vrot.slane %v1758, %v1788
        %v1791 = vunpack.c.l.s4 1983009808
        %v1792 = vunpack.c.0.s8 %v1791
        %v1793 = vlaneseq
        %v1794 = vshrl.u32 %v1793, 7
        %v1795 = vsub.s32 %v1792, %v1794
        %v1796 = vrot.slane %v1766, %v1795
        %v1798 = vunpack.c.l.s4 1983009808
        %v1799 = vunpack.c.0.s8 %v1798
        %v1800 = vlaneseq
        %v1801 = vshrl.u32 %v1800, 7
        %v1802 = vsub.s32 %v1799, %v1801
        %v1803 = vrot.slane %v1774, %v1802
        %v1805 = vunpack.c.l.s4 1983009808
        %v1806 = vunpack.c.0.s8 %v1805
        %v1807 = vlaneseq
        %v1808 = vshrl.u32 %v1807, 7
        %v1809 = vsub.s32 %v1806, %v1808
        %v1810 = vrot.slane %v1782, %v1809
        %v1811 = vunpack.c.l.b16 %v1789
        %v1812 = vunpack.c.l.b16 %v1796
        %v1813 = vunpack.c.l.b16 %v1803
        %v1814 = vunpack.c.l.b16 %v1810
        %v1815 = vrot.slane %v1811, 3
        %v1816 = vrot.slane %v1812, 2
        %v1817 = vsel %vm468, %v1816, %v1815
        %v1818 = vrot.slane %v1813, 1
        %v1819 = vsel %vm471, %v1818, %v1817
        %v1820 = vsel %vm474, %v1814, %v1819
        %v1821 = vpack.c.b16 %v1820, %v1820
        %v1823 = vunpack.c.l.s4 1983009808
        %v1824 = vunpack.c.0.s8 %v1823
        %v1825 = vlaneseq
        %v1826 = vshrl.u32 %v1825, 7
        %v1827 = vsub.s32 %v1824, %v1826
        %v1828 = vrot.slane %v1821, %v1827
        %1829 = vrot.lane.b32.xlu0 %v1828, 14
        %v1830 = vpop.permute.xlu0 %1829
        %vm1832 = vcmask 255088
        %1833 = vst.msk [vmem:[#allocation2 + $0x4] sm:$0x3] %vm1832, %v1830
        %v1834 = vld [vmem:[%s365] sm:$0x1]
        %v1835 = vld [vmem:[%s365 + $0x4] sm:$0x1]
        %v1836 = vld [vmem:[%s365 + $0x8] sm:$0x1]
        %v1837 = vld [vmem:[%s365 + $0xc] sm:$0x1]
        %v1843 = vunpack.c.l.s4 1983009808
        %v1844 = vunpack.c.0.s8 %v1843
        %v1845 = vlaneseq
        %v1846 = vshrl.u32 %v1845, 7
        %v1847 = vsub.s32 %v1844, %v1846
        %v1848 = vrot.slane %v1834, %v1847
        %v1850 = vunpack.c.l.s4 1983009808
        %v1851 = vunpack.c.0.s8 %v1850
        %v1852 = vlaneseq
        %v1853 = vshrl.u32 %v1852, 7
        %v1854 = vsub.s32 %v1851, %v1853
        %v1855 = vrot.slane %v1835, %v1854
        %v1857 = vunpack.c.l.s4 1983009808
        %v1858 = vunpack.c.0.s8 %v1857
        %v1859 = vlaneseq
        %v1860 = vshrl.u32 %v1859, 7
        %v1861 = vsub.s32 %v1858, %v1860
        %v1862 = vrot.slane %v1836, %v1861
        %v1864 = vunpack.c.l.s4 1983009808
        %v1865 = vunpack.c.0.s8 %v1864
        %v1866 = vlaneseq
        %v1867 = vshrl.u32 %v1866, 7
        %v1868 = vsub.s32 %v1865, %v1867
        %v1869 = vrot.slane %v1837, %v1868
        %v1871 = vunpack.c.l.s4 1983009808
        %v1872 = vunpack.c.0.s8 %v1871
        %v1873 = vlaneseq
        %v1874 = vshrl.u32 %v1873, 7
        %v1875 = vsub.s32 %v1872, %v1874
        %v1876 = vrot.slane %v1848, %v1875
        %v1878 = vunpack.c.l.s4 1983009808
        %v1879 = vunpack.c.0.s8 %v1878
        %v1880 = vlaneseq
        %v1881 = vshrl.u32 %v1880, 7
        %v1882 = vsub.s32 %v1879, %v1881
        %v1883 = vrot.slane %v1855, %v1882
        %v1885 = vunpack.c.l.s4 1983009808
        %v1886 = vunpack.c.0.s8 %v1885
        %v1887 = vlaneseq
        %v1888 = vshrl.u32 %v1887, 7
        %v1889 = vsub.s32 %v1886, %v1888
        %v1890 = vrot.slane %v1862, %v1889
        %v1892 = vunpack.c.l.s4 1983009808
        %v1893 = vunpack.c.0.s8 %v1892
        %v1894 = vlaneseq
        %v1895 = vshrl.u32 %v1894, 7
        %v1896 = vsub.s32 %v1893, %v1895
        %v1897 = vrot.slane %v1869, %v1896
        %v1898 = vunpack.c.l.b16 %v1876
        %v1899 = vunpack.c.l.b16 %v1883
        %v1900 = vunpack.c.l.b16 %v1890
        %v1901 = vunpack.c.l.b16 %v1897
        %v1902 = vrot.slane %v1899, 7
        %v1903 = vsel %vm468, %v1902, %v1898
        %v1904 = vrot.slane %v1900, 6
        %v1905 = vsel %vm471, %v1904, %v1903
        %v1906 = vrot.slane %v1901, 5
        %v1907 = vsel %vm474, %v1906, %v1905
        %v1908 = vpack.c.b16 %v1907, %v1907
        %v1910 = vunpack.c.l.s4 1983009808
        %v1911 = vunpack.c.0.s8 %v1910
        %v1912 = vlaneseq
        %v1913 = vshrl.u32 %v1912, 7
        %v1914 = vsub.s32 %v1911, %v1913
        %v1915 = vrot.slane %v1908, %v1914
        %1916 = vrot.lane.b32.xlu0 %v1915, 32
        %v1917 = vpop.permute.xlu0 %1916
        %vm1919 = vcmask 402688
        %1920 = vst.msk [vmem:[#allocation2 + $0x4] sm:$0x3] %vm1919, %v1917
        %v1921 = vld [vmem:[%s365] sm:$0x1]
        %v1922 = vld [vmem:[%s365 + $0x4] sm:$0x1]
        %v1923 = vld [vmem:[%s365 + $0x8] sm:$0x1]
        %v1924 = vld [vmem:[%s365 + $0xc] sm:$0x1]
        %v1930 = vunpack.c.l.s4 1983009808
        %v1931 = vunpack.c.0.s8 %v1930
        %v1932 = vlaneseq
        %v1933 = vshrl.u32 %v1932, 7
        %v1934 = vsub.s32 %v1931, %v1933
        %v1935 = vrot.slane %v1921, %v1934
        %v1937 = vunpack.c.l.s4 1983009808
        %v1938 = vunpack.c.0.s8 %v1937
        %v1939 = vlaneseq
        %v1940 = vshrl.u32 %v1939, 7
        %v1941 = vsub.s32 %v1938, %v1940
        %v1942 = vrot.slane %v1922, %v1941
        %v1944 = vunpack.c.l.s4 1983009808
        %v1945 = vunpack.c.0.s8 %v1944
        %v1946 = vlaneseq
        %v1947 = vshrl.u32 %v1946, 7
        %v1948 = vsub.s32 %v1945, %v1947
        %v1949 = vrot.slane %v1923, %v1948
        %v1951 = vunpack.c.l.s4 1983009808
        %v1952 = vunpack.c.0.s8 %v1951
        %v1953 = vlaneseq
        %v1954 = vshrl.u32 %v1953, 7
        %v1955 = vsub.s32 %v1952, %v1954
        %v1956 = vrot.slane %v1924, %v1955
        %v1958 = vunpack.c.l.s4 1983009808
        %v1959 = vunpack.c.0.s8 %v1958
        %v1960 = vlaneseq
        %v1961 = vshrl.u32 %v1960, 7
        %v1962 = vsub.s32 %v1959, %v1961
        %v1963 = vrot.slane %v1935, %v1962
        %v1965 = vunpack.c.l.s4 1983009808
        %v1966 = vunpack.c.0.s8 %v1965
        %v1967 = vlaneseq
        %v1968 = vshrl.u32 %v1967, 7
        %v1969 = vsub.s32 %v1966, %v1968
        %v1970 = vrot.slane %v1942, %v1969
        %v1972 = vunpack.c.l.s4 1983009808
        %v1973 = vunpack.c.0.s8 %v1972
        %v1974 = vlaneseq
        %v1975 = vshrl.u32 %v1974, 7
        %v1976 = vsub.s32 %v1973, %v1975
        %v1977 = vrot.slane %v1949, %v1976
        %v1979 = vunpack.c.l.s4 1983009808
        %v1980 = vunpack.c.0.s8 %v1979
        %v1981 = vlaneseq
        %v1982 = vshrl.u32 %v1981, 7
        %v1983 = vsub.s32 %v1980, %v1982
        %v1984 = vrot.slane %v1956, %v1983
        %v1985 = vunpack.c.l.b16 %v1963
        %v1986 = vunpack.c.l.b16 %v1970
        %v1987 = vunpack.c.l.b16 %v1977
        %v1988 = vunpack.c.l.b16 %v1984
        %v1989 = vrot.slane %v1985, 1
        %v1990 = vsel %vm468, %v1986, %v1989
        %v1991 = vrot.slane %v1987, 7
        %v1992 = vsel %vm471, %v1991, %v1990
        %v1993 = vrot.slane %v1988, 6
        %v1994 = vsel %vm474, %v1993, %v1992
        %v1995 = vpack.c.b16 %v1994, %v1994
        %v1997 = vunpack.c.l.s4 1983009808
        %v1998 = vunpack.c.0.s8 %v1997
        %v1999 = vlaneseq
        %v2000 = vshrl.u32 %v1999, 7
        %v2001 = vsub.s32 %v1998, %v2000
        %v2002 = vrot.slane %v1995, %v2001
        %2003 = vrot.lane.b32.xlu0 %v2002, 50
        %v2004 = vpop.permute.xlu0 %2003
        %vm2006 = vcmask 550288
        %2007 = vst.msk [vmem:[#allocation2 + $0x4] sm:$0x3] %vm2006, %v2004
        %v2008 = vld [vmem:[%s365] sm:$0x2]
        %v2009 = vld [vmem:[%s365 + $0x4] sm:$0x2]
        %v2010 = vld [vmem:[%s365 + $0x8] sm:$0x2]
        %v2011 = vld [vmem:[%s365 + $0xc] sm:$0x2]
        %v2017 = vunpack.c.l.s4 1983009808
        %v2018 = vunpack.c.0.s8 %v2017
        %v2019 = vlaneseq
        %v2020 = vshrl.u32 %v2019, 7
        %v2021 = vsub.s32 %v2018, %v2020
        %v2022 = vrot.slane %v2008, %v2021
        %v2024 = vunpack.c.l.s4 1983009808
        %v2025 = vunpack.c.0.s8 %v2024
        %v2026 = vlaneseq
        %v2027 = vshrl.u32 %v2026, 7
        %v2028 = vsub.s32 %v2025, %v2027
        %v2029 = vrot.slane %v2009, %v2028
        %v2031 = vunpack.c.l.s4 1983009808
        %v2032 = vunpack.c.0.s8 %v2031
        %v2033 = vlaneseq
        %v2034 = vshrl.u32 %v2033, 7
        %v2035 = vsub.s32 %v2032, %v2034
        %v2036 = vrot.slane %v2010, %v2035
        %v2038 = vunpack.c.l.s4 1983009808
        %v2039 = vunpack.c.0.s8 %v2038
        %v2040 = vlaneseq
        %v2041 = vshrl.u32 %v2040, 7
        %v2042 = vsub.s32 %v2039, %v2041
        %v2043 = vrot.slane %v2011, %v2042
        %v2045 = vunpack.c.l.s4 1983009808
        %v2046 = vunpack.c.0.s8 %v2045
        %v2047 = vlaneseq
        %v2048 = vshrl.u32 %v2047, 7
        %v2049 = vsub.s32 %v2046, %v2048
        %v2050 = vrot.slane %v2022, %v2049
        %v2052 = vunpack.c.l.s4 1983009808
        %v2053 = vunpack.c.0.s8 %v2052
        %v2054 = vlaneseq
        %v2055 = vshrl.u32 %v2054, 7
        %v2056 = vsub.s32 %v2053, %v2055
        %v2057 = vrot.slane %v2029, %v2056
        %v2059 = vunpack.c.l.s4 1983009808
        %v2060 = vunpack.c.0.s8 %v2059
        %v2061 = vlaneseq
        %v2062 = vshrl.u32 %v2061, 7
        %v2063 = vsub.s32 %v2060, %v2062
        %v2064 = vrot.slane %v2036, %v2063
        %v2066 = vunpack.c.l.s4 1983009808
        %v2067 = vunpack.c.0.s8 %v2066
        %v2068 = vlaneseq
        %v2069 = vshrl.u32 %v2068, 7
        %v2070 = vsub.s32 %v2067, %v2069
        %v2071 = vrot.slane %v2043, %v2070
        %v2072 = vunpack.c.l.b16 %v2050
        %v2073 = vunpack.c.l.b16 %v2057
        %v2074 = vunpack.c.l.b16 %v2064
        %v2075 = vunpack.c.l.b16 %v2071
        %v2076 = vrot.slane %v2072, 2
        %v2077 = vrot.slane %v2073, 1
        %v2078 = vsel %vm468, %v2077, %v2076
        %v2079 = vsel %vm471, %v2074, %v2078
        %v2080 = vrot.slane %v2075, 7
        %v2081 = vsel %vm474, %v2080, %v2079
        %v2082 = vpack.c.b16 %v2081, %v2081
        %v2084 = vunpack.c.l.s4 1983009808
        %v2085 = vunpack.c.0.s8 %v2084
        %v2086 = vlaneseq
        %v2087 = vshrl.u32 %v2086, 7
        %v2088 = vsub.s32 %v2085, %v2087
        %v2089 = vrot.slane %v2082, %v2088
        %2090 = vrot.lane.b32.xlu0 %v2089, 68
        %v2091 = vpop.permute.xlu0 %2090
        %vm2093 = vcmask 697888
        %2094 = vst.msk [vmem:[#allocation2 + $0x4] sm:$0x3] %vm2093, %v2091
        %v2095 = vld [vmem:[%s4] sm:$0xff]
        %v2096 = vld [vmem:[%s4 + $0x8] sm:$0xff]
        %v2097 = vld [vmem:[%s4 + $0x10] sm:$0xff]
        %v2098 = vld [vmem:[%s4 + $0x18] sm:$0xff]
        %v2099 = vld [vmem:[#allocation2] sm:$0xf]
        %v2100 = vld [vmem:[%s2] sm:$0xf]
        %v2101 = vld [vmem:[%s2 + $0x4] sm:$0xf]
        %v2102 = vld [vmem:[%s2 + $0x8] sm:$0xf]
        %v2103 = vld [vmem:[%s2 + $0xc] sm:$0xf]
        %s2104 = scalar_lea.vmem %s2, 16
        %v2105 = vld [vmem:[%s2104] sm:$0xf]
        %v2106 = vld [vmem:[%s2104 + $0x4] sm:$0xf]
        %v2107 = vld [vmem:[%s2104 + $0x8] sm:$0xf]
        %v2108 = vld [vmem:[%s2104 + $0xc] sm:$0xf]
        %v2113 = vunpack.c.l.b16 %v2105
        %v2114 = vunpack.c.l.b16 %v2106
        %v2115 = vunpack.c.l.b16 %v2107
        %v2116 = vunpack.c.l.b16 %v2108
        %v2117 = vpack.c.b16 %v2114, %v2113
        %v2118 = vpack.c.b16 %v2116, %v2115
        %v2121 = vunpack.c.l.s4 1983009808
        %v2122 = vunpack.c.0.s8 %v2121
        %v2123 = vlaneseq
        %v2124 = vshrl.u32 %v2123, 7
        %v2125 = vsub.s32 %v2122, %v2124
        %v2126 = vrot.slane %v2099, %v2125
        %v2127 = vcombine.high %v2126, %v2126
        %2128 = vrot.lane.b32.xlu0 %v2126, 127
        %v2129 = vpop.permute.xlu0 %2128
        %2130 = vrot.lane.b32.xlu0 %v2127, 127
        %v2131 = vpop.permute.xlu0 %2130
        %vm2132 = vcmask 1039360
        %v2133 = vsel %vm2132, %v2129, %v2131
        %vm2134 = vcmask 31744
        %v2136 = vsel %vm2134, %v2117, 0
        %v2139 = vsel %vm2134, %v2118, 0
        %vm2141 = vcmask 1041408
        %v2143 = vsel %vm2141, %v2133, 0
        %v2146 = vsel %vm2141, %v2131, 0
        %2148 = vmatprep.subr.bf16.mxu0 %v2146
        %2149 = vmatpush1.bf16.msra.mxu0 %v2143
        %2150 = vmatprep.subr.bf16.mxu0 0
        %2151 = vmatpush1.bf16.msra.mxu0 0
        %2152 = vmatprep.subr.bf16.mxu0 0
        %2153 = vmatpush1.bf16.msra.mxu0 0
        %2154 = vmatprep.subr.bf16.mxu0 0
        %2155 = vmatpush1.bf16.msra.mxu0 0
        %2156 = vmatprep.subr.bf16.mxu0 0
        %2157 = vmatpush1.bf16.msra.mxu0 0
        %2158 = vmatprep.subr.bf16.mxu0 0
        %2159 = vmatpush1.bf16.msra.mxu0 0
        %2160 = vmatprep.subr.bf16.mxu0 0
        %2161 = vmatpush1.bf16.msra.mxu0 0
        %2162 = vmatprep.subr.bf16.mxu0 0
        %2163 = vmatpush1.bf16.msra.mxu0 0
        %2164 = vmatprep.subr.bf16.mxu0 0
        %2165 = vmatpush1.bf16.msra.mxu0 0
        %2166 = vmatprep.subr.bf16.mxu0 0
        %2167 = vmatpush1.bf16.msra.mxu0 0
        %2168 = vmatprep.subr.bf16.mxu0 0
        %2169 = vmatpush1.bf16.msra.mxu0 0
        %2170 = vmatprep.subr.bf16.mxu0 0
        %2171 = vmatpush1.bf16.msra.mxu0 0
        %2172 = vmatprep.subr.bf16.mxu0 0
        %2173 = vmatpush1.bf16.msra.mxu0 0
        %2174 = vmatprep.subr.bf16.mxu0 0
        %2175 = vmatpush1.bf16.msra.mxu0 0
        %2176 = vmatprep.subr.bf16.mxu0 0
        %2177 = vmatpush1.bf16.msra.mxu0 0
        %2178 = vmatprep.subr.bf16.mxu0 0
        %2179 = vmatpush1.bf16.msra.mxu0 0
        %2180 = vmatprep.mubr.bf16.mxu0 0
        %2181 = vmatmul.mubr.bf16.gmra.mrb[0].mxu0 %v2136
        %v2182 = vpop.f32.mrb[0].mxu0
        %v2183 = vadd.f32 0.0, %v2182
        %v2184 = vpop.f32.mrb[0].mxu0
        %v2185 = vadd.f32 0.0, %v2184
        %v2186 = vpop.f32.mrb[0].mxu0
        %v2187 = vadd.f32 0.0, %v2186
        %v2188 = vpop.f32.mrb[0].mxu0
        %v2189 = vadd.f32 0.0, %v2188
        %2190 = vmatprep.mubr.bf16.mxu0 0
        %2191 = vmatmul.mubr.bf16.gmra.mrb[0].mxu0 %v2139
        %v2192 = vpop.f32.mrb[0].mxu0
        %v2193 = vadd.f32 0.0, %v2192
        %v2194 = vpop.f32.mrb[0].mxu0
        %v2195 = vadd.f32 0.0, %v2194
        %v2196 = vpop.f32.mrb[0].mxu0
        %v2197 = vadd.f32 0.0, %v2196
        %v2198 = vpop.f32.mrb[0].mxu0
        %v2199 = vadd.f32 0.0, %v2198
        %2200 = vdwg.mxu0
        %v2205 = vunpack.c.l.b16 %v2100
        %v2206 = vunpack.c.l.b16 %v2101
        %v2207 = vunpack.c.l.b16 %v2102
        %v2208 = vunpack.c.l.b16 %v2103
        %v2209 = vpack.c.b16 %v2206, %v2205
        %v2210 = vpack.c.b16 %v2208, %v2207
        %v2212 = vsel %vm2134, %v2209, 0
        %v2215 = vsel %vm2134, %v2210, 0
        %v2218 = vsel %vm2141, %v2126, 0
        %v2221 = vsel %vm2141, %v2127, 0
        %2223 = vmatprep.subr.bf16.mxu0 %v2221
        %2224 = vmatpush1.bf16.msra.mxu0 %v2218
        %2225 = vmatprep.subr.bf16.mxu0 0
        %2226 = vmatpush1.bf16.msra.mxu0 0
        %2227 = vmatprep.subr.bf16.mxu0 0
        %2228 = vmatpush1.bf16.msra.mxu0 0
        %2229 = vmatprep.subr.bf16.mxu0 0
        %2230 = vmatpush1.bf16.msra.mxu0 0
        %2231 = vmatprep.subr.bf16.mxu0 0
        %2232 = vmatpush1.bf16.msra.mxu0 0
        %2233 = vmatprep.subr.bf16.mxu0 0
        %2234 = vmatpush1.bf16.msra.mxu0 0
        %2235 = vmatprep.subr.bf16.mxu0 0
        %2236 = vmatpush1.bf16.msra.mxu0 0
        %2237 = vmatprep.subr.bf16.mxu0 0
        %2238 = vmatpush1.bf16.msra.mxu0 0
        %2239 = vmatprep.subr.bf16.mxu0 0
        %2240 = vmatpush1.bf16.msra.mxu0 0
        %2241 = vmatprep.subr.bf16.mxu0 0
        %2242 = vmatpush1.bf16.msra.mxu0 0
        %2243 = vmatprep.subr.bf16.mxu0 0
        %2244 = vmatpush1.bf16.msra.mxu0 0
        %2245 = vmatprep.subr.bf16.mxu0 0
        %2246 = vmatpush1.bf16.msra.mxu0 0
        %2247 = vmatprep.subr.bf16.mxu0 0
        %2248 = vmatpush1.bf16.msra.mxu0 0
        %2249 = vmatprep.subr.bf16.mxu0 0
        %2250 = vmatpush1.bf16.msra.mxu0 0
        %2251 = vmatprep.subr.bf16.mxu0 0
        %2252 = vmatpush1.bf16.msra.mxu0 0
        %2253 = vmatprep.subr.bf16.mxu0 0
        %2254 = vmatpush1.bf16.msra.mxu0 0
        %2255 = vmatprep.mubr.bf16.mxu0 0
        %2256 = vmatmul.mubr.bf16.gmra.mrb[0].mxu0 %v2212
        %v2257 = vpop.f32.mrb[0].mxu0
        %v2258 = vadd.f32 %v2183, %v2257
        %v2259 = vpop.f32.mrb[0].mxu0
        %v2260 = vadd.f32 %v2185, %v2259
        %v2261 = vpop.f32.mrb[0].mxu0
        %v2262 = vadd.f32 %v2187, %v2261
        %v2263 = vpop.f32.mrb[0].mxu0
        %v2264 = vadd.f32 %v2189, %v2263
        %2265 = vmatprep.mubr.bf16.mxu0 0
        %2266 = vmatmul.mubr.bf16.gmra.mrb[0].mxu0 %v2215
        %v2267 = vpop.f32.mrb[0].mxu0
        %v2268 = vadd.f32 %v2193, %v2267
        %v2269 = vpop.f32.mrb[0].mxu0
        %v2270 = vadd.f32 %v2195, %v2269
        %v2271 = vpop.f32.mrb[0].mxu0
        %v2272 = vadd.f32 %v2197, %v2271
        %v2273 = vpop.f32.mrb[0].mxu0
        %v2274 = vadd.f32 %v2199, %v2273
        %2275 = vdwg.mxu0
        %v2276 = vld [vmem:[#allocation2] sm:$0xf]
        %s2277 = scalar_lea.vmem %s2, 32
        %v2278 = vld [vmem:[%s2277] sm:$0xf]
        %v2279 = vld [vmem:[%s2277 + $0x4] sm:$0xf]
        %v2280 = vld [vmem:[%s2277 + $0x8] sm:$0xf]
        %v2281 = vld [vmem:[%s2277 + $0xc] sm:$0xf]
        %v2286 = vunpack.c.l.b16 %v2278
        %v2287 = vunpack.c.l.b16 %v2279
        %v2288 = vunpack.c.l.b16 %v2280
        %v2289 = vunpack.c.l.b16 %v2281
        %v2290 = vpack.c.b16 %v2287, %v2286
        %v2291 = vpack.c.b16 %v2289, %v2288
        %v2294 = vunpack.c.l.s4 1983009808
        %v2295 = vunpack.c.0.s8 %v2294
        %v2296 = vlaneseq
        %v2297 = vshrl.u32 %v2296, 7
        %v2298 = vsub.s32 %v2295, %v2297
        %v2299 = vrot.slane %v2276, %v2298
        %v2300 = vcombine.high %v2299, %v2299
        %2301 = vrot.lane.b32.xlu0 %v2299, 126
        %v2302 = vpop.permute.xlu0 %2301
        %2303 = vrot.lane.b32.xlu0 %v2300, 126
        %v2304 = vpop.permute.xlu0 %2303
        %v2305 = vsel %vm1110, %v2302, %v2304
        %v2307 = vsel %vm2134, %v2290, 0
        %v2310 = vsel %vm2134, %v2291, 0
        %v2313 = vsel %vm2141, %v2305, 0
        %v2316 = vsel %vm2141, %v2304, 0
        %2318 = vmatprep.subr.bf16.mxu0 %v2316
        %2319 = vmatpush1.bf16.msra.mxu0 %v2313
        %2320 = vmatprep.subr.bf16.mxu0 0
        %2321 = vmatpush1.bf16.msra.mxu0 0
        %2322 = vmatprep.subr.bf16.mxu0 0
        %2323 = vmatpush1.bf16.msra.mxu0 0
        %2324 = vmatprep.subr.bf16.mxu0 0
        %2325 = vmatpush1.bf16.msra.mxu0 0
        %2326 = vmatprep.subr.bf16.mxu0 0
        %2327 = vmatpush1.bf16.msra.mxu0 0
        %2328 = vmatprep.subr.bf16.mxu0 0
        %2329 = vmatpush1.bf16.msra.mxu0 0
        %2330 = vmatprep.subr.bf16.mxu0 0
        %2331 = vmatpush1.bf16.msra.mxu0 0
        %2332 = vmatprep.subr.bf16.mxu0 0
        %2333 = vmatpush1.bf16.msra.mxu0 0
        %2334 = vmatprep.subr.bf16.mxu0 0
        %2335 = vmatpush1.bf16.msra.mxu0 0
        %2336 = vmatprep.subr.bf16.mxu0 0
        %2337 = vmatpush1.bf16.msra.mxu0 0
        %2338 = vmatprep.subr.bf16.mxu0 0
        %2339 = vmatpush1.bf16.msra.mxu0 0
        %2340 = vmatprep.subr.bf16.mxu0 0
        %2341 = vmatpush1.bf16.msra.mxu0 0
        %2342 = vmatprep.subr.bf16.mxu0 0
        %2343 = vmatpush1.bf16.msra.mxu0 0
        %2344 = vmatprep.subr.bf16.mxu0 0
        %2345 = vmatpush1.bf16.msra.mxu0 0
        %2346 = vmatprep.subr.bf16.mxu0 0
        %2347 = vmatpush1.bf16.msra.mxu0 0
        %2348 = vmatprep.subr.bf16.mxu0 0
        %2349 = vmatpush1.bf16.msra.mxu0 0
        %2350 = vmatprep.mubr.bf16.mxu0 0
        %2351 = vmatmul.mubr.bf16.gmra.mrb[0].mxu0 %v2307
        %v2352 = vpop.f32.mrb[0].mxu0
        %v2353 = vadd.f32 0.0, %v2352
        %v2354 = vpop.f32.mrb[0].mxu0
        %v2355 = vadd.f32 0.0, %v2354
        %v2356 = vpop.f32.mrb[0].mxu0
        %v2357 = vadd.f32 0.0, %v2356
        %v2358 = vpop.f32.mrb[0].mxu0
        %v2359 = vadd.f32 0.0, %v2358
        %2360 = vmatprep.mubr.bf16.mxu0 0
        %2361 = vmatmul.mubr.bf16.gmra.mrb[0].mxu0 %v2310
        %v2362 = vpop.f32.mrb[0].mxu0
        %v2363 = vadd.f32 0.0, %v2362
        %v2364 = vpop.f32.mrb[0].mxu0
        %v2365 = vadd.f32 0.0, %v2364
        %v2366 = vpop.f32.mrb[0].mxu0
        %v2367 = vadd.f32 0.0, %v2366
        %v2368 = vpop.f32.mrb[0].mxu0
        %v2369 = vadd.f32 0.0, %v2368
        %2370 = vdwg.mxu0
        %v2371 = vadd.f32 %v2258, %v2353
        %v2372 = vadd.f32 %v2260, %v2355
        %v2373 = vadd.f32 %v2262, %v2357
        %v2374 = vadd.f32 %v2264, %v2359
        %v2375 = vadd.f32 %v2268, %v2363
        %v2376 = vadd.f32 %v2270, %v2365
        %v2377 = vadd.f32 %v2272, %v2367
        %v2378 = vadd.f32 %v2274, %v2369
        %v2379 = vld [vmem:[#allocation2] sm:$0xf]
        %s2380 = scalar_lea.vmem %s2, 48
        %v2381 = vld [vmem:[%s2380] sm:$0xf]
        %v2382 = vld [vmem:[%s2380 + $0x4] sm:$0xf]
        %v2383 = vld [vmem:[%s2380 + $0x8] sm:$0xf]
        %v2384 = vld [vmem:[%s2380 + $0xc] sm:$0xf]
        %v2389 = vunpack.c.l.b16 %v2381
        %v2390 = vunpack.c.l.b16 %v2382
        %v2391 = vunpack.c.l.b16 %v2383
        %v2392 = vunpack.c.l.b16 %v2384
        %v2393 = vpack.c.b16 %v2390, %v2389
        %v2394 = vpack.c.b16 %v2392, %v2391
        %v2397 = vunpack.c.l.s4 1983009808
        %v2398 = vunpack.c.0.s8 %v2397
        %v2399 = vlaneseq
        %v2400 = vshrl.u32 %v2399, 7
        %v2401 = vsub.s32 %v2398, %v2400
        %v2402 = vrot.slane %v2379, %v2401
        %v2403 = vcombine.high %v2402, %v2402
        %2404 = vrot.lane.b32.xlu0 %v2402, 110
        %v2405 = vpop.permute.xlu0 %2404
        %2406 = vrot.lane.b32.xlu0 %v2403, 110
        %v2407 = vpop.permute.xlu0 %2406
        %vm2408 = vcmask 900096
        %v2409 = vsel %vm2408, %v2405, %v2407
        %v2411 = vsel %vm2134, %v2393, 0
        %v2414 = vsel %vm2134, %v2394, 0
        %v2417 = vsel %vm2141, %v2409, 0
        %v2420 = vsel %vm2141, %v2407, 0
        %2422 = vmatprep.subr.bf16.mxu0 %v2420
        %2423 = vmatpush1.bf16.msra.mxu0 %v2417
        %2424 = vmatprep.subr.bf16.mxu0 0
        %2425 = vmatpush1.bf16.msra.mxu0 0
        %2426 = vmatprep.subr.bf16.mxu0 0
        %2427 = vmatpush1.bf16.msra.mxu0 0
        %2428 = vmatprep.subr.bf16.mxu0 0
        %2429 = vmatpush1.bf16.msra.mxu0 0
        %2430 = vmatprep.subr.bf16.mxu0 0
        %2431 = vmatpush1.bf16.msra.mxu0 0
        %2432 = vmatprep.subr.bf16.mxu0 0
        %2433 = vmatpush1.bf16.msra.mxu0 0
        %2434 = vmatprep.subr.bf16.mxu0 0
        %2435 = vmatpush1.bf16.msra.mxu0 0
        %2436 = vmatprep.subr.bf16.mxu0 0
        %2437 = vmatpush1.bf16.msra.mxu0 0
        %2438 = vmatprep.subr.bf16.mxu0 0
        %2439 = vmatpush1.bf16.msra.mxu0 0
        %2440 = vmatprep.subr.bf16.mxu0 0
        %2441 = vmatpush1.bf16.msra.mxu0 0
        %2442 = vmatprep.subr.bf16.mxu0 0
        %2443 = vmatpush1.bf16.msra.mxu0 0
        %2444 = vmatprep.subr.bf16.mxu0 0
        %2445 = vmatpush1.bf16.msra.mxu0 0
        %2446 = vmatprep.subr.bf16.mxu0 0
        %2447 = vmatpush1.bf16.msra.mxu0 0
        %2448 = vmatprep.subr.bf16.mxu0 0
        %2449 = vmatpush1.bf16.msra.mxu0 0
        %2450 = vmatprep.subr.bf16.mxu0 0
        %2451 = vmatpush1.bf16.msra.mxu0 0
        %2452 = vmatprep.subr.bf16.mxu0 0
        %2453 = vmatpush1.bf16.msra.mxu0 0
        %2454 = vmatprep.mubr.bf16.mxu0 0
        %2455 = vmatmul.mubr.bf16.gmra.mrb[0].mxu0 %v2411
        %v2456 = vpop.f32.mrb[0].mxu0
        %v2457 = vadd.f32 0.0, %v2456
        %v2458 = vpop.f32.mrb[0].mxu0
        %v2459 = vadd.f32 0.0, %v2458
        %v2460 = vpop.f32.mrb[0].mxu0
        %v2461 = vadd.f32 0.0, %v2460
        %v2462 = vpop.f32.mrb[0].mxu0
        %v2463 = vadd.f32 0.0, %v2462
        %2464 = vmatprep.mubr.bf16.mxu0 0
        %2465 = vmatmul.mubr.bf16.gmra.mrb[0].mxu0 %v2414
        %v2466 = vpop.f32.mrb[0].mxu0
        %v2467 = vadd.f32 0.0, %v2466
        %v2468 = vpop.f32.mrb[0].mxu0
        %v2469 = vadd.f32 0.0, %v2468
        %v2470 = vpop.f32.mrb[0].mxu0
        %v2471 = vadd.f32 0.0, %v2470
        %v2472 = vpop.f32.mrb[0].mxu0
        %v2473 = vadd.f32 0.0, %v2472
        %2474 = vdwg.mxu0
        %v2475 = vadd.f32 %v2371, %v2457
        %v2476 = vadd.f32 %v2372, %v2459
        %v2477 = vadd.f32 %v2373, %v2461
        %v2478 = vadd.f32 %v2374, %v2463
        %v2479 = vadd.f32 %v2375, %v2467
        %v2480 = vadd.f32 %v2376, %v2469
        %v2481 = vadd.f32 %v2377, %v2471
        %v2482 = vadd.f32 %v2378, %v2473
        %v2483 = vld [vmem:[#allocation2] sm:$0xf]
        %s2484 = scalar_lea.vmem %s2, 64
        %v2485 = vld [vmem:[%s2484] sm:$0xf]
        %v2486 = vld [vmem:[%s2484 + $0x4] sm:$0xf]
        %v2487 = vld [vmem:[%s2484 + $0x8] sm:$0xf]
        %v2488 = vld [vmem:[%s2484 + $0xc] sm:$0xf]
        %v2493 = vunpack.c.l.b16 %v2485
        %v2494 = vunpack.c.l.b16 %v2486
        %v2495 = vunpack.c.l.b16 %v2487
        %v2496 = vunpack.c.l.b16 %v2488
        %v2497 = vpack.c.b16 %v2494, %v2493
        %v2498 = vpack.c.b16 %v2496, %v2495
        %v2501 = vunpack.c.l.s4 1983009808
        %v2502 = vunpack.c.0.s8 %v2501
        %v2503 = vlaneseq
        %v2504 = vshrl.u32 %v2503, 7
        %v2505 = vsub.s32 %v2502, %v2504
        %v2506 = vrot.slane %v2483, %v2505
        %v2507 = vcombine.high %v2506, %v2506
        %2508 = vrot.lane.b32.xlu0 %v2506, 109
        %v2509 = vpop.permute.xlu0 %2508
        %2510 = vrot.lane.b32.xlu0 %v2507, 109
        %v2511 = vpop.permute.xlu0 %2510
        %vm2512 = vcmask 891904
        %v2513 = vsel %vm2512, %v2509, %v2511
        %v2515 = vsel %vm2134, %v2497, 0
        %v2518 = vsel %vm2134, %v2498, 0
        %v2521 = vsel %vm2141, %v2513, 0
        %v2524 = vsel %vm2141, %v2511, 0
        %2526 = vmatprep.subr.bf16.mxu0 %v2524
        %2527 = vmatpush1.bf16.msra.mxu0 %v2521
        %2528 = vmatprep.subr.bf16.mxu0 0
        %2529 = vmatpush1.bf16.msra.mxu0 0
        %2530 = vmatprep.subr.bf16.mxu0 0
        %2531 = vmatpush1.bf16.msra.mxu0 0
        %2532 = vmatprep.subr.bf16.mxu0 0
        %2533 = vmatpush1.bf16.msra.mxu0 0
        %2534 = vmatprep.subr.bf16.mxu0 0
        %2535 = vmatpush1.bf16.msra.mxu0 0
        %2536 = vmatprep.subr.bf16.mxu0 0
        %2537 = vmatpush1.bf16.msra.mxu0 0
        %2538 = vmatprep.subr.bf16.mxu0 0
        %2539 = vmatpush1.bf16.msra.mxu0 0
        %2540 = vmatprep.subr.bf16.mxu0 0
        %2541 = vmatpush1.bf16.msra.mxu0 0
        %2542 = vmatprep.subr.bf16.mxu0 0
        %2543 = vmatpush1.bf16.msra.mxu0 0
        %2544 = vmatprep.subr.bf16.mxu0 0
        %2545 = vmatpush1.bf16.msra.mxu0 0
        %2546 = vmatprep.subr.bf16.mxu0 0
        %2547 = vmatpush1.bf16.msra.mxu0 0
        %2548 = vmatprep.subr.bf16.mxu0 0
        %2549 = vmatpush1.bf16.msra.mxu0 0
        %2550 = vmatprep.subr.bf16.mxu0 0
        %2551 = vmatpush1.bf16.msra.mxu0 0
        %2552 = vmatprep.subr.bf16.mxu0 0
        %2553 = vmatpush1.bf16.msra.mxu0 0
        %2554 = vmatprep.subr.bf16.mxu0 0
        %2555 = vmatpush1.bf16.msra.mxu0 0
        %2556 = vmatprep.subr.bf16.mxu0 0
        %2557 = vmatpush1.bf16.msra.mxu0 0
        %2558 = vmatprep.mubr.bf16.mxu0 0
        %2559 = vmatmul.mubr.bf16.gmra.mrb[0].mxu0 %v2515
        %v2560 = vpop.f32.mrb[0].mxu0
        %v2561 = vadd.f32 0.0, %v2560
        %v2562 = vpop.f32.mrb[0].mxu0
        %v2563 = vadd.f32 0.0, %v2562
        %v2564 = vpop.f32.mrb[0].mxu0
        %v2565 = vadd.f32 0.0, %v2564
        %v2566 = vpop.f32.mrb[0].mxu0
        %v2567 = vadd.f32 0.0, %v2566
        %2568 = vmatprep.mubr.bf16.mxu0 0
        %2569 = vmatmul.mubr.bf16.gmra.mrb[0].mxu0 %v2518
        %v2570 = vpop.f32.mrb[0].mxu0
        %v2571 = vadd.f32 0.0, %v2570
        %v2572 = vpop.f32.mrb[0].mxu0
        %v2573 = vadd.f32 0.0, %v2572
        %v2574 = vpop.f32.mrb[0].mxu0
        %v2575 = vadd.f32 0.0, %v2574
        %v2576 = vpop.f32.mrb[0].mxu0
        %v2577 = vadd.f32 0.0, %v2576
        %2578 = vdwg.mxu0
        %v2579 = vadd.f32 %v2475, %v2561
        %v2580 = vadd.f32 %v2476, %v2563
        %v2581 = vadd.f32 %v2477, %v2565
        %v2582 = vadd.f32 %v2478, %v2567
        %v2583 = vadd.f32 %v2479, %v2571
        %v2584 = vadd.f32 %v2480, %v2573
        %v2585 = vadd.f32 %v2481, %v2575
        %v2586 = vadd.f32 %v2482, %v2577
        %v2587 = vld [vmem:[#allocation2] sm:$0xf]
        %s2588 = scalar_lea.vmem %s2, 80
        %v2589 = vld [vmem:[%s2588] sm:$0xf]
        %v2590 = vld [vmem:[%s2588 + $0x4] sm:$0xf]
        %v2591 = vld [vmem:[%s2588 + $0x8] sm:$0xf]
        %v2592 = vld [vmem:[%s2588 + $0xc] sm:$0xf]
        %v2597 = vunpack.c.l.b16 %v2589
        %v2598 = vunpack.c.l.b16 %v2590
        %v2599 = vunpack.c.l.b16 %v2591
        %v2600 = vunpack.c.l.b16 %v2592
        %v2601 = vpack.c.b16 %v2598, %v2597
        %v2602 = vpack.c.b16 %v2600, %v2599
        %v2605 = vunpack.c.l.s4 1983009808
        %v2606 = vunpack.c.0.s8 %v2605
        %v2607 = vlaneseq
        %v2608 = vshrl.u32 %v2607, 7
        %v2609 = vsub.s32 %v2606, %v2608
        %v2610 = vrot.slane %v2587, %v2609
        %v2611 = vcombine.high %v2610, %v2610
        %2612 = vrot.lane.b32.xlu0 %v2610, 108
        %v2613 = vpop.permute.xlu0 %2612
        %2614 = vrot.lane.b32.xlu0 %v2611, 108
        %v2615 = vpop.permute.xlu0 %2614
        %vm2616 = vcmask 883712
        %v2617 = vsel %vm2616, %v2613, %v2615
        %v2619 = vsel %vm2134, %v2601, 0
        %v2622 = vsel %vm2134, %v2602, 0
        %v2625 = vsel %vm2141, %v2617, 0
        %v2628 = vsel %vm2141, %v2615, 0
        %2630 = vmatprep.subr.bf16.mxu0 %v2628
        %2631 = vmatpush1.bf16.msra.mxu0 %v2625
        %2632 = vmatprep.subr.bf16.mxu0 0
        %2633 = vmatpush1.bf16.msra.mxu0 0
        %2634 = vmatprep.subr.bf16.mxu0 0
        %2635 = vmatpush1.bf16.msra.mxu0 0
        %2636 = vmatprep.subr.bf16.mxu0 0
        %2637 = vmatpush1.bf16.msra.mxu0 0
        %2638 = vmatprep.subr.bf16.mxu0 0
        %2639 = vmatpush1.bf16.msra.mxu0 0
        %2640 = vmatprep.subr.bf16.mxu0 0
        %2641 = vmatpush1.bf16.msra.mxu0 0
        %2642 = vmatprep.subr.bf16.mxu0 0
        %2643 = vmatpush1.bf16.msra.mxu0 0
        %2644 = vmatprep.subr.bf16.mxu0 0
        %2645 = vmatpush1.bf16.msra.mxu0 0
        %2646 = vmatprep.subr.bf16.mxu0 0
        %2647 = vmatpush1.bf16.msra.mxu0 0
        %2648 = vmatprep.subr.bf16.mxu0 0
        %2649 = vmatpush1.bf16.msra.mxu0 0
        %2650 = vmatprep.subr.bf16.mxu0 0
        %2651 = vmatpush1.bf16.msra.mxu0 0
        %2652 = vmatprep.subr.bf16.mxu0 0
        %2653 = vmatpush1.bf16.msra.mxu0 0
        %2654 = vmatprep.subr.bf16.mxu0 0
        %2655 = vmatpush1.bf16.msra.mxu0 0
        %2656 = vmatprep.subr.bf16.mxu0 0
        %2657 = vmatpush1.bf16.msra.mxu0 0
        %2658 = vmatprep.subr.bf16.mxu0 0
        %2659 = vmatpush1.bf16.msra.mxu0 0
        %2660 = vmatprep.subr.bf16.mxu0 0
        %2661 = vmatpush1.bf16.msra.mxu0 0
        %2662 = vmatprep.mubr.bf16.mxu0 0
        %2663 = vmatmul.mubr.bf16.gmra.mrb[0].mxu0 %v2619
        %v2664 = vpop.f32.mrb[0].mxu0
        %v2665 = vadd.f32 0.0, %v2664
        %v2666 = vpop.f32.mrb[0].mxu0
        %v2667 = vadd.f32 0.0, %v2666
        %v2668 = vpop.f32.mrb[0].mxu0
        %v2669 = vadd.f32 0.0, %v2668
        %v2670 = vpop.f32.mrb[0].mxu0
        %v2671 = vadd.f32 0.0, %v2670
        %2672 = vmatprep.mubr.bf16.mxu0 0
        %2673 = vmatmul.mubr.bf16.gmra.mrb[0].mxu0 %v2622
        %v2674 = vpop.f32.mrb[0].mxu0
        %v2675 = vadd.f32 0.0, %v2674
        %v2676 = vpop.f32.mrb[0].mxu0
        %v2677 = vadd.f32 0.0, %v2676
        %v2678 = vpop.f32.mrb[0].mxu0
        %v2679 = vadd.f32 0.0, %v2678
        %v2680 = vpop.f32.mrb[0].mxu0
        %v2681 = vadd.f32 0.0, %v2680
        %2682 = vdwg.mxu0
        %v2683 = vadd.f32 %v2579, %v2665
        %v2684 = vadd.f32 %v2580, %v2667
        %v2685 = vadd.f32 %v2581, %v2669
        %v2686 = vadd.f32 %v2582, %v2671
        %v2687 = vadd.f32 %v2583, %v2675
        %v2688 = vadd.f32 %v2584, %v2677
        %v2689 = vadd.f32 %v2585, %v2679
        %v2690 = vadd.f32 %v2586, %v2681
        %v2691 = vld [vmem:[#allocation2] sm:$0xf]
        %s2692 = scalar_lea.vmem %s2, 96
        %v2693 = vld [vmem:[%s2692] sm:$0xf]
        %v2694 = vld [vmem:[%s2692 + $0x4] sm:$0xf]
        %v2695 = vld [vmem:[%s2692 + $0x8] sm:$0xf]
        %v2696 = vld [vmem:[%s2692 + $0xc] sm:$0xf]
        %v2701 = vunpack.c.l.b16 %v2693
        %v2702 = vunpack.c.l.b16 %v2694
        %v2703 = vunpack.c.l.b16 %v2695
        %v2704 = vunpack.c.l.b16 %v2696
        %v2705 = vpack.c.b16 %v2702, %v2701
        %v2706 = vpack.c.b16 %v2704, %v2703
        %v2709 = vunpack.c.l.s4 1983009808
        %v2710 = vunpack.c.0.s8 %v2709
        %v2711 = vlaneseq
        %v2712 = vshrl.u32 %v2711, 7
        %v2713 = vsub.s32 %v2710, %v2712
        %v2714 = vrot.slane %v2691, %v2713
        %v2715 = vcombine.high %v2714, %v2714
        %2716 = vrot.lane.b32.xlu0 %v2714, 92
        %v2717 = vpop.permute.xlu0 %2716
        %2718 = vrot.lane.b32.xlu0 %v2715, 92
        %v2719 = vpop.permute.xlu0 %2718
        %vm2720 = vcmask 752640
        %v2721 = vsel %vm2720, %v2717, %v2719
        %v2723 = vsel %vm2134, %v2705, 0
        %v2726 = vsel %vm2134, %v2706, 0
        %v2729 = vsel %vm2141, %v2721, 0
        %v2732 = vsel %vm2141, %v2719, 0
        %2734 = vmatprep.subr.bf16.mxu0 %v2732
        %2735 = vmatpush1.bf16.msra.mxu0 %v2729
        %2736 = vmatprep.subr.bf16.mxu0 0
        %2737 = vmatpush1.bf16.msra.mxu0 0
        %2738 = vmatprep.subr.bf16.mxu0 0
        %2739 = vmatpush1.bf16.msra.mxu0 0
        %2740 = vmatprep.subr.bf16.mxu0 0
        %2741 = vmatpush1.bf16.msra.mxu0 0
        %2742 = vmatprep.subr.bf16.mxu0 0
        %2743 = vmatpush1.bf16.msra.mxu0 0
        %2744 = vmatprep.subr.bf16.mxu0 0
        %2745 = vmatpush1.bf16.msra.mxu0 0
        %2746 = vmatprep.subr.bf16.mxu0 0
        %2747 = vmatpush1.bf16.msra.mxu0 0
        %2748 = vmatprep.subr.bf16.mxu0 0
        %2749 = vmatpush1.bf16.msra.mxu0 0
        %2750 = vmatprep.subr.bf16.mxu0 0
        %2751 = vmatpush1.bf16.msra.mxu0 0
        %2752 = vmatprep.subr.bf16.mxu0 0
        %2753 = vmatpush1.bf16.msra.mxu0 0
        %2754 = vmatprep.subr.bf16.mxu0 0
        %2755 = vmatpush1.bf16.msra.mxu0 0
        %2756 = vmatprep.subr.bf16.mxu0 0
        %2757 = vmatpush1.bf16.msra.mxu0 0
        %2758 = vmatprep.subr.bf16.mxu0 0
        %2759 = vmatpush1.bf16.msra.mxu0 0
        %2760 = vmatprep.subr.bf16.mxu0 0
        %2761 = vmatpush1.bf16.msra.mxu0 0
        %2762 = vmatprep.subr.bf16.mxu0 0
        %2763 = vmatpush1.bf16.msra.mxu0 0
        %2764 = vmatprep.subr.bf16.mxu0 0
        %2765 = vmatpush1.bf16.msra.mxu0 0
        %2766 = vmatprep.mubr.bf16.mxu0 0
        %2767 = vmatmul.mubr.bf16.gmra.mrb[0].mxu0 %v2723
        %v2768 = vpop.f32.mrb[0].mxu0
        %v2769 = vadd.f32 0.0, %v2768
        %v2770 = vpop.f32.mrb[0].mxu0
        %v2771 = vadd.f32 0.0, %v2770
        %v2772 = vpop.f32.mrb[0].mxu0
        %v2773 = vadd.f32 0.0, %v2772
        %v2774 = vpop.f32.mrb[0].mxu0
        %v2775 = vadd.f32 0.0, %v2774
        %2776 = vmatprep.mubr.bf16.mxu0 0
        %2777 = vmatmul.mubr.bf16.gmra.mrb[0].mxu0 %v2726
        %v2778 = vpop.f32.mrb[0].mxu0
        %v2779 = vadd.f32 0.0, %v2778
        %v2780 = vpop.f32.mrb[0].mxu0
        %v2781 = vadd.f32 0.0, %v2780
        %v2782 = vpop.f32.mrb[0].mxu0
        %v2783 = vadd.f32 0.0, %v2782
        %v2784 = vpop.f32.mrb[0].mxu0
        %v2785 = vadd.f32 0.0, %v2784
        %2786 = vdwg.mxu0
        %v2787 = vadd.f32 %v2683, %v2769
        %v2788 = vadd.f32 %v2684, %v2771
        %v2789 = vadd.f32 %v2685, %v2773
        %v2790 = vadd.f32 %v2686, %v2775
        %v2791 = vadd.f32 %v2687, %v2779
        %v2792 = vadd.f32 %v2688, %v2781
        %v2793 = vadd.f32 %v2689, %v2783
        %v2794 = vadd.f32 %v2690, %v2785
        %v2795 = vld [vmem:[#allocation2] sm:$0xf]
        %s2796 = scalar_lea.vmem %s2, 112
        %v2797 = vld [vmem:[%s2796] sm:$0xf]
        %v2798 = vld [vmem:[%s2796 + $0x4] sm:$0xf]
        %v2799 = vld [vmem:[%s2796 + $0x8] sm:$0xf]
        %v2800 = vld [vmem:[%s2796 + $0xc] sm:$0xf]
        %v2805 = vunpack.c.l.b16 %v2797
        %v2806 = vunpack.c.l.b16 %v2798
        %v2807 = vunpack.c.l.b16 %v2799
        %v2808 = vunpack.c.l.b16 %v2800
        %v2809 = vpack.c.b16 %v2806, %v2805
        %v2810 = vpack.c.b16 %v2808, %v2807
        %v2813 = vunpack.c.l.s4 1983009808
        %v2814 = vunpack.c.0.s8 %v2813
        %v2815 = vlaneseq
        %v2816 = vshrl.u32 %v2815, 7
        %v2817 = vsub.s32 %v2814, %v2816
        %v2818 = vrot.slane %v2795, %v2817
        %v2819 = vcombine.high %v2818, %v2818
        %2820 = vrot.lane.b32.xlu0 %v2818, 91
        %v2821 = vpop.permute.xlu0 %2820
        %2822 = vrot.lane.b32.xlu0 %v2819, 91
        %v2823 = vpop.permute.xlu0 %2822
        %vm2824 = vcmask 744448
        %v2825 = vsel %vm2824, %v2821, %v2823
        %v2827 = vsel %vm2134, %v2809, 0
        %v2830 = vsel %vm2134, %v2810, 0
        %v2833 = vsel %vm2141, %v2825, 0
        %v2836 = vsel %vm2141, %v2823, 0
        %2838 = vmatprep.subr.bf16.mxu0 %v2836
        %2839 = vmatpush1.bf16.msra.mxu0 %v2833
        %2840 = vmatprep.subr.bf16.mxu0 0
        %2841 = vmatpush1.bf16.msra.mxu0 0
        %2842 = vmatprep.subr.bf16.mxu0 0
        %2843 = vmatpush1.bf16.msra.mxu0 0
        %2844 = vmatprep.subr.bf16.mxu0 0
        %2845 = vmatpush1.bf16.msra.mxu0 0
        %2846 = vmatprep.subr.bf16.mxu0 0
        %2847 = vmatpush1.bf16.msra.mxu0 0
        %2848 = vmatprep.subr.bf16.mxu0 0
        %2849 = vmatpush1.bf16.msra.mxu0 0
        %2850 = vmatprep.subr.bf16.mxu0 0
        %2851 = vmatpush1.bf16.msra.mxu0 0
        %2852 = vmatprep.subr.bf16.mxu0 0
        %2853 = vmatpush1.bf16.msra.mxu0 0
        %2854 = vmatprep.subr.bf16.mxu0 0
        %2855 = vmatpush1.bf16.msra.mxu0 0
        %2856 = vmatprep.subr.bf16.mxu0 0
        %2857 = vmatpush1.bf16.msra.mxu0 0
        %2858 = vmatprep.subr.bf16.mxu0 0
        %2859 = vmatpush1.bf16.msra.mxu0 0
        %2860 = vmatprep.subr.bf16.mxu0 0
        %2861 = vmatpush1.bf16.msra.mxu0 0
        %2862 = vmatprep.subr.bf16.mxu0 0
        %2863 = vmatpush1.bf16.msra.mxu0 0
        %2864 = vmatprep.subr.bf16.mxu0 0
        %2865 = vmatpush1.bf16.msra.mxu0 0
        %2866 = vmatprep.subr.bf16.mxu0 0
        %2867 = vmatpush1.bf16.msra.mxu0 0
        %2868 = vmatprep.subr.bf16.mxu0 0
        %2869 = vmatpush1.bf16.msra.mxu0 0
        %2870 = vmatprep.mubr.bf16.mxu0 0
        %2871 = vmatmul.mubr.bf16.gmra.mrb[0].mxu0 %v2827
        %v2872 = vpop.f32.mrb[0].mxu0
        %v2873 = vadd.f32 0.0, %v2872
        %v2874 = vpop.f32.mrb[0].mxu0
        %v2875 = vadd.f32 0.0, %v2874
        %v2876 = vpop.f32.mrb[0].mxu0
        %v2877 = vadd.f32 0.0, %v2876
        %v2878 = vpop.f32.mrb[0].mxu0
        %v2879 = vadd.f32 0.0, %v2878
        %2880 = vmatprep.mubr.bf16.mxu0 0
        %2881 = vmatmul.mubr.bf16.gmra.mrb[0].mxu0 %v2830
        %v2882 = vpop.f32.mrb[0].mxu0
        %v2883 = vadd.f32 0.0, %v2882
        %v2884 = vpop.f32.mrb[0].mxu0
        %v2885 = vadd.f32 0.0, %v2884
        %v2886 = vpop.f32.mrb[0].mxu0
        %v2887 = vadd.f32 0.0, %v2886
        %v2888 = vpop.f32.mrb[0].mxu0
        %v2889 = vadd.f32 0.0, %v2888
        %2890 = vdwg.mxu0
        %v2891 = vadd.f32 %v2787, %v2873
        %v2892 = vadd.f32 %v2788, %v2875
        %v2893 = vadd.f32 %v2789, %v2877
        %v2894 = vadd.f32 %v2790, %v2879
        %v2895 = vadd.f32 %v2791, %v2883
        %v2896 = vadd.f32 %v2792, %v2885
        %v2897 = vadd.f32 %v2793, %v2887
        %v2898 = vadd.f32 %v2794, %v2889
        %v2899 = vld [vmem:[#allocation2] sm:$0xf]
        %s2900 = scalar_lea.vmem %s2, 128
        %v2901 = vld [vmem:[%s2900] sm:$0xf]
        %v2902 = vld [vmem:[%s2900 + $0x4] sm:$0xf]
        %v2903 = vld [vmem:[%s2900 + $0x8] sm:$0xf]
        %v2904 = vld [vmem:[%s2900 + $0xc] sm:$0xf]
        %v2909 = vunpack.c.l.b16 %v2901
        %v2910 = vunpack.c.l.b16 %v2902
        %v2911 = vunpack.c.l.b16 %v2903
        %v2912 = vunpack.c.l.b16 %v2904
        %v2913 = vpack.c.b16 %v2910, %v2909
        %v2914 = vpack.c.b16 %v2912, %v2911
        %v2917 = vunpack.c.l.s4 1983009808
        %v2918 = vunpack.c.0.s8 %v2917
        %v2919 = vlaneseq
        %v2920 = vshrl.u32 %v2919, 7
        %v2921 = vsub.s32 %v2918, %v2920
        %v2922 = vrot.slane %v2899, %v2921
        %v2923 = vcombine.high %v2922, %v2922
        %2924 = vrot.lane.b32.xlu0 %v2922, 90
        %v2925 = vpop.permute.xlu0 %2924
        %2926 = vrot.lane.b32.xlu0 %v2923, 90
        %v2927 = vpop.permute.xlu0 %2926
        %vm2928 = vcmask 736256
        %v2929 = vsel %vm2928, %v2925, %v2927
        %v2931 = vsel %vm2134, %v2913, 0
        %v2934 = vsel %vm2134, %v2914, 0
        %v2937 = vsel %vm2141, %v2929, 0
        %v2940 = vsel %vm2141, %v2927, 0
        %2942 = vmatprep.subr.bf16.mxu0 %v2940
        %2943 = vmatpush1.bf16.msra.mxu0 %v2937
        %2944 = vmatprep.subr.bf16.mxu0 0
        %2945 = vmatpush1.bf16.msra.mxu0 0
        %2946 = vmatprep.subr.bf16.mxu0 0
        %2947 = vmatpush1.bf16.msra.mxu0 0
        %2948 = vmatprep.subr.bf16.mxu0 0
        %2949 = vmatpush1.bf16.msra.mxu0 0
        %2950 = vmatprep.subr.bf16.mxu0 0
        %2951 = vmatpush1.bf16.msra.mxu0 0
        %2952 = vmatprep.subr.bf16.mxu0 0
        %2953 = vmatpush1.bf16.msra.mxu0 0
        %2954 = vmatprep.subr.bf16.mxu0 0
        %2955 = vmatpush1.bf16.msra.mxu0 0
        %2956 = vmatprep.subr.bf16.mxu0 0
        %2957 = vmatpush1.bf16.msra.mxu0 0
        %2958 = vmatprep.subr.bf16.mxu0 0
        %2959 = vmatpush1.bf16.msra.mxu0 0
        %2960 = vmatprep.subr.bf16.mxu0 0
        %2961 = vmatpush1.bf16.msra.mxu0 0
        %2962 = vmatprep.subr.bf16.mxu0 0
        %2963 = vmatpush1.bf16.msra.mxu0 0
        %2964 = vmatprep.subr.bf16.mxu0 0
        %2965 = vmatpush1.bf16.msra.mxu0 0
        %2966 = vmatprep.subr.bf16.mxu0 0
        %2967 = vmatpush1.bf16.msra.mxu0 0
        %2968 = vmatprep.subr.bf16.mxu0 0
        %2969 = vmatpush1.bf16.msra.mxu0 0
        %2970 = vmatprep.subr.bf16.mxu0 0
        %2971 = vmatpush1.bf16.msra.mxu0 0
        %2972 = vmatprep.subr.bf16.mxu0 0
        %2973 = vmatpush1.bf16.msra.mxu0 0
        %2974 = vmatprep.mubr.bf16.mxu0 0
        %2975 = vmatmul.mubr.bf16.gmra.mrb[0].mxu0 %v2931
        %v2976 = vpop.f32.mrb[0].mxu0
        %v2977 = vadd.f32 0.0, %v2976
        %v2978 = vpop.f32.mrb[0].mxu0
        %v2979 = vadd.f32 0.0, %v2978
        %v2980 = vpop.f32.mrb[0].mxu0
        %v2981 = vadd.f32 0.0, %v2980
        %v2982 = vpop.f32.mrb[0].mxu0
        %v2983 = vadd.f32 0.0, %v2982
        %2984 = vmatprep.mubr.bf16.mxu0 0
        %2985 = vmatmul.mubr.bf16.gmra.mrb[0].mxu0 %v2934
        %v2986 = vpop.f32.mrb[0].mxu0
        %v2987 = vadd.f32 0.0, %v2986
        %v2988 = vpop.f32.mrb[0].mxu0
        %v2989 = vadd.f32 0.0, %v2988
        %v2990 = vpop.f32.mrb[0].mxu0
        %v2991 = vadd.f32 0.0, %v2990
        %v2992 = vpop.f32.mrb[0].mxu0
        %v2993 = vadd.f32 0.0, %v2992
        %2994 = vdwg.mxu0
        %v2995 = vadd.f32 %v2891, %v2977
        %v2996 = vadd.f32 %v2892, %v2979
        %v2997 = vadd.f32 %v2893, %v2981
        %v2998 = vadd.f32 %v2894, %v2983
        %v2999 = vadd.f32 %v2895, %v2987
        %v3000 = vadd.f32 %v2896, %v2989
        %v3001 = vadd.f32 %v2897, %v2991
        %v3002 = vadd.f32 %v2898, %v2993
        %3004 = vset.pattern.permute.xlu0 0
        %3005 = vperm.xlu0 %3004, %v2095
        %v3006 = vpop.permute.xlu0 %3005
        %3009 = vset.pattern.permute.xlu0 0
        %3010 = vperm.xlu0 %3009, %v2096
        %v3011 = vpop.permute.xlu0 %3010
        %3014 = vset.pattern.permute.xlu0 0
        %3015 = vperm.xlu0 %3014, %v2097
        %v3016 = vpop.permute.xlu0 %3015
        %3019 = vset.pattern.permute.xlu0 0
        %3020 = vperm.xlu0 %3019, %v2098
        %v3021 = vpop.permute.xlu0 %3020
        %v3023 = vadd.f32 %v2995, %v3006
        %v3024 = vadd.f32 %v2996, %v3006
        %v3025 = vadd.f32 %v2997, %v3011
        %v3026 = vadd.f32 %v2998, %v3011
        %v3027 = vadd.f32 %v2999, %v3016
        %v3028 = vadd.f32 %v3000, %v3016
        %v3029 = vadd.f32 %v3001, %v3021
        %v3030 = vadd.f32 %v3002, %v3021
        %v3031 = vpack.c.bf16 %v3025, %v3023
        %v3032 = vpack.c.bf16 %v3026, %v3024
        %v3033 = vpack.c.bf16 %v3029, %v3027
        %v3034 = vpack.c.bf16 %v3030, %v3028
        %v3035 = vld [vmem:[%s3] sm:$0xf]
        %v3036 = vld [vmem:[%s3 + $0x4] sm:$0xf]
        %s3037 = scalar_lea.vmem %s3, 8
        %v3038 = vld [vmem:[%s3037] sm:$0xf]
        %v3039 = vld [vmem:[%s3037 + $0x4] sm:$0xf]
        %v3042 = vunpack.c.l.b16 %v3038
        %v3043 = vunpack.c.l.b16 %v3039
        %v3044 = vpack.c.b16 %v3043, %v3042
        %vm3046 = vcmask 130048
        %v3048 = vsel %vm3046, %v3033, 0
        %3050 = vmatprep.subr.bf16.mxu0 0
        %3051 = vmatpush1.bf16.msra.mxu0 %v3044
        %3052 = vmatprep.subr.bf16.mxu0 0
        %3053 = vmatpush1.bf16.msra.mxu0 0
        %3054 = vmatprep.subr.bf16.mxu0 0
        %3055 = vmatpush1.bf16.msra.mxu0 0
        %3056 = vmatprep.subr.bf16.mxu0 0
        %3057 = vmatpush1.bf16.msra.mxu0 0
        %3058 = vmatprep.subr.bf16.mxu0 0
        %3059 = vmatpush1.bf16.msra.mxu0 0
        %3060 = vmatprep.subr.bf16.mxu0 0
        %3061 = vmatpush1.bf16.msra.mxu0 0
        %3062 = vmatprep.subr.bf16.mxu0 0
        %3063 = vmatpush1.bf16.msra.mxu0 0
        %3064 = vmatprep.subr.bf16.mxu0 0
        %3065 = vmatpush1.bf16.msra.mxu0 0
        %3066 = vmatprep.subr.bf16.mxu0 0
        %3067 = vmatpush1.bf16.msra.mxu0 0
        %3068 = vmatprep.subr.bf16.mxu0 0
        %3069 = vmatpush1.bf16.msra.mxu0 0
        %3070 = vmatprep.subr.bf16.mxu0 0
        %3071 = vmatpush1.bf16.msra.mxu0 0
        %3072 = vmatprep.subr.bf16.mxu0 0
        %3073 = vmatpush1.bf16.msra.mxu0 0
        %3074 = vmatprep.subr.bf16.mxu0 0
        %3075 = vmatpush1.bf16.msra.mxu0 0
        %3076 = vmatprep.subr.bf16.mxu0 0
        %3077 = vmatpush1.bf16.msra.mxu0 0
        %3078 = vmatprep.subr.bf16.mxu0 0
        %3079 = vmatpush1.bf16.msra.mxu0 0
        %3080 = vmatprep.subr.bf16.mxu0 0
        %3081 = vmatpush1.bf16.msra.mxu0 0
        %3082 = vmatprep.mubr.bf16.mxu0 0
        %3083 = vmatmul.mubr.bf16.gmra.mrb[0].mxu0 %v3048
        %v3084 = vpop.f32.mrb[0].mxu0
        %v3085 = vadd.f32 0.0, %v3084
        %v3086 = vpop.f32.mrb[0].mxu0
        %v3087 = vpop.f32.mrb[0].mxu0
        %v3088 = vadd.f32 0.0, %v3087
        %v3089 = vpop.f32.mrb[0].mxu0
        %3090 = vdwg.mxu0
        %v3093 = vunpack.c.l.b16 %v3035
        %v3094 = vunpack.c.l.b16 %v3036
        %v3095 = vpack.c.b16 %v3094, %v3093
        %v3098 = vsel %vm3046, %v3031, 0
        %3100 = vmatprep.subr.bf16.mxu0 0
        %3101 = vmatpush1.bf16.msra.mxu0 %v3095
        %3102 = vmatprep.subr.bf16.mxu0 0
        %3103 = vmatpush1.bf16.msra.mxu0 0
        %3104 = vmatprep.subr.bf16.mxu0 0
        %3105 = vmatpush1.bf16.msra.mxu0 0
        %3106 = vmatprep.subr.bf16.mxu0 0
        %3107 = vmatpush1.bf16.msra.mxu0 0
        %3108 = vmatprep.subr.bf16.mxu0 0
        %3109 = vmatpush1.bf16.msra.mxu0 0
        %3110 = vmatprep.subr.bf16.mxu0 0
        %3111 = vmatpush1.bf16.msra.mxu0 0
        %3112 = vmatprep.subr.bf16.mxu0 0
        %3113 = vmatpush1.bf16.msra.mxu0 0
        %3114 = vmatprep.subr.bf16.mxu0 0
        %3115 = vmatpush1.bf16.msra.mxu0 0
        %3116 = vmatprep.subr.bf16.mxu0 0
        %3117 = vmatpush1.bf16.msra.mxu0 0
        %3118 = vmatprep.subr.bf16.mxu0 0
        %3119 = vmatpush1.bf16.msra.mxu0 0
        %3120 = vmatprep.subr.bf16.mxu0 0
        %3121 = vmatpush1.bf16.msra.mxu0 0
        %3122 = vmatprep.subr.bf16.mxu0 0
        %3123 = vmatpush1.bf16.msra.mxu0 0
        %3124 = vmatprep.subr.bf16.mxu0 0
        %3125 = vmatpush1.bf16.msra.mxu0 0
        %3126 = vmatprep.subr.bf16.mxu0 0
        %3127 = vmatpush1.bf16.msra.mxu0 0
        %3128 = vmatprep.subr.bf16.mxu0 0
        %3129 = vmatpush1.bf16.msra.mxu0 0
        %3130 = vmatprep.subr.bf16.mxu0 0
        %3131 = vmatpush1.bf16.msra.mxu0 0
        %3132 = vmatprep.mubr.bf16.mxu0 0
        %3133 = vmatmul.mubr.bf16.gmra.mrb[0].mxu0 %v3098
        %v3134 = vpop.f32.mrb[0].mxu0
        %v3135 = vadd.f32 %v3085, %v3134
        %v3136 = vpop.f32.mrb[0].mxu0
        %v3137 = vpop.f32.mrb[0].mxu0
        %v3138 = vadd.f32 %v3088, %v3137
        %v3139 = vpop.f32.mrb[0].mxu0
        %3140 = vdwg.mxu0
        %vm3141 = vcmask 261120
        %3142 = vst.msk [vmem:[%s393] sm:$0xff] %vm3141, %v3135
        %3144 = vrot.lane.b32.xlu0 %v3138, 32
        %v3145 = vpop.permute.xlu0 %3144
        %vm3147 = vcmask 523520
        %3148 = vst.msk [vmem:[%s393] sm:$0xff] %vm3147, %v3145
        %v3149 = vld [vmem:[%s3] sm:$0xf]
        %v3150 = vld [vmem:[%s3 + $0x4] sm:$0xf]
        %v3151 = vld [vmem:[%s3037] sm:$0xf]
        %v3152 = vld [vmem:[%s3037 + $0x4] sm:$0xf]
        %3154 = vrot.lane.b32.xlu0 %v3033, 110
        %v3155 = vpop.permute.xlu0 %3154
        %v3158 = vunpack.c.l.b16 %v3151
        %v3159 = vunpack.c.l.b16 %v3152
        %v3160 = vpack.c.b16 %v3159, %v3158
        %v3163 = vsel %vm3046, %v3155, 0
        %3165 = vmatprep.subr.bf16.mxu0 0
        %3166 = vmatpush1.bf16.msra.mxu0 %v3160
        %3167 = vmatprep.subr.bf16.mxu0 0
        %3168 = vmatpush1.bf16.msra.mxu0 0
        %3169 = vmatprep.subr.bf16.mxu0 0
        %3170 = vmatpush1.bf16.msra.mxu0 0
        %3171 = vmatprep.subr.bf16.mxu0 0
        %3172 = vmatpush1.bf16.msra.mxu0 0
        %3173 = vmatprep.subr.bf16.mxu0 0
        %3174 = vmatpush1.bf16.msra.mxu0 0
        %3175 = vmatprep.subr.bf16.mxu0 0
        %3176 = vmatpush1.bf16.msra.mxu0 0
        %3177 = vmatprep.subr.bf16.mxu0 0
        %3178 = vmatpush1.bf16.msra.mxu0 0
        %3179 = vmatprep.subr.bf16.mxu0 0
        %3180 = vmatpush1.bf16.msra.mxu0 0
        %3181 = vmatprep.subr.bf16.mxu0 0
        %3182 = vmatpush1.bf16.msra.mxu0 0
        %3183 = vmatprep.subr.bf16.mxu0 0
        %3184 = vmatpush1.bf16.msra.mxu0 0
        %3185 = vmatprep.subr.bf16.mxu0 0
        %3186 = vmatpush1.bf16.msra.mxu0 0
        %3187 = vmatprep.subr.bf16.mxu0 0
        %3188 = vmatpush1.bf16.msra.mxu0 0
        %3189 = vmatprep.subr.bf16.mxu0 0
        %3190 = vmatpush1.bf16.msra.mxu0 0
        %3191 = vmatprep.subr.bf16.mxu0 0
        %3192 = vmatpush1.bf16.msra.mxu0 0
        %3193 = vmatprep.subr.bf16.mxu0 0
        %3194 = vmatpush1.bf16.msra.mxu0 0
        %3195 = vmatprep.subr.bf16.mxu0 0
        %3196 = vmatpush1.bf16.msra.mxu0 0
        %3197 = vmatprep.mubr.bf16.mxu0 0
        %3198 = vmatmul.mubr.bf16.gmra.mrb[0].mxu0 %v3163
        %v3199 = vpop.f32.mrb[0].mxu0
        %v3200 = vadd.f32 0.0, %v3199
        %v3201 = vpop.f32.mrb[0].mxu0
        %v3202 = vpop.f32.mrb[0].mxu0
        %v3203 = vadd.f32 0.0, %v3202
        %v3204 = vpop.f32.mrb[0].mxu0
        %3205 = vdwg.mxu0
        %3207 = vrot.lane.b32.xlu0 %v3031, 110
        %v3208 = vpop.permute.xlu0 %3207
        %v3211 = vunpack.c.l.b16 %v3149
        %v3212 = vunpack.c.l.b16 %v3150
        %v3213 = vpack.c.b16 %v3212, %v3211
        %v3216 = vsel %vm3046, %v3208, 0
        %3218 = vmatprep.subr.bf16.mxu0 0
        %3219 = vmatpush1.bf16.msra.mxu0 %v3213
        %3220 = vmatprep.subr.bf16.mxu0 0
        %3221 = vmatpush1.bf16.msra.mxu0 0
        %3222 = vmatprep.subr.bf16.mxu0 0
        %3223 = vmatpush1.bf16.msra.mxu0 0
        %3224 = vmatprep.subr.bf16.mxu0 0
        %3225 = vmatpush1.bf16.msra.mxu0 0
        %3226 = vmatprep.subr.bf16.mxu0 0
        %3227 = vmatpush1.bf16.msra.mxu0 0
        %3228 = vmatprep.subr.bf16.mxu0 0
        %3229 = vmatpush1.bf16.msra.mxu0 0
        %3230 = vmatprep.subr.bf16.mxu0 0
        %3231 = vmatpush1.bf16.msra.mxu0 0
        %3232 = vmatprep.subr.bf16.mxu0 0
        %3233 = vmatpush1.bf16.msra.mxu0 0
        %3234 = vmatprep.subr.bf16.mxu0 0
        %3235 = vmatpush1.bf16.msra.mxu0 0
        %3236 = vmatprep.subr.bf16.mxu0 0
        %3237 = vmatpush1.bf16.msra.mxu0 0
        %3238 = vmatprep.subr.bf16.mxu0 0
        %3239 = vmatpush1.bf16.msra.mxu0 0
        %3240 = vmatprep.subr.bf16.mxu0 0
        %3241 = vmatpush1.bf16.msra.mxu0 0
        %3242 = vmatprep.subr.bf16.mxu0 0
        %3243 = vmatpush1.bf16.msra.mxu0 0
        %3244 = vmatprep.subr.bf16.mxu0 0
        %3245 = vmatpush1.bf16.msra.mxu0 0
        %3246 = vmatprep.subr.bf16.mxu0 0
        %3247 = vmatpush1.bf16.msra.mxu0 0
        %3248 = vmatprep.subr.bf16.mxu0 0
        %3249 = vmatpush1.bf16.msra.mxu0 0
        %3250 = vmatprep.mubr.bf16.mxu0 0
        %3251 = vmatmul.mubr.bf16.gmra.mrb[0].mxu0 %v3216
        %v3252 = vpop.f32.mrb[0].mxu0
        %v3253 = vadd.f32 %v3200, %v3252
        %v3254 = vpop.f32.mrb[0].mxu0
        %v3255 = vpop.f32.mrb[0].mxu0
        %v3256 = vadd.f32 %v3203, %v3255
        %v3257 = vpop.f32.mrb[0].mxu0
        %3258 = vdwg.mxu0
        %3260 = vrot.lane.b32.xlu0 %v3253, 64
        %v3261 = vpop.permute.xlu0 %3260
        %vm3263 = vcmask 785920
        %3264 = vst.msk [vmem:[%s393] sm:$0xff] %vm3263, %v3261
        %3266 = vrot.lane.b32.xlu0 %v3256, 96
        %v3267 = vpop.permute.xlu0 %3266
        %vm3269 = vcmask 1048320
        %3270 = vst.msk [vmem:[%s393] sm:$0xff] %vm3269, %v3267
        %v3271 = vld [vmem:[%s3] sm:$0xf]
        %v3272 = vld [vmem:[%s3 + $0x4] sm:$0xf]
        %v3273 = vld [vmem:[%s3037] sm:$0xf]
        %v3274 = vld [vmem:[%s3037 + $0x4] sm:$0xf]
        %3275 = vrot.lane.b32.xlu0 %v3033, 92
        %v3276 = vpop.permute.xlu0 %3275
        %v3279 = vunpack.c.l.b16 %v3273
        %v3280 = vunpack.c.l.b16 %v3274
        %v3281 = vpack.c.b16 %v3280, %v3279
        %v3284 = vsel %vm3046, %v3276, 0
        %3286 = vmatprep.subr.bf16.mxu0 0
        %3287 = vmatpush1.bf16.msra.mxu0 %v3281
        %3288 = vmatprep.subr.bf16.mxu0 0
        %3289 = vmatpush1.bf16.msra.mxu0 0
        %3290 = vmatprep.subr.bf16.mxu0 0
        %3291 = vmatpush1.bf16.msra.mxu0 0
        %3292 = vmatprep.subr.bf16.mxu0 0
        %3293 = vmatpush1.bf16.msra.mxu0 0
        %3294 = vmatprep.subr.bf16.mxu0 0
        %3295 = vmatpush1.bf16.msra.mxu0 0
        %3296 = vmatprep.subr.bf16.mxu0 0
        %3297 = vmatpush1.bf16.msra.mxu0 0
        %3298 = vmatprep.subr.bf16.mxu0 0
        %3299 = vmatpush1.bf16.msra.mxu0 0
        %3300 = vmatprep.subr.bf16.mxu0 0
        %3301 = vmatpush1.bf16.msra.mxu0 0
        %3302 = vmatprep.subr.bf16.mxu0 0
        %3303 = vmatpush1.bf16.msra.mxu0 0
        %3304 = vmatprep.subr.bf16.mxu0 0
        %3305 = vmatpush1.bf16.msra.mxu0 0
        %3306 = vmatprep.subr.bf16.mxu0 0
        %3307 = vmatpush1.bf16.msra.mxu0 0
        %3308 = vmatprep.subr.bf16.mxu0 0
        %3309 = vmatpush1.bf16.msra.mxu0 0
        %3310 = vmatprep.subr.bf16.mxu0 0
        %3311 = vmatpush1.bf16.msra.mxu0 0
        %3312 = vmatprep.subr.bf16.mxu0 0
        %3313 = vmatpush1.bf16.msra.mxu0 0
        %3314 = vmatprep.subr.bf16.mxu0 0
        %3315 = vmatpush1.bf16.msra.mxu0 0
        %3316 = vmatprep.subr.bf16.mxu0 0
        %3317 = vmatpush1.bf16.msra.mxu0 0
        %3318 = vmatprep.mubr.bf16.mxu0 0
        %3319 = vmatmul.mubr.bf16.gmra.mrb[0].mxu0 %v3284
        %v3320 = vpop.f32.mrb[0].mxu0
        %v3321 = vadd.f32 0.0, %v3320
        %v3322 = vpop.f32.mrb[0].mxu0
        %v3323 = vpop.f32.mrb[0].mxu0
        %v3324 = vadd.f32 0.0, %v3323
        %v3325 = vpop.f32.mrb[0].mxu0
        %3326 = vdwg.mxu0
        %3327 = vrot.lane.b32.xlu0 %v3031, 92
        %v3328 = vpop.permute.xlu0 %3327
        %v3331 = vunpack.c.l.b16 %v3271
        %v3332 = vunpack.c.l.b16 %v3272
        %v3333 = vpack.c.b16 %v3332, %v3331
        %v3336 = vsel %vm3046, %v3328, 0
        %3338 = vmatprep.subr.bf16.mxu0 0
        %3339 = vmatpush1.bf16.msra.mxu0 %v3333
        %3340 = vmatprep.subr.bf16.mxu0 0
        %3341 = vmatpush1.bf16.msra.mxu0 0
        %3342 = vmatprep.subr.bf16.mxu0 0
        %3343 = vmatpush1.bf16.msra.mxu0 0
        %3344 = vmatprep.subr.bf16.mxu0 0
        %3345 = vmatpush1.bf16.msra.mxu0 0
        %3346 = vmatprep.subr.bf16.mxu0 0
        %3347 = vmatpush1.bf16.msra.mxu0 0
        %3348 = vmatprep.subr.bf16.mxu0 0
        %3349 = vmatpush1.bf16.msra.mxu0 0
        %3350 = vmatprep.subr.bf16.mxu0 0
        %3351 = vmatpush1.bf16.msra.mxu0 0
        %3352 = vmatprep.subr.bf16.mxu0 0
        %3353 = vmatpush1.bf16.msra.mxu0 0
        %3354 = vmatprep.subr.bf16.mxu0 0
        %3355 = vmatpush1.bf16.msra.mxu0 0
        %3356 = vmatprep.subr.bf16.mxu0 0
        %3357 = vmatpush1.bf16.msra.mxu0 0
        %3358 = vmatprep.subr.bf16.mxu0 0
        %3359 = vmatpush1.bf16.msra.mxu0 0
        %3360 = vmatprep.subr.bf16.mxu0 0
        %3361 = vmatpush1.bf16.msra.mxu0 0
        %3362 = vmatprep.subr.bf16.mxu0 0
        %3363 = vmatpush1.bf16.msra.mxu0 0
        %3364 = vmatprep.subr.bf16.mxu0 0
        %3365 = vmatpush1.bf16.msra.mxu0 0
        %3366 = vmatprep.subr.bf16.mxu0 0
        %3367 = vmatpush1.bf16.msra.mxu0 0
        %3368 = vmatprep.subr.bf16.mxu0 0
        %3369 = vmatpush1.bf16.msra.mxu0 0
        %3370 = vmatprep.mubr.bf16.mxu0 0
        %3371 = vmatmul.mubr.bf16.gmra.mrb[0].mxu0 %v3336
        %v3372 = vpop.f32.mrb[0].mxu0
        %v3373 = vadd.f32 %v3321, %v3372
        %v3374 = vpop.f32.mrb[0].mxu0
        %v3375 = vpop.f32.mrb[0].mxu0
        %v3376 = vadd.f32 %v3324, %v3375
        %v3377 = vpop.f32.mrb[0].mxu0
        %3378 = vdwg.mxu0
        %3379 = vst.msk [vmem:[%s393 + $0x8] sm:$0xff] %vm3141, %v3373
        %3381 = vrot.lane.b32.xlu0 %v3376, 32
        %v3382 = vpop.permute.xlu0 %3381
        %3384 = vst.msk [vmem:[%s393 + $0x8] sm:$0xff] %vm3147, %v3382
        %v3385 = vld [vmem:[%s3] sm:$0xf]
        %v3386 = vld [vmem:[%s3 + $0x4] sm:$0xf]
        %v3387 = vld [vmem:[%s3037] sm:$0xf]
        %v3388 = vld [vmem:[%s3037 + $0x4] sm:$0xf]
        %3389 = vrot.lane.b32.xlu0 %v3033, 74
        %v3390 = vpop.permute.xlu0 %3389
        %v3393 = vunpack.c.l.b16 %v3387
        %v3394 = vunpack.c.l.b16 %v3388
        %v3395 = vpack.c.b16 %v3394, %v3393
        %v3398 = vsel %vm3046, %v3390, 0
        %3400 = vmatprep.subr.bf16.mxu0 0
        %3401 = vmatpush1.bf16.msra.mxu0 %v3395
        %3402 = vmatprep.subr.bf16.mxu0 0
        %3403 = vmatpush1.bf16.msra.mxu0 0
        %3404 = vmatprep.subr.bf16.mxu0 0
        %3405 = vmatpush1.bf16.msra.mxu0 0
        %3406 = vmatprep.subr.bf16.mxu0 0
        %3407 = vmatpush1.bf16.msra.mxu0 0
        %3408 = vmatprep.subr.bf16.mxu0 0
        %3409 = vmatpush1.bf16.msra.mxu0 0
        %3410 = vmatprep.subr.bf16.mxu0 0
        %3411 = vmatpush1.bf16.msra.mxu0 0
        %3412 = vmatprep.subr.bf16.mxu0 0
        %3413 = vmatpush1.bf16.msra.mxu0 0
        %3414 = vmatprep.subr.bf16.mxu0 0
        %3415 = vmatpush1.bf16.msra.mxu0 0
        %3416 = vmatprep.subr.bf16.mxu0 0
        %3417 = vmatpush1.bf16.msra.mxu0 0
        %3418 = vmatprep.subr.bf16.mxu0 0
        %3419 = vmatpush1.bf16.msra.mxu0 0
        %3420 = vmatprep.subr.bf16.mxu0 0
        %3421 = vmatpush1.bf16.msra.mxu0 0
        %3422 = vmatprep.subr.bf16.mxu0 0
        %3423 = vmatpush1.bf16.msra.mxu0 0
        %3424 = vmatprep.subr.bf16.mxu0 0
        %3425 = vmatpush1.bf16.msra.mxu0 0
        %3426 = vmatprep.subr.bf16.mxu0 0
        %3427 = vmatpush1.bf16.msra.mxu0 0
        %3428 = vmatprep.subr.bf16.mxu0 0
        %3429 = vmatpush1.bf16.msra.mxu0 0
        %3430 = vmatprep.subr.bf16.mxu0 0
        %3431 = vmatpush1.bf16.msra.mxu0 0
        %3432 = vmatprep.mubr.bf16.mxu0 0
        %3433 = vmatmul.mubr.bf16.gmra.mrb[0].mxu0 %v3398
        %v3434 = vpop.f32.mrb[0].mxu0
        %v3435 = vadd.f32 0.0, %v3434
        %v3436 = vpop.f32.mrb[0].mxu0
        %v3437 = vpop.f32.mrb[0].mxu0
        %v3438 = vadd.f32 0.0, %v3437
        %v3439 = vpop.f32.mrb[0].mxu0
        %3440 = vdwg.mxu0
        %3441 = vrot.lane.b32.xlu0 %v3031, 74
        %v3442 = vpop.permute.xlu0 %3441
        %v3445 = vunpack.c.l.b16 %v3385
        %v3446 = vunpack.c.l.b16 %v3386
        %v3447 = vpack.c.b16 %v3446, %v3445
        %v3450 = vsel %vm3046, %v3442, 0
        %3452 = vmatprep.subr.bf16.mxu0 0
        %3453 = vmatpush1.bf16.msra.mxu0 %v3447
        %3454 = vmatprep.subr.bf16.mxu0 0
        %3455 = vmatpush1.bf16.msra.mxu0 0
        %3456 = vmatprep.subr.bf16.mxu0 0
        %3457 = vmatpush1.bf16.msra.mxu0 0
        %3458 = vmatprep.subr.bf16.mxu0 0
        %3459 = vmatpush1.bf16.msra.mxu0 0
        %3460 = vmatprep.subr.bf16.mxu0 0
        %3461 = vmatpush1.bf16.msra.mxu0 0
        %3462 = vmatprep.subr.bf16.mxu0 0
        %3463 = vmatpush1.bf16.msra.mxu0 0
        %3464 = vmatprep.subr.bf16.mxu0 0
        %3465 = vmatpush1.bf16.msra.mxu0 0
        %3466 = vmatprep.subr.bf16.mxu0 0
        %3467 = vmatpush1.bf16.msra.mxu0 0
        %3468 = vmatprep.subr.bf16.mxu0 0
        %3469 = vmatpush1.bf16.msra.mxu0 0
        %3470 = vmatprep.subr.bf16.mxu0 0
        %3471 = vmatpush1.bf16.msra.mxu0 0
        %3472 = vmatprep.subr.bf16.mxu0 0
        %3473 = vmatpush1.bf16.msra.mxu0 0
        %3474 = vmatprep.subr.bf16.mxu0 0
        %3475 = vmatpush1.bf16.msra.mxu0 0
        %3476 = vmatprep.subr.bf16.mxu0 0
        %3477 = vmatpush1.bf16.msra.mxu0 0
        %3478 = vmatprep.subr.bf16.mxu0 0
        %3479 = vmatpush1.bf16.msra.mxu0 0
        %3480 = vmatprep.subr.bf16.mxu0 0
        %3481 = vmatpush1.bf16.msra.mxu0 0
        %3482 = vmatprep.subr.bf16.mxu0 0
        %3483 = vmatpush1.bf16.msra.mxu0 0
        %3484 = vmatprep.mubr.bf16.mxu0 0
        %3485 = vmatmul.mubr.bf16.gmra.mrb[0].mxu0 %v3450
        %v3486 = vpop.f32.mrb[0].mxu0
        %v3487 = vadd.f32 %v3435, %v3486
        %v3488 = vpop.f32.mrb[0].mxu0
        %v3489 = vpop.f32.mrb[0].mxu0
        %v3490 = vadd.f32 %v3438, %v3489
        %v3491 = vpop.f32.mrb[0].mxu0
        %3492 = vdwg.mxu0
        %3494 = vrot.lane.b32.xlu0 %v3487, 64
        %v3495 = vpop.permute.xlu0 %3494
        %3497 = vst.msk [vmem:[%s393 + $0x8] sm:$0xff] %vm3263, %v3495
        %3499 = vrot.lane.b32.xlu0 %v3490, 96
        %v3500 = vpop.permute.xlu0 %3499
        %3502 = vst.msk [vmem:[%s393 + $0x8] sm:$0xff] %vm3269, %v3500
        %v3503 = vld [vmem:[%s3] sm:$0xf]
        %v3504 = vld [vmem:[%s3 + $0x4] sm:$0xf]
        %v3505 = vld [vmem:[%s3037] sm:$0xf]
        %v3506 = vld [vmem:[%s3037 + $0x4] sm:$0xf]
        %3507 = vrot.lane.b32.xlu0 %v3033, 56
        %v3508 = vpop.permute.xlu0 %3507
        %v3511 = vunpack.c.l.b16 %v3505
        %v3512 = vunpack.c.l.b16 %v3506
        %v3513 = vpack.c.b16 %v3512, %v3511
        %v3516 = vsel %vm3046, %v3508, 0
        %3518 = vmatprep.subr.bf16.mxu0 0
        %3519 = vmatpush1.bf16.msra.mxu0 %v3513
        %3520 = vmatprep.subr.bf16.mxu0 0
        %3521 = vmatpush1.bf16.msra.mxu0 0
        %3522 = vmatprep.subr.bf16.mxu0 0
        %3523 = vmatpush1.bf16.msra.mxu0 0
        %3524 = vmatprep.subr.bf16.mxu0 0
        %3525 = vmatpush1.bf16.msra.mxu0 0
        %3526 = vmatprep.subr.bf16.mxu0 0
        %3527 = vmatpush1.bf16.msra.mxu0 0
        %3528 = vmatprep.subr.bf16.mxu0 0
        %3529 = vmatpush1.bf16.msra.mxu0 0
        %3530 = vmatprep.subr.bf16.mxu0 0
        %3531 = vmatpush1.bf16.msra.mxu0 0
        %3532 = vmatprep.subr.bf16.mxu0 0
        %3533 = vmatpush1.bf16.msra.mxu0 0
        %3534 = vmatprep.subr.bf16.mxu0 0
        %3535 = vmatpush1.bf16.msra.mxu0 0
        %3536 = vmatprep.subr.bf16.mxu0 0
        %3537 = vmatpush1.bf16.msra.mxu0 0
        %3538 = vmatprep.subr.bf16.mxu0 0
        %3539 = vmatpush1.bf16.msra.mxu0 0
        %3540 = vmatprep.subr.bf16.mxu0 0
        %3541 = vmatpush1.bf16.msra.mxu0 0
        %3542 = vmatprep.subr.bf16.mxu0 0
        %3543 = vmatpush1.bf16.msra.mxu0 0
        %3544 = vmatprep.subr.bf16.mxu0 0
        %3545 = vmatpush1.bf16.msra.mxu0 0
        %3546 = vmatprep.subr.bf16.mxu0 0
        %3547 = vmatpush1.bf16.msra.mxu0 0
        %3548 = vmatprep.subr.bf16.mxu0 0
        %3549 = vmatpush1.bf16.msra.mxu0 0
        %3550 = vmatprep.mubr.bf16.mxu0 0
        %3551 = vmatmul.mubr.bf16.gmra.mrb[0].mxu0 %v3516
        %v3552 = vpop.f32.mrb[0].mxu0
        %v3553 = vadd.f32 0.0, %v3552
        %v3554 = vpop.f32.mrb[0].mxu0
        %v3555 = vpop.f32.mrb[0].mxu0
        %v3556 = vadd.f32 0.0, %v3555
        %v3557 = vpop.f32.mrb[0].mxu0
        %3558 = vdwg.mxu0
        %3559 = vrot.lane.b32.xlu0 %v3031, 56
        %v3560 = vpop.permute.xlu0 %3559
        %v3563 = vunpack.c.l.b16 %v3503
        %v3564 = vunpack.c.l.b16 %v3504
        %v3565 = vpack.c.b16 %v3564, %v3563
        %v3568 = vsel %vm3046, %v3560, 0
        %3570 = vmatprep.subr.bf16.mxu0 0
        %3571 = vmatpush1.bf16.msra.mxu0 %v3565
        %3572 = vmatprep.subr.bf16.mxu0 0
        %3573 = vmatpush1.bf16.msra.mxu0 0
        %3574 = vmatprep.subr.bf16.mxu0 0
        %3575 = vmatpush1.bf16.msra.mxu0 0
        %3576 = vmatprep.subr.bf16.mxu0 0
        %3577 = vmatpush1.bf16.msra.mxu0 0
        %3578 = vmatprep.subr.bf16.mxu0 0
        %3579 = vmatpush1.bf16.msra.mxu0 0
        %3580 = vmatprep.subr.bf16.mxu0 0
        %3581 = vmatpush1.bf16.msra.mxu0 0
        %3582 = vmatprep.subr.bf16.mxu0 0
        %3583 = vmatpush1.bf16.msra.mxu0 0
        %3584 = vmatprep.subr.bf16.mxu0 0
        %3585 = vmatpush1.bf16.msra.mxu0 0
        %3586 = vmatprep.subr.bf16.mxu0 0
        %3587 = vmatpush1.bf16.msra.mxu0 0
        %3588 = vmatprep.subr.bf16.mxu0 0
        %3589 = vmatpush1.bf16.msra.mxu0 0
        %3590 = vmatprep.subr.bf16.mxu0 0
        %3591 = vmatpush1.bf16.msra.mxu0 0
        %3592 = vmatprep.subr.bf16.mxu0 0
        %3593 = vmatpush1.bf16.msra.mxu0 0
        %3594 = vmatprep.subr.bf16.mxu0 0
        %3595 = vmatpush1.bf16.msra.mxu0 0
        %3596 = vmatprep.subr.bf16.mxu0 0
        %3597 = vmatpush1.bf16.msra.mxu0 0
        %3598 = vmatprep.subr.bf16.mxu0 0
        %3599 = vmatpush1.bf16.msra.mxu0 0
        %3600 = vmatprep.subr.bf16.mxu0 0
        %3601 = vmatpush1.bf16.msra.mxu0 0
        %3602 = vmatprep.mubr.bf16.mxu0 0
        %3603 = vmatmul.mubr.bf16.gmra.mrb[0].mxu0 %v3568
        %v3604 = vpop.f32.mrb[0].mxu0
        %v3605 = vadd.f32 %v3553, %v3604
        %v3606 = vpop.f32.mrb[0].mxu0
        %v3607 = vpop.f32.mrb[0].mxu0
        %v3608 = vadd.f32 %v3556, %v3607
        %v3609 = vpop.f32.mrb[0].mxu0
        %3610 = vdwg.mxu0
        %3611 = vst.msk [vmem:[%s393 + $0x10] sm:$0xff] %vm3141, %v3605
        %3613 = vrot.lane.b32.xlu0 %v3608, 32
        %v3614 = vpop.permute.xlu0 %3613
        %3616 = vst.msk [vmem:[%s393 + $0x10] sm:$0xff] %vm3147, %v3614
        %v3617 = vld [vmem:[%s3] sm:$0xf]
        %v3618 = vld [vmem:[%s3 + $0x4] sm:$0xf]
        %v3619 = vld [vmem:[%s3037] sm:$0xf]
        %v3620 = vld [vmem:[%s3037 + $0x4] sm:$0xf]
        %3621 = vrot.lane.b32.xlu0 %v3033, 38
        %v3622 = vpop.permute.xlu0 %3621
        %v3625 = vunpack.c.l.b16 %v3619
        %v3626 = vunpack.c.l.b16 %v3620
        %v3627 = vpack.c.b16 %v3626, %v3625
        %v3630 = vsel %vm3046, %v3622, 0
        %3632 = vmatprep.subr.bf16.mxu0 0
        %3633 = vmatpush1.bf16.msra.mxu0 %v3627
        %3634 = vmatprep.subr.bf16.mxu0 0
        %3635 = vmatpush1.bf16.msra.mxu0 0
        %3636 = vmatprep.subr.bf16.mxu0 0
        %3637 = vmatpush1.bf16.msra.mxu0 0
        %3638 = vmatprep.subr.bf16.mxu0 0
        %3639 = vmatpush1.bf16.msra.mxu0 0
        %3640 = vmatprep.subr.bf16.mxu0 0
        %3641 = vmatpush1.bf16.msra.mxu0 0
        %3642 = vmatprep.subr.bf16.mxu0 0
        %3643 = vmatpush1.bf16.msra.mxu0 0
        %3644 = vmatprep.subr.bf16.mxu0 0
        %3645 = vmatpush1.bf16.msra.mxu0 0
        %3646 = vmatprep.subr.bf16.mxu0 0
        %3647 = vmatpush1.bf16.msra.mxu0 0
        %3648 = vmatprep.subr.bf16.mxu0 0
        %3649 = vmatpush1.bf16.msra.mxu0 0
        %3650 = vmatprep.subr.bf16.mxu0 0
        %3651 = vmatpush1.bf16.msra.mxu0 0
        %3652 = vmatprep.subr.bf16.mxu0 0
        %3653 = vmatpush1.bf16.msra.mxu0 0
        %3654 = vmatprep.subr.bf16.mxu0 0
        %3655 = vmatpush1.bf16.msra.mxu0 0
        %3656 = vmatprep.subr.bf16.mxu0 0
        %3657 = vmatpush1.bf16.msra.mxu0 0
        %3658 = vmatprep.subr.bf16.mxu0 0
        %3659 = vmatpush1.bf16.msra.mxu0 0
        %3660 = vmatprep.subr.bf16.mxu0 0
        %3661 = vmatpush1.bf16.msra.mxu0 0
        %3662 = vmatprep.subr.bf16.mxu0 0
        %3663 = vmatpush1.bf16.msra.mxu0 0
        %3664 = vmatprep.mubr.bf16.mxu0 0
        %3665 = vmatmul.mubr.bf16.gmra.mrb[0].mxu0 %v3630
        %v3666 = vpop.f32.mrb[0].mxu0
        %v3667 = vadd.f32 0.0, %v3666
        %v3668 = vpop.f32.mrb[0].mxu0
        %v3669 = vpop.f32.mrb[0].mxu0
        %v3670 = vadd.f32 0.0, %v3669
        %v3671 = vpop.f32.mrb[0].mxu0
        %3672 = vdwg.mxu0
        %3673 = vrot.lane.b32.xlu0 %v3031, 38
        %v3674 = vpop.permute.xlu0 %3673
        %v3677 = vunpack.c.l.b16 %v3617
        %v3678 = vunpack.c.l.b16 %v3618
        %v3679 = vpack.c.b16 %v3678, %v3677
        %v3682 = vsel %vm3046, %v3674, 0
        %3684 = vmatprep.subr.bf16.mxu0 0
        %3685 = vmatpush1.bf16.msra.mxu0 %v3679
        %3686 = vmatprep.subr.bf16.mxu0 0
        %3687 = vmatpush1.bf16.msra.mxu0 0
        %3688 = vmatprep.subr.bf16.mxu0 0
        %3689 = vmatpush1.bf16.msra.mxu0 0
        %3690 = vmatprep.subr.bf16.mxu0 0
        %3691 = vmatpush1.bf16.msra.mxu0 0
        %3692 = vmatprep.subr.bf16.mxu0 0
        %3693 = vmatpush1.bf16.msra.mxu0 0
        %3694 = vmatprep.subr.bf16.mxu0 0
        %3695 = vmatpush1.bf16.msra.mxu0 0
        %3696 = vmatprep.subr.bf16.mxu0 0
        %3697 = vmatpush1.bf16.msra.mxu0 0
        %3698 = vmatprep.subr.bf16.mxu0 0
        %3699 = vmatpush1.bf16.msra.mxu0 0
        %3700 = vmatprep.subr.bf16.mxu0 0
        %3701 = vmatpush1.bf16.msra.mxu0 0
        %3702 = vmatprep.subr.bf16.mxu0 0
        %3703 = vmatpush1.bf16.msra.mxu0 0
        %3704 = vmatprep.subr.bf16.mxu0 0
        %3705 = vmatpush1.bf16.msra.mxu0 0
        %3706 = vmatprep.subr.bf16.mxu0 0
        %3707 = vmatpush1.bf16.msra.mxu0 0
        %3708 = vmatprep.subr.bf16.mxu0 0
        %3709 = vmatpush1.bf16.msra.mxu0 0
        %3710 = vmatprep.subr.bf16.mxu0 0
        %3711 = vmatpush1.bf16.msra.mxu0 0
        %3712 = vmatprep.subr.bf16.mxu0 0
        %3713 = vmatpush1.bf16.msra.mxu0 0
        %3714 = vmatprep.subr.bf16.mxu0 0
        %3715 = vmatpush1.bf16.msra.mxu0 0
        %3716 = vmatprep.mubr.bf16.mxu0 0
        %3717 = vmatmul.mubr.bf16.gmra.mrb[0].mxu0 %v3682
        %v3718 = vpop.f32.mrb[0].mxu0
        %v3719 = vadd.f32 %v3667, %v3718
        %v3720 = vpop.f32.mrb[0].mxu0
        %v3721 = vpop.f32.mrb[0].mxu0
        %v3722 = vadd.f32 %v3670, %v3721
        %v3723 = vpop.f32.mrb[0].mxu0
        %3724 = vdwg.mxu0
        %3726 = vrot.lane.b32.xlu0 %v3719, 64
        %v3727 = vpop.permute.xlu0 %3726
        %3729 = vst.msk [vmem:[%s393 + $0x10] sm:$0xff] %vm3263, %v3727
        %3731 = vrot.lane.b32.xlu0 %v3722, 96
        %v3732 = vpop.permute.xlu0 %3731
        %3734 = vst.msk [vmem:[%s393 + $0x10] sm:$0xff] %vm3269, %v3732
        %v3735 = vld [vmem:[%s3] sm:$0xf]
        %v3736 = vld [vmem:[%s3 + $0x4] sm:$0xf]
        %v3737 = vld [vmem:[%s3037] sm:$0xf]
        %v3738 = vld [vmem:[%s3037 + $0x4] sm:$0xf]
        %3739 = vrot.lane.b32.xlu0 %v3033, 20
        %v3740 = vpop.permute.xlu0 %3739
        %v3743 = vunpack.c.l.b16 %v3737
        %v3744 = vunpack.c.l.b16 %v3738
        %v3745 = vpack.c.b16 %v3744, %v3743
        %v3748 = vsel %vm3046, %v3740, 0
        %3750 = vmatprep.subr.bf16.mxu0 0
        %3751 = vmatpush1.bf16.msra.mxu0 %v3745
        %3752 = vmatprep.subr.bf16.mxu0 0
        %3753 = vmatpush1.bf16.msra.mxu0 0
        %3754 = vmatprep.subr.bf16.mxu0 0
        %3755 = vmatpush1.bf16.msra.mxu0 0
        %3756 = vmatprep.subr.bf16.mxu0 0
        %3757 = vmatpush1.bf16.msra.mxu0 0
        %3758 = vmatprep.subr.bf16.mxu0 0
        %3759 = vmatpush1.bf16.msra.mxu0 0
        %3760 = vmatprep.subr.bf16.mxu0 0
        %3761 = vmatpush1.bf16.msra.mxu0 0
        %3762 = vmatprep.subr.bf16.mxu0 0
        %3763 = vmatpush1.bf16.msra.mxu0 0
        %3764 = vmatprep.subr.bf16.mxu0 0
        %3765 = vmatpush1.bf16.msra.mxu0 0
        %3766 = vmatprep.subr.bf16.mxu0 0
        %3767 = vmatpush1.bf16.msra.mxu0 0
        %3768 = vmatprep.subr.bf16.mxu0 0
        %3769 = vmatpush1.bf16.msra.mxu0 0
        %3770 = vmatprep.subr.bf16.mxu0 0
        %3771 = vmatpush1.bf16.msra.mxu0 0
        %3772 = vmatprep.subr.bf16.mxu0 0
        %3773 = vmatpush1.bf16.msra.mxu0 0
        %3774 = vmatprep.subr.bf16.mxu0 0
        %3775 = vmatpush1.bf16.msra.mxu0 0
        %3776 = vmatprep.subr.bf16.mxu0 0
        %3777 = vmatpush1.bf16.msra.mxu0 0
        %3778 = vmatprep.subr.bf16.mxu0 0
        %3779 = vmatpush1.bf16.msra.mxu0 0
        %3780 = vmatprep.subr.bf16.mxu0 0
        %3781 = vmatpush1.bf16.msra.mxu0 0
        %3782 = vmatprep.mubr.bf16.mxu0 0
        %3783 = vmatmul.mubr.bf16.gmra.mrb[0].mxu0 %v3748
        %v3784 = vpop.f32.mrb[0].mxu0
        %v3785 = vadd.f32 0.0, %v3784
        %v3786 = vpop.f32.mrb[0].mxu0
        %v3787 = vpop.f32.mrb[0].mxu0
        %v3788 = vadd.f32 0.0, %v3787
        %v3789 = vpop.f32.mrb[0].mxu0
        %3790 = vdwg.mxu0
        %3791 = vrot.lane.b32.xlu0 %v3031, 20
        %v3792 = vpop.permute.xlu0 %3791
        %v3795 = vunpack.c.l.b16 %v3735
        %v3796 = vunpack.c.l.b16 %v3736
        %v3797 = vpack.c.b16 %v3796, %v3795
        %v3800 = vsel %vm3046, %v3792, 0
        %3802 = vmatprep.subr.bf16.mxu0 0
        %3803 = vmatpush1.bf16.msra.mxu0 %v3797
        %3804 = vmatprep.subr.bf16.mxu0 0
        %3805 = vmatpush1.bf16.msra.mxu0 0
        %3806 = vmatprep.subr.bf16.mxu0 0
        %3807 = vmatpush1.bf16.msra.mxu0 0
        %3808 = vmatprep.subr.bf16.mxu0 0
        %3809 = vmatpush1.bf16.msra.mxu0 0
        %3810 = vmatprep.subr.bf16.mxu0 0
        %3811 = vmatpush1.bf16.msra.mxu0 0
        %3812 = vmatprep.subr.bf16.mxu0 0
        %3813 = vmatpush1.bf16.msra.mxu0 0
        %3814 = vmatprep.subr.bf16.mxu0 0
        %3815 = vmatpush1.bf16.msra.mxu0 0
        %3816 = vmatprep.subr.bf16.mxu0 0
        %3817 = vmatpush1.bf16.msra.mxu0 0
        %3818 = vmatprep.subr.bf16.mxu0 0
        %3819 = vmatpush1.bf16.msra.mxu0 0
        %3820 = vmatprep.subr.bf16.mxu0 0
        %3821 = vmatpush1.bf16.msra.mxu0 0
        %3822 = vmatprep.subr.bf16.mxu0 0
        %3823 = vmatpush1.bf16.msra.mxu0 0
        %3824 = vmatprep.subr.bf16.mxu0 0
        %3825 = vmatpush1.bf16.msra.mxu0 0
        %3826 = vmatprep.subr.bf16.mxu0 0
        %3827 = vmatpush1.bf16.msra.mxu0 0
        %3828 = vmatprep.subr.bf16.mxu0 0
        %3829 = vmatpush1.bf16.msra.mxu0 0
        %3830 = vmatprep.subr.bf16.mxu0 0
        %3831 = vmatpush1.bf16.msra.mxu0 0
        %3832 = vmatprep.subr.bf16.mxu0 0
        %3833 = vmatpush1.bf16.msra.mxu0 0
        %3834 = vmatprep.mubr.bf16.mxu0 0
        %3835 = vmatmul.mubr.bf16.gmra.mrb[0].mxu0 %v3800
        %v3836 = vpop.f32.mrb[0].mxu0
        %v3837 = vadd.f32 %v3785, %v3836
        %v3838 = vpop.f32.mrb[0].mxu0
        %v3839 = vpop.f32.mrb[0].mxu0
        %v3840 = vadd.f32 %v3788, %v3839
        %v3841 = vpop.f32.mrb[0].mxu0
        %3842 = vdwg.mxu0
        %3843 = vst.msk [vmem:[%s393 + $0x18] sm:$0xff] %vm3141, %v3837
        %3845 = vrot.lane.b32.xlu0 %v3840, 32
        %v3846 = vpop.permute.xlu0 %3845
        %3848 = vst.msk [vmem:[%s393 + $0x18] sm:$0xff] %vm3147, %v3846
        %v3849 = vld [vmem:[%s3] sm:$0xf]
        %v3850 = vld [vmem:[%s3 + $0x4] sm:$0xf]
        %v3851 = vld [vmem:[%s3037] sm:$0xf]
        %v3852 = vld [vmem:[%s3037 + $0x4] sm:$0xf]
        %3854 = vrot.lane.b32.xlu0 %v3033, 2
        %v3855 = vpop.permute.xlu0 %3854
        %3856 = vrot.lane.b32.xlu0 %v3034, 2
        %v3857 = vpop.permute.xlu0 %3856
        %vm3858 = vcmask 15360
        %v3859 = vsel %vm3858, %v3855, %v3857
        %v3862 = vunpack.c.l.b16 %v3851
        %v3863 = vunpack.c.l.b16 %v3852
        %v3864 = vpack.c.b16 %v3863, %v3862
        %v3867 = vsel %vm3046, %v3859, 0
        %3869 = vmatprep.subr.bf16.mxu0 0
        %3870 = vmatpush1.bf16.msra.mxu0 %v3864
        %3871 = vmatprep.subr.bf16.mxu0 0
        %3872 = vmatpush1.bf16.msra.mxu0 0
        %3873 = vmatprep.subr.bf16.mxu0 0
        %3874 = vmatpush1.bf16.msra.mxu0 0
        %3875 = vmatprep.subr.bf16.mxu0 0
        %3876 = vmatpush1.bf16.msra.mxu0 0
        %3877 = vmatprep.subr.bf16.mxu0 0
        %3878 = vmatpush1.bf16.msra.mxu0 0
        %3879 = vmatprep.subr.bf16.mxu0 0
        %3880 = vmatpush1.bf16.msra.mxu0 0
        %3881 = vmatprep.subr.bf16.mxu0 0
        %3882 = vmatpush1.bf16.msra.mxu0 0
        %3883 = vmatprep.subr.bf16.mxu0 0
        %3884 = vmatpush1.bf16.msra.mxu0 0
        %3885 = vmatprep.subr.bf16.mxu0 0
        %3886 = vmatpush1.bf16.msra.mxu0 0
        %3887 = vmatprep.subr.bf16.mxu0 0
        %3888 = vmatpush1.bf16.msra.mxu0 0
        %3889 = vmatprep.subr.bf16.mxu0 0
        %3890 = vmatpush1.bf16.msra.mxu0 0
        %3891 = vmatprep.subr.bf16.mxu0 0
        %3892 = vmatpush1.bf16.msra.mxu0 0
        %3893 = vmatprep.subr.bf16.mxu0 0
        %3894 = vmatpush1.bf16.msra.mxu0 0
        %3895 = vmatprep.subr.bf16.mxu0 0
        %3896 = vmatpush1.bf16.msra.mxu0 0
        %3897 = vmatprep.subr.bf16.mxu0 0
        %3898 = vmatpush1.bf16.msra.mxu0 0
        %3899 = vmatprep.subr.bf16.mxu0 0
        %3900 = vmatpush1.bf16.msra.mxu0 0
        %3901 = vmatprep.mubr.bf16.mxu0 0
        %3902 = vmatmul.mubr.bf16.gmra.mrb[0].mxu0 %v3867
        %v3903 = vpop.f32.mrb[0].mxu0
        %v3904 = vadd.f32 0.0, %v3903
        %v3905 = vpop.f32.mrb[0].mxu0
        %v3906 = vpop.f32.mrb[0].mxu0
        %v3907 = vadd.f32 0.0, %v3906
        %v3908 = vpop.f32.mrb[0].mxu0
        %3909 = vdwg.mxu0
        %3911 = vrot.lane.b32.xlu0 %v3031, 2
        %v3912 = vpop.permute.xlu0 %3911
        %3913 = vrot.lane.b32.xlu0 %v3032, 2
        %v3914 = vpop.permute.xlu0 %3913
        %v3915 = vsel %vm3858, %v3912, %v3914
        %v3918 = vunpack.c.l.b16 %v3849
        %v3919 = vunpack.c.l.b16 %v3850
        %v3920 = vpack.c.b16 %v3919, %v3918
        %v3923 = vsel %vm3046, %v3915, 0
        %3925 = vmatprep.subr.bf16.mxu0 0
        %3926 = vmatpush1.bf16.msra.mxu0 %v3920
        %3927 = vmatprep.subr.bf16.mxu0 0
        %3928 = vmatpush1.bf16.msra.mxu0 0
        %3929 = vmatprep.subr.bf16.mxu0 0
        %3930 = vmatpush1.bf16.msra.mxu0 0
        %3931 = vmatprep.subr.bf16.mxu0 0
        %3932 = vmatpush1.bf16.msra.mxu0 0
        %3933 = vmatprep.subr.bf16.mxu0 0
        %3934 = vmatpush1.bf16.msra.mxu0 0
        %3935 = vmatprep.subr.bf16.mxu0 0
        %3936 = vmatpush1.bf16.msra.mxu0 0
        %3937 = vmatprep.subr.bf16.mxu0 0
        %3938 = vmatpush1.bf16.msra.mxu0 0
        %3939 = vmatprep.subr.bf16.mxu0 0
        %3940 = vmatpush1.bf16.msra.mxu0 0
        %3941 = vmatprep.subr.bf16.mxu0 0
        %3942 = vmatpush1.bf16.msra.mxu0 0
        %3943 = vmatprep.subr.bf16.mxu0 0
        %3944 = vmatpush1.bf16.msra.mxu0 0
        %3945 = vmatprep.subr.bf16.mxu0 0
        %3946 = vmatpush1.bf16.msra.mxu0 0
        %3947 = vmatprep.subr.bf16.mxu0 0
        %3948 = vmatpush1.bf16.msra.mxu0 0
        %3949 = vmatprep.subr.bf16.mxu0 0
        %3950 = vmatpush1.bf16.msra.mxu0 0
        %3951 = vmatprep.subr.bf16.mxu0 0
        %3952 = vmatpush1.bf16.msra.mxu0 0
        %3953 = vmatprep.subr.bf16.mxu0 0
        %3954 = vmatpush1.bf16.msra.mxu0 0
        %3955 = vmatprep.subr.bf16.mxu0 0
        %3956 = vmatpush1.bf16.msra.mxu0 0
        %3957 = vmatprep.mubr.bf16.mxu0 0
        %3958 = vmatmul.mubr.bf16.gmra.mrb[0].mxu0 %v3923
        %v3959 = vpop.f32.mrb[0].mxu0
        %v3960 = vadd.f32 %v3904, %v3959
        %v3961 = vpop.f32.mrb[0].mxu0
        %v3962 = vpop.f32.mrb[0].mxu0
        %v3963 = vadd.f32 %v3907, %v3962
        %v3964 = vpop.f32.mrb[0].mxu0
        %3965 = vdwg.mxu0
        %3967 = vrot.lane.b32.xlu0 %v3960, 64
        %v3968 = vpop.permute.xlu0 %3967
        %3970 = vst.msk [vmem:[%s393 + $0x18] sm:$0xff] %vm3263, %v3968
        %3972 = vrot.lane.b32.xlu0 %v3963, 96
        %v3973 = vpop.permute.xlu0 %3972
        %3975 = vst.msk [vmem:[%s393 + $0x18] sm:$0xff] %vm3269, %v3973
        %v3976 = vld [vmem:[#allocation2 + $0x2] sm:$0xf]
        %v3977 = vld [vmem:[%s2] sm:$0xf]
        %v3978 = vld [vmem:[%s2 + $0x4] sm:$0xf]
        %v3979 = vld [vmem:[%s2 + $0x8] sm:$0xf]
        %v3980 = vld [vmem:[%s2 + $0xc] sm:$0xf]
        %v3981 = vld [vmem:[%s2104] sm:$0xf]
        %v3982 = vld [vmem:[%s2104 + $0x4] sm:$0xf]
        %v3983 = vld [vmem:[%s2104 + $0x8] sm:$0xf]
        %v3984 = vld [vmem:[%s2104 + $0xc] sm:$0xf]
        %v3989 = vunpack.c.l.b16 %v3981
        %v3990 = vunpack.c.l.b16 %v3982
        %v3991 = vunpack.c.l.b16 %v3983
        %v3992 = vunpack.c.l.b16 %v3984
        %v3993 = vpack.c.b16 %v3990, %v3989
        %v3994 = vpack.c.b16 %v3992, %v3991
        %v3997 = vunpack.c.l.s4 1983009808
        %v3998 = vunpack.c.0.s8 %v3997
        %v3999 = vlaneseq
        %v4000 = vshrl.u32 %v3999, 7
        %v4001 = vsub.s32 %v3998, %v4000
        %v4002 = vrot.slane %v3976, %v4001
        %v4003 = vcombine.high %v4002, %v4002
        %4004 = vrot.lane.b32.xlu0 %v4002, 111
        %v4005 = vpop.permute.xlu0 %4004
        %4006 = vrot.lane.b32.xlu0 %v4003, 111
        %v4007 = vpop.permute.xlu0 %4006
        %vm4008 = vcmask 908288
        %v4009 = vsel %vm4008, %v4005, %v4007
        %v4011 = vsel %vm2134, %v3993, 0
        %v4014 = vsel %vm2134, %v3994, 0
        %v4017 = vsel %vm2141, %v4009, 0
        %v4020 = vsel %vm2141, %v4007, 0
        %4022 = vmatprep.subr.bf16.mxu0 %v4020
        %4023 = vmatpush1.bf16.msra.mxu0 %v4017
        %4024 = vmatprep.subr.bf16.mxu0 0
        %4025 = vmatpush1.bf16.msra.mxu0 0
        %4026 = vmatprep.subr.bf16.mxu0 0
        %4027 = vmatpush1.bf16.msra.mxu0 0
        %4028 = vmatprep.subr.bf16.mxu0 0
        %4029 = vmatpush1.bf16.msra.mxu0 0
        %4030 = vmatprep.subr.bf16.mxu0 0
        %4031 = vmatpush1.bf16.msra.mxu0 0
        %4032 = vmatprep.subr.bf16.mxu0 0
        %4033 = vmatpush1.bf16.msra.mxu0 0
        %4034 = vmatprep.subr.bf16.mxu0 0
        %4035 = vmatpush1.bf16.msra.mxu0 0
        %4036 = vmatprep.subr.bf16.mxu0 0
        %4037 = vmatpush1.bf16.msra.mxu0 0
        %4038 = vmatprep.subr.bf16.mxu0 0
        %4039 = vmatpush1.bf16.msra.mxu0 0
        %4040 = vmatprep.subr.bf16.mxu0 0
        %4041 = vmatpush1.bf16.msra.mxu0 0
        %4042 = vmatprep.subr.bf16.mxu0 0
        %4043 = vmatpush1.bf16.msra.mxu0 0
        %4044 = vmatprep.subr.bf16.mxu0 0
        %4045 = vmatpush1.bf16.msra.mxu0 0
        %4046 = vmatprep.subr.bf16.mxu0 0
        %4047 = vmatpush1.bf16.msra.mxu0 0
        %4048 = vmatprep.subr.bf16.mxu0 0
        %4049 = vmatpush1.bf16.msra.mxu0 0
        %4050 = vmatprep.subr.bf16.mxu0 0
        %4051 = vmatpush1.bf16.msra.mxu0 0
        %4052 = vmatprep.subr.bf16.mxu0 0
        %4053 = vmatpush1.bf16.msra.mxu0 0
        %4054 = vmatprep.mubr.bf16.mxu0 0
        %4055 = vmatmul.mubr.bf16.gmra.mrb[0].mxu0 %v4011
        %v4056 = vpop.f32.mrb[0].mxu0
        %v4057 = vadd.f32 0.0, %v4056
        %v4058 = vpop.f32.mrb[0].mxu0
        %v4059 = vadd.f32 0.0, %v4058
        %v4060 = vpop.f32.mrb[0].mxu0
        %v4061 = vadd.f32 0.0, %v4060
        %v4062 = vpop.f32.mrb[0].mxu0
        %v4063 = vadd.f32 0.0, %v4062
        %4064 = vmatprep.mubr.bf16.mxu0 0
        %4065 = vmatmul.mubr.bf16.gmra.mrb[0].mxu0 %v4014
        %v4066 = vpop.f32.mrb[0].mxu0
        %v4067 = vadd.f32 0.0, %v4066
        %v4068 = vpop.f32.mrb[0].mxu0
        %v4069 = vadd.f32 0.0, %v4068
        %v4070 = vpop.f32.mrb[0].mxu0
        %v4071 = vadd.f32 0.0, %v4070
        %v4072 = vpop.f32.mrb[0].mxu0
        %v4073 = vadd.f32 0.0, %v4072
        %4074 = vdwg.mxu0
        %v4079 = vunpack.c.l.b16 %v3977
        %v4080 = vunpack.c.l.b16 %v3978
        %v4081 = vunpack.c.l.b16 %v3979
        %v4082 = vunpack.c.l.b16 %v3980
        %v4083 = vpack.c.b16 %v4080, %v4079
        %v4084 = vpack.c.b16 %v4082, %v4081
        %4085 = vrot.lane.b32.xlu0 %v4002, 112
        %v4086 = vpop.permute.xlu0 %4085
        %4087 = vrot.lane.b32.xlu0 %v4003, 112
        %v4088 = vpop.permute.xlu0 %4087
        %vm4089 = vcmask 916480
        %v4090 = vsel %vm4089, %v4086, %v4088
        %v4092 = vsel %vm2134, %v4083, 0
        %v4095 = vsel %vm2134, %v4084, 0
        %v4098 = vsel %vm2141, %v4090, 0
        %v4101 = vsel %vm2141, %v4088, 0
        %4103 = vmatprep.subr.bf16.mxu0 %v4101
        %4104 = vmatpush1.bf16.msra.mxu0 %v4098
        %4105 = vmatprep.subr.bf16.mxu0 0
        %4106 = vmatpush1.bf16.msra.mxu0 0
        %4107 = vmatprep.subr.bf16.mxu0 0
        %4108 = vmatpush1.bf16.msra.mxu0 0
        %4109 = vmatprep.subr.bf16.mxu0 0
        %4110 = vmatpush1.bf16.msra.mxu0 0
        %4111 = vmatprep.subr.bf16.mxu0 0
        %4112 = vmatpush1.bf16.msra.mxu0 0
        %4113 = vmatprep.subr.bf16.mxu0 0
        %4114 = vmatpush1.bf16.msra.mxu0 0
        %4115 = vmatprep.subr.bf16.mxu0 0
        %4116 = vmatpush1.bf16.msra.mxu0 0
        %4117 = vmatprep.subr.bf16.mxu0 0
        %4118 = vmatpush1.bf16.msra.mxu0 0
        %4119 = vmatprep.subr.bf16.mxu0 0
        %4120 = vmatpush1.bf16.msra.mxu0 0
        %4121 = vmatprep.subr.bf16.mxu0 0
        %4122 = vmatpush1.bf16.msra.mxu0 0
        %4123 = vmatprep.subr.bf16.mxu0 0
        %4124 = vmatpush1.bf16.msra.mxu0 0
        %4125 = vmatprep.subr.bf16.mxu0 0
        %4126 = vmatpush1.bf16.msra.mxu0 0
        %4127 = vmatprep.subr.bf16.mxu0 0
        %4128 = vmatpush1.bf16.msra.mxu0 0
        %4129 = vmatprep.subr.bf16.mxu0 0
        %4130 = vmatpush1.bf16.msra.mxu0 0
        %4131 = vmatprep.subr.bf16.mxu0 0
        %4132 = vmatpush1.bf16.msra.mxu0 0
        %4133 = vmatprep.subr.bf16.mxu0 0
        %4134 = vmatpush1.bf16.msra.mxu0 0
        %4135 = vmatprep.mubr.bf16.mxu0 0
        %4136 = vmatmul.mubr.bf16.gmra.mrb[0].mxu0 %v4092
        %v4137 = vpop.f32.mrb[0].mxu0
        %v4138 = vadd.f32 %v4057, %v4137
        %v4139 = vpop.f32.mrb[0].mxu0
        %v4140 = vadd.f32 %v4059, %v4139
        %v4141 = vpop.f32.mrb[0].mxu0
        %v4142 = vadd.f32 %v4061, %v4141
        %v4143 = vpop.f32.mrb[0].mxu0
        %v4144 = vadd.f32 %v4063, %v4143
        %4145 = vmatprep.mubr.bf16.mxu0 0
        %4146 = vmatmul.mubr.bf16.gmra.mrb[0].mxu0 %v4095
        %v4147 = vpop.f32.mrb[0].mxu0
        %v4148 = vadd.f32 %v4067, %v4147
        %v4149 = vpop.f32.mrb[0].mxu0
        %v4150 = vadd.f32 %v4069, %v4149
        %v4151 = vpop.f32.mrb[0].mxu0
        %v4152 = vadd.f32 %v4071, %v4151
        %v4153 = vpop.f32.mrb[0].mxu0
        %v4154 = vadd.f32 %v4073, %v4153
        %4155 = vdwg.mxu0
        %v4156 = vld [vmem:[#allocation2 + $0x2] sm:$0xf]
        %v4157 = vld [vmem:[%s2277] sm:$0xf]
        %v4158 = vld [vmem:[%s2277 + $0x4] sm:$0xf]
        %v4159 = vld [vmem:[%s2277 + $0x8] sm:$0xf]
        %v4160 = vld [vmem:[%s2277 + $0xc] sm:$0xf]
        %v4165 = vunpack.c.l.b16 %v4157
        %v4166 = vunpack.c.l.b16 %v4158
        %v4167 = vunpack.c.l.b16 %v4159
        %v4168 = vunpack.c.l.b16 %v4160
        %v4169 = vpack.c.b16 %v4166, %v4165
        %v4170 = vpack.c.b16 %v4168, %v4167
        %v4173 = vunpack.c.l.s4 1983009808
        %v4174 = vunpack.c.0.s8 %v4173
        %v4175 = vlaneseq
        %v4176 = vshrl.u32 %v4175, 7
        %v4177 = vsub.s32 %v4174, %v4176
        %v4178 = vrot.slane %v4156, %v4177
        %v4179 = vcombine.high %v4178, %v4178
        %4180 = vrot.lane.b32.xlu0 %v4178, 110
        %v4181 = vpop.permute.xlu0 %4180
        %4182 = vrot.lane.b32.xlu0 %v4179, 110
        %v4183 = vpop.permute.xlu0 %4182
        %v4184 = vsel %vm2408, %v4181, %v4183
        %v4186 = vsel %vm2134, %v4169, 0
        %v4189 = vsel %vm2134, %v4170, 0
        %v4192 = vsel %vm2141, %v4184, 0
        %v4195 = vsel %vm2141, %v4183, 0
        %4197 = vmatprep.subr.bf16.mxu0 %v4195
        %4198 = vmatpush1.bf16.msra.mxu0 %v4192
        %4199 = vmatprep.subr.bf16.mxu0 0
        %4200 = vmatpush1.bf16.msra.mxu0 0
        %4201 = vmatprep.subr.bf16.mxu0 0
        %4202 = vmatpush1.bf16.msra.mxu0 0
        %4203 = vmatprep.subr.bf16.mxu0 0
        %4204 = vmatpush1.bf16.msra.mxu0 0
        %4205 = vmatprep.subr.bf16.mxu0 0
        %4206 = vmatpush1.bf16.msra.mxu0 0
        %4207 = vmatprep.subr.bf16.mxu0 0
        %4208 = vmatpush1.bf16.msra.mxu0 0
        %4209 = vmatprep.subr.bf16.mxu0 0
        %4210 = vmatpush1.bf16.msra.mxu0 0
        %4211 = vmatprep.subr.bf16.mxu0 0
        %4212 = vmatpush1.bf16.msra.mxu0 0
        %4213 = vmatprep.subr.bf16.mxu0 0
        %4214 = vmatpush1.bf16.msra.mxu0 0
        %4215 = vmatprep.subr.bf16.mxu0 0
        %4216 = vmatpush1.bf16.msra.mxu0 0
        %4217 = vmatprep.subr.bf16.mxu0 0
        %4218 = vmatpush1.bf16.msra.mxu0 0
        %4219 = vmatprep.subr.bf16.mxu0 0
        %4220 = vmatpush1.bf16.msra.mxu0 0
        %4221 = vmatprep.subr.bf16.mxu0 0
        %4222 = vmatpush1.bf16.msra.mxu0 0
        %4223 = vmatprep.subr.bf16.mxu0 0
        %4224 = vmatpush1.bf16.msra.mxu0 0
        %4225 = vmatprep.subr.bf16.mxu0 0
        %4226 = vmatpush1.bf16.msra.mxu0 0
        %4227 = vmatprep.subr.bf16.mxu0 0
        %4228 = vmatpush1.bf16.msra.mxu0 0
        %4229 = vmatprep.mubr.bf16.mxu0 0
        %4230 = vmatmul.mubr.bf16.gmra.mrb[0].mxu0 %v4186
        %v4231 = vpop.f32.mrb[0].mxu0
        %v4232 = vadd.f32 0.0, %v4231
        %v4233 = vpop.f32.mrb[0].mxu0
        %v4234 = vadd.f32 0.0, %v4233
        %v4235 = vpop.f32.mrb[0].mxu0
        %v4236 = vadd.f32 0.0, %v4235
        %v4237 = vpop.f32.mrb[0].mxu0
        %v4238 = vadd.f32 0.0, %v4237
        %4239 = vmatprep.mubr.bf16.mxu0 0
        %4240 = vmatmul.mubr.bf16.gmra.mrb[0].mxu0 %v4189
        %v4241 = vpop.f32.mrb[0].mxu0
        %v4242 = vadd.f32 0.0, %v4241
        %v4243 = vpop.f32.mrb[0].mxu0
        %v4244 = vadd.f32 0.0, %v4243
        %v4245 = vpop.f32.mrb[0].mxu0
        %v4246 = vadd.f32 0.0, %v4245
        %v4247 = vpop.f32.mrb[0].mxu0
        %v4248 = vadd.f32 0.0, %v4247
        %4249 = vdwg.mxu0
        %v4250 = vadd.f32 %v4138, %v4232
        %v4251 = vadd.f32 %v4140, %v4234
        %v4252 = vadd.f32 %v4142, %v4236
        %v4253 = vadd.f32 %v4144, %v4238
        %v4254 = vadd.f32 %v4148, %v4242
        %v4255 = vadd.f32 %v4150, %v4244
        %v4256 = vadd.f32 %v4152, %v4246
        %v4257 = vadd.f32 %v4154, %v4248
        %v4258 = vld [vmem:[#allocation2 + $0x2] sm:$0xf]
        %v4259 = vld [vmem:[%s2380] sm:$0xf]
        %v4260 = vld [vmem:[%s2380 + $0x4] sm:$0xf]
        %v4261 = vld [vmem:[%s2380 + $0x8] sm:$0xf]
        %v4262 = vld [vmem:[%s2380 + $0xc] sm:$0xf]
        %v4267 = vunpack.c.l.b16 %v4259
        %v4268 = vunpack.c.l.b16 %v4260
        %v4269 = vunpack.c.l.b16 %v4261
        %v4270 = vunpack.c.l.b16 %v4262
        %v4271 = vpack.c.b16 %v4268, %v4267
        %v4272 = vpack.c.b16 %v4270, %v4269
        %v4275 = vunpack.c.l.s4 1983009808
        %v4276 = vunpack.c.0.s8 %v4275
        %v4277 = vlaneseq
        %v4278 = vshrl.u32 %v4277, 7
        %v4279 = vsub.s32 %v4276, %v4278
        %v4280 = vrot.slane %v4258, %v4279
        %v4281 = vcombine.high %v4280, %v4280
        %4282 = vrot.lane.b32.xlu0 %v4280, 94
        %v4283 = vpop.permute.xlu0 %4282
        %4284 = vrot.lane.b32.xlu0 %v4281, 94
        %v4285 = vpop.permute.xlu0 %4284
        %vm4286 = vcmask 769024
        %v4287 = vsel %vm4286, %v4283, %v4285
        %v4289 = vsel %vm2134, %v4271, 0
        %v4292 = vsel %vm2134, %v4272, 0
        %v4295 = vsel %vm2141, %v4287, 0
        %v4298 = vsel %vm2141, %v4285, 0
        %4300 = vmatprep.subr.bf16.mxu0 %v4298
        %4301 = vmatpush1.bf16.msra.mxu0 %v4295
        %4302 = vmatprep.subr.bf16.mxu0 0
        %4303 = vmatpush1.bf16.msra.mxu0 0
        %4304 = vmatprep.subr.bf16.mxu0 0
        %4305 = vmatpush1.bf16.msra.mxu0 0
        %4306 = vmatprep.subr.bf16.mxu0 0
        %4307 = vmatpush1.bf16.msra.mxu0 0
        %4308 = vmatprep.subr.bf16.mxu0 0
        %4309 = vmatpush1.bf16.msra.mxu0 0
        %4310 = vmatprep.subr.bf16.mxu0 0
        %4311 = vmatpush1.bf16.msra.mxu0 0
        %4312 = vmatprep.subr.bf16.mxu0 0
        %4313 = vmatpush1.bf16.msra.mxu0 0
        %4314 = vmatprep.subr.bf16.mxu0 0
        %4315 = vmatpush1.bf16.msra.mxu0 0
        %4316 = vmatprep.subr.bf16.mxu0 0
        %4317 = vmatpush1.bf16.msra.mxu0 0
        %4318 = vmatprep.subr.bf16.mxu0 0
        %4319 = vmatpush1.bf16.msra.mxu0 0
        %4320 = vmatprep.subr.bf16.mxu0 0
        %4321 = vmatpush1.bf16.msra.mxu0 0
        %4322 = vmatprep.subr.bf16.mxu0 0
        %4323 = vmatpush1.bf16.msra.mxu0 0
        %4324 = vmatprep.subr.bf16.mxu0 0
        %4325 = vmatpush1.bf16.msra.mxu0 0
        %4326 = vmatprep.subr.bf16.mxu0 0
        %4327 = vmatpush1.bf16.msra.mxu0 0
        %4328 = vmatprep.subr.bf16.mxu0 0
        %4329 = vmatpush1.bf16.msra.mxu0 0
        %4330 = vmatprep.subr.bf16.mxu0 0
        %4331 = vmatpush1.bf16.msra.mxu0 0
        %4332 = vmatprep.mubr.bf16.mxu0 0
        %4333 = vmatmul.mubr.bf16.gmra.mrb[0].mxu0 %v4289
        %v4334 = vpop.f32.mrb[0].mxu0
        %v4335 = vadd.f32 0.0, %v4334
        %v4336 = vpop.f32.mrb[0].mxu0
        %v4337 = vadd.f32 0.0, %v4336
        %v4338 = vpop.f32.mrb[0].mxu0
        %v4339 = vadd.f32 0.0, %v4338
        %v4340 = vpop.f32.mrb[0].mxu0
        %v4341 = vadd.f32 0.0, %v4340
        %4342 = vmatprep.mubr.bf16.mxu0 0
        %4343 = vmatmul.mubr.bf16.gmra.mrb[0].mxu0 %v4292
        %v4344 = vpop.f32.mrb[0].mxu0
        %v4345 = vadd.f32 0.0, %v4344
        %v4346 = vpop.f32.mrb[0].mxu0
        %v4347 = vadd.f32 0.0, %v4346
        %v4348 = vpop.f32.mrb[0].mxu0
        %v4349 = vadd.f32 0.0, %v4348
        %v4350 = vpop.f32.mrb[0].mxu0
        %v4351 = vadd.f32 0.0, %v4350
        %4352 = vdwg.mxu0
        %v4353 = vadd.f32 %v4250, %v4335
        %v4354 = vadd.f32 %v4251, %v4337
        %v4355 = vadd.f32 %v4252, %v4339
        %v4356 = vadd.f32 %v4253, %v4341
        %v4357 = vadd.f32 %v4254, %v4345
        %v4358 = vadd.f32 %v4255, %v4347
        %v4359 = vadd.f32 %v4256, %v4349
        %v4360 = vadd.f32 %v4257, %v4351
        %v4361 = vld [vmem:[#allocation2 + $0x2] sm:$0xf]
        %v4362 = vld [vmem:[%s2484] sm:$0xf]
        %v4363 = vld [vmem:[%s2484 + $0x4] sm:$0xf]
        %v4364 = vld [vmem:[%s2484 + $0x8] sm:$0xf]
        %v4365 = vld [vmem:[%s2484 + $0xc] sm:$0xf]
        %v4370 = vunpack.c.l.b16 %v4362
        %v4371 = vunpack.c.l.b16 %v4363
        %v4372 = vunpack.c.l.b16 %v4364
        %v4373 = vunpack.c.l.b16 %v4365
        %v4374 = vpack.c.b16 %v4371, %v4370
        %v4375 = vpack.c.b16 %v4373, %v4372
        %v4378 = vunpack.c.l.s4 1983009808
        %v4379 = vunpack.c.0.s8 %v4378
        %v4380 = vlaneseq
        %v4381 = vshrl.u32 %v4380, 7
        %v4382 = vsub.s32 %v4379, %v4381
        %v4383 = vrot.slane %v4361, %v4382
        %v4384 = vcombine.high %v4383, %v4383
        %4385 = vrot.lane.b32.xlu0 %v4383, 93
        %v4386 = vpop.permute.xlu0 %4385
        %4387 = vrot.lane.b32.xlu0 %v4384, 93
        %v4388 = vpop.permute.xlu0 %4387
        %vm4389 = vcmask 760832
        %v4390 = vsel %vm4389, %v4386, %v4388
        %v4392 = vsel %vm2134, %v4374, 0
        %v4395 = vsel %vm2134, %v4375, 0
        %v4398 = vsel %vm2141, %v4390, 0
        %v4401 = vsel %vm2141, %v4388, 0
        %4403 = vmatprep.subr.bf16.mxu0 %v4401
        %4404 = vmatpush1.bf16.msra.mxu0 %v4398
        %4405 = vmatprep.subr.bf16.mxu0 0
        %4406 = vmatpush1.bf16.msra.mxu0 0
        %4407 = vmatprep.subr.bf16.mxu0 0
        %4408 = vmatpush1.bf16.msra.mxu0 0
        %4409 = vmatprep.subr.bf16.mxu0 0
        %4410 = vmatpush1.bf16.msra.mxu0 0
        %4411 = vmatprep.subr.bf16.mxu0 0
        %4412 = vmatpush1.bf16.msra.mxu0 0
        %4413 = vmatprep.subr.bf16.mxu0 0
        %4414 = vmatpush1.bf16.msra.mxu0 0
        %4415 = vmatprep.subr.bf16.mxu0 0
        %4416 = vmatpush1.bf16.msra.mxu0 0
        %4417 = vmatprep.subr.bf16.mxu0 0
        %4418 = vmatpush1.bf16.msra.mxu0 0
        %4419 = vmatprep.subr.bf16.mxu0 0
        %4420 = vmatpush1.bf16.msra.mxu0 0
        %4421 = vmatprep.subr.bf16.mxu0 0
        %4422 = vmatpush1.bf16.msra.mxu0 0
        %4423 = vmatprep.subr.bf16.mxu0 0
        %4424 = vmatpush1.bf16.msra.mxu0 0
        %4425 = vmatprep.subr.bf16.mxu0 0
        %4426 = vmatpush1.bf16.msra.mxu0 0
        %4427 = vmatprep.subr.bf16.mxu0 0
        %4428 = vmatpush1.bf16.msra.mxu0 0
        %4429 = vmatprep.subr.bf16.mxu0 0
        %4430 = vmatpush1.bf16.msra.mxu0 0
        %4431 = vmatprep.subr.bf16.mxu0 0
        %4432 = vmatpush1.bf16.msra.mxu0 0
        %4433 = vmatprep.subr.bf16.mxu0 0
        %4434 = vmatpush1.bf16.msra.mxu0 0
        %4435 = vmatprep.mubr.bf16.mxu0 0
        %4436 = vmatmul.mubr.bf16.gmra.mrb[0].mxu0 %v4392
        %v4437 = vpop.f32.mrb[0].mxu0
        %v4438 = vadd.f32 0.0, %v4437
        %v4439 = vpop.f32.mrb[0].mxu0
        %v4440 = vadd.f32 0.0, %v4439
        %v4441 = vpop.f32.mrb[0].mxu0
        %v4442 = vadd.f32 0.0, %v4441
        %v4443 = vpop.f32.mrb[0].mxu0
        %v4444 = vadd.f32 0.0, %v4443
        %4445 = vmatprep.mubr.bf16.mxu0 0
        %4446 = vmatmul.mubr.bf16.gmra.mrb[0].mxu0 %v4395
        %v4447 = vpop.f32.mrb[0].mxu0
        %v4448 = vadd.f32 0.0, %v4447
        %v4449 = vpop.f32.mrb[0].mxu0
        %v4450 = vadd.f32 0.0, %v4449
        %v4451 = vpop.f32.mrb[0].mxu0
        %v4452 = vadd.f32 0.0, %v4451
        %v4453 = vpop.f32.mrb[0].mxu0
        %v4454 = vadd.f32 0.0, %v4453
        %4455 = vdwg.mxu0
        %v4456 = vadd.f32 %v4353, %v4438
        %v4457 = vadd.f32 %v4354, %v4440
        %v4458 = vadd.f32 %v4355, %v4442
        %v4459 = vadd.f32 %v4356, %v4444
        %v4460 = vadd.f32 %v4357, %v4448
        %v4461 = vadd.f32 %v4358, %v4450
        %v4462 = vadd.f32 %v4359, %v4452
        %v4463 = vadd.f32 %v4360, %v4454
        %v4464 = vld [vmem:[#allocation2 + $0x2] sm:$0xf]
        %v4465 = vld [vmem:[%s2588] sm:$0xf]
        %v4466 = vld [vmem:[%s2588 + $0x4] sm:$0xf]
        %v4467 = vld [vmem:[%s2588 + $0x8] sm:$0xf]
        %v4468 = vld [vmem:[%s2588 + $0xc] sm:$0xf]
        %v4473 = vunpack.c.l.b16 %v4465
        %v4474 = vunpack.c.l.b16 %v4466
        %v4475 = vunpack.c.l.b16 %v4467
        %v4476 = vunpack.c.l.b16 %v4468
        %v4477 = vpack.c.b16 %v4474, %v4473
        %v4478 = vpack.c.b16 %v4476, %v4475
        %v4481 = vunpack.c.l.s4 1983009808
        %v4482 = vunpack.c.0.s8 %v4481
        %v4483 = vlaneseq
        %v4484 = vshrl.u32 %v4483, 7
        %v4485 = vsub.s32 %v4482, %v4484
        %v4486 = vrot.slane %v4464, %v4485
        %v4487 = vcombine.high %v4486, %v4486
        %4488 = vrot.lane.b32.xlu0 %v4486, 92
        %v4489 = vpop.permute.xlu0 %4488
        %4490 = vrot.lane.b32.xlu0 %v4487, 92
        %v4491 = vpop.permute.xlu0 %4490
        %v4492 = vsel %vm2720, %v4489, %v4491
        %v4494 = vsel %vm2134, %v4477, 0
        %v4497 = vsel %vm2134, %v4478, 0
        %v4500 = vsel %vm2141, %v4492, 0
        %v4503 = vsel %vm2141, %v4491, 0
        %4505 = vmatprep.subr.bf16.mxu0 %v4503
        %4506 = vmatpush1.bf16.msra.mxu0 %v4500
        %4507 = vmatprep.subr.bf16.mxu0 0
        %4508 = vmatpush1.bf16.msra.mxu0 0
        %4509 = vmatprep.subr.bf16.mxu0 0
        %4510 = vmatpush1.bf16.msra.mxu0 0
        %4511 = vmatprep.subr.bf16.mxu0 0
        %4512 = vmatpush1.bf16.msra.mxu0 0
        %4513 = vmatprep.subr.bf16.mxu0 0
        %4514 = vmatpush1.bf16.msra.mxu0 0
        %4515 = vmatprep.subr.bf16.mxu0 0
        %4516 = vmatpush1.bf16.msra.mxu0 0
        %4517 = vmatprep.subr.bf16.mxu0 0
        %4518 = vmatpush1.bf16.msra.mxu0 0
        %4519 = vmatprep.subr.bf16.mxu0 0
        %4520 = vmatpush1.bf16.msra.mxu0 0
        %4521 = vmatprep.subr.bf16.mxu0 0
        %4522 = vmatpush1.bf16.msra.mxu0 0
        %4523 = vmatprep.subr.bf16.mxu0 0
        %4524 = vmatpush1.bf16.msra.mxu0 0
        %4525 = vmatprep.subr.bf16.mxu0 0
        %4526 = vmatpush1.bf16.msra.mxu0 0
        %4527 = vmatprep.subr.bf16.mxu0 0
        %4528 = vmatpush1.bf16.msra.mxu0 0
        %4529 = vmatprep.subr.bf16.mxu0 0
        %4530 = vmatpush1.bf16.msra.mxu0 0
        %4531 = vmatprep.subr.bf16.mxu0 0
        %4532 = vmatpush1.bf16.msra.mxu0 0
        %4533 = vmatprep.subr.bf16.mxu0 0
        %4534 = vmatpush1.bf16.msra.mxu0 0
        %4535 = vmatprep.subr.bf16.mxu0 0
        %4536 = vmatpush1.bf16.msra.mxu0 0
        %4537 = vmatprep.mubr.bf16.mxu0 0
        %4538 = vmatmul.mubr.bf16.gmra.mrb[0].mxu0 %v4494
        %v4539 = vpop.f32.mrb[0].mxu0
        %v4540 = vadd.f32 0.0, %v4539
        %v4541 = vpop.f32.mrb[0].mxu0
        %v4542 = vadd.f32 0.0, %v4541
        %v4543 = vpop.f32.mrb[0].mxu0
        %v4544 = vadd.f32 0.0, %v4543
        %v4545 = vpop.f32.mrb[0].mxu0
        %v4546 = vadd.f32 0.0, %v4545
        %4547 = vmatprep.mubr.bf16.mxu0 0
        %4548 = vmatmul.mubr.bf16.gmra.mrb[0].mxu0 %v4497
        %v4549 = vpop.f32.mrb[0].mxu0
        %v4550 = vadd.f32 0.0, %v4549
        %v4551 = vpop.f32.mrb[0].mxu0
        %v4552 = vadd.f32 0.0, %v4551
        %v4553 = vpop.f32.mrb[0].mxu0
        %v4554 = vadd.f32 0.0, %v4553
        %v4555 = vpop.f32.mrb[0].mxu0
        %v4556 = vadd.f32 0.0, %v4555
        %4557 = vdwg.mxu0
        %v4558 = vadd.f32 %v4456, %v4540
        %v4559 = vadd.f32 %v4457, %v4542
        %v4560 = vadd.f32 %v4458, %v4544
        %v4561 = vadd.f32 %v4459, %v4546
        %v4562 = vadd.f32 %v4460, %v4550
        %v4563 = vadd.f32 %v4461, %v4552
        %v4564 = vadd.f32 %v4462, %v4554
        %v4565 = vadd.f32 %v4463, %v4556
        %v4566 = vld [vmem:[#allocation2 + $0x2] sm:$0xf]
        %v4567 = vld [vmem:[%s2692] sm:$0xf]
        %v4568 = vld [vmem:[%s2692 + $0x4] sm:$0xf]
        %v4569 = vld [vmem:[%s2692 + $0x8] sm:$0xf]
        %v4570 = vld [vmem:[%s2692 + $0xc] sm:$0xf]
        %v4575 = vunpack.c.l.b16 %v4567
        %v4576 = vunpack.c.l.b16 %v4568
        %v4577 = vunpack.c.l.b16 %v4569
        %v4578 = vunpack.c.l.b16 %v4570
        %v4579 = vpack.c.b16 %v4576, %v4575
        %v4580 = vpack.c.b16 %v4578, %v4577
        %v4583 = vunpack.c.l.s4 1983009808
        %v4584 = vunpack.c.0.s8 %v4583
        %v4585 = vlaneseq
        %v4586 = vshrl.u32 %v4585, 7
        %v4587 = vsub.s32 %v4584, %v4586
        %v4588 = vrot.slane %v4566, %v4587
        %v4589 = vcombine.high %v4588, %v4588
        %4590 = vrot.lane.b32.xlu0 %v4588, 76
        %v4591 = vpop.permute.xlu0 %4590
        %4592 = vrot.lane.b32.xlu0 %v4589, 76
        %v4593 = vpop.permute.xlu0 %4592
        %vm4594 = vcmask 621568
        %v4595 = vsel %vm4594, %v4591, %v4593
        %v4597 = vsel %vm2134, %v4579, 0
        %v4600 = vsel %vm2134, %v4580, 0
        %v4603 = vsel %vm2141, %v4595, 0
        %v4606 = vsel %vm2141, %v4593, 0
        %4608 = vmatprep.subr.bf16.mxu0 %v4606
        %4609 = vmatpush1.bf16.msra.mxu0 %v4603
        %4610 = vmatprep.subr.bf16.mxu0 0
        %4611 = vmatpush1.bf16.msra.mxu0 0
        %4612 = vmatprep.subr.bf16.mxu0 0
        %4613 = vmatpush1.bf16.msra.mxu0 0
        %4614 = vmatprep.subr.bf16.mxu0 0
        %4615 = vmatpush1.bf16.msra.mxu0 0
        %4616 = vmatprep.subr.bf16.mxu0 0
        %4617 = vmatpush1.bf16.msra.mxu0 0
        %4618 = vmatprep.subr.bf16.mxu0 0
        %4619 = vmatpush1.bf16.msra.mxu0 0
        %4620 = vmatprep.subr.bf16.mxu0 0
        %4621 = vmatpush1.bf16.msra.mxu0 0
        %4622 = vmatprep.subr.bf16.mxu0 0
        %4623 = vmatpush1.bf16.msra.mxu0 0
        %4624 = vmatprep.subr.bf16.mxu0 0
        %4625 = vmatpush1.bf16.msra.mxu0 0
        %4626 = vmatprep.subr.bf16.mxu0 0
        %4627 = vmatpush1.bf16.msra.mxu0 0
        %4628 = vmatprep.subr.bf16.mxu0 0
        %4629 = vmatpush1.bf16.msra.mxu0 0
        %4630 = vmatprep.subr.bf16.mxu0 0
        %4631 = vmatpush1.bf16.msra.mxu0 0
        %4632 = vmatprep.subr.bf16.mxu0 0
        %4633 = vmatpush1.bf16.msra.mxu0 0
        %4634 = vmatprep.subr.bf16.mxu0 0
        %4635 = vmatpush1.bf16.msra.mxu0 0
        %4636 = vmatprep.subr.bf16.mxu0 0
        %4637 = vmatpush1.bf16.msra.mxu0 0
        %4638 = vmatprep.subr.bf16.mxu0 0
        %4639 = vmatpush1.bf16.msra.mxu0 0
        %4640 = vmatprep.mubr.bf16.mxu0 0
        %4641 = vmatmul.mubr.bf16.gmra.mrb[0].mxu0 %v4597
        %v4642 = vpop.f32.mrb[0].mxu0
        %v4643 = vadd.f32 0.0, %v4642
        %v4644 = vpop.f32.mrb[0].mxu0
        %v4645 = vadd.f32 0.0, %v4644
        %v4646 = vpop.f32.mrb[0].mxu0
        %v4647 = vadd.f32 0.0, %v4646
        %v4648 = vpop.f32.mrb[0].mxu0
        %v4649 = vadd.f32 0.0, %v4648
        %4650 = vmatprep.mubr.bf16.mxu0 0
        %4651 = vmatmul.mubr.bf16.gmra.mrb[0].mxu0 %v4600
        %v4652 = vpop.f32.mrb[0].mxu0
        %v4653 = vadd.f32 0.0, %v4652
        %v4654 = vpop.f32.mrb[0].mxu0
        %v4655 = vadd.f32 0.0, %v4654
        %v4656 = vpop.f32.mrb[0].mxu0
        %v4657 = vadd.f32 0.0, %v4656
        %v4658 = vpop.f32.mrb[0].mxu0
        %v4659 = vadd.f32 0.0, %v4658
        %4660 = vdwg.mxu0
        %v4661 = vadd.f32 %v4558, %v4643
        %v4662 = vadd.f32 %v4559, %v4645
        %v4663 = vadd.f32 %v4560, %v4647
        %v4664 = vadd.f32 %v4561, %v4649
        %v4665 = vadd.f32 %v4562, %v4653
        %v4666 = vadd.f32 %v4563, %v4655
        %v4667 = vadd.f32 %v4564, %v4657
        %v4668 = vadd.f32 %v4565, %v4659
        %v4669 = vld [vmem:[#allocation2 + $0x2] sm:$0xf]
        %v4670 = vld [vmem:[%s2796] sm:$0xf]
        %v4671 = vld [vmem:[%s2796 + $0x4] sm:$0xf]
        %v4672 = vld [vmem:[%s2796 + $0x8] sm:$0xf]
        %v4673 = vld [vmem:[%s2796 + $0xc] sm:$0xf]
        %v4678 = vunpack.c.l.b16 %v4670
        %v4679 = vunpack.c.l.b16 %v4671
        %v4680 = vunpack.c.l.b16 %v4672
        %v4681 = vunpack.c.l.b16 %v4673
        %v4682 = vpack.c.b16 %v4679, %v4678
        %v4683 = vpack.c.b16 %v4681, %v4680
        %v4686 = vunpack.c.l.s4 1983009808
        %v4687 = vunpack.c.0.s8 %v4686
        %v4688 = vlaneseq
        %v4689 = vshrl.u32 %v4688, 7
        %v4690 = vsub.s32 %v4687, %v4689
        %v4691 = vrot.slane %v4669, %v4690
        %v4692 = vcombine.high %v4691, %v4691
        %4693 = vrot.lane.b32.xlu0 %v4691, 75
        %v4694 = vpop.permute.xlu0 %4693
        %4695 = vrot.lane.b32.xlu0 %v4692, 75
        %v4696 = vpop.permute.xlu0 %4695
        %vm4697 = vcmask 613376
        %v4698 = vsel %vm4697, %v4694, %v4696
        %v4700 = vsel %vm2134, %v4682, 0
        %v4703 = vsel %vm2134, %v4683, 0
        %v4706 = vsel %vm2141, %v4698, 0
        %v4709 = vsel %vm2141, %v4696, 0
        %4711 = vmatprep.subr.bf16.mxu0 %v4709
        %4712 = vmatpush1.bf16.msra.mxu0 %v4706
        %4713 = vmatprep.subr.bf16.mxu0 0
        %4714 = vmatpush1.bf16.msra.mxu0 0
        %4715 = vmatprep.subr.bf16.mxu0 0
        %4716 = vmatpush1.bf16.msra.mxu0 0
        %4717 = vmatprep.subr.bf16.mxu0 0
        %4718 = vmatpush1.bf16.msra.mxu0 0
        %4719 = vmatprep.subr.bf16.mxu0 0
        %4720 = vmatpush1.bf16.msra.mxu0 0
        %4721 = vmatprep.subr.bf16.mxu0 0
        %4722 = vmatpush1.bf16.msra.mxu0 0
        %4723 = vmatprep.subr.bf16.mxu0 0
        %4724 = vmatpush1.bf16.msra.mxu0 0
        %4725 = vmatprep.subr.bf16.mxu0 0
        %4726 = vmatpush1.bf16.msra.mxu0 0
        %4727 = vmatprep.subr.bf16.mxu0 0
        %4728 = vmatpush1.bf16.msra.mxu0 0
        %4729 = vmatprep.subr.bf16.mxu0 0
        %4730 = vmatpush1.bf16.msra.mxu0 0
        %4731 = vmatprep.subr.bf16.mxu0 0
        %4732 = vmatpush1.bf16.msra.mxu0 0
        %4733 = vmatprep.subr.bf16.mxu0 0
        %4734 = vmatpush1.bf16.msra.mxu0 0
        %4735 = vmatprep.subr.bf16.mxu0 0
        %4736 = vmatpush1.bf16.msra.mxu0 0
        %4737 = vmatprep.subr.bf16.mxu0 0
        %4738 = vmatpush1.bf16.msra.mxu0 0
        %4739 = vmatprep.subr.bf16.mxu0 0
        %4740 = vmatpush1.bf16.msra.mxu0 0
        %4741 = vmatprep.subr.bf16.mxu0 0
        %4742 = vmatpush1.bf16.msra.mxu0 0
        %4743 = vmatprep.mubr.bf16.mxu0 0
        %4744 = vmatmul.mubr.bf16.gmra.mrb[0].mxu0 %v4700
        %v4745 = vpop.f32.mrb[0].mxu0
        %v4746 = vadd.f32 0.0, %v4745
        %v4747 = vpop.f32.mrb[0].mxu0
        %v4748 = vadd.f32 0.0, %v4747
        %v4749 = vpop.f32.mrb[0].mxu0
        %v4750 = vadd.f32 0.0, %v4749
        %v4751 = vpop.f32.mrb[0].mxu0
        %v4752 = vadd.f32 0.0, %v4751
        %4753 = vmatprep.mubr.bf16.mxu0 0
        %4754 = vmatmul.mubr.bf16.gmra.mrb[0].mxu0 %v4703
        %v4755 = vpop.f32.mrb[0].mxu0
        %v4756 = vadd.f32 0.0, %v4755
        %v4757 = vpop.f32.mrb[0].mxu0
        %v4758 = vadd.f32 0.0, %v4757
        %v4759 = vpop.f32.mrb[0].mxu0
        %v4760 = vadd.f32 0.0, %v4759
        %v4761 = vpop.f32.mrb[0].mxu0
        %v4762 = vadd.f32 0.0, %v4761
        %4763 = vdwg.mxu0
        %v4764 = vadd.f32 %v4661, %v4746
        %v4765 = vadd.f32 %v4662, %v4748
        %v4766 = vadd.f32 %v4663, %v4750
        %v4767 = vadd.f32 %v4664, %v4752
        %v4768 = vadd.f32 %v4665, %v4756
        %v4769 = vadd.f32 %v4666, %v4758
        %v4770 = vadd.f32 %v4667, %v4760
        %v4771 = vadd.f32 %v4668, %v4762
        %v4772 = vld [vmem:[#allocation2 + $0x2] sm:$0xf]
        %v4773 = vld [vmem:[%s2900] sm:$0xf]
        %v4774 = vld [vmem:[%s2900 + $0x4] sm:$0xf]
        %v4775 = vld [vmem:[%s2900 + $0x8] sm:$0xf]
        %v4776 = vld [vmem:[%s2900 + $0xc] sm:$0xf]
        %v4781 = vunpack.c.l.b16 %v4773
        %v4782 = vunpack.c.l.b16 %v4774
        %v4783 = vunpack.c.l.b16 %v4775
        %v4784 = vunpack.c.l.b16 %v4776
        %v4785 = vpack.c.b16 %v4782, %v4781
        %v4786 = vpack.c.b16 %v4784, %v4783
        %v4789 = vunpack.c.l.s4 1983009808
        %v4790 = vunpack.c.0.s8 %v4789
        %v4791 = vlaneseq
        %v4792 = vshrl.u32 %v4791, 7
        %v4793 = vsub.s32 %v4790, %v4792
        %v4794 = vrot.slane %v4772, %v4793
        %v4795 = vcombine.high %v4794, %v4794
        %4796 = vrot.lane.b32.xlu0 %v4794, 74
        %v4797 = vpop.permute.xlu0 %4796
        %4798 = vrot.lane.b32.xlu0 %v4795, 74
        %v4799 = vpop.permute.xlu0 %4798
        %vm4800 = vcmask 605184
        %v4801 = vsel %vm4800, %v4797, %v4799
        %v4803 = vsel %vm2134, %v4785, 0
        %v4806 = vsel %vm2134, %v4786, 0
        %v4809 = vsel %vm2141, %v4801, 0
        %v4812 = vsel %vm2141, %v4799, 0
        %4814 = vmatprep.subr.bf16.mxu0 %v4812
        %4815 = vmatpush1.bf16.msra.mxu0 %v4809
        %4816 = vmatprep.subr.bf16.mxu0 0
        %4817 = vmatpush1.bf16.msra.mxu0 0
        %4818 = vmatprep.subr.bf16.mxu0 0
        %4819 = vmatpush1.bf16.msra.mxu0 0
        %4820 = vmatprep.subr.bf16.mxu0 0
        %4821 = vmatpush1.bf16.msra.mxu0 0
        %4822 = vmatprep.subr.bf16.mxu0 0
        %4823 = vmatpush1.bf16.msra.mxu0 0
        %4824 = vmatprep.subr.bf16.mxu0 0
        %4825 = vmatpush1.bf16.msra.mxu0 0
        %4826 = vmatprep.subr.bf16.mxu0 0
        %4827 = vmatpush1.bf16.msra.mxu0 0
        %4828 = vmatprep.subr.bf16.mxu0 0
        %4829 = vmatpush1.bf16.msra.mxu0 0
        %4830 = vmatprep.subr.bf16.mxu0 0
        %4831 = vmatpush1.bf16.msra.mxu0 0
        %4832 = vmatprep.subr.bf16.mxu0 0
        %4833 = vmatpush1.bf16.msra.mxu0 0
        %4834 = vmatprep.subr.bf16.mxu0 0
        %4835 = vmatpush1.bf16.msra.mxu0 0
        %4836 = vmatprep.subr.bf16.mxu0 0
        %4837 = vmatpush1.bf16.msra.mxu0 0
        %4838 = vmatprep.subr.bf16.mxu0 0
        %4839 = vmatpush1.bf16.msra.mxu0 0
        %4840 = vmatprep.subr.bf16.mxu0 0
        %4841 = vmatpush1.bf16.msra.mxu0 0
        %4842 = vmatprep.subr.bf16.mxu0 0
        %4843 = vmatpush1.bf16.msra.mxu0 0
        %4844 = vmatprep.subr.bf16.mxu0 0
        %4845 = vmatpush1.bf16.msra.mxu0 0
        %4846 = vmatprep.mubr.bf16.mxu0 0
        %4847 = vmatmul.mubr.bf16.gmra.mrb[0].mxu0 %v4803
        %v4848 = vpop.f32.mrb[0].mxu0
        %v4849 = vadd.f32 0.0, %v4848
        %v4850 = vpop.f32.mrb[0].mxu0
        %v4851 = vadd.f32 0.0, %v4850
        %v4852 = vpop.f32.mrb[0].mxu0
        %v4853 = vadd.f32 0.0, %v4852
        %v4854 = vpop.f32.mrb[0].mxu0
        %v4855 = vadd.f32 0.0, %v4854
        %4856 = vmatprep.mubr.bf16.mxu0 0
        %4857 = vmatmul.mubr.bf16.gmra.mrb[0].mxu0 %v4806
        %v4858 = vpop.f32.mrb[0].mxu0
        %v4859 = vadd.f32 0.0, %v4858
        %v4860 = vpop.f32.mrb[0].mxu0
        %v4861 = vadd.f32 0.0, %v4860
        %v4862 = vpop.f32.mrb[0].mxu0
        %v4863 = vadd.f32 0.0, %v4862
        %v4864 = vpop.f32.mrb[0].mxu0
        %v4865 = vadd.f32 0.0, %v4864
        %4866 = vdwg.mxu0
        %v4867 = vadd.f32 %v4764, %v4849
        %v4868 = vadd.f32 %v4765, %v4851
        %v4869 = vadd.f32 %v4766, %v4853
        %v4870 = vadd.f32 %v4767, %v4855
        %v4871 = vadd.f32 %v4768, %v4859
        %v4872 = vadd.f32 %v4769, %v4861
        %v4873 = vadd.f32 %v4770, %v4863
        %v4874 = vadd.f32 %v4771, %v4865
        %v4875 = vadd.f32 %v4867, %v3006
        %v4876 = vadd.f32 %v4868, %v3006
        %v4877 = vadd.f32 %v4869, %v3011
        %v4878 = vadd.f32 %v4870, %v3011
        %v4879 = vadd.f32 %v4871, %v3016
        %v4880 = vadd.f32 %v4872, %v3016
        %v4881 = vadd.f32 %v4873, %v3021
        %v4882 = vadd.f32 %v4874, %v3021
        %v4883 = vpack.c.bf16 %v4877, %v4875
        %v4884 = vpack.c.bf16 %v4878, %v4876
        %v4885 = vpack.c.bf16 %v4881, %v4879
        %v4886 = vpack.c.bf16 %v4882, %v4880
        %v4887 = vld [vmem:[%s3] sm:$0xf]
        %v4888 = vld [vmem:[%s3 + $0x4] sm:$0xf]
        %v4889 = vld [vmem:[%s3037] sm:$0xf]
        %v4890 = vld [vmem:[%s3037 + $0x4] sm:$0xf]
        %v4893 = vunpack.c.l.b16 %v4889
        %v4894 = vunpack.c.l.b16 %v4890
        %v4895 = vpack.c.b16 %v4894, %v4893
        %v4898 = vsel %vm3046, %v4885, 0
        %4900 = vmatprep.subr.bf16.mxu0 0
        %4901 = vmatpush1.bf16.msra.mxu0 %v4895
        %4902 = vmatprep.subr.bf16.mxu0 0
        %4903 = vmatpush1.bf16.msra.mxu0 0
        %4904 = vmatprep.subr.bf16.mxu0 0
        %4905 = vmatpush1.bf16.msra.mxu0 0
        %4906 = vmatprep.subr.bf16.mxu0 0
        %4907 = vmatpush1.bf16.msra.mxu0 0
        %4908 = vmatprep.subr.bf16.mxu0 0
        %4909 = vmatpush1.bf16.msra.mxu0 0
        %4910 = vmatprep.subr.bf16.mxu0 0
        %4911 = vmatpush1.bf16.msra.mxu0 0
        %4912 = vmatprep.subr.bf16.mxu0 0
        %4913 = vmatpush1.bf16.msra.mxu0 0
        %4914 = vmatprep.subr.bf16.mxu0 0
        %4915 = vmatpush1.bf16.msra.mxu0 0
        %4916 = vmatprep.subr.bf16.mxu0 0
        %4917 = vmatpush1.bf16.msra.mxu0 0
        %4918 = vmatprep.subr.bf16.mxu0 0
        %4919 = vmatpush1.bf16.msra.mxu0 0
        %4920 = vmatprep.subr.bf16.mxu0 0
        %4921 = vmatpush1.bf16.msra.mxu0 0
        %4922 = vmatprep.subr.bf16.mxu0 0
        %4923 = vmatpush1.bf16.msra.mxu0 0
        %4924 = vmatprep.subr.bf16.mxu0 0
        %4925 = vmatpush1.bf16.msra.mxu0 0
        %4926 = vmatprep.subr.bf16.mxu0 0
        %4927 = vmatpush1.bf16.msra.mxu0 0
        %4928 = vmatprep.subr.bf16.mxu0 0
        %4929 = vmatpush1.bf16.msra.mxu0 0
        %4930 = vmatprep.subr.bf16.mxu0 0
        %4931 = vmatpush1.bf16.msra.mxu0 0
        %4932 = vmatprep.mubr.bf16.mxu0 0
        %4933 = vmatmul.mubr.bf16.gmra.mrb[0].mxu0 %v4898
        %v4934 = vpop.f32.mrb[0].mxu0
        %v4935 = vadd.f32 0.0, %v4934
        %v4936 = vpop.f32.mrb[0].mxu0
        %v4937 = vpop.f32.mrb[0].mxu0
        %v4938 = vadd.f32 0.0, %v4937
        %v4939 = vpop.f32.mrb[0].mxu0
        %4940 = vdwg.mxu0
        %v4943 = vunpack.c.l.b16 %v4887
        %v4944 = vunpack.c.l.b16 %v4888
        %v4945 = vpack.c.b16 %v4944, %v4943
        %v4948 = vsel %vm3046, %v4883, 0
        %4950 = vmatprep.subr.bf16.mxu0 0
        %4951 = vmatpush1.bf16.msra.mxu0 %v4945
        %4952 = vmatprep.subr.bf16.mxu0 0
        %4953 = vmatpush1.bf16.msra.mxu0 0
        %4954 = vmatprep.subr.bf16.mxu0 0
        %4955 = vmatpush1.bf16.msra.mxu0 0
        %4956 = vmatprep.subr.bf16.mxu0 0
        %4957 = vmatpush1.bf16.msra.mxu0 0
        %4958 = vmatprep.subr.bf16.mxu0 0
        %4959 = vmatpush1.bf16.msra.mxu0 0
        %4960 = vmatprep.subr.bf16.mxu0 0
        %4961 = vmatpush1.bf16.msra.mxu0 0
        %4962 = vmatprep.subr.bf16.mxu0 0
        %4963 = vmatpush1.bf16.msra.mxu0 0
        %4964 = vmatprep.subr.bf16.mxu0 0
        %4965 = vmatpush1.bf16.msra.mxu0 0
        %4966 = vmatprep.subr.bf16.mxu0 0
        %4967 = vmatpush1.bf16.msra.mxu0 0
        %4968 = vmatprep.subr.bf16.mxu0 0
        %4969 = vmatpush1.bf16.msra.mxu0 0
        %4970 = vmatprep.subr.bf16.mxu0 0
        %4971 = vmatpush1.bf16.msra.mxu0 0
        %4972 = vmatprep.subr.bf16.mxu0 0
        %4973 = vmatpush1.bf16.msra.mxu0 0
        %4974 = vmatprep.subr.bf16.mxu0 0
        %4975 = vmatpush1.bf16.msra.mxu0 0
        %4976 = vmatprep.subr.bf16.mxu0 0
        %4977 = vmatpush1.bf16.msra.mxu0 0
        %4978 = vmatprep.subr.bf16.mxu0 0
        %4979 = vmatpush1.bf16.msra.mxu0 0
        %4980 = vmatprep.subr.bf16.mxu0 0
        %4981 = vmatpush1.bf16.msra.mxu0 0
        %4982 = vmatprep.mubr.bf16.mxu0 0
        %4983 = vmatmul.mubr.bf16.gmra.mrb[0].mxu0 %v4948
        %v4984 = vpop.f32.mrb[0].mxu0
        %v4985 = vadd.f32 %v4935, %v4984
        %v4986 = vpop.f32.mrb[0].mxu0
        %v4987 = vpop.f32.mrb[0].mxu0
        %v4988 = vadd.f32 %v4938, %v4987
        %v4989 = vpop.f32.mrb[0].mxu0
        %4990 = vdwg.mxu0
        %4991 = vst.msk [vmem:[%s393 + $0x20] sm:$0xff] %vm3141, %v4985
        %4993 = vrot.lane.b32.xlu0 %v4988, 32
        %v4994 = vpop.permute.xlu0 %4993
        %4996 = vst.msk [vmem:[%s393 + $0x20] sm:$0xff] %vm3147, %v4994
        %v4997 = vld [vmem:[%s3] sm:$0xf]
        %v4998 = vld [vmem:[%s3 + $0x4] sm:$0xf]
        %v4999 = vld [vmem:[%s3037] sm:$0xf]
        %v5000 = vld [vmem:[%s3037 + $0x4] sm:$0xf]
        %5002 = vrot.lane.b32.xlu0 %v4885, 110
        %v5003 = vpop.permute.xlu0 %5002
        %v5006 = vunpack.c.l.b16 %v4999
        %v5007 = vunpack.c.l.b16 %v5000
        %v5008 = vpack.c.b16 %v5007, %v5006
        %v5011 = vsel %vm3046, %v5003, 0
        %5013 = vmatprep.subr.bf16.mxu0 0
        %5014 = vmatpush1.bf16.msra.mxu0 %v5008
        %5015 = vmatprep.subr.bf16.mxu0 0
        %5016 = vmatpush1.bf16.msra.mxu0 0
        %5017 = vmatprep.subr.bf16.mxu0 0
        %5018 = vmatpush1.bf16.msra.mxu0 0
        %5019 = vmatprep.subr.bf16.mxu0 0
        %5020 = vmatpush1.bf16.msra.mxu0 0
        %5021 = vmatprep.subr.bf16.mxu0 0
        %5022 = vmatpush1.bf16.msra.mxu0 0
        %5023 = vmatprep.subr.bf16.mxu0 0
        %5024 = vmatpush1.bf16.msra.mxu0 0
        %5025 = vmatprep.subr.bf16.mxu0 0
        %5026 = vmatpush1.bf16.msra.mxu0 0
        %5027 = vmatprep.subr.bf16.mxu0 0
        %5028 = vmatpush1.bf16.msra.mxu0 0
        %5029 = vmatprep.subr.bf16.mxu0 0
        %5030 = vmatpush1.bf16.msra.mxu0 0
        %5031 = vmatprep.subr.bf16.mxu0 0
        %5032 = vmatpush1.bf16.msra.mxu0 0
        %5033 = vmatprep.subr.bf16.mxu0 0
        %5034 = vmatpush1.bf16.msra.mxu0 0
        %5035 = vmatprep.subr.bf16.mxu0 0
        %5036 = vmatpush1.bf16.msra.mxu0 0
        %5037 = vmatprep.subr.bf16.mxu0 0
        %5038 = vmatpush1.bf16.msra.mxu0 0
        %5039 = vmatprep.subr.bf16.mxu0 0
        %5040 = vmatpush1.bf16.msra.mxu0 0
        %5041 = vmatprep.subr.bf16.mxu0 0
        %5042 = vmatpush1.bf16.msra.mxu0 0
        %5043 = vmatprep.subr.bf16.mxu0 0
        %5044 = vmatpush1.bf16.msra.mxu0 0
        %5045 = vmatprep.mubr.bf16.mxu0 0
        %5046 = vmatmul.mubr.bf16.gmra.mrb[0].mxu0 %v5011
        %v5047 = vpop.f32.mrb[0].mxu0
        %v5048 = vadd.f32 0.0, %v5047
        %v5049 = vpop.f32.mrb[0].mxu0
        %v5050 = vpop.f32.mrb[0].mxu0
        %v5051 = vadd.f32 0.0, %v5050
        %v5052 = vpop.f32.mrb[0].mxu0
        %5053 = vdwg.mxu0
        %5055 = vrot.lane.b32.xlu0 %v4883, 110
        %v5056 = vpop.permute.xlu0 %5055
        %v5059 = vunpack.c.l.b16 %v4997
        %v5060 = vunpack.c.l.b16 %v4998
        %v5061 = vpack.c.b16 %v5060, %v5059
        %v5064 = vsel %vm3046, %v5056, 0
        %5066 = vmatprep.subr.bf16.mxu0 0
        %5067 = vmatpush1.bf16.msra.mxu0 %v5061
        %5068 = vmatprep.subr.bf16.mxu0 0
        %5069 = vmatpush1.bf16.msra.mxu0 0
        %5070 = vmatprep.subr.bf16.mxu0 0
        %5071 = vmatpush1.bf16.msra.mxu0 0
        %5072 = vmatprep.subr.bf16.mxu0 0
        %5073 = vmatpush1.bf16.msra.mxu0 0
        %5074 = vmatprep.subr.bf16.mxu0 0
        %5075 = vmatpush1.bf16.msra.mxu0 0
        %5076 = vmatprep.subr.bf16.mxu0 0
        %5077 = vmatpush1.bf16.msra.mxu0 0
        %5078 = vmatprep.subr.bf16.mxu0 0
        %5079 = vmatpush1.bf16.msra.mxu0 0
        %5080 = vmatprep.subr.bf16.mxu0 0
        %5081 = vmatpush1.bf16.msra.mxu0 0
        %5082 = vmatprep.subr.bf16.mxu0 0
        %5083 = vmatpush1.bf16.msra.mxu0 0
        %5084 = vmatprep.subr.bf16.mxu0 0
        %5085 = vmatpush1.bf16.msra.mxu0 0
        %5086 = vmatprep.subr.bf16.mxu0 0
        %5087 = vmatpush1.bf16.msra.mxu0 0
        %5088 = vmatprep.subr.bf16.mxu0 0
        %5089 = vmatpush1.bf16.msra.mxu0 0
        %5090 = vmatprep.subr.bf16.mxu0 0
        %5091 = vmatpush1.bf16.msra.mxu0 0
        %5092 = vmatprep.subr.bf16.mxu0 0
        %5093 = vmatpush1.bf16.msra.mxu0 0
        %5094 = vmatprep.subr.bf16.mxu0 0
        %5095 = vmatpush1.bf16.msra.mxu0 0
        %5096 = vmatprep.subr.bf16.mxu0 0
        %5097 = vmatpush1.bf16.msra.mxu0 0
        %5098 = vmatprep.mubr.bf16.mxu0 0
        %5099 = vmatmul.mubr.bf16.gmra.mrb[0].mxu0 %v5064
        %v5100 = vpop.f32.mrb[0].mxu0
        %v5101 = vadd.f32 %v5048, %v5100
        %v5102 = vpop.f32.mrb[0].mxu0
        %v5103 = vpop.f32.mrb[0].mxu0
        %v5104 = vadd.f32 %v5051, %v5103
        %v5105 = vpop.f32.mrb[0].mxu0
        %5106 = vdwg.mxu0
        %5108 = vrot.lane.b32.xlu0 %v5101, 64
        %v5109 = vpop.permute.xlu0 %5108
        %5111 = vst.msk [vmem:[%s393 + $0x20] sm:$0xff] %vm3263, %v5109
        %5113 = vrot.lane.b32.xlu0 %v5104, 96
        %v5114 = vpop.permute.xlu0 %5113
        %5116 = vst.msk [vmem:[%s393 + $0x20] sm:$0xff] %vm3269, %v5114
        %v5117 = vld [vmem:[%s3] sm:$0xf]
        %v5118 = vld [vmem:[%s3 + $0x4] sm:$0xf]
        %v5119 = vld [vmem:[%s3037] sm:$0xf]
        %v5120 = vld [vmem:[%s3037 + $0x4] sm:$0xf]
        %5121 = vrot.lane.b32.xlu0 %v4885, 92
        %v5122 = vpop.permute.xlu0 %5121
        %v5125 = vunpack.c.l.b16 %v5119
        %v5126 = vunpack.c.l.b16 %v5120
        %v5127 = vpack.c.b16 %v5126, %v5125
        %v5130 = vsel %vm3046, %v5122, 0
        %5132 = vmatprep.subr.bf16.mxu0 0
        %5133 = vmatpush1.bf16.msra.mxu0 %v5127
        %5134 = vmatprep.subr.bf16.mxu0 0
        %5135 = vmatpush1.bf16.msra.mxu0 0
        %5136 = vmatprep.subr.bf16.mxu0 0
        %5137 = vmatpush1.bf16.msra.mxu0 0
        %5138 = vmatprep.subr.bf16.mxu0 0
        %5139 = vmatpush1.bf16.msra.mxu0 0
        %5140 = vmatprep.subr.bf16.mxu0 0
        %5141 = vmatpush1.bf16.msra.mxu0 0
        %5142 = vmatprep.subr.bf16.mxu0 0
        %5143 = vmatpush1.bf16.msra.mxu0 0
        %5144 = vmatprep.subr.bf16.mxu0 0
        %5145 = vmatpush1.bf16.msra.mxu0 0
        %5146 = vmatprep.subr.bf16.mxu0 0
        %5147 = vmatpush1.bf16.msra.mxu0 0
        %5148 = vmatprep.subr.bf16.mxu0 0
        %5149 = vmatpush1.bf16.msra.mxu0 0
        %5150 = vmatprep.subr.bf16.mxu0 0
        %5151 = vmatpush1.bf16.msra.mxu0 0
        %5152 = vmatprep.subr.bf16.mxu0 0
        %5153 = vmatpush1.bf16.msra.mxu0 0
        %5154 = vmatprep.subr.bf16.mxu0 0
        %5155 = vmatpush1.bf16.msra.mxu0 0
        %5156 = vmatprep.subr.bf16.mxu0 0
        %5157 = vmatpush1.bf16.msra.mxu0 0
        %5158 = vmatprep.subr.bf16.mxu0 0
        %5159 = vmatpush1.bf16.msra.mxu0 0
        %5160 = vmatprep.subr.bf16.mxu0 0
        %5161 = vmatpush1.bf16.msra.mxu0 0
        %5162 = vmatprep.subr.bf16.mxu0 0
        %5163 = vmatpush1.bf16.msra.mxu0 0
        %5164 = vmatprep.mubr.bf16.mxu0 0
        %5165 = vmatmul.mubr.bf16.gmra.mrb[0].mxu0 %v5130
        %v5166 = vpop.f32.mrb[0].mxu0
        %v5167 = vadd.f32 0.0, %v5166
        %v5168 = vpop.f32.mrb[0].mxu0
        %v5169 = vpop.f32.mrb[0].mxu0
        %v5170 = vadd.f32 0.0, %v5169
        %v5171 = vpop.f32.mrb[0].mxu0
        %5172 = vdwg.mxu0
        %5173 = vrot.lane.b32.xlu0 %v4883, 92
        %v5174 = vpop.permute.xlu0 %5173
        %v5177 = vunpack.c.l.b16 %v5117
        %v5178 = vunpack.c.l.b16 %v5118
        %v5179 = vpack.c.b16 %v5178, %v5177
        %v5182 = vsel %vm3046, %v5174, 0
        %5184 = vmatprep.subr.bf16.mxu0 0
        %5185 = vmatpush1.bf16.msra.mxu0 %v5179
        %5186 = vmatprep.subr.bf16.mxu0 0
        %5187 = vmatpush1.bf16.msra.mxu0 0
        %5188 = vmatprep.subr.bf16.mxu0 0
        %5189 = vmatpush1.bf16.msra.mxu0 0
        %5190 = vmatprep.subr.bf16.mxu0 0
        %5191 = vmatpush1.bf16.msra.mxu0 0
        %5192 = vmatprep.subr.bf16.mxu0 0
        %5193 = vmatpush1.bf16.msra.mxu0 0
        %5194 = vmatprep.subr.bf16.mxu0 0
        %5195 = vmatpush1.bf16.msra.mxu0 0
        %5196 = vmatprep.subr.bf16.mxu0 0
        %5197 = vmatpush1.bf16.msra.mxu0 0
        %5198 = vmatprep.subr.bf16.mxu0 0
        %5199 = vmatpush1.bf16.msra.mxu0 0
        %5200 = vmatprep.subr.bf16.mxu0 0
        %5201 = vmatpush1.bf16.msra.mxu0 0
        %5202 = vmatprep.subr.bf16.mxu0 0
        %5203 = vmatpush1.bf16.msra.mxu0 0
        %5204 = vmatprep.subr.bf16.mxu0 0
        %5205 = vmatpush1.bf16.msra.mxu0 0
        %5206 = vmatprep.subr.bf16.mxu0 0
        %5207 = vmatpush1.bf16.msra.mxu0 0
        %5208 = vmatprep.subr.bf16.mxu0 0
        %5209 = vmatpush1.bf16.msra.mxu0 0
        %5210 = vmatprep.subr.bf16.mxu0 0
        %5211 = vmatpush1.bf16.msra.mxu0 0
        %5212 = vmatprep.subr.bf16.mxu0 0
        %5213 = vmatpush1.bf16.msra.mxu0 0
        %5214 = vmatprep.subr.bf16.mxu0 0
        %5215 = vmatpush1.bf16.msra.mxu0 0
        %5216 = vmatprep.mubr.bf16.mxu0 0
        %5217 = vmatmul.mubr.bf16.gmra.mrb[0].mxu0 %v5182
        %v5218 = vpop.f32.mrb[0].mxu0
        %v5219 = vadd.f32 %v5167, %v5218
        %v5220 = vpop.f32.mrb[0].mxu0
        %v5221 = vpop.f32.mrb[0].mxu0
        %v5222 = vadd.f32 %v5170, %v5221
        %v5223 = vpop.f32.mrb[0].mxu0
        %5224 = vdwg.mxu0
        %5225 = vst.msk [vmem:[%s393 + $0x28] sm:$0xff] %vm3141, %v5219
        %5227 = vrot.lane.b32.xlu0 %v5222, 32
        %v5228 = vpop.permute.xlu0 %5227
        %5230 = vst.msk [vmem:[%s393 + $0x28] sm:$0xff] %vm3147, %v5228
        %v5231 = vld [vmem:[%s3] sm:$0xf]
        %v5232 = vld [vmem:[%s3 + $0x4] sm:$0xf]
        %v5233 = vld [vmem:[%s3037] sm:$0xf]
        %v5234 = vld [vmem:[%s3037 + $0x4] sm:$0xf]
        %5235 = vrot.lane.b32.xlu0 %v4885, 74
        %v5236 = vpop.permute.xlu0 %5235
        %v5239 = vunpack.c.l.b16 %v5233
        %v5240 = vunpack.c.l.b16 %v5234
        %v5241 = vpack.c.b16 %v5240, %v5239
        %v5244 = vsel %vm3046, %v5236, 0
        %5246 = vmatprep.subr.bf16.mxu0 0
        %5247 = vmatpush1.bf16.msra.mxu0 %v5241
        %5248 = vmatprep.subr.bf16.mxu0 0
        %5249 = vmatpush1.bf16.msra.mxu0 0
        %5250 = vmatprep.subr.bf16.mxu0 0
        %5251 = vmatpush1.bf16.msra.mxu0 0
        %5252 = vmatprep.subr.bf16.mxu0 0
        %5253 = vmatpush1.bf16.msra.mxu0 0
        %5254 = vmatprep.subr.bf16.mxu0 0
        %5255 = vmatpush1.bf16.msra.mxu0 0
        %5256 = vmatprep.subr.bf16.mxu0 0
        %5257 = vmatpush1.bf16.msra.mxu0 0
        %5258 = vmatprep.subr.bf16.mxu0 0
        %5259 = vmatpush1.bf16.msra.mxu0 0
        %5260 = vmatprep.subr.bf16.mxu0 0
        %5261 = vmatpush1.bf16.msra.mxu0 0
        %5262 = vmatprep.subr.bf16.mxu0 0
        %5263 = vmatpush1.bf16.msra.mxu0 0
        %5264 = vmatprep.subr.bf16.mxu0 0
        %5265 = vmatpush1.bf16.msra.mxu0 0
        %5266 = vmatprep.subr.bf16.mxu0 0
        %5267 = vmatpush1.bf16.msra.mxu0 0
        %5268 = vmatprep.subr.bf16.mxu0 0
        %5269 = vmatpush1.bf16.msra.mxu0 0
        %5270 = vmatprep.subr.bf16.mxu0 0
        %5271 = vmatpush1.bf16.msra.mxu0 0
        %5272 = vmatprep.subr.bf16.mxu0 0
        %5273 = vmatpush1.bf16.msra.mxu0 0
        %5274 = vmatprep.subr.bf16.mxu0 0
        %5275 = vmatpush1.bf16.msra.mxu0 0
        %5276 = vmatprep.subr.bf16.mxu0 0
        %5277 = vmatpush1.bf16.msra.mxu0 0
        %5278 = vmatprep.mubr.bf16.mxu0 0
        %5279 = vmatmul.mubr.bf16.gmra.mrb[0].mxu0 %v5244
        %v5280 = vpop.f32.mrb[0].mxu0
        %v5281 = vadd.f32 0.0, %v5280
        %v5282 = vpop.f32.mrb[0].mxu0
        %v5283 = vpop.f32.mrb[0].mxu0
        %v5284 = vadd.f32 0.0, %v5283
        %v5285 = vpop.f32.mrb[0].mxu0
        %5286 = vdwg.mxu0
        %5287 = vrot.lane.b32.xlu0 %v4883, 74
        %v5288 = vpop.permute.xlu0 %5287
        %v5291 = vunpack.c.l.b16 %v5231
        %v5292 = vunpack.c.l.b16 %v5232
        %v5293 = vpack.c.b16 %v5292, %v5291
        %v5296 = vsel %vm3046, %v5288, 0
        %5298 = vmatprep.subr.bf16.mxu0 0
        %5299 = vmatpush1.bf16.msra.mxu0 %v5293
        %5300 = vmatprep.subr.bf16.mxu0 0
        %5301 = vmatpush1.bf16.msra.mxu0 0
        %5302 = vmatprep.subr.bf16.mxu0 0
        %5303 = vmatpush1.bf16.msra.mxu0 0
        %5304 = vmatprep.subr.bf16.mxu0 0
        %5305 = vmatpush1.bf16.msra.mxu0 0
        %5306 = vmatprep.subr.bf16.mxu0 0
        %5307 = vmatpush1.bf16.msra.mxu0 0
        %5308 = vmatprep.subr.bf16.mxu0 0
        %5309 = vmatpush1.bf16.msra.mxu0 0
        %5310 = vmatprep.subr.bf16.mxu0 0
        %5311 = vmatpush1.bf16.msra.mxu0 0
        %5312 = vmatprep.subr.bf16.mxu0 0
        %5313 = vmatpush1.bf16.msra.mxu0 0
        %5314 = vmatprep.subr.bf16.mxu0 0
        %5315 = vmatpush1.bf16.msra.mxu0 0
        %5316 = vmatprep.subr.bf16.mxu0 0
        %5317 = vmatpush1.bf16.msra.mxu0 0
        %5318 = vmatprep.subr.bf16.mxu0 0
        %5319 = vmatpush1.bf16.msra.mxu0 0
        %5320 = vmatprep.subr.bf16.mxu0 0
        %5321 = vmatpush1.bf16.msra.mxu0 0
        %5322 = vmatprep.subr.bf16.mxu0 0
        %5323 = vmatpush1.bf16.msra.mxu0 0
        %5324 = vmatprep.subr.bf16.mxu0 0
        %5325 = vmatpush1.bf16.msra.mxu0 0
        %5326 = vmatprep.subr.bf16.mxu0 0
        %5327 = vmatpush1.bf16.msra.mxu0 0
        %5328 = vmatprep.subr.bf16.mxu0 0
        %5329 = vmatpush1.bf16.msra.mxu0 0
        %5330 = vmatprep.mubr.bf16.mxu0 0
        %5331 = vmatmul.mubr.bf16.gmra.mrb[0].mxu0 %v5296
        %v5332 = vpop.f32.mrb[0].mxu0
        %v5333 = vadd.f32 %v5281, %v5332
        %v5334 = vpop.f32.mrb[0].mxu0
        %v5335 = vpop.f32.mrb[0].mxu0
        %v5336 = vadd.f32 %v5284, %v5335
        %v5337 = vpop.f32.mrb[0].mxu0
        %5338 = vdwg.mxu0
        %5340 = vrot.lane.b32.xlu0 %v5333, 64
        %v5341 = vpop.permute.xlu0 %5340
        %5343 = vst.msk [vmem:[%s393 + $0x28] sm:$0xff] %vm3263, %v5341
        %5345 = vrot.lane.b32.xlu0 %v5336, 96
        %v5346 = vpop.permute.xlu0 %5345
        %5348 = vst.msk [vmem:[%s393 + $0x28] sm:$0xff] %vm3269, %v5346
        %v5349 = vld [vmem:[%s3] sm:$0xf]
        %v5350 = vld [vmem:[%s3 + $0x4] sm:$0xf]
        %v5351 = vld [vmem:[%s3037] sm:$0xf]
        %v5352 = vld [vmem:[%s3037 + $0x4] sm:$0xf]
        %5353 = vrot.lane.b32.xlu0 %v4885, 56
        %v5354 = vpop.permute.xlu0 %5353
        %v5357 = vunpack.c.l.b16 %v5351
        %v5358 = vunpack.c.l.b16 %v5352
        %v5359 = vpack.c.b16 %v5358, %v5357
        %v5362 = vsel %vm3046, %v5354, 0
        %5364 = vmatprep.subr.bf16.mxu0 0
        %5365 = vmatpush1.bf16.msra.mxu0 %v5359
        %5366 = vmatprep.subr.bf16.mxu0 0
        %5367 = vmatpush1.bf16.msra.mxu0 0
        %5368 = vmatprep.subr.bf16.mxu0 0
        %5369 = vmatpush1.bf16.msra.mxu0 0
        %5370 = vmatprep.subr.bf16.mxu0 0
        %5371 = vmatpush1.bf16.msra.mxu0 0
        %5372 = vmatprep.subr.bf16.mxu0 0
        %5373 = vmatpush1.bf16.msra.mxu0 0
        %5374 = vmatprep.subr.bf16.mxu0 0
        %5375 = vmatpush1.bf16.msra.mxu0 0
        %5376 = vmatprep.subr.bf16.mxu0 0
        %5377 = vmatpush1.bf16.msra.mxu0 0
        %5378 = vmatprep.subr.bf16.mxu0 0
        %5379 = vmatpush1.bf16.msra.mxu0 0
        %5380 = vmatprep.subr.bf16.mxu0 0
        %5381 = vmatpush1.bf16.msra.mxu0 0
        %5382 = vmatprep.subr.bf16.mxu0 0
        %5383 = vmatpush1.bf16.msra.mxu0 0
        %5384 = vmatprep.subr.bf16.mxu0 0
        %5385 = vmatpush1.bf16.msra.mxu0 0
        %5386 = vmatprep.subr.bf16.mxu0 0
        %5387 = vmatpush1.bf16.msra.mxu0 0
        %5388 = vmatprep.subr.bf16.mxu0 0
        %5389 = vmatpush1.bf16.msra.mxu0 0
        %5390 = vmatprep.subr.bf16.mxu0 0
        %5391 = vmatpush1.bf16.msra.mxu0 0
        %5392 = vmatprep.subr.bf16.mxu0 0
        %5393 = vmatpush1.bf16.msra.mxu0 0
        %5394 = vmatprep.subr.bf16.mxu0 0
        %5395 = vmatpush1.bf16.msra.mxu0 0
        %5396 = vmatprep.mubr.bf16.mxu0 0
        %5397 = vmatmul.mubr.bf16.gmra.mrb[0].mxu0 %v5362
        %v5398 = vpop.f32.mrb[0].mxu0
        %v5399 = vadd.f32 0.0, %v5398
        %v5400 = vpop.f32.mrb[0].mxu0
        %v5401 = vpop.f32.mrb[0].mxu0
        %v5402 = vadd.f32 0.0, %v5401
        %v5403 = vpop.f32.mrb[0].mxu0
        %5404 = vdwg.mxu0
        %5405 = vrot.lane.b32.xlu0 %v4883, 56
        %v5406 = vpop.permute.xlu0 %5405
        %v5409 = vunpack.c.l.b16 %v5349
        %v5410 = vunpack.c.l.b16 %v5350
        %v5411 = vpack.c.b16 %v5410, %v5409
        %v5414 = vsel %vm3046, %v5406, 0
        %5416 = vmatprep.subr.bf16.mxu0 0
        %5417 = vmatpush1.bf16.msra.mxu0 %v5411
        %5418 = vmatprep.subr.bf16.mxu0 0
        %5419 = vmatpush1.bf16.msra.mxu0 0
        %5420 = vmatprep.subr.bf16.mxu0 0
        %5421 = vmatpush1.bf16.msra.mxu0 0
        %5422 = vmatprep.subr.bf16.mxu0 0
        %5423 = vmatpush1.bf16.msra.mxu0 0
        %5424 = vmatprep.subr.bf16.mxu0 0
        %5425 = vmatpush1.bf16.msra.mxu0 0
        %5426 = vmatprep.subr.bf16.mxu0 0
        %5427 = vmatpush1.bf16.msra.mxu0 0
        %5428 = vmatprep.subr.bf16.mxu0 0
        %5429 = vmatpush1.bf16.msra.mxu0 0
        %5430 = vmatprep.subr.bf16.mxu0 0
        %5431 = vmatpush1.bf16.msra.mxu0 0
        %5432 = vmatprep.subr.bf16.mxu0 0
        %5433 = vmatpush1.bf16.msra.mxu0 0
        %5434 = vmatprep.subr.bf16.mxu0 0
        %5435 = vmatpush1.bf16.msra.mxu0 0
        %5436 = vmatprep.subr.bf16.mxu0 0
        %5437 = vmatpush1.bf16.msra.mxu0 0
        %5438 = vmatprep.subr.bf16.mxu0 0
        %5439 = vmatpush1.bf16.msra.mxu0 0
        %5440 = vmatprep.subr.bf16.mxu0 0
        %5441 = vmatpush1.bf16.msra.mxu0 0
        %5442 = vmatprep.subr.bf16.mxu0 0
        %5443 = vmatpush1.bf16.msra.mxu0 0
        %5444 = vmatprep.subr.bf16.mxu0 0
        %5445 = vmatpush1.bf16.msra.mxu0 0
        %5446 = vmatprep.subr.bf16.mxu0 0
        %5447 = vmatpush1.bf16.msra.mxu0 0
        %5448 = vmatprep.mubr.bf16.mxu0 0
        %5449 = vmatmul.mubr.bf16.gmra.mrb[0].mxu0 %v5414
        %v5450 = vpop.f32.mrb[0].mxu0
        %v5451 = vadd.f32 %v5399, %v5450
        %v5452 = vpop.f32.mrb[0].mxu0
        %v5453 = vpop.f32.mrb[0].mxu0
        %v5454 = vadd.f32 %v5402, %v5453
        %v5455 = vpop.f32.mrb[0].mxu0
        %5456 = vdwg.mxu0
        %5457 = vst.msk [vmem:[%s393 + $0x30] sm:$0xff] %vm3141, %v5451
        %5459 = vrot.lane.b32.xlu0 %v5454, 32
        %v5460 = vpop.permute.xlu0 %5459
        %5462 = vst.msk [vmem:[%s393 + $0x30] sm:$0xff] %vm3147, %v5460
        %v5463 = vld [vmem:[%s3] sm:$0xf]
        %v5464 = vld [vmem:[%s3 + $0x4] sm:$0xf]
        %v5465 = vld [vmem:[%s3037] sm:$0xf]
        %v5466 = vld [vmem:[%s3037 + $0x4] sm:$0xf]
        %5467 = vrot.lane.b32.xlu0 %v4885, 38
        %v5468 = vpop.permute.xlu0 %5467
        %v5471 = vunpack.c.l.b16 %v5465
        %v5472 = vunpack.c.l.b16 %v5466
        %v5473 = vpack.c.b16 %v5472, %v5471
        %v5476 = vsel %vm3046, %v5468, 0
        %5478 = vmatprep.subr.bf16.mxu0 0
        %5479 = vmatpush1.bf16.msra.mxu0 %v5473
        %5480 = vmatprep.subr.bf16.mxu0 0
        %5481 = vmatpush1.bf16.msra.mxu0 0
        %5482 = vmatprep.subr.bf16.mxu0 0
        %5483 = vmatpush1.bf16.msra.mxu0 0
        %5484 = vmatprep.subr.bf16.mxu0 0
        %5485 = vmatpush1.bf16.msra.mxu0 0
        %5486 = vmatprep.subr.bf16.mxu0 0
        %5487 = vmatpush1.bf16.msra.mxu0 0
        %5488 = vmatprep.subr.bf16.mxu0 0
        %5489 = vmatpush1.bf16.msra.mxu0 0
        %5490 = vmatprep.subr.bf16.mxu0 0
        %5491 = vmatpush1.bf16.msra.mxu0 0
        %5492 = vmatprep.subr.bf16.mxu0 0
        %5493 = vmatpush1.bf16.msra.mxu0 0
        %5494 = vmatprep.subr.bf16.mxu0 0
        %5495 = vmatpush1.bf16.msra.mxu0 0
        %5496 = vmatprep.subr.bf16.mxu0 0
        %5497 = vmatpush1.bf16.msra.mxu0 0
        %5498 = vmatprep.subr.bf16.mxu0 0
        %5499 = vmatpush1.bf16.msra.mxu0 0
        %5500 = vmatprep.subr.bf16.mxu0 0
        %5501 = vmatpush1.bf16.msra.mxu0 0
        %5502 = vmatprep.subr.bf16.mxu0 0
        %5503 = vmatpush1.bf16.msra.mxu0 0
        %5504 = vmatprep.subr.bf16.mxu0 0
        %5505 = vmatpush1.bf16.msra.mxu0 0
        %5506 = vmatprep.subr.bf16.mxu0 0
        %5507 = vmatpush1.bf16.msra.mxu0 0
        %5508 = vmatprep.subr.bf16.mxu0 0
        %5509 = vmatpush1.bf16.msra.mxu0 0
        %5510 = vmatprep.mubr.bf16.mxu0 0
        %5511 = vmatmul.mubr.bf16.gmra.mrb[0].mxu0 %v5476
        %v5512 = vpop.f32.mrb[0].mxu0
        %v5513 = vadd.f32 0.0, %v5512
        %v5514 = vpop.f32.mrb[0].mxu0
        %v5515 = vpop.f32.mrb[0].mxu0
        %v5516 = vadd.f32 0.0, %v5515
        %v5517 = vpop.f32.mrb[0].mxu0
        %5518 = vdwg.mxu0
        %5519 = vrot.lane.b32.xlu0 %v4883, 38
        %v5520 = vpop.permute.xlu0 %5519
        %v5523 = vunpack.c.l.b16 %v5463
        %v5524 = vunpack.c.l.b16 %v5464
        %v5525 = vpack.c.b16 %v5524, %v5523
        %v5528 = vsel %vm3046, %v5520, 0
        %5530 = vmatprep.subr.bf16.mxu0 0
        %5531 = vmatpush1.bf16.msra.mxu0 %v5525
        %5532 = vmatprep.subr.bf16.mxu0 0
        %5533 = vmatpush1.bf16.msra.mxu0 0
        %5534 = vmatprep.subr.bf16.mxu0 0
        %5535 = vmatpush1.bf16.msra.mxu0 0
        %5536 = vmatprep.subr.bf16.mxu0 0
        %5537 = vmatpush1.bf16.msra.mxu0 0
        %5538 = vmatprep.subr.bf16.mxu0 0
        %5539 = vmatpush1.bf16.msra.mxu0 0
        %5540 = vmatprep.subr.bf16.mxu0 0
        %5541 = vmatpush1.bf16.msra.mxu0 0
        %5542 = vmatprep.subr.bf16.mxu0 0
        %5543 = vmatpush1.bf16.msra.mxu0 0
        %5544 = vmatprep.subr.bf16.mxu0 0
        %5545 = vmatpush1.bf16.msra.mxu0 0
        %5546 = vmatprep.subr.bf16.mxu0 0
        %5547 = vmatpush1.bf16.msra.mxu0 0
        %5548 = vmatprep.subr.bf16.mxu0 0
        %5549 = vmatpush1.bf16.msra.mxu0 0
        %5550 = vmatprep.subr.bf16.mxu0 0
        %5551 = vmatpush1.bf16.msra.mxu0 0
        %5552 = vmatprep.subr.bf16.mxu0 0
        %5553 = vmatpush1.bf16.msra.mxu0 0
        %5554 = vmatprep.subr.bf16.mxu0 0
        %5555 = vmatpush1.bf16.msra.mxu0 0
        %5556 = vmatprep.subr.bf16.mxu0 0
        %5557 = vmatpush1.bf16.msra.mxu0 0
        %5558 = vmatprep.subr.bf16.mxu0 0
        %5559 = vmatpush1.bf16.msra.mxu0 0
        %5560 = vmatprep.subr.bf16.mxu0 0
        %5561 = vmatpush1.bf16.msra.mxu0 0
        %5562 = vmatprep.mubr.bf16.mxu0 0
        %5563 = vmatmul.mubr.bf16.gmra.mrb[0].mxu0 %v5528
        %v5564 = vpop.f32.mrb[0].mxu0
        %v5565 = vadd.f32 %v5513, %v5564
        %v5566 = vpop.f32.mrb[0].mxu0
        %v5567 = vpop.f32.mrb[0].mxu0
        %v5568 = vadd.f32 %v5516, %v5567
        %v5569 = vpop.f32.mrb[0].mxu0
        %5570 = vdwg.mxu0
        %5572 = vrot.lane.b32.xlu0 %v5565, 64
        %v5573 = vpop.permute.xlu0 %5572
        %5575 = vst.msk [vmem:[%s393 + $0x30] sm:$0xff] %vm3263, %v5573
        %5577 = vrot.lane.b32.xlu0 %v5568, 96
        %v5578 = vpop.permute.xlu0 %5577
        %5580 = vst.msk [vmem:[%s393 + $0x30] sm:$0xff] %vm3269, %v5578
        %v5581 = vld [vmem:[%s3] sm:$0xf]
        %v5582 = vld [vmem:[%s3 + $0x4] sm:$0xf]
        %v5583 = vld [vmem:[%s3037] sm:$0xf]
        %v5584 = vld [vmem:[%s3037 + $0x4] sm:$0xf]
        %5585 = vrot.lane.b32.xlu0 %v4885, 20
        %v5586 = vpop.permute.xlu0 %5585
        %v5589 = vunpack.c.l.b16 %v5583
        %v5590 = vunpack.c.l.b16 %v5584
        %v5591 = vpack.c.b16 %v5590, %v5589
        %v5594 = vsel %vm3046, %v5586, 0
        %5596 = vmatprep.subr.bf16.mxu0 0
        %5597 = vmatpush1.bf16.msra.mxu0 %v5591
        %5598 = vmatprep.subr.bf16.mxu0 0
        %5599 = vmatpush1.bf16.msra.mxu0 0
        %5600 = vmatprep.subr.bf16.mxu0 0
        %5601 = vmatpush1.bf16.msra.mxu0 0
        %5602 = vmatprep.subr.bf16.mxu0 0
        %5603 = vmatpush1.bf16.msra.mxu0 0
        %5604 = vmatprep.subr.bf16.mxu0 0
        %5605 = vmatpush1.bf16.msra.mxu0 0
        %5606 = vmatprep.subr.bf16.mxu0 0
        %5607 = vmatpush1.bf16.msra.mxu0 0
        %5608 = vmatprep.subr.bf16.mxu0 0
        %5609 = vmatpush1.bf16.msra.mxu0 0
        %5610 = vmatprep.subr.bf16.mxu0 0
        %5611 = vmatpush1.bf16.msra.mxu0 0
        %5612 = vmatprep.subr.bf16.mxu0 0
        %5613 = vmatpush1.bf16.msra.mxu0 0
        %5614 = vmatprep.subr.bf16.mxu0 0
        %5615 = vmatpush1.bf16.msra.mxu0 0
        %5616 = vmatprep.subr.bf16.mxu0 0
        %5617 = vmatpush1.bf16.msra.mxu0 0
        %5618 = vmatprep.subr.bf16.mxu0 0
        %5619 = vmatpush1.bf16.msra.mxu0 0
        %5620 = vmatprep.subr.bf16.mxu0 0
        %5621 = vmatpush1.bf16.msra.mxu0 0
        %5622 = vmatprep.subr.bf16.mxu0 0
        %5623 = vmatpush1.bf16.msra.mxu0 0
        %5624 = vmatprep.subr.bf16.mxu0 0
        %5625 = vmatpush1.bf16.msra.mxu0 0
        %5626 = vmatprep.subr.bf16.mxu0 0
        %5627 = vmatpush1.bf16.msra.mxu0 0
        %5628 = vmatprep.mubr.bf16.mxu0 0
        %5629 = vmatmul.mubr.bf16.gmra.mrb[0].mxu0 %v5594
        %v5630 = vpop.f32.mrb[0].mxu0
        %v5631 = vadd.f32 0.0, %v5630
        %v5632 = vpop.f32.mrb[0].mxu0
        %v5633 = vpop.f32.mrb[0].mxu0
        %v5634 = vadd.f32 0.0, %v5633
        %v5635 = vpop.f32.mrb[0].mxu0
        %5636 = vdwg.mxu0
        %5637 = vrot.lane.b32.xlu0 %v4883, 20
        %v5638 = vpop.permute.xlu0 %5637
        %v5641 = vunpack.c.l.b16 %v5581
        %v5642 = vunpack.c.l.b16 %v5582
        %v5643 = vpack.c.b16 %v5642, %v5641
        %v5646 = vsel %vm3046, %v5638, 0
        %5648 = vmatprep.subr.bf16.mxu0 0
        %5649 = vmatpush1.bf16.msra.mxu0 %v5643
        %5650 = vmatprep.subr.bf16.mxu0 0
        %5651 = vmatpush1.bf16.msra.mxu0 0
        %5652 = vmatprep.subr.bf16.mxu0 0
        %5653 = vmatpush1.bf16.msra.mxu0 0
        %5654 = vmatprep.subr.bf16.mxu0 0
        %5655 = vmatpush1.bf16.msra.mxu0 0
        %5656 = vmatprep.subr.bf16.mxu0 0
        %5657 = vmatpush1.bf16.msra.mxu0 0
        %5658 = vmatprep.subr.bf16.mxu0 0
        %5659 = vmatpush1.bf16.msra.mxu0 0
        %5660 = vmatprep.subr.bf16.mxu0 0
        %5661 = vmatpush1.bf16.msra.mxu0 0
        %5662 = vmatprep.subr.bf16.mxu0 0
        %5663 = vmatpush1.bf16.msra.mxu0 0
        %5664 = vmatprep.subr.bf16.mxu0 0
        %5665 = vmatpush1.bf16.msra.mxu0 0
        %5666 = vmatprep.subr.bf16.mxu0 0
        %5667 = vmatpush1.bf16.msra.mxu0 0
        %5668 = vmatprep.subr.bf16.mxu0 0
        %5669 = vmatpush1.bf16.msra.mxu0 0
        %5670 = vmatprep.subr.bf16.mxu0 0
        %5671 = vmatpush1.bf16.msra.mxu0 0
        %5672 = vmatprep.subr.bf16.mxu0 0
        %5673 = vmatpush1.bf16.msra.mxu0 0
        %5674 = vmatprep.subr.bf16.mxu0 0
        %5675 = vmatpush1.bf16.msra.mxu0 0
        %5676 = vmatprep.subr.bf16.mxu0 0
        %5677 = vmatpush1.bf16.msra.mxu0 0
        %5678 = vmatprep.subr.bf16.mxu0 0
        %5679 = vmatpush1.bf16.msra.mxu0 0
        %5680 = vmatprep.mubr.bf16.mxu0 0
        %5681 = vmatmul.mubr.bf16.gmra.mrb[0].mxu0 %v5646
        %v5682 = vpop.f32.mrb[0].mxu0
        %v5683 = vadd.f32 %v5631, %v5682
        %v5684 = vpop.f32.mrb[0].mxu0
        %v5685 = vpop.f32.mrb[0].mxu0
        %v5686 = vadd.f32 %v5634, %v5685
        %v5687 = vpop.f32.mrb[0].mxu0
        %5688 = vdwg.mxu0
        %5689 = vst.msk [vmem:[%s393 + $0x38] sm:$0xff] %vm3141, %v5683
        %5691 = vrot.lane.b32.xlu0 %v5686, 32
        %v5692 = vpop.permute.xlu0 %5691
        %5694 = vst.msk [vmem:[%s393 + $0x38] sm:$0xff] %vm3147, %v5692
        %v5695 = vld [vmem:[%s3] sm:$0xf]
        %v5696 = vld [vmem:[%s3 + $0x4] sm:$0xf]
        %v5697 = vld [vmem:[%s3037] sm:$0xf]
        %v5698 = vld [vmem:[%s3037 + $0x4] sm:$0xf]
        %5700 = vrot.lane.b32.xlu0 %v4885, 2
        %v5701 = vpop.permute.xlu0 %5700
        %5702 = vrot.lane.b32.xlu0 %v4886, 2
        %v5703 = vpop.permute.xlu0 %5702
        %v5704 = vsel %vm3858, %v5701, %v5703
        %v5707 = vunpack.c.l.b16 %v5697
        %v5708 = vunpack.c.l.b16 %v5698
        %v5709 = vpack.c.b16 %v5708, %v5707
        %v5712 = vsel %vm3046, %v5704, 0
        %5714 = vmatprep.subr.bf16.mxu0 0
        %5715 = vmatpush1.bf16.msra.mxu0 %v5709
        %5716 = vmatprep.subr.bf16.mxu0 0
        %5717 = vmatpush1.bf16.msra.mxu0 0
        %5718 = vmatprep.subr.bf16.mxu0 0
        %5719 = vmatpush1.bf16.msra.mxu0 0
        %5720 = vmatprep.subr.bf16.mxu0 0
        %5721 = vmatpush1.bf16.msra.mxu0 0
        %5722 = vmatprep.subr.bf16.mxu0 0
        %5723 = vmatpush1.bf16.msra.mxu0 0
        %5724 = vmatprep.subr.bf16.mxu0 0
        %5725 = vmatpush1.bf16.msra.mxu0 0
        %5726 = vmatprep.subr.bf16.mxu0 0
        %5727 = vmatpush1.bf16.msra.mxu0 0
        %5728 = vmatprep.subr.bf16.mxu0 0
        %5729 = vmatpush1.bf16.msra.mxu0 0
        %5730 = vmatprep.subr.bf16.mxu0 0
        %5731 = vmatpush1.bf16.msra.mxu0 0
        %5732 = vmatprep.subr.bf16.mxu0 0
        %5733 = vmatpush1.bf16.msra.mxu0 0
        %5734 = vmatprep.subr.bf16.mxu0 0
        %5735 = vmatpush1.bf16.msra.mxu0 0
        %5736 = vmatprep.subr.bf16.mxu0 0
        %5737 = vmatpush1.bf16.msra.mxu0 0
        %5738 = vmatprep.subr.bf16.mxu0 0
        %5739 = vmatpush1.bf16.msra.mxu0 0
        %5740 = vmatprep.subr.bf16.mxu0 0
        %5741 = vmatpush1.bf16.msra.mxu0 0
        %5742 = vmatprep.subr.bf16.mxu0 0
        %5743 = vmatpush1.bf16.msra.mxu0 0
        %5744 = vmatprep.subr.bf16.mxu0 0
        %5745 = vmatpush1.bf16.msra.mxu0 0
        %5746 = vmatprep.mubr.bf16.mxu0 0
        %5747 = vmatmul.mubr.bf16.gmra.mrb[0].mxu0 %v5712
        %v5748 = vpop.f32.mrb[0].mxu0
        %v5749 = vadd.f32 0.0, %v5748
        %v5750 = vpop.f32.mrb[0].mxu0
        %v5751 = vpop.f32.mrb[0].mxu0
        %v5752 = vadd.f32 0.0, %v5751
        %v5753 = vpop.f32.mrb[0].mxu0
        %5754 = vdwg.mxu0
        %5756 = vrot.lane.b32.xlu0 %v4883, 2
        %v5757 = vpop.permute.xlu0 %5756
        %5758 = vrot.lane.b32.xlu0 %v4884, 2
        %v5759 = vpop.permute.xlu0 %5758
        %v5760 = vsel %vm3858, %v5757, %v5759
        %v5763 = vunpack.c.l.b16 %v5695
        %v5764 = vunpack.c.l.b16 %v5696
        %v5765 = vpack.c.b16 %v5764, %v5763
        %v5768 = vsel %vm3046, %v5760, 0
        %5770 = vmatprep.subr.bf16.mxu0 0
        %5771 = vmatpush1.bf16.msra.mxu0 %v5765
        %5772 = vmatprep.subr.bf16.mxu0 0
        %5773 = vmatpush1.bf16.msra.mxu0 0
        %5774 = vmatprep.subr.bf16.mxu0 0
        %5775 = vmatpush1.bf16.msra.mxu0 0
        %5776 = vmatprep.subr.bf16.mxu0 0
        %5777 = vmatpush1.bf16.msra.mxu0 0
        %5778 = vmatprep.subr.bf16.mxu0 0
        %5779 = vmatpush1.bf16.msra.mxu0 0
        %5780 = vmatprep.subr.bf16.mxu0 0
        %5781 = vmatpush1.bf16.msra.mxu0 0
        %5782 = vmatprep.subr.bf16.mxu0 0
        %5783 = vmatpush1.bf16.msra.mxu0 0
        %5784 = vmatprep.subr.bf16.mxu0 0
        %5785 = vmatpush1.bf16.msra.mxu0 0
        %5786 = vmatprep.subr.bf16.mxu0 0
        %5787 = vmatpush1.bf16.msra.mxu0 0
        %5788 = vmatprep.subr.bf16.mxu0 0
        %5789 = vmatpush1.bf16.msra.mxu0 0
        %5790 = vmatprep.subr.bf16.mxu0 0
        %5791 = vmatpush1.bf16.msra.mxu0 0
        %5792 = vmatprep.subr.bf16.mxu0 0
        %5793 = vmatpush1.bf16.msra.mxu0 0
        %5794 = vmatprep.subr.bf16.mxu0 0
        %5795 = vmatpush1.bf16.msra.mxu0 0
        %5796 = vmatprep.subr.bf16.mxu0 0
        %5797 = vmatpush1.bf16.msra.mxu0 0
        %5798 = vmatprep.subr.bf16.mxu0 0
        %5799 = vmatpush1.bf16.msra.mxu0 0
        %5800 = vmatprep.subr.bf16.mxu0 0
        %5801 = vmatpush1.bf16.msra.mxu0 0
        %5802 = vmatprep.mubr.bf16.mxu0 0
        %5803 = vmatmul.mubr.bf16.gmra.mrb[0].mxu0 %v5768
        %v5804 = vpop.f32.mrb[0].mxu0
        %v5805 = vadd.f32 %v5749, %v5804
        %v5806 = vpop.f32.mrb[0].mxu0
        %v5807 = vpop.f32.mrb[0].mxu0
        %v5808 = vadd.f32 %v5752, %v5807
        %v5809 = vpop.f32.mrb[0].mxu0
        %5810 = vdwg.mxu0
        %5812 = vrot.lane.b32.xlu0 %v5805, 64
        %v5813 = vpop.permute.xlu0 %5812
        %5815 = vst.msk [vmem:[%s393 + $0x38] sm:$0xff] %vm3263, %v5813
        %5817 = vrot.lane.b32.xlu0 %v5808, 96
        %v5818 = vpop.permute.xlu0 %5817
        %5820 = vst.msk [vmem:[%s393 + $0x38] sm:$0xff] %vm3269, %v5818
        %s5821 = sand.u32 %s164, 1
        %s5822 = scalar_lea.sflag [#allocation6], %s5821
        %s5823 = sand.u32 %s164, 1
        %s5824 = smul.addr %s5823, 64
        %s5825 = scalar_lea.vmem [#allocation5], %s5824
        // Predicated region
        $region123: #{tpu_custom_call.1} parent=113 // pred_check
          %p5826 = pneg %p174
        $region124: #{tpu_custom_call.1} parent=113 // pred_check_branch
          %5828 = sbr.rel (%p5826) target = $region126
        $region125: #{tpu_custom_call.1} parent=113 // pred_region
          %s5829 = smul.u32 8, %s24
          %s5831 = ssub.s32 1024, 1024
          %5832 = vsyncadd %s5822, %s5831
          %s5833 = smul.addr %s23, 8
          %s5834 = sadd.s32 %s5829, %s5833
          %s5835 = smul.addr %s5834, 128
          %s5836 = scalar_lea.hbm %s5, %s5835
          %s5838 = sshll.u32 %s5825, 4
          %s5839 = int_to_ptr.vmem [resolvable:$true] %s5838
          %5841 = dma.vmem_to_hbm [thread:$0]  %s5839, 1024, %s5836, %s5822
        $region126: #{tpu_custom_call.1} parent=113 // pred_fallthru
          _
      $region114: #{tpu_custom_call.1} parent=5 // pred_fallthru
        _
      %p5842 = scmp.le.s32.totalorder 2, %s14
      // Predicated region
      $region127: #{tpu_custom_call.1} parent=5 // pred_check
        %p5843 = pneg %p5842
      $region128: #{tpu_custom_call.1} parent=5 // pred_check_branch
        %5845 = sbr.rel (%p5843) target = $region130
      $region129: #{tpu_custom_call.1} parent=5 // pred_region
        %s5846 = ssub.s32 %s14, 2
        // Predicated region
        $region131: #{tpu_custom_call.1} parent=129 // pred_check
          %p5847 = pneg %p180
        $region132: #{tpu_custom_call.1} parent=129 // pred_check_branch
          %5849 = sbr.rel (%p5847) target = $region134
        $region133: #{tpu_custom_call.1} parent=129 // pred_region
          %s5850 = sand.u32 %s165, 1
          %s5851 = scalar_lea.sflag [#allocation6], %s5850
          %s5852 = sand.u32 %s165, 1
          %s5853 = smul.addr %s5852, 64
          %s5854 = scalar_lea.vmem [#allocation5], %s5853
          %5855 = dma.done %s5851, 1024
        $region134: #{tpu_custom_call.1} parent=129 // pred_fallthru
          _
      $region130: #{tpu_custom_call.1} parent=5 // pred_fallthru
        _
    $region6: #{tpu_custom_call.1} parent=1 // loop_footer
      %s18 = sadd.s32 1, %s14
    $region7: #{tpu_custom_call.1} parent=1 // loop_footer_branch
      %13 = sbr.rel target = $region3
    $region8: #{tpu_custom_call.1} parent=1 // loop_exit
      _
    %5856 = vsyncpa [#allocation6], 1
    %s5857 = scalar_lea.sflag [#allocation6], 1
    %5858 = vsyncpa %s5857, 1

</llo_original>
